<compile_context>
chip_gen: v6e
topology: v6e:2x2x1
jax: 0.10.0
libtpu: 0.0.40
codegen_flags: <defaults>
</compile_context>

<pallas_src>
import functools

import jax
import jax.numpy as jnp
from jax.experimental import pallas as pl
from jax.experimental.pallas import tpu as pltpu


def _round_up(x, m):
    return (x + m - 1) // m * m


def _cdiv(a, b):
    return -(-a // b)


# ----------------------------- kernel 1: trunk MLP -----------------------------
def trunk_kernel(x_ref,
                 w1_ref, b1_ref,
                 w2_ref, b2_ref,
                 w3_ref, b3_ref,
                 w4_ref, b4_ref,
                 w5_ref, b5_ref,
                 h_ref):
    """Trunk MLP (Linear+ReLU x4, Linear) computed once, entirely in VMEM.

    Weights arrive in bf16; every dot accumulates in f32; bias add / ReLU in f32.
    """
    def layer(h, w_ref, b_ref, relu):
        y = jnp.dot(h.astype(jnp.bfloat16), w_ref[...],
                    preferred_element_type=jnp.float32) + b_ref[...]
        return jnp.maximum(y, 0.0) if relu else y

    h = x_ref[...].astype(jnp.float32)
    h = layer(h, w1_ref, b1_ref, True)
    h = layer(h, w2_ref, b2_ref, True)
    h = layer(h, w3_ref, b3_ref, True)
    h = layer(h, w4_ref, b4_ref, True)
    h = layer(h, w5_ref, b5_ref, False)
    h_ref[...] = h.astype(h_ref.dtype)   # bf16 for the streamed head matmul


# ------------------------ kernel 2: streamed fused heads ------------------------
def head_kernel(h_ref, w_ref, b_ref, o_ref):
    """One output-column tile of the fused head matmul: o = h @ W_tile + b_tile."""
    o_ref[...] = (jnp.dot(h_ref[...], w_ref[...], preferred_element_type=jnp.float32)
                  + b_ref[...]).astype(o_ref.dtype)


# --------------------------- one-time parameter prep ----------------------------
def _choose_head_tiling(total_p, tn_max):
    """Pick (TN, n_tiles) with TN % 128 == 0, TN <= tn_max, n_tiles >= 2 and even."""
    lanes = 128
    tn_max = max(lanes, _round_up(tn_max, lanes))
    n128 = max(1, _round_up(total_p, lanes) // lanes)     # lane-groups of useful columns
    n_tiles = max(2, _cdiv(n128, tn_max // lanes))        # >=2 so both v7x TCs get work
    if n_tiles % 2:                                       # even -> balanced megacore split
        n_tiles += 1
    tn_units = _cdiv(n128, n_tiles)
    TN = tn_units * lanes
    return TN, n_tiles, TN * n_tiles


def prepare_params(trunk_f32, wout_f32, bout_f32, tn_max=2048):
    """Cast/pad parameters ONCE, outside the jitted forward (hoisted per the review)."""
    trunk = tuple((w.astype(jnp.bfloat16), b.astype(jnp.float32).reshape(1, -1))
                  for (w, b) in trunk_f32)

    trunk_out, total_p = wout_f32.shape
    TN, n_tiles, total_p_pad = _choose_head_tiling(total_p, tn_max)

    wout_p = jnp.zeros((trunk_out, total_p_pad), jnp.bfloat16)
    wout_p = wout_p.at[:, :total_p].set(wout_f32.astype(jnp.bfloat16))
    bout_p = jnp.zeros((1, total_p_pad), jnp.float32)
    bout_p = bout_p.at[:, :total_p].set(bout_f32.reshape(1, -1).astype(jnp.float32))

    return trunk, wout_p, bout_p, total_p, TN


# ----------------------------------- forward ------------------------------------
@functools.partial(jax.jit, static_argnames=("total_p", "tn"))
def hypernetwork_forward(x, trunk_params, wout_p, bout_p, *, total_p, tn):
    """x: (B, z_size) -> (B, total_p).  Parameters must come from prepare_params()."""
    B, z = x.shape
    trunk_out, total_p_pad = wout_p.shape            # 2048, padded fused-head width
    TN = tn
    assert TN % 128 == 0 and total_p_pad % TN == 0
    n_tiles = total_p_pad // TN

    # batch padded to 8 sublanes
    B_pad = _round_up(max(B, 8), 8)
    x_pad = jnp.zeros((B_pad, z), x.dtype).at[:B, :].set(x)

    # --- trunk: single un-gridded call, all (bf16) weights whole-array in VMEM ---
    flat_trunk = []
    for (w, b) in trunk_params:
        flat_trunk += [w, b]
    vmem_spec = pl.BlockSpec(memory_space=pltpu.MemorySpace.VMEM)

    h = pl.pallas_call(
        trunk_kernel,
        out_shape=jax.ShapeDtypeStruct((B_pad, trunk_out), jnp.bfloat16),
        in_specs=[vmem_spec] * (1 + len(flat_trunk)),
        out_specs=vmem_spec,
        compiler_params=pltpu.CompilerParams(vmem_limit_bytes=48 * 1024 * 1024),
    )(x_pad, *flat_trunk)

    # --- fused heads: stream bf16 weight tiles, h resident, f32 accumulate ---
    cost = pl.CostEstimate(
        flops=2 * B_pad * trunk_out * total_p_pad,
        transcendentals=0,
        bytes_accessed=(wout_p.size * 2 + bout_p.size * 4
                        + h.size * 2 + B_pad * total_p_pad * 4),
    )

    out = pl.pallas_call(
        head_kernel,
        out_shape=jax.ShapeDtypeStruct((B_pad, total_p_pad), jnp.float32),
        grid_spec=pltpu.PrefetchScalarGridSpec(
            num_scalar_prefetch=0,
            grid=(n_tiles,),
            in_specs=[
                # h: same block every step -> stays resident in VMEM
                pl.BlockSpec((B_pad, trunk_out), lambda j: (0, 0)),
                # wout: streamed, double-buffered (2048, TN) bf16 tiles
                pl.BlockSpec((trunk_out, TN), lambda j: (0, j)),
                pl.BlockSpec((1, TN), lambda j: (0, j)),
            ],
            out_specs=pl.BlockSpec((B_pad, TN), lambda j: (0, j)),
        ),
        compiler_params=pltpu.CompilerParams(
            # 'parallel' column axis + n_tiles >= 2 (even) -> both v7x TCs stream weights
            dimension_semantics=("parallel",),
            vmem_limit_bytes=48 * 1024 * 1024,
        ),
        cost_estimate=cost,
    )(h, wout_p, bout_p)

    return out[:B, :total_p]


# ----------------------------- parameter construction ---------------------------
def _init_linear(key, fan_in, fan_out):
    kw, kb = jax.random.split(key)
    w = jax.random.normal(kw, (fan_in, fan_out), jnp.float32) * 0.05
    b = jax.random.normal(kb, (1, fan_out), jnp.float32) * 0.05
    return w, b


def build_hypernetwork_params(key, z_size, tn_in_features, layer_out_channels,
                              tn_use_bias):
    """Deterministic synthetic f32 parameters matching HyperNetwork.__init__ shapes."""
    # target-network layer parameter counts (non-AtlasNet branch)
    out_ch = [tn_in_features] + list(layer_out_channels) + [3]
    params = [(out_ch[i - 1] + int(tn_use_bias)) * out_ch[i]
              for i in range(1, len(out_ch))]

    trunk_dims = [z_size, 64, 128, 512, 1024, 2048]
    keys = jax.random.split(key, len(trunk_dims) - 1 + len(params))

    trunk = []
    for i in range(len(trunk_dims) - 1):
        trunk.append(_init_linear(keys[i], trunk_dims[i], trunk_dims[i + 1]))

    # per-head Linear(2048, p_i, bias=True); fused into a single (2048, sum p_i) weight
    head_ws, head_bs = [], []
    for j, p in enumerate(params):
        w, b = _init_linear(keys[len(trunk_dims) - 1 + j], 2048, p)
        head_ws.append(w)
        head_bs.append(b)
    wout = jnp.concatenate(head_ws, axis=1)
    bout = jnp.concatenate(head_bs, axis=1)
    return trunk, wout, bout, params


def reference_forward(x, trunk_params, wout, bout):
    """Pure-JAX f32 reference of the PyTorch forward."""
    h = x
    n = len(trunk_params)
    for i, (w, b) in enumerate(trunk_params):
        h = h @ w + b
        if i < n - 1:  # ReLU after every trunk Linear except the last (2048-dim) one
            h = jnp.maximum(h, 0.0)
    return h @ wout + bout


if __name__ == "__main__":
    # small, self-consistent config
    z_size = 32
    tn_in_features = 3
    layer_out_channels = [8, 16]   # config['model']['TN']['layer_out_channels']
    tn_use_bias = True
    batch = 2

    key = jax.random.PRNGKey(0)
    kx, kp = jax.random.split(key)

    trunk_f32, wout_f32, bout_f32, head_sizes = build_hypernetwork_params(
        kp, z_size, tn_in_features, layer_out_channels, tn_use_bias)

    # one-time prep (outside jit): bf16 trunk weights, bf16 lane-padded fused head
    trunk_bf16, wout_p, bout_p, total_p, TN = prepare_params(
        trunk_f32, wout_f32, bout_f32, tn_max=2048)

    x = jax.random.normal(kx, (batch, z_size), jnp.float32)

    out = hypernetwork_forward(x, trunk_bf16, wout_p, bout_p,
                               total_p=total_p, tn=TN)
    out = jax.block_until_ready(out)

    ref = reference_forward(x, trunk_f32, wout_f32, bout_f32)

    assert out.shape == (batch, sum(head_sizes)), (out.shape, sum(head_sizes))
    # bf16 trunk/head weights + bf16 activations (f32 accumulation) vs f32 reference.
    assert jnp.allclose(out, ref, atol=3e-2, rtol=3e-2), "mismatch vs reference"

    print("KERNEL_OK")
</pallas_src>

<mosaic_0001>
module attributes {stable_mosaic.version = 11 : i64} {
  func.func @head_kernel(%arg0: i32, %arg1: memref<8x2048xbf16, #tpu.memory_space<vmem>>, %arg2: memref<2048x128xbf16, #tpu.memory_space<vmem>>, %arg3: memref<1x128xf32, #tpu.memory_space<vmem>>, %arg4: memref<8x128xf32, #tpu.memory_space<vmem>>) attributes {dimension_semantics = [#tpu.dimension_semantics<parallel>], iteration_bounds = array<i64: 2>, scalar_prefetch = 0 : i64, scratch_operands = 0 : i64, tpu.core_type = #tpu.core_type<tc>, window_params = [{pipeline_mode = #tpu.pipeline_mode<synchronous>, transform_indices = @transform_0, window_bounds = array<i64: 8, 2048>}, {transform_indices = @transform_1, window_bounds = array<i64: 2048, 128>}, {transform_indices = @transform_2, window_bounds = array<i64: 1, 128>}, {transform_indices = @transform_3, window_bounds = array<i64: 8, 128>}]} {
    %c0 = arith.constant 0 : index
    %c0_0 = arith.constant 0 : index
    %0 = vector.load %arg1[%c0, %c0_0] : memref<8x2048xbf16, #tpu.memory_space<vmem>>, vector<8x2048xbf16>
    %c0_1 = arith.constant 0 : index
    %c0_2 = arith.constant 0 : index
    %1 = vector.load %arg2[%c0_1, %c0_2] : memref<2048x128xbf16, #tpu.memory_space<vmem>>, vector<2048x128xbf16>
    %cst = arith.constant dense<0.000000e+00> : vector<8x128xf32>
    %2 = tpu.matmul %0, %1, %cst {dimension_numbers = #tpu.dot_dimension_numbers<[1], [0], [0], [1], [0, 0, 1, 1], [], []>} : vector<8x2048xbf16>, vector<2048x128xbf16>, vector<8x128xf32> -> vector<8x128xf32>
    %c0_3 = arith.constant 0 : index
    %c0_4 = arith.constant 0 : index
    %3 = vector.load %arg3[%c0_3, %c0_4] : memref<1x128xf32, #tpu.memory_space<vmem>>, vector<1x128xf32>
    %4 = vector.broadcast %3 : vector<1x128xf32> to vector<8x128xf32>
    %5 = arith.addf %2, %4 : vector<8x128xf32>
    %c0_5 = arith.constant 0 : index
    %c0_6 = arith.constant 0 : index
    %6 = vector.load %arg4[%c0_5, %c0_6] : memref<8x128xf32, #tpu.memory_space<vmem>>, vector<8x128xf32>
    tpu.vector_store %arg4[%c0_5, %c0_6], %5 {strides = array<i32>} : memref<8x128xf32, #tpu.memory_space<vmem>>, vector<8x128xf32>,
    return
  }
  func.func @transform_0(%arg0: i32) -> (i32, i32) {
    %c0_i32 = arith.constant 0 : i32
    %c0_i32_0 = arith.constant 0 : i32
    %c0_i32_1 = arith.constant 0 : i32
    return %c0_i32, %c0_i32_0 : i32, i32
  }
  func.func @transform_1(%arg0: i32) -> (i32, i32) {
    %c0_i32 = arith.constant 0 : i32
    %c0_i32_0 = arith.constant 0 : i32
    return %c0_i32, %arg0 : i32, i32
  }
  func.func @transform_2(%arg0: i32) -> (i32, i32) {
    %c0_i32 = arith.constant 0 : i32
    %c0_i32_0 = arith.constant 0 : i32
    return %c0_i32, %arg0 : i32, i32
  }
  func.func @transform_3(%arg0: i32) -> (i32, i32) {
    %c0_i32 = arith.constant 0 : i32
    %c0_i32_0 = arith.constant 0 : i32
    return %c0_i32, %arg0 : i32, i32
  }
}

module attributes {stable_mosaic.version = 11 : i64} {
  func.func @trunk_kernel(%arg0: memref<8x32xf32, #tpu.memory_space<vmem>>, %arg1: memref<32x64xbf16, #tpu.memory_space<vmem>>, %arg2: memref<1x64xf32, #tpu.memory_space<vmem>>, %arg3: memref<64x128xbf16, #tpu.memory_space<vmem>>, %arg4: memref<1x128xf32, #tpu.memory_space<vmem>>, %arg5: memref<128x512xbf16, #tpu.memory_space<vmem>>, %arg6: memref<1x512xf32, #tpu.memory_space<vmem>>, %arg7: memref<512x1024xbf16, #tpu.memory_space<vmem>>, %arg8: memref<1x1024xf32, #tpu.memory_space<vmem>>, %arg9: memref<1024x2048xbf16, #tpu.memory_space<vmem>>, %arg10: memref<1x2048xf32, #tpu.memory_space<vmem>>, %arg11: memref<8x2048xbf16, #tpu.memory_space<vmem>>) attributes {dimension_semantics = [], scalar_prefetch = 0 : i64, scratch_operands = 0 : i64, tpu.core_type = #tpu.core_type<tc>} {
    %c0 = arith.constant 0 : index
    %c0_0 = arith.constant 0 : index
    %0 = vector.load %arg0[%c0, %c0_0] : memref<8x32xf32, #tpu.memory_space<vmem>>, vector<8x32xf32>
    %1 = arith.truncf %0 : vector<8x32xf32> to vector<8x32xbf16>
    %c0_1 = arith.constant 0 : index
    %c0_2 = arith.constant 0 : index
    %2 = vector.load %arg1[%c0_1, %c0_2] : memref<32x64xbf16, #tpu.memory_space<vmem>>, vector<32x64xbf16>
    %cst = arith.constant dense<0.000000e+00> : vector<8x64xf32>
    %3 = tpu.matmul %1, %2, %cst {dimension_numbers = #tpu.dot_dimension_numbers<[1], [0], [0], [1], [0, 0, 1, 1], [], []>} : vector<8x32xbf16>, vector<32x64xbf16>, vector<8x64xf32> -> vector<8x64xf32>
    %c0_3 = arith.constant 0 : index
    %c0_4 = arith.constant 0 : index
    %4 = vector.load %arg2[%c0_3, %c0_4] : memref<1x64xf32, #tpu.memory_space<vmem>>, vector<1x64xf32>
    %5 = vector.broadcast %4 : vector<1x64xf32> to vector<8x64xf32>
    %6 = arith.addf %3, %5 : vector<8x64xf32>
    %cst_5 = arith.constant 0.000000e+00 : f32
    %7 = vector.broadcast %cst_5 : f32 to vector<8x64xf32>
    %8 = arith.maximumf %6, %7 : vector<8x64xf32>
    %9 = arith.truncf %8 : vector<8x64xf32> to vector<8x64xbf16>
    %c0_6 = arith.constant 0 : index
    %c0_7 = arith.constant 0 : index
    %10 = vector.load %arg3[%c0_6, %c0_7] : memref<64x128xbf16, #tpu.memory_space<vmem>>, vector<64x128xbf16>
    %cst_8 = arith.constant dense<0.000000e+00> : vector<8x128xf32>
    %11 = tpu.matmul %9, %10, %cst_8 {dimension_numbers = #tpu.dot_dimension_numbers<[1], [0], [0], [1], [0, 0, 1, 1], [], []>} : vector<8x64xbf16>, vector<64x128xbf16>, vector<8x128xf32> -> vector<8x128xf32>
    %c0_9 = arith.constant 0 : index
    %c0_10 = arith.constant 0 : index
    %12 = vector.load %arg4[%c0_9, %c0_10] : memref<1x128xf32, #tpu.memory_space<vmem>>, vector<1x128xf32>
    %13 = vector.broadcast %12 : vector<1x128xf32> to vector<8x128xf32>
    %14 = arith.addf %11, %13 : vector<8x128xf32>
    %cst_11 = arith.constant 0.000000e+00 : f32
    %15 = vector.broadcast %cst_11 : f32 to vector<8x128xf32>
    %16 = arith.maximumf %14, %15 : vector<8x128xf32>
    %17 = arith.truncf %16 : vector<8x128xf32> to vector<8x128xbf16>
    %c0_12 = arith.constant 0 : index
    %c0_13 = arith.constant 0 : index
    %18 = vector.load %arg5[%c0_12, %c0_13] : memref<128x512xbf16, #tpu.memory_space<vmem>>, vector<128x512xbf16>
    %cst_14 = arith.constant dense<0.000000e+00> : vector<8x512xf32>
    %19 = tpu.matmul %17, %18, %cst_14 {dimension_numbers = #tpu.dot_dimension_numbers<[1], [0], [0], [1], [0, 0, 1, 1], [], []>} : vector<8x128xbf16>, vector<128x512xbf16>, vector<8x512xf32> -> vector<8x512xf32>
    %c0_15 = arith.constant 0 : index
    %c0_16 = arith.constant 0 : index
    %20 = vector.load %arg6[%c0_15, %c0_16] : memref<1x512xf32, #tpu.memory_space<vmem>>, vector<1x512xf32>
    %21 = vector.broadcast %20 : vector<1x512xf32> to vector<8x512xf32>
    %22 = arith.addf %19, %21 : vector<8x512xf32>
    %cst_17 = arith.constant 0.000000e+00 : f32
    %23 = vector.broadcast %cst_17 : f32 to vector<8x512xf32>
    %24 = arith.maximumf %22, %23 : vector<8x512xf32>
    %25 = arith.truncf %24 : vector<8x512xf32> to vector<8x512xbf16>
    %c0_18 = arith.constant 0 : index
    %c0_19 = arith.constant 0 : index
    %26 = vector.load %arg7[%c0_18, %c0_19] : memref<512x1024xbf16, #tpu.memory_space<vmem>>, vector<512x1024xbf16>
    %cst_20 = arith.constant dense<0.000000e+00> : vector<8x1024xf32>
    %27 = tpu.matmul %25, %26, %cst_20 {dimension_numbers = #tpu.dot_dimension_numbers<[1], [0], [0], [1], [0, 0, 1, 1], [], []>} : vector<8x512xbf16>, vector<512x1024xbf16>, vector<8x1024xf32> -> vector<8x1024xf32>
    %c0_21 = arith.constant 0 : index
    %c0_22 = arith.constant 0 : index
    %28 = vector.load %arg8[%c0_21, %c0_22] : memref<1x1024xf32, #tpu.memory_space<vmem>>, vector<1x1024xf32>
    %29 = vector.broadcast %28 : vector<1x1024xf32> to vector<8x1024xf32>
    %30 = arith.addf %27, %29 : vector<8x1024xf32>
    %cst_23 = arith.constant 0.000000e+00 : f32
    %31 = vector.broadcast %cst_23 : f32 to vector<8x1024xf32>
    %32 = arith.maximumf %30, %31 : vector<8x1024xf32>
    %33 = arith.truncf %32 : vector<8x1024xf32> to vector<8x1024xbf16>
    %c0_24 = arith.constant 0 : index
    %c0_25 = arith.constant 0 : index
    %34 = vector.load %arg9[%c0_24, %c0_25] : memref<1024x2048xbf16, #tpu.memory_space<vmem>>, vector<1024x2048xbf16>
    %cst_26 = arith.constant dense<0.000000e+00> : vector<8x2048xf32>
    %35 = tpu.matmul %33, %34, %cst_26 {dimension_numbers = #tpu.dot_dimension_numbers<[1], [0], [0], [1], [0, 0, 1, 1], [], []>} : vector<8x1024xbf16>, vector<1024x2048xbf16>, vector<8x2048xf32> -> vector<8x2048xf32>
    %c0_27 = arith.constant 0 : index
    %c0_28 = arith.constant 0 : index
    %36 = vector.load %arg10[%c0_27, %c0_28] : memref<1x2048xf32, #tpu.memory_space<vmem>>, vector<1x2048xf32>
    %37 = vector.broadcast %36 : vector<1x2048xf32> to vector<8x2048xf32>
    %38 = arith.addf %35, %37 : vector<8x2048xf32>
    %39 = arith.truncf %38 : vector<8x2048xf32> to vector<8x2048xbf16>
    %c0_29 = arith.constant 0 : index
    %c0_30 = arith.constant 0 : index
    %40 = vector.load %arg11[%c0_29, %c0_30] : memref<8x2048xbf16, #tpu.memory_space<vmem>>, vector<8x2048xbf16>
    tpu.vector_store %arg11[%c0_29, %c0_30], %39 {strides = array<i32>} : memref<8x2048xbf16, #tpu.memory_space<vmem>>, vector<8x2048xbf16>,
    return
  }
}

</mosaic_0001>

<llo_original>
// kernel: hypernetwork_forward.3
$region0: #{hypernetwork_forward.3}
  #allocation0 [shape = 'u32[]', space=smem, size = 0x4, offset = 0x4, fixed_abs, tag = 'smem constant byte address 0x4 - core index']
  #allocation1 [shape = 'u32[144,128]{1,0:T(1,128)}', space=vmem, size = 0x12000, scoped, tag = 'internal scratch']
  %s0 = inlined_call_operand.vmem [shape: bf16[8,2048], index: 0, kind: input, shape index: {}]
  %s1 = inlined_call_operand.vmem [shape: bf16[2048,256], index: 1, kind: input, shape index: {}]
  %s2 = inlined_call_operand.vmem [shape: f32[1,256], index: 2, kind: input, shape index: {}]
  %s3 = inlined_call_operand.vmem [shape: f32[8,256], index: 3, kind: output, shape index: {}]
  %s4 = sld [smem:[#allocation0]]
  $region86: #{hypernetwork_forward.3} parent=0
    _
  %s6 = ssub.s32 1, %s4
  %s7 = scalar_select 0, %s6, %s4
  $region1: #{hypernetwork_forward.3} parent=0
    #allocation2 [shape = 'u8[1048576]{0}', space=vmem, size = 0x100000, scoped, tag = 'input window, operand 1']
    loop: start=0, step=1, limit=4
    $region2: #{hypernetwork_forward.3} parent=1 // loop_pre_header
      _
    $region3: #{hypernetwork_forward.3} parent=1 // loop_header
      %s9 = sphi 0, %s13
      %p10 = scmp.ge.s32.totalorder %s9, 4
      %s17 = sphi 0, %s17
      %s19 = sphi 0, %s17
      %s20 = sphi 0, %s19
      %s34 = sphi 0, %s20
      %s40 = sphi 0, %s42
      %s43 = sphi 0, %s40
      %s44 = sphi 0, %s43
      %s60 = sphi 0, %s44
      %s66 = sphi 0, %s68
      %s69 = sphi 0, %s66
      %s70 = sphi 0, %s69
      %s86 = sphi 0, %s70
      %s92 = sphi 0, %s94
      %s95 = sphi 0, %s92
      %s96 = sphi 0, %s95
      %s112 = sphi 0, %s96
    $region4: #{hypernetwork_forward.3} parent=1 // loop_header_branch
      %12 = sbr.rel (%p10) target = $region8
    $region5: #{hypernetwork_forward.3} parent=1 // loop_body
      %s14 = ssub.s32 %s9, 1
      %s15 = ssub.s32 %s9, 2
      %s16 = sadd.s32 %s9, 1
      %s18 = sadd.s32 %s17, 1
      %p21 = scmp.eq.s32.totalorder %s9, 1
      %p22 = scmp.ne.s32.totalorder %s17, %s19
      %p23 = scmp.eq.s32.totalorder %s9, 0
      %p24 = por %p22, %p23
      %p25 = scmp.ne.s32.totalorder %s17, %s19
      %p26 = scmp.eq.s32.totalorder %s14, 1
      %p27 = por %p25, %p26
      %p28 = scmp.ne.s32.totalorder %s19, %s20
      %p29 = scmp.eq.s32.totalorder %s14, 0
      %p30 = por %p28, %p29
      %p31 = scmp.ne.s32.totalorder %s19, %s20
      %p32 = scmp.eq.s32.totalorder %s15, 1
      %p33 = por %p31, %p32
      %p35 = scmp.ne.s32.totalorder %s20, %s34
      %p36 = scmp.eq.s32.totalorder %s15, 0
      %p37 = por %p35, %p36
      %s38 = ssub.s32 %s9, %s16
      %p39 = scmp.eq.s32.totalorder %s38, 0
      %s41 = sadd.s32 %s40, 1
      %s42 = scalar_select %p39, %s40, %s41
      %p45 = pneg %p39
      %p46 = scmp.eq.s32.totalorder %s9, 1
      %p47 = por %p45, %p46
      %p48 = scmp.ne.s32.totalorder %s40, %s43
      %p49 = scmp.eq.s32.totalorder %s9, 0
      %p50 = por %p48, %p49
      %p51 = scmp.ne.s32.totalorder %s40, %s43
      %p52 = scmp.eq.s32.totalorder %s14, 1
      %p53 = por %p51, %p52
      %p54 = scmp.ne.s32.totalorder %s43, %s44
      %p55 = scmp.eq.s32.totalorder %s14, 0
      %p56 = por %p54, %p55
      %p57 = scmp.ne.s32.totalorder %s43, %s44
      %p58 = scmp.eq.s32.totalorder %s15, 1
      %p59 = por %p57, %p58
      %p61 = scmp.ne.s32.totalorder %s44, %s60
      %p62 = scmp.eq.s32.totalorder %s15, 0
      %p63 = por %p61, %p62
      %s64 = ssub.s32 %s9, %s16
      %p65 = scmp.eq.s32.totalorder %s64, 0
      %s67 = sadd.s32 %s66, 1
      %s68 = scalar_select %p65, %s66, %s67
      %p71 = pneg %p65
      %p72 = scmp.eq.s32.totalorder %s9, 1
      %p73 = por %p71, %p72
      %p74 = scmp.ne.s32.totalorder %s66, %s69
      %p75 = scmp.eq.s32.totalorder %s9, 0
      %p76 = por %p74, %p75
      %p77 = scmp.ne.s32.totalorder %s66, %s69
      %p78 = scmp.eq.s32.totalorder %s14, 1
      %p79 = por %p77, %p78
      %p80 = scmp.ne.s32.totalorder %s69, %s70
      %p81 = scmp.eq.s32.totalorder %s14, 0
      %p82 = por %p80, %p81
      %p83 = scmp.ne.s32.totalorder %s69, %s70
      %p84 = scmp.eq.s32.totalorder %s15, 1
      %p85 = por %p83, %p84
      %p87 = scmp.ne.s32.totalorder %s70, %s86
      %p88 = scmp.eq.s32.totalorder %s15, 0
      %p89 = por %p87, %p88
      %s90 = ssub.s32 %s9, %s16
      %p91 = scmp.eq.s32.totalorder %s90, 0
      %s93 = sadd.s32 %s92, 1
      %s94 = scalar_select %p91, %s92, %s93
      %p97 = pneg %p91
      %p98 = scmp.eq.s32.totalorder %s9, 1
      %p99 = por %p97, %p98
      %p100 = scmp.ne.s32.totalorder %s92, %s95
      %p101 = scmp.eq.s32.totalorder %s9, 0
      %p102 = por %p100, %p101
      %p103 = scmp.ne.s32.totalorder %s92, %s95
      %p104 = scmp.eq.s32.totalorder %s14, 1
      %p105 = por %p103, %p104
      %p106 = scmp.ne.s32.totalorder %s95, %s96
      %p107 = scmp.eq.s32.totalorder %s14, 0
      %p108 = por %p106, %p107
      %p109 = scmp.ne.s32.totalorder %s95, %s96
      %p110 = scmp.eq.s32.totalorder %s15, 1
      %p111 = por %p109, %p110
      %p113 = scmp.ne.s32.totalorder %s96, %s112
      %p114 = scmp.eq.s32.totalorder %s15, 0
      %p115 = por %p113, %p114
      %p116 = scmp.le.s32.totalorder 1, %s9
      %p117 = scmp.lt.s32.totalorder %s9, 3
      %p118 = pnand %p116, %p117
      %p119 = pneg %p118
      // Predicated region
      $region9: #{hypernetwork_forward.3} parent=5 // pred_check
        _
      $region10: #{hypernetwork_forward.3} parent=5 // pred_check_branch
        %121 = sbr.rel (%p118) target = $region12
      $region11: #{hypernetwork_forward.3} parent=5 // pred_region
        %s122 = ssub.s32 %s9, 1
        // Predicated region
        $region13: #{hypernetwork_forward.3} parent=11 // pred_check
          %p123 = pneg %p30
        $region14: #{hypernetwork_forward.3} parent=11 // pred_check_branch
          %125 = sbr.rel (%p123) target = $region16
        $region15: #{hypernetwork_forward.3} parent=11 // pred_region
          _
        $region16: #{hypernetwork_forward.3} parent=11 // pred_fallthru
          _
      $region12: #{hypernetwork_forward.3} parent=5 // pred_fallthru
        _
      %p126 = scmp.lt.s32.totalorder %s9, 2
      // Predicated region
      $region17: #{hypernetwork_forward.3} parent=5 // pred_check
        %p127 = pneg %p126
      $region18: #{hypernetwork_forward.3} parent=5 // pred_check_branch
        %129 = sbr.rel (%p127) target = $region20
      $region19: #{hypernetwork_forward.3} parent=5 // pred_region
        // Predicated region
        $region21: #{hypernetwork_forward.3} parent=19 // pred_check
          %p130 = pneg %p50
        $region22: #{hypernetwork_forward.3} parent=19 // pred_check_branch
          %132 = sbr.rel (%p130) target = $region24
        $region23: #{hypernetwork_forward.3} parent=19 // pred_region
          %s133 = sand.u32 %s40, 1
          %s134 = sand.u32 %s40, 1
          %s135 = smul.addr %s134, 1024
          %s136 = scalar_lea.vmem [#allocation2], %s135
          %s137 = smul.addr %s9, 4
          %s138 = scalar_lea.vmem %s1, %s137
          // Predicated region
          $region25: #{hypernetwork_forward.3} parent=23 // pred_check
            _
          $region26: #{hypernetwork_forward.3} parent=23 // pred_check_branch
            %140 = sbr.rel (0) target = $region28
          $region27: #{hypernetwork_forward.3} parent=23 // pred_region
            // Predicated region
            $region29: #{hypernetwork_forward.3} parent=27 // pred_check
              _
            $region30: #{hypernetwork_forward.3} parent=27 // pred_check_branch
              %142 = sbr.rel target = $region32
            $region31: #{hypernetwork_forward.3} parent=27 // pred_region
              // Predicated region
              $region44: #{hypernetwork_forward.3} parent=31 // pred_check
                _
              $region45: #{hypernetwork_forward.3} parent=31 // pred_check_branch
                %668 = sbr.rel (0) target = $region47
              $region46: #{hypernetwork_forward.3} parent=31 // pred_region
                loop: start=0, step=1, limit=1
                $region48: #{hypernetwork_forward.3} parent=46 // loop_pre_header
                  _
                $region49: #{hypernetwork_forward.3} parent=46 // loop_header
                  %s670 = sphi 0, %s674
                  %p671 = scmp.ge.s32.totalorder %s670, 1
                  %s675 = sphi %s138, %s138
                  %s676 = sphi %s136, %s136
                $region50: #{hypernetwork_forward.3} parent=46 // loop_header_branch
                  %673 = sbr.rel (%p671) target = $region54
                $region51: #{hypernetwork_forward.3} parent=46 // loop_body
                  _
                $region52: #{hypernetwork_forward.3} parent=46 // loop_footer
                  %s674 = sadd.s32 1, %s670
                $region53: #{hypernetwork_forward.3} parent=46 // loop_footer_branch
                  %669 = sbr.rel target = $region49
                $region54: #{hypernetwork_forward.3} parent=46 // loop_exit
                  _
                %s678 = ssub.s32 16, 1
                loop: start=0, step=1, limit=1
                $region55: #{hypernetwork_forward.3} parent=46 // loop_pre_header
                  _
                $region56: #{hypernetwork_forward.3} parent=46 // loop_header
                  %s680 = sphi 0, %s684
                  %p681 = scmp.ge.s32.totalorder %s680, 1
                  %s685 = sphi %s138, %s138
                  %s686 = sphi %s136, %s136
                $region57: #{hypernetwork_forward.3} parent=46 // loop_header_branch
                  %683 = sbr.rel (%p681) target = $region61
                $region58: #{hypernetwork_forward.3} parent=46 // loop_body
                  %v687 = vld [vmem:[%s685] sm:%s678]
                  %688 = vst [vmem:[%s686] sm:%s678] %v687
                  %v689 = vld [vmem:[%s685 + $0x8] sm:%s678]
                  %690 = vst [vmem:[%s686 + $0x4] sm:%s678] %v689
                  %v691 = vld [vmem:[%s685 + $0x10] sm:%s678]
                  %692 = vst [vmem:[%s686 + $0x8] sm:%s678] %v691
                  %v693 = vld [vmem:[%s685 + $0x18] sm:%s678]
                  %694 = vst [vmem:[%s686 + $0xc] sm:%s678] %v693
                  %v695 = vld [vmem:[%s685 + $0x20] sm:%s678]
                  %696 = vst [vmem:[%s686 + $0x10] sm:%s678] %v695
                  %v697 = vld [vmem:[%s685 + $0x28] sm:%s678]
                  %698 = vst [vmem:[%s686 + $0x14] sm:%s678] %v697
                  %v699 = vld [vmem:[%s685 + $0x30] sm:%s678]
                  %700 = vst [vmem:[%s686 + $0x18] sm:%s678] %v699
                  %v701 = vld [vmem:[%s685 + $0x38] sm:%s678]
                  %702 = vst [vmem:[%s686 + $0x1c] sm:%s678] %v701
                  %v703 = vld [vmem:[%s685 + $0x40] sm:%s678]
                  %704 = vst [vmem:[%s686 + $0x20] sm:%s678] %v703
                  %v705 = vld [vmem:[%s685 + $0x48] sm:%s678]
                  %706 = vst [vmem:[%s686 + $0x24] sm:%s678] %v705
                  %v707 = vld [vmem:[%s685 + $0x50] sm:%s678]
                  %708 = vst [vmem:[%s686 + $0x28] sm:%s678] %v707
                  %v709 = vld [vmem:[%s685 + $0x58] sm:%s678]
                  %710 = vst [vmem:[%s686 + $0x2c] sm:%s678] %v709
                  %v711 = vld [vmem:[%s685 + $0x60] sm:%s678]
                  %712 = vst [vmem:[%s686 + $0x30] sm:%s678] %v711
                  %v713 = vld [vmem:[%s685 + $0x68] sm:%s678]
                  %714 = vst [vmem:[%s686 + $0x34] sm:%s678] %v713
                  %v715 = vld [vmem:[%s685 + $0x70] sm:%s678]
                  %716 = vst [vmem:[%s686 + $0x38] sm:%s678] %v715
                  %v717 = vld [vmem:[%s685 + $0x78] sm:%s678]
                  %718 = vst [vmem:[%s686 + $0x3c] sm:%s678] %v717
                  %v719 = vld [vmem:[%s685 + $0x80] sm:%s678]
                  %720 = vst [vmem:[%s686 + $0x40] sm:%s678] %v719
                  %v721 = vld [vmem:[%s685 + $0x88] sm:%s678]
                  %722 = vst [vmem:[%s686 + $0x44] sm:%s678] %v721
                  %v723 = vld [vmem:[%s685 + $0x90] sm:%s678]
                  %724 = vst [vmem:[%s686 + $0x48] sm:%s678] %v723
                  %v725 = vld [vmem:[%s685 + $0x98] sm:%s678]
                  %726 = vst [vmem:[%s686 + $0x4c] sm:%s678] %v725
                  %v727 = vld [vmem:[%s685 + $0xa0] sm:%s678]
                  %728 = vst [vmem:[%s686 + $0x50] sm:%s678] %v727
                  %v729 = vld [vmem:[%s685 + $0xa8] sm:%s678]
                  %730 = vst [vmem:[%s686 + $0x54] sm:%s678] %v729
                  %v731 = vld [vmem:[%s685 + $0xb0] sm:%s678]
                  %732 = vst [vmem:[%s686 + $0x58] sm:%s678] %v731
                  %v733 = vld [vmem:[%s685 + $0xb8] sm:%s678]
                  %734 = vst [vmem:[%s686 + $0x5c] sm:%s678] %v733
                  %v735 = vld [vmem:[%s685 + $0xc0] sm:%s678]
                  %736 = vst [vmem:[%s686 + $0x60] sm:%s678] %v735
                  %v737 = vld [vmem:[%s685 + $0xc8] sm:%s678]
                  %738 = vst [vmem:[%s686 + $0x64] sm:%s678] %v737
                  %v739 = vld [vmem:[%s685 + $0xd0] sm:%s678]
                  %740 = vst [vmem:[%s686 + $0x68] sm:%s678] %v739
                  %v741 = vld [vmem:[%s685 + $0xd8] sm:%s678]
                  %742 = vst [vmem:[%s686 + $0x6c] sm:%s678] %v741
                  %v743 = vld [vmem:[%s685 + $0xe0] sm:%s678]
                  %744 = vst [vmem:[%s686 + $0x70] sm:%s678] %v743
                  %v745 = vld [vmem:[%s685 + $0xe8] sm:%s678]
                  %746 = vst [vmem:[%s686 + $0x74] sm:%s678] %v745
                  %v747 = vld [vmem:[%s685 + $0xf0] sm:%s678]
                  %748 = vst [vmem:[%s686 + $0x78] sm:%s678] %v747
                  %v749 = vld [vmem:[%s685 + $0xf8] sm:%s678]
                  %750 = vst [vmem:[%s686 + $0x7c] sm:%s678] %v749
                  %v751 = vld [vmem:[%s685 + $0x100] sm:%s678]
                  %752 = vst [vmem:[%s686 + $0x80] sm:%s678] %v751
                  %v753 = vld [vmem:[%s685 + $0x108] sm:%s678]
                  %754 = vst [vmem:[%s686 + $0x84] sm:%s678] %v753
                  %v755 = vld [vmem:[%s685 + $0x110] sm:%s678]
                  %756 = vst [vmem:[%s686 + $0x88] sm:%s678] %v755
                  %v757 = vld [vmem:[%s685 + $0x118] sm:%s678]
                  %758 = vst [vmem:[%s686 + $0x8c] sm:%s678] %v757
                  %v759 = vld [vmem:[%s685 + $0x120] sm:%s678]
                  %760 = vst [vmem:[%s686 + $0x90] sm:%s678] %v759
                  %v761 = vld [vmem:[%s685 + $0x128] sm:%s678]
                  %762 = vst [vmem:[%s686 + $0x94] sm:%s678] %v761
                  %v763 = vld [vmem:[%s685 + $0x130] sm:%s678]
                  %764 = vst [vmem:[%s686 + $0x98] sm:%s678] %v763
                  %v765 = vld [vmem:[%s685 + $0x138] sm:%s678]
                  %766 = vst [vmem:[%s686 + $0x9c] sm:%s678] %v765
                  %v767 = vld [vmem:[%s685 + $0x140] sm:%s678]
                  %768 = vst [vmem:[%s686 + $0xa0] sm:%s678] %v767
                  %v769 = vld [vmem:[%s685 + $0x148] sm:%s678]
                  %770 = vst [vmem:[%s686 + $0xa4] sm:%s678] %v769
                  %v771 = vld [vmem:[%s685 + $0x150] sm:%s678]
                  %772 = vst [vmem:[%s686 + $0xa8] sm:%s678] %v771
                  %v773 = vld [vmem:[%s685 + $0x158] sm:%s678]
                  %774 = vst [vmem:[%s686 + $0xac] sm:%s678] %v773
                  %v775 = vld [vmem:[%s685 + $0x160] sm:%s678]
                  %776 = vst [vmem:[%s686 + $0xb0] sm:%s678] %v775
                  %v777 = vld [vmem:[%s685 + $0x168] sm:%s678]
                  %778 = vst [vmem:[%s686 + $0xb4] sm:%s678] %v777
                  %v779 = vld [vmem:[%s685 + $0x170] sm:%s678]
                  %780 = vst [vmem:[%s686 + $0xb8] sm:%s678] %v779
                  %v781 = vld [vmem:[%s685 + $0x178] sm:%s678]
                  %782 = vst [vmem:[%s686 + $0xbc] sm:%s678] %v781
                  %v783 = vld [vmem:[%s685 + $0x180] sm:%s678]
                  %784 = vst [vmem:[%s686 + $0xc0] sm:%s678] %v783
                  %v785 = vld [vmem:[%s685 + $0x188] sm:%s678]
                  %786 = vst [vmem:[%s686 + $0xc4] sm:%s678] %v785
                  %v787 = vld [vmem:[%s685 + $0x190] sm:%s678]
                  %788 = vst [vmem:[%s686 + $0xc8] sm:%s678] %v787
                  %v789 = vld [vmem:[%s685 + $0x198] sm:%s678]
                  %790 = vst [vmem:[%s686 + $0xcc] sm:%s678] %v789
                  %v791 = vld [vmem:[%s685 + $0x1a0] sm:%s678]
                  %792 = vst [vmem:[%s686 + $0xd0] sm:%s678] %v791
                  %v793 = vld [vmem:[%s685 + $0x1a8] sm:%s678]
                  %794 = vst [vmem:[%s686 + $0xd4] sm:%s678] %v793
                  %v795 = vld [vmem:[%s685 + $0x1b0] sm:%s678]
                  %796 = vst [vmem:[%s686 + $0xd8] sm:%s678] %v795
                  %v797 = vld [vmem:[%s685 + $0x1b8] sm:%s678]
                  %798 = vst [vmem:[%s686 + $0xdc] sm:%s678] %v797
                  %v799 = vld [vmem:[%s685 + $0x1c0] sm:%s678]
                  %800 = vst [vmem:[%s686 + $0xe0] sm:%s678] %v799
                  %v801 = vld [vmem:[%s685 + $0x1c8] sm:%s678]
                  %802 = vst [vmem:[%s686 + $0xe4] sm:%s678] %v801
                  %v803 = vld [vmem:[%s685 + $0x1d0] sm:%s678]
                  %804 = vst [vmem:[%s686 + $0xe8] sm:%s678] %v803
                  %v805 = vld [vmem:[%s685 + $0x1d8] sm:%s678]
                  %806 = vst [vmem:[%s686 + $0xec] sm:%s678] %v805
                  %v807 = vld [vmem:[%s685 + $0x1e0] sm:%s678]
                  %808 = vst [vmem:[%s686 + $0xf0] sm:%s678] %v807
                  %v809 = vld [vmem:[%s685 + $0x1e8] sm:%s678]
                  %810 = vst [vmem:[%s686 + $0xf4] sm:%s678] %v809
                  %v811 = vld [vmem:[%s685 + $0x1f0] sm:%s678]
                  %812 = vst [vmem:[%s686 + $0xf8] sm:%s678] %v811
                  %v813 = vld [vmem:[%s685 + $0x1f8] sm:%s678]
                  %814 = vst [vmem:[%s686 + $0xfc] sm:%s678] %v813
                  %v815 = vld [vmem:[%s685 + $0x200] sm:%s678]
                  %816 = vst [vmem:[%s686 + $0x100] sm:%s678] %v815
                  %v817 = vld [vmem:[%s685 + $0x208] sm:%s678]
                  %818 = vst [vmem:[%s686 + $0x104] sm:%s678] %v817
                  %v819 = vld [vmem:[%s685 + $0x210] sm:%s678]
                  %820 = vst [vmem:[%s686 + $0x108] sm:%s678] %v819
                  %v821 = vld [vmem:[%s685 + $0x218] sm:%s678]
                  %822 = vst [vmem:[%s686 + $0x10c] sm:%s678] %v821
                  %v823 = vld [vmem:[%s685 + $0x220] sm:%s678]
                  %824 = vst [vmem:[%s686 + $0x110] sm:%s678] %v823
                  %v825 = vld [vmem:[%s685 + $0x228] sm:%s678]
                  %826 = vst [vmem:[%s686 + $0x114] sm:%s678] %v825
                  %v827 = vld [vmem:[%s685 + $0x230] sm:%s678]
                  %828 = vst [vmem:[%s686 + $0x118] sm:%s678] %v827
                  %v829 = vld [vmem:[%s685 + $0x238] sm:%s678]
                  %830 = vst [vmem:[%s686 + $0x11c] sm:%s678] %v829
                  %v831 = vld [vmem:[%s685 + $0x240] sm:%s678]
                  %832 = vst [vmem:[%s686 + $0x120] sm:%s678] %v831
                  %v833 = vld [vmem:[%s685 + $0x248] sm:%s678]
                  %834 = vst [vmem:[%s686 + $0x124] sm:%s678] %v833
                  %v835 = vld [vmem:[%s685 + $0x250] sm:%s678]
                  %836 = vst [vmem:[%s686 + $0x128] sm:%s678] %v835
                  %v837 = vld [vmem:[%s685 + $0x258] sm:%s678]
                  %838 = vst [vmem:[%s686 + $0x12c] sm:%s678] %v837
                  %v839 = vld [vmem:[%s685 + $0x260] sm:%s678]
                  %840 = vst [vmem:[%s686 + $0x130] sm:%s678] %v839
                  %v841 = vld [vmem:[%s685 + $0x268] sm:%s678]
                  %842 = vst [vmem:[%s686 + $0x134] sm:%s678] %v841
                  %v843 = vld [vmem:[%s685 + $0x270] sm:%s678]
                  %844 = vst [vmem:[%s686 + $0x138] sm:%s678] %v843
                  %v845 = vld [vmem:[%s685 + $0x278] sm:%s678]
                  %846 = vst [vmem:[%s686 + $0x13c] sm:%s678] %v845
                  %v847 = vld [vmem:[%s685 + $0x280] sm:%s678]
                  %848 = vst [vmem:[%s686 + $0x140] sm:%s678] %v847
                  %v849 = vld [vmem:[%s685 + $0x288] sm:%s678]
                  %850 = vst [vmem:[%s686 + $0x144] sm:%s678] %v849
                  %v851 = vld [vmem:[%s685 + $0x290] sm:%s678]
                  %852 = vst [vmem:[%s686 + $0x148] sm:%s678] %v851
                  %v853 = vld [vmem:[%s685 + $0x298] sm:%s678]
                  %854 = vst [vmem:[%s686 + $0x14c] sm:%s678] %v853
                  %v855 = vld [vmem:[%s685 + $0x2a0] sm:%s678]
                  %856 = vst [vmem:[%s686 + $0x150] sm:%s678] %v855
                  %v857 = vld [vmem:[%s685 + $0x2a8] sm:%s678]
                  %858 = vst [vmem:[%s686 + $0x154] sm:%s678] %v857
                  %v859 = vld [vmem:[%s685 + $0x2b0] sm:%s678]
                  %860 = vst [vmem:[%s686 + $0x158] sm:%s678] %v859
                  %v861 = vld [vmem:[%s685 + $0x2b8] sm:%s678]
                  %862 = vst [vmem:[%s686 + $0x15c] sm:%s678] %v861
                  %v863 = vld [vmem:[%s685 + $0x2c0] sm:%s678]
                  %864 = vst [vmem:[%s686 + $0x160] sm:%s678] %v863
                  %v865 = vld [vmem:[%s685 + $0x2c8] sm:%s678]
                  %866 = vst [vmem:[%s686 + $0x164] sm:%s678] %v865
                  %v867 = vld [vmem:[%s685 + $0x2d0] sm:%s678]
                  %868 = vst [vmem:[%s686 + $0x168] sm:%s678] %v867
                  %v869 = vld [vmem:[%s685 + $0x2d8] sm:%s678]
                  %870 = vst [vmem:[%s686 + $0x16c] sm:%s678] %v869
                  %v871 = vld [vmem:[%s685 + $0x2e0] sm:%s678]
                  %872 = vst [vmem:[%s686 + $0x170] sm:%s678] %v871
                  %v873 = vld [vmem:[%s685 + $0x2e8] sm:%s678]
                  %874 = vst [vmem:[%s686 + $0x174] sm:%s678] %v873
                  %v875 = vld [vmem:[%s685 + $0x2f0] sm:%s678]
                  %876 = vst [vmem:[%s686 + $0x178] sm:%s678] %v875
                  %v877 = vld [vmem:[%s685 + $0x2f8] sm:%s678]
                  %878 = vst [vmem:[%s686 + $0x17c] sm:%s678] %v877
                  %v879 = vld [vmem:[%s685 + $0x300] sm:%s678]
                  %880 = vst [vmem:[%s686 + $0x180] sm:%s678] %v879
                  %v881 = vld [vmem:[%s685 + $0x308] sm:%s678]
                  %882 = vst [vmem:[%s686 + $0x184] sm:%s678] %v881
                  %v883 = vld [vmem:[%s685 + $0x310] sm:%s678]
                  %884 = vst [vmem:[%s686 + $0x188] sm:%s678] %v883
                  %v885 = vld [vmem:[%s685 + $0x318] sm:%s678]
                  %886 = vst [vmem:[%s686 + $0x18c] sm:%s678] %v885
                  %v887 = vld [vmem:[%s685 + $0x320] sm:%s678]
                  %888 = vst [vmem:[%s686 + $0x190] sm:%s678] %v887
                  %v889 = vld [vmem:[%s685 + $0x328] sm:%s678]
                  %890 = vst [vmem:[%s686 + $0x194] sm:%s678] %v889
                  %v891 = vld [vmem:[%s685 + $0x330] sm:%s678]
                  %892 = vst [vmem:[%s686 + $0x198] sm:%s678] %v891
                  %v893 = vld [vmem:[%s685 + $0x338] sm:%s678]
                  %894 = vst [vmem:[%s686 + $0x19c] sm:%s678] %v893
                  %v895 = vld [vmem:[%s685 + $0x340] sm:%s678]
                  %896 = vst [vmem:[%s686 + $0x1a0] sm:%s678] %v895
                  %v897 = vld [vmem:[%s685 + $0x348] sm:%s678]
                  %898 = vst [vmem:[%s686 + $0x1a4] sm:%s678] %v897
                  %v899 = vld [vmem:[%s685 + $0x350] sm:%s678]
                  %900 = vst [vmem:[%s686 + $0x1a8] sm:%s678] %v899
                  %v901 = vld [vmem:[%s685 + $0x358] sm:%s678]
                  %902 = vst [vmem:[%s686 + $0x1ac] sm:%s678] %v901
                  %v903 = vld [vmem:[%s685 + $0x360] sm:%s678]
                  %904 = vst [vmem:[%s686 + $0x1b0] sm:%s678] %v903
                  %v905 = vld [vmem:[%s685 + $0x368] sm:%s678]
                  %906 = vst [vmem:[%s686 + $0x1b4] sm:%s678] %v905
                  %v907 = vld [vmem:[%s685 + $0x370] sm:%s678]
                  %908 = vst [vmem:[%s686 + $0x1b8] sm:%s678] %v907
                  %v909 = vld [vmem:[%s685 + $0x378] sm:%s678]
                  %910 = vst [vmem:[%s686 + $0x1bc] sm:%s678] %v909
                  %v911 = vld [vmem:[%s685 + $0x380] sm:%s678]
                  %912 = vst [vmem:[%s686 + $0x1c0] sm:%s678] %v911
                  %v913 = vld [vmem:[%s685 + $0x388] sm:%s678]
                  %914 = vst [vmem:[%s686 + $0x1c4] sm:%s678] %v913
                  %v915 = vld [vmem:[%s685 + $0x390] sm:%s678]
                  %916 = vst [vmem:[%s686 + $0x1c8] sm:%s678] %v915
                  %v917 = vld [vmem:[%s685 + $0x398] sm:%s678]
                  %918 = vst [vmem:[%s686 + $0x1cc] sm:%s678] %v917
                  %v919 = vld [vmem:[%s685 + $0x3a0] sm:%s678]
                  %920 = vst [vmem:[%s686 + $0x1d0] sm:%s678] %v919
                  %v921 = vld [vmem:[%s685 + $0x3a8] sm:%s678]
                  %922 = vst [vmem:[%s686 + $0x1d4] sm:%s678] %v921
                  %v923 = vld [vmem:[%s685 + $0x3b0] sm:%s678]
                  %924 = vst [vmem:[%s686 + $0x1d8] sm:%s678] %v923
                  %v925 = vld [vmem:[%s685 + $0x3b8] sm:%s678]
                  %926 = vst [vmem:[%s686 + $0x1dc] sm:%s678] %v925
                  %v927 = vld [vmem:[%s685 + $0x3c0] sm:%s678]
                  %928 = vst [vmem:[%s686 + $0x1e0] sm:%s678] %v927
                  %v929 = vld [vmem:[%s685 + $0x3c8] sm:%s678]
                  %930 = vst [vmem:[%s686 + $0x1e4] sm:%s678] %v929
                  %v931 = vld [vmem:[%s685 + $0x3d0] sm:%s678]
                  %932 = vst [vmem:[%s686 + $0x1e8] sm:%s678] %v931
                  %v933 = vld [vmem:[%s685 + $0x3d8] sm:%s678]
                  %934 = vst [vmem:[%s686 + $0x1ec] sm:%s678] %v933
                  %v935 = vld [vmem:[%s685 + $0x3e0] sm:%s678]
                  %936 = vst [vmem:[%s686 + $0x1f0] sm:%s678] %v935
                  %v937 = vld [vmem:[%s685 + $0x3e8] sm:%s678]
                  %938 = vst [vmem:[%s686 + $0x1f4] sm:%s678] %v937
                  %v939 = vld [vmem:[%s685 + $0x3f0] sm:%s678]
                  %940 = vst [vmem:[%s686 + $0x1f8] sm:%s678] %v939
                  %v941 = vld [vmem:[%s685 + $0x3f8] sm:%s678]
                  %942 = vst [vmem:[%s686 + $0x1fc] sm:%s678] %v941
                  %v943 = vld [vmem:[%s685 + $0x400] sm:%s678]
                  %944 = vst [vmem:[%s686 + $0x200] sm:%s678] %v943
                  %v945 = vld [vmem:[%s685 + $0x408] sm:%s678]
                  %946 = vst [vmem:[%s686 + $0x204] sm:%s678] %v945
                  %v947 = vld [vmem:[%s685 + $0x410] sm:%s678]
                  %948 = vst [vmem:[%s686 + $0x208] sm:%s678] %v947
                  %v949 = vld [vmem:[%s685 + $0x418] sm:%s678]
                  %950 = vst [vmem:[%s686 + $0x20c] sm:%s678] %v949
                  %v951 = vld [vmem:[%s685 + $0x420] sm:%s678]
                  %952 = vst [vmem:[%s686 + $0x210] sm:%s678] %v951
                  %v953 = vld [vmem:[%s685 + $0x428] sm:%s678]
                  %954 = vst [vmem:[%s686 + $0x214] sm:%s678] %v953
                  %v955 = vld [vmem:[%s685 + $0x430] sm:%s678]
                  %956 = vst [vmem:[%s686 + $0x218] sm:%s678] %v955
                  %v957 = vld [vmem:[%s685 + $0x438] sm:%s678]
                  %958 = vst [vmem:[%s686 + $0x21c] sm:%s678] %v957
                  %v959 = vld [vmem:[%s685 + $0x440] sm:%s678]
                  %960 = vst [vmem:[%s686 + $0x220] sm:%s678] %v959
                  %v961 = vld [vmem:[%s685 + $0x448] sm:%s678]
                  %962 = vst [vmem:[%s686 + $0x224] sm:%s678] %v961
                  %v963 = vld [vmem:[%s685 + $0x450] sm:%s678]
                  %964 = vst [vmem:[%s686 + $0x228] sm:%s678] %v963
                  %v965 = vld [vmem:[%s685 + $0x458] sm:%s678]
                  %966 = vst [vmem:[%s686 + $0x22c] sm:%s678] %v965
                  %v967 = vld [vmem:[%s685 + $0x460] sm:%s678]
                  %968 = vst [vmem:[%s686 + $0x230] sm:%s678] %v967
                  %v969 = vld [vmem:[%s685 + $0x468] sm:%s678]
                  %970 = vst [vmem:[%s686 + $0x234] sm:%s678] %v969
                  %v971 = vld [vmem:[%s685 + $0x470] sm:%s678]
                  %972 = vst [vmem:[%s686 + $0x238] sm:%s678] %v971
                  %v973 = vld [vmem:[%s685 + $0x478] sm:%s678]
                  %974 = vst [vmem:[%s686 + $0x23c] sm:%s678] %v973
                  %v975 = vld [vmem:[%s685 + $0x480] sm:%s678]
                  %976 = vst [vmem:[%s686 + $0x240] sm:%s678] %v975
                  %v977 = vld [vmem:[%s685 + $0x488] sm:%s678]
                  %978 = vst [vmem:[%s686 + $0x244] sm:%s678] %v977
                  %v979 = vld [vmem:[%s685 + $0x490] sm:%s678]
                  %980 = vst [vmem:[%s686 + $0x248] sm:%s678] %v979
                  %v981 = vld [vmem:[%s685 + $0x498] sm:%s678]
                  %982 = vst [vmem:[%s686 + $0x24c] sm:%s678] %v981
                  %v983 = vld [vmem:[%s685 + $0x4a0] sm:%s678]
                  %984 = vst [vmem:[%s686 + $0x250] sm:%s678] %v983
                  %v985 = vld [vmem:[%s685 + $0x4a8] sm:%s678]
                  %986 = vst [vmem:[%s686 + $0x254] sm:%s678] %v985
                  %v987 = vld [vmem:[%s685 + $0x4b0] sm:%s678]
                  %988 = vst [vmem:[%s686 + $0x258] sm:%s678] %v987
                  %v989 = vld [vmem:[%s685 + $0x4b8] sm:%s678]
                  %990 = vst [vmem:[%s686 + $0x25c] sm:%s678] %v989
                  %v991 = vld [vmem:[%s685 + $0x4c0] sm:%s678]
                  %992 = vst [vmem:[%s686 + $0x260] sm:%s678] %v991
                  %v993 = vld [vmem:[%s685 + $0x4c8] sm:%s678]
                  %994 = vst [vmem:[%s686 + $0x264] sm:%s678] %v993
                  %v995 = vld [vmem:[%s685 + $0x4d0] sm:%s678]
                  %996 = vst [vmem:[%s686 + $0x268] sm:%s678] %v995
                  %v997 = vld [vmem:[%s685 + $0x4d8] sm:%s678]
                  %998 = vst [vmem:[%s686 + $0x26c] sm:%s678] %v997
                  %v999 = vld [vmem:[%s685 + $0x4e0] sm:%s678]
                  %1000 = vst [vmem:[%s686 + $0x270] sm:%s678] %v999
                  %v1001 = vld [vmem:[%s685 + $0x4e8] sm:%s678]
                  %1002 = vst [vmem:[%s686 + $0x274] sm:%s678] %v1001
                  %v1003 = vld [vmem:[%s685 + $0x4f0] sm:%s678]
                  %1004 = vst [vmem:[%s686 + $0x278] sm:%s678] %v1003
                  %v1005 = vld [vmem:[%s685 + $0x4f8] sm:%s678]
                  %1006 = vst [vmem:[%s686 + $0x27c] sm:%s678] %v1005
                  %v1007 = vld [vmem:[%s685 + $0x500] sm:%s678]
                  %1008 = vst [vmem:[%s686 + $0x280] sm:%s678] %v1007
                  %v1009 = vld [vmem:[%s685 + $0x508] sm:%s678]
                  %1010 = vst [vmem:[%s686 + $0x284] sm:%s678] %v1009
                  %v1011 = vld [vmem:[%s685 + $0x510] sm:%s678]
                  %1012 = vst [vmem:[%s686 + $0x288] sm:%s678] %v1011
                  %v1013 = vld [vmem:[%s685 + $0x518] sm:%s678]
                  %1014 = vst [vmem:[%s686 + $0x28c] sm:%s678] %v1013
                  %v1015 = vld [vmem:[%s685 + $0x520] sm:%s678]
                  %1016 = vst [vmem:[%s686 + $0x290] sm:%s678] %v1015
                  %v1017 = vld [vmem:[%s685 + $0x528] sm:%s678]
                  %1018 = vst [vmem:[%s686 + $0x294] sm:%s678] %v1017
                  %v1019 = vld [vmem:[%s685 + $0x530] sm:%s678]
                  %1020 = vst [vmem:[%s686 + $0x298] sm:%s678] %v1019
                  %v1021 = vld [vmem:[%s685 + $0x538] sm:%s678]
                  %1022 = vst [vmem:[%s686 + $0x29c] sm:%s678] %v1021
                  %v1023 = vld [vmem:[%s685 + $0x540] sm:%s678]
                  %1024 = vst [vmem:[%s686 + $0x2a0] sm:%s678] %v1023
                  %v1025 = vld [vmem:[%s685 + $0x548] sm:%s678]
                  %1026 = vst [vmem:[%s686 + $0x2a4] sm:%s678] %v1025
                  %v1027 = vld [vmem:[%s685 + $0x550] sm:%s678]
                  %1028 = vst [vmem:[%s686 + $0x2a8] sm:%s678] %v1027
                  %v1029 = vld [vmem:[%s685 + $0x558] sm:%s678]
                  %1030 = vst [vmem:[%s686 + $0x2ac] sm:%s678] %v1029
                  %v1031 = vld [vmem:[%s685 + $0x560] sm:%s678]
                  %1032 = vst [vmem:[%s686 + $0x2b0] sm:%s678] %v1031
                  %v1033 = vld [vmem:[%s685 + $0x568] sm:%s678]
                  %1034 = vst [vmem:[%s686 + $0x2b4] sm:%s678] %v1033
                  %v1035 = vld [vmem:[%s685 + $0x570] sm:%s678]
                  %1036 = vst [vmem:[%s686 + $0x2b8] sm:%s678] %v1035
                  %v1037 = vld [vmem:[%s685 + $0x578] sm:%s678]
                  %1038 = vst [vmem:[%s686 + $0x2bc] sm:%s678] %v1037
                  %v1039 = vld [vmem:[%s685 + $0x580] sm:%s678]
                  %1040 = vst [vmem:[%s686 + $0x2c0] sm:%s678] %v1039
                  %v1041 = vld [vmem:[%s685 + $0x588] sm:%s678]
                  %1042 = vst [vmem:[%s686 + $0x2c4] sm:%s678] %v1041
                  %v1043 = vld [vmem:[%s685 + $0x590] sm:%s678]
                  %1044 = vst [vmem:[%s686 + $0x2c8] sm:%s678] %v1043
                  %v1045 = vld [vmem:[%s685 + $0x598] sm:%s678]
                  %1046 = vst [vmem:[%s686 + $0x2cc] sm:%s678] %v1045
                  %v1047 = vld [vmem:[%s685 + $0x5a0] sm:%s678]
                  %1048 = vst [vmem:[%s686 + $0x2d0] sm:%s678] %v1047
                  %v1049 = vld [vmem:[%s685 + $0x5a8] sm:%s678]
                  %1050 = vst [vmem:[%s686 + $0x2d4] sm:%s678] %v1049
                  %v1051 = vld [vmem:[%s685 + $0x5b0] sm:%s678]
                  %1052 = vst [vmem:[%s686 + $0x2d8] sm:%s678] %v1051
                  %v1053 = vld [vmem:[%s685 + $0x5b8] sm:%s678]
                  %1054 = vst [vmem:[%s686 + $0x2dc] sm:%s678] %v1053
                  %v1055 = vld [vmem:[%s685 + $0x5c0] sm:%s678]
                  %1056 = vst [vmem:[%s686 + $0x2e0] sm:%s678] %v1055
                  %v1057 = vld [vmem:[%s685 + $0x5c8] sm:%s678]
                  %1058 = vst [vmem:[%s686 + $0x2e4] sm:%s678] %v1057
                  %v1059 = vld [vmem:[%s685 + $0x5d0] sm:%s678]
                  %1060 = vst [vmem:[%s686 + $0x2e8] sm:%s678] %v1059
                  %v1061 = vld [vmem:[%s685 + $0x5d8] sm:%s678]
                  %1062 = vst [vmem:[%s686 + $0x2ec] sm:%s678] %v1061
                  %v1063 = vld [vmem:[%s685 + $0x5e0] sm:%s678]
                  %1064 = vst [vmem:[%s686 + $0x2f0] sm:%s678] %v1063
                  %v1065 = vld [vmem:[%s685 + $0x5e8] sm:%s678]
                  %1066 = vst [vmem:[%s686 + $0x2f4] sm:%s678] %v1065
                  %v1067 = vld [vmem:[%s685 + $0x5f0] sm:%s678]
                  %1068 = vst [vmem:[%s686 + $0x2f8] sm:%s678] %v1067
                  %v1069 = vld [vmem:[%s685 + $0x5f8] sm:%s678]
                  %1070 = vst [vmem:[%s686 + $0x2fc] sm:%s678] %v1069
                  %v1071 = vld [vmem:[%s685 + $0x600] sm:%s678]
                  %1072 = vst [vmem:[%s686 + $0x300] sm:%s678] %v1071
                  %v1073 = vld [vmem:[%s685 + $0x608] sm:%s678]
                  %1074 = vst [vmem:[%s686 + $0x304] sm:%s678] %v1073
                  %v1075 = vld [vmem:[%s685 + $0x610] sm:%s678]
                  %1076 = vst [vmem:[%s686 + $0x308] sm:%s678] %v1075
                  %v1077 = vld [vmem:[%s685 + $0x618] sm:%s678]
                  %1078 = vst [vmem:[%s686 + $0x30c] sm:%s678] %v1077
                  %v1079 = vld [vmem:[%s685 + $0x620] sm:%s678]
                  %1080 = vst [vmem:[%s686 + $0x310] sm:%s678] %v1079
                  %v1081 = vld [vmem:[%s685 + $0x628] sm:%s678]
                  %1082 = vst [vmem:[%s686 + $0x314] sm:%s678] %v1081
                  %v1083 = vld [vmem:[%s685 + $0x630] sm:%s678]
                  %1084 = vst [vmem:[%s686 + $0x318] sm:%s678] %v1083
                  %v1085 = vld [vmem:[%s685 + $0x638] sm:%s678]
                  %1086 = vst [vmem:[%s686 + $0x31c] sm:%s678] %v1085
                  %v1087 = vld [vmem:[%s685 + $0x640] sm:%s678]
                  %1088 = vst [vmem:[%s686 + $0x320] sm:%s678] %v1087
                  %v1089 = vld [vmem:[%s685 + $0x648] sm:%s678]
                  %1090 = vst [vmem:[%s686 + $0x324] sm:%s678] %v1089
                  %v1091 = vld [vmem:[%s685 + $0x650] sm:%s678]
                  %1092 = vst [vmem:[%s686 + $0x328] sm:%s678] %v1091
                  %v1093 = vld [vmem:[%s685 + $0x658] sm:%s678]
                  %1094 = vst [vmem:[%s686 + $0x32c] sm:%s678] %v1093
                  %v1095 = vld [vmem:[%s685 + $0x660] sm:%s678]
                  %1096 = vst [vmem:[%s686 + $0x330] sm:%s678] %v1095
                  %v1097 = vld [vmem:[%s685 + $0x668] sm:%s678]
                  %1098 = vst [vmem:[%s686 + $0x334] sm:%s678] %v1097
                  %v1099 = vld [vmem:[%s685 + $0x670] sm:%s678]
                  %1100 = vst [vmem:[%s686 + $0x338] sm:%s678] %v1099
                  %v1101 = vld [vmem:[%s685 + $0x678] sm:%s678]
                  %1102 = vst [vmem:[%s686 + $0x33c] sm:%s678] %v1101
                  %v1103 = vld [vmem:[%s685 + $0x680] sm:%s678]
                  %1104 = vst [vmem:[%s686 + $0x340] sm:%s678] %v1103
                  %v1105 = vld [vmem:[%s685 + $0x688] sm:%s678]
                  %1106 = vst [vmem:[%s686 + $0x344] sm:%s678] %v1105
                  %v1107 = vld [vmem:[%s685 + $0x690] sm:%s678]
                  %1108 = vst [vmem:[%s686 + $0x348] sm:%s678] %v1107
                  %v1109 = vld [vmem:[%s685 + $0x698] sm:%s678]
                  %1110 = vst [vmem:[%s686 + $0x34c] sm:%s678] %v1109
                  %v1111 = vld [vmem:[%s685 + $0x6a0] sm:%s678]
                  %1112 = vst [vmem:[%s686 + $0x350] sm:%s678] %v1111
                  %v1113 = vld [vmem:[%s685 + $0x6a8] sm:%s678]
                  %1114 = vst [vmem:[%s686 + $0x354] sm:%s678] %v1113
                  %v1115 = vld [vmem:[%s685 + $0x6b0] sm:%s678]
                  %1116 = vst [vmem:[%s686 + $0x358] sm:%s678] %v1115
                  %v1117 = vld [vmem:[%s685 + $0x6b8] sm:%s678]
                  %1118 = vst [vmem:[%s686 + $0x35c] sm:%s678] %v1117
                  %v1119 = vld [vmem:[%s685 + $0x6c0] sm:%s678]
                  %1120 = vst [vmem:[%s686 + $0x360] sm:%s678] %v1119
                  %v1121 = vld [vmem:[%s685 + $0x6c8] sm:%s678]
                  %1122 = vst [vmem:[%s686 + $0x364] sm:%s678] %v1121
                  %v1123 = vld [vmem:[%s685 + $0x6d0] sm:%s678]
                  %1124 = vst [vmem:[%s686 + $0x368] sm:%s678] %v1123
                  %v1125 = vld [vmem:[%s685 + $0x6d8] sm:%s678]
                  %1126 = vst [vmem:[%s686 + $0x36c] sm:%s678] %v1125
                  %v1127 = vld [vmem:[%s685 + $0x6e0] sm:%s678]
                  %1128 = vst [vmem:[%s686 + $0x370] sm:%s678] %v1127
                  %v1129 = vld [vmem:[%s685 + $0x6e8] sm:%s678]
                  %1130 = vst [vmem:[%s686 + $0x374] sm:%s678] %v1129
                  %v1131 = vld [vmem:[%s685 + $0x6f0] sm:%s678]
                  %1132 = vst [vmem:[%s686 + $0x378] sm:%s678] %v1131
                  %v1133 = vld [vmem:[%s685 + $0x6f8] sm:%s678]
                  %1134 = vst [vmem:[%s686 + $0x37c] sm:%s678] %v1133
                  %v1135 = vld [vmem:[%s685 + $0x700] sm:%s678]
                  %1136 = vst [vmem:[%s686 + $0x380] sm:%s678] %v1135
                  %v1137 = vld [vmem:[%s685 + $0x708] sm:%s678]
                  %1138 = vst [vmem:[%s686 + $0x384] sm:%s678] %v1137
                  %v1139 = vld [vmem:[%s685 + $0x710] sm:%s678]
                  %1140 = vst [vmem:[%s686 + $0x388] sm:%s678] %v1139
                  %v1141 = vld [vmem:[%s685 + $0x718] sm:%s678]
                  %1142 = vst [vmem:[%s686 + $0x38c] sm:%s678] %v1141
                  %v1143 = vld [vmem:[%s685 + $0x720] sm:%s678]
                  %1144 = vst [vmem:[%s686 + $0x390] sm:%s678] %v1143
                  %v1145 = vld [vmem:[%s685 + $0x728] sm:%s678]
                  %1146 = vst [vmem:[%s686 + $0x394] sm:%s678] %v1145
                  %v1147 = vld [vmem:[%s685 + $0x730] sm:%s678]
                  %1148 = vst [vmem:[%s686 + $0x398] sm:%s678] %v1147
                  %v1149 = vld [vmem:[%s685 + $0x738] sm:%s678]
                  %1150 = vst [vmem:[%s686 + $0x39c] sm:%s678] %v1149
                  %v1151 = vld [vmem:[%s685 + $0x740] sm:%s678]
                  %1152 = vst [vmem:[%s686 + $0x3a0] sm:%s678] %v1151
                  %v1153 = vld [vmem:[%s685 + $0x748] sm:%s678]
                  %1154 = vst [vmem:[%s686 + $0x3a4] sm:%s678] %v1153
                  %v1155 = vld [vmem:[%s685 + $0x750] sm:%s678]
                  %1156 = vst [vmem:[%s686 + $0x3a8] sm:%s678] %v1155
                  %v1157 = vld [vmem:[%s685 + $0x758] sm:%s678]
                  %1158 = vst [vmem:[%s686 + $0x3ac] sm:%s678] %v1157
                  %v1159 = vld [vmem:[%s685 + $0x760] sm:%s678]
                  %1160 = vst [vmem:[%s686 + $0x3b0] sm:%s678] %v1159
                  %v1161 = vld [vmem:[%s685 + $0x768] sm:%s678]
                  %1162 = vst [vmem:[%s686 + $0x3b4] sm:%s678] %v1161
                  %v1163 = vld [vmem:[%s685 + $0x770] sm:%s678]
                  %1164 = vst [vmem:[%s686 + $0x3b8] sm:%s678] %v1163
                  %v1165 = vld [vmem:[%s685 + $0x778] sm:%s678]
                  %1166 = vst [vmem:[%s686 + $0x3bc] sm:%s678] %v1165
                  %v1167 = vld [vmem:[%s685 + $0x780] sm:%s678]
                  %1168 = vst [vmem:[%s686 + $0x3c0] sm:%s678] %v1167
                  %v1169 = vld [vmem:[%s685 + $0x788] sm:%s678]
                  %1170 = vst [vmem:[%s686 + $0x3c4] sm:%s678] %v1169
                  %v1171 = vld [vmem:[%s685 + $0x790] sm:%s678]
                  %1172 = vst [vmem:[%s686 + $0x3c8] sm:%s678] %v1171
                  %v1173 = vld [vmem:[%s685 + $0x798] sm:%s678]
                  %1174 = vst [vmem:[%s686 + $0x3cc] sm:%s678] %v1173
                  %v1175 = vld [vmem:[%s685 + $0x7a0] sm:%s678]
                  %1176 = vst [vmem:[%s686 + $0x3d0] sm:%s678] %v1175
                  %v1177 = vld [vmem:[%s685 + $0x7a8] sm:%s678]
                  %1178 = vst [vmem:[%s686 + $0x3d4] sm:%s678] %v1177
                  %v1179 = vld [vmem:[%s685 + $0x7b0] sm:%s678]
                  %1180 = vst [vmem:[%s686 + $0x3d8] sm:%s678] %v1179
                  %v1181 = vld [vmem:[%s685 + $0x7b8] sm:%s678]
                  %1182 = vst [vmem:[%s686 + $0x3dc] sm:%s678] %v1181
                  %v1183 = vld [vmem:[%s685 + $0x7c0] sm:%s678]
                  %1184 = vst [vmem:[%s686 + $0x3e0] sm:%s678] %v1183
                  %v1185 = vld [vmem:[%s685 + $0x7c8] sm:%s678]
                  %1186 = vst [vmem:[%s686 + $0x3e4] sm:%s678] %v1185
                  %v1187 = vld [vmem:[%s685 + $0x7d0] sm:%s678]
                  %1188 = vst [vmem:[%s686 + $0x3e8] sm:%s678] %v1187
                  %v1189 = vld [vmem:[%s685 + $0x7d8] sm:%s678]
                  %1190 = vst [vmem:[%s686 + $0x3ec] sm:%s678] %v1189
                  %v1191 = vld [vmem:[%s685 + $0x7e0] sm:%s678]
                  %1192 = vst [vmem:[%s686 + $0x3f0] sm:%s678] %v1191
                  %v1193 = vld [vmem:[%s685 + $0x7e8] sm:%s678]
                  %1194 = vst [vmem:[%s686 + $0x3f4] sm:%s678] %v1193
                  %v1195 = vld [vmem:[%s685 + $0x7f0] sm:%s678]
                  %1196 = vst [vmem:[%s686 + $0x3f8] sm:%s678] %v1195
                  %v1197 = vld [vmem:[%s685 + $0x7f8] sm:%s678]
                  %1198 = vst [vmem:[%s686 + $0x3fc] sm:%s678] %v1197
                $region59: #{hypernetwork_forward.3} parent=46 // loop_footer
                  %s684 = sadd.s32 1, %s680
                $region60: #{hypernetwork_forward.3} parent=46 // loop_footer_branch
                  %679 = sbr.rel target = $region56
                $region61: #{hypernetwork_forward.3} parent=46 // loop_exit
                  _
              $region47: #{hypernetwork_forward.3} parent=31 // pred_fallthru
                _
            $region32: #{hypernetwork_forward.3} parent=27 // pred_fallthru
              _
            // Predicated region
            $region33: #{hypernetwork_forward.3} parent=27 // pred_check
              _
            $region34: #{hypernetwork_forward.3} parent=27 // pred_check_branch
              %144 = sbr.rel (0) target = $region36
            $region35: #{hypernetwork_forward.3} parent=27 // pred_region
              %s146 = ssub.s32 16, 1
              loop: start=0, step=1, limit=1
              $region37: #{hypernetwork_forward.3} parent=35 // loop_pre_header
                _
              $region38: #{hypernetwork_forward.3} parent=35 // loop_header
                %s148 = sphi 0, %s152
                %p149 = scmp.ge.s32.totalorder %s148, 1
                %s153 = sphi %s138, %s138
                %s154 = sphi %s136, %s136
              $region39: #{hypernetwork_forward.3} parent=35 // loop_header_branch
                %151 = sbr.rel (%p149) target = $region43
              $region40: #{hypernetwork_forward.3} parent=35 // loop_body
                %v155 = vld [vmem:[%s153] sm:%s146]
                %156 = vst [vmem:[%s154] sm:%s146] %v155
                %v157 = vld [vmem:[%s153 + $0x8] sm:%s146]
                %158 = vst [vmem:[%s154 + $0x4] sm:%s146] %v157
                %v159 = vld [vmem:[%s153 + $0x10] sm:%s146]
                %160 = vst [vmem:[%s154 + $0x8] sm:%s146] %v159
                %v161 = vld [vmem:[%s153 + $0x18] sm:%s146]
                %162 = vst [vmem:[%s154 + $0xc] sm:%s146] %v161
                %v163 = vld [vmem:[%s153 + $0x20] sm:%s146]
                %164 = vst [vmem:[%s154 + $0x10] sm:%s146] %v163
                %v165 = vld [vmem:[%s153 + $0x28] sm:%s146]
                %166 = vst [vmem:[%s154 + $0x14] sm:%s146] %v165
                %v167 = vld [vmem:[%s153 + $0x30] sm:%s146]
                %168 = vst [vmem:[%s154 + $0x18] sm:%s146] %v167
                %v169 = vld [vmem:[%s153 + $0x38] sm:%s146]
                %170 = vst [vmem:[%s154 + $0x1c] sm:%s146] %v169
                %v171 = vld [vmem:[%s153 + $0x40] sm:%s146]
                %172 = vst [vmem:[%s154 + $0x20] sm:%s146] %v171
                %v173 = vld [vmem:[%s153 + $0x48] sm:%s146]
                %174 = vst [vmem:[%s154 + $0x24] sm:%s146] %v173
                %v175 = vld [vmem:[%s153 + $0x50] sm:%s146]
                %176 = vst [vmem:[%s154 + $0x28] sm:%s146] %v175
                %v177 = vld [vmem:[%s153 + $0x58] sm:%s146]
                %178 = vst [vmem:[%s154 + $0x2c] sm:%s146] %v177
                %v179 = vld [vmem:[%s153 + $0x60] sm:%s146]
                %180 = vst [vmem:[%s154 + $0x30] sm:%s146] %v179
                %v181 = vld [vmem:[%s153 + $0x68] sm:%s146]
                %182 = vst [vmem:[%s154 + $0x34] sm:%s146] %v181
                %v183 = vld [vmem:[%s153 + $0x70] sm:%s146]
                %184 = vst [vmem:[%s154 + $0x38] sm:%s146] %v183
                %v185 = vld [vmem:[%s153 + $0x78] sm:%s146]
                %186 = vst [vmem:[%s154 + $0x3c] sm:%s146] %v185
                %v187 = vld [vmem:[%s153 + $0x80] sm:%s146]
                %188 = vst [vmem:[%s154 + $0x40] sm:%s146] %v187
                %v189 = vld [vmem:[%s153 + $0x88] sm:%s146]
                %190 = vst [vmem:[%s154 + $0x44] sm:%s146] %v189
                %v191 = vld [vmem:[%s153 + $0x90] sm:%s146]
                %192 = vst [vmem:[%s154 + $0x48] sm:%s146] %v191
                %v193 = vld [vmem:[%s153 + $0x98] sm:%s146]
                %194 = vst [vmem:[%s154 + $0x4c] sm:%s146] %v193
                %v195 = vld [vmem:[%s153 + $0xa0] sm:%s146]
                %196 = vst [vmem:[%s154 + $0x50] sm:%s146] %v195
                %v197 = vld [vmem:[%s153 + $0xa8] sm:%s146]
                %198 = vst [vmem:[%s154 + $0x54] sm:%s146] %v197
                %v199 = vld [vmem:[%s153 + $0xb0] sm:%s146]
                %200 = vst [vmem:[%s154 + $0x58] sm:%s146] %v199
                %v201 = vld [vmem:[%s153 + $0xb8] sm:%s146]
                %202 = vst [vmem:[%s154 + $0x5c] sm:%s146] %v201
                %v203 = vld [vmem:[%s153 + $0xc0] sm:%s146]
                %204 = vst [vmem:[%s154 + $0x60] sm:%s146] %v203
                %v205 = vld [vmem:[%s153 + $0xc8] sm:%s146]
                %206 = vst [vmem:[%s154 + $0x64] sm:%s146] %v205
                %v207 = vld [vmem:[%s153 + $0xd0] sm:%s146]
                %208 = vst [vmem:[%s154 + $0x68] sm:%s146] %v207
                %v209 = vld [vmem:[%s153 + $0xd8] sm:%s146]
                %210 = vst [vmem:[%s154 + $0x6c] sm:%s146] %v209
                %v211 = vld [vmem:[%s153 + $0xe0] sm:%s146]
                %212 = vst [vmem:[%s154 + $0x70] sm:%s146] %v211
                %v213 = vld [vmem:[%s153 + $0xe8] sm:%s146]
                %214 = vst [vmem:[%s154 + $0x74] sm:%s146] %v213
                %v215 = vld [vmem:[%s153 + $0xf0] sm:%s146]
                %216 = vst [vmem:[%s154 + $0x78] sm:%s146] %v215
                %v217 = vld [vmem:[%s153 + $0xf8] sm:%s146]
                %218 = vst [vmem:[%s154 + $0x7c] sm:%s146] %v217
                %v219 = vld [vmem:[%s153 + $0x100] sm:%s146]
                %220 = vst [vmem:[%s154 + $0x80] sm:%s146] %v219
                %v221 = vld [vmem:[%s153 + $0x108] sm:%s146]
                %222 = vst [vmem:[%s154 + $0x84] sm:%s146] %v221
                %v223 = vld [vmem:[%s153 + $0x110] sm:%s146]
                %224 = vst [vmem:[%s154 + $0x88] sm:%s146] %v223
                %v225 = vld [vmem:[%s153 + $0x118] sm:%s146]
                %226 = vst [vmem:[%s154 + $0x8c] sm:%s146] %v225
                %v227 = vld [vmem:[%s153 + $0x120] sm:%s146]
                %228 = vst [vmem:[%s154 + $0x90] sm:%s146] %v227
                %v229 = vld [vmem:[%s153 + $0x128] sm:%s146]
                %230 = vst [vmem:[%s154 + $0x94] sm:%s146] %v229
                %v231 = vld [vmem:[%s153 + $0x130] sm:%s146]
                %232 = vst [vmem:[%s154 + $0x98] sm:%s146] %v231
                %v233 = vld [vmem:[%s153 + $0x138] sm:%s146]
                %234 = vst [vmem:[%s154 + $0x9c] sm:%s146] %v233
                %v235 = vld [vmem:[%s153 + $0x140] sm:%s146]
                %236 = vst [vmem:[%s154 + $0xa0] sm:%s146] %v235
                %v237 = vld [vmem:[%s153 + $0x148] sm:%s146]
                %238 = vst [vmem:[%s154 + $0xa4] sm:%s146] %v237
                %v239 = vld [vmem:[%s153 + $0x150] sm:%s146]
                %240 = vst [vmem:[%s154 + $0xa8] sm:%s146] %v239
                %v241 = vld [vmem:[%s153 + $0x158] sm:%s146]
                %242 = vst [vmem:[%s154 + $0xac] sm:%s146] %v241
                %v243 = vld [vmem:[%s153 + $0x160] sm:%s146]
                %244 = vst [vmem:[%s154 + $0xb0] sm:%s146] %v243
                %v245 = vld [vmem:[%s153 + $0x168] sm:%s146]
                %246 = vst [vmem:[%s154 + $0xb4] sm:%s146] %v245
                %v247 = vld [vmem:[%s153 + $0x170] sm:%s146]
                %248 = vst [vmem:[%s154 + $0xb8] sm:%s146] %v247
                %v249 = vld [vmem:[%s153 + $0x178] sm:%s146]
                %250 = vst [vmem:[%s154 + $0xbc] sm:%s146] %v249
                %v251 = vld [vmem:[%s153 + $0x180] sm:%s146]
                %252 = vst [vmem:[%s154 + $0xc0] sm:%s146] %v251
                %v253 = vld [vmem:[%s153 + $0x188] sm:%s146]
                %254 = vst [vmem:[%s154 + $0xc4] sm:%s146] %v253
                %v255 = vld [vmem:[%s153 + $0x190] sm:%s146]
                %256 = vst [vmem:[%s154 + $0xc8] sm:%s146] %v255
                %v257 = vld [vmem:[%s153 + $0x198] sm:%s146]
                %258 = vst [vmem:[%s154 + $0xcc] sm:%s146] %v257
                %v259 = vld [vmem:[%s153 + $0x1a0] sm:%s146]
                %260 = vst [vmem:[%s154 + $0xd0] sm:%s146] %v259
                %v261 = vld [vmem:[%s153 + $0x1a8] sm:%s146]
                %262 = vst [vmem:[%s154 + $0xd4] sm:%s146] %v261
                %v263 = vld [vmem:[%s153 + $0x1b0] sm:%s146]
                %264 = vst [vmem:[%s154 + $0xd8] sm:%s146] %v263
                %v265 = vld [vmem:[%s153 + $0x1b8] sm:%s146]
                %266 = vst [vmem:[%s154 + $0xdc] sm:%s146] %v265
                %v267 = vld [vmem:[%s153 + $0x1c0] sm:%s146]
                %268 = vst [vmem:[%s154 + $0xe0] sm:%s146] %v267
                %v269 = vld [vmem:[%s153 + $0x1c8] sm:%s146]
                %270 = vst [vmem:[%s154 + $0xe4] sm:%s146] %v269
                %v271 = vld [vmem:[%s153 + $0x1d0] sm:%s146]
                %272 = vst [vmem:[%s154 + $0xe8] sm:%s146] %v271
                %v273 = vld [vmem:[%s153 + $0x1d8] sm:%s146]
                %274 = vst [vmem:[%s154 + $0xec] sm:%s146] %v273
                %v275 = vld [vmem:[%s153 + $0x1e0] sm:%s146]
                %276 = vst [vmem:[%s154 + $0xf0] sm:%s146] %v275
                %v277 = vld [vmem:[%s153 + $0x1e8] sm:%s146]
                %278 = vst [vmem:[%s154 + $0xf4] sm:%s146] %v277
                %v279 = vld [vmem:[%s153 + $0x1f0] sm:%s146]
                %280 = vst [vmem:[%s154 + $0xf8] sm:%s146] %v279
                %v281 = vld [vmem:[%s153 + $0x1f8] sm:%s146]
                %282 = vst [vmem:[%s154 + $0xfc] sm:%s146] %v281
                %v283 = vld [vmem:[%s153 + $0x200] sm:%s146]
                %284 = vst [vmem:[%s154 + $0x100] sm:%s146] %v283
                %v285 = vld [vmem:[%s153 + $0x208] sm:%s146]
                %286 = vst [vmem:[%s154 + $0x104] sm:%s146] %v285
                %v287 = vld [vmem:[%s153 + $0x210] sm:%s146]
                %288 = vst [vmem:[%s154 + $0x108] sm:%s146] %v287
                %v289 = vld [vmem:[%s153 + $0x218] sm:%s146]
                %290 = vst [vmem:[%s154 + $0x10c] sm:%s146] %v289
                %v291 = vld [vmem:[%s153 + $0x220] sm:%s146]
                %292 = vst [vmem:[%s154 + $0x110] sm:%s146] %v291
                %v293 = vld [vmem:[%s153 + $0x228] sm:%s146]
                %294 = vst [vmem:[%s154 + $0x114] sm:%s146] %v293
                %v295 = vld [vmem:[%s153 + $0x230] sm:%s146]
                %296 = vst [vmem:[%s154 + $0x118] sm:%s146] %v295
                %v297 = vld [vmem:[%s153 + $0x238] sm:%s146]
                %298 = vst [vmem:[%s154 + $0x11c] sm:%s146] %v297
                %v299 = vld [vmem:[%s153 + $0x240] sm:%s146]
                %300 = vst [vmem:[%s154 + $0x120] sm:%s146] %v299
                %v301 = vld [vmem:[%s153 + $0x248] sm:%s146]
                %302 = vst [vmem:[%s154 + $0x124] sm:%s146] %v301
                %v303 = vld [vmem:[%s153 + $0x250] sm:%s146]
                %304 = vst [vmem:[%s154 + $0x128] sm:%s146] %v303
                %v305 = vld [vmem:[%s153 + $0x258] sm:%s146]
                %306 = vst [vmem:[%s154 + $0x12c] sm:%s146] %v305
                %v307 = vld [vmem:[%s153 + $0x260] sm:%s146]
                %308 = vst [vmem:[%s154 + $0x130] sm:%s146] %v307
                %v309 = vld [vmem:[%s153 + $0x268] sm:%s146]
                %310 = vst [vmem:[%s154 + $0x134] sm:%s146] %v309
                %v311 = vld [vmem:[%s153 + $0x270] sm:%s146]
                %312 = vst [vmem:[%s154 + $0x138] sm:%s146] %v311
                %v313 = vld [vmem:[%s153 + $0x278] sm:%s146]
                %314 = vst [vmem:[%s154 + $0x13c] sm:%s146] %v313
                %v315 = vld [vmem:[%s153 + $0x280] sm:%s146]
                %316 = vst [vmem:[%s154 + $0x140] sm:%s146] %v315
                %v317 = vld [vmem:[%s153 + $0x288] sm:%s146]
                %318 = vst [vmem:[%s154 + $0x144] sm:%s146] %v317
                %v319 = vld [vmem:[%s153 + $0x290] sm:%s146]
                %320 = vst [vmem:[%s154 + $0x148] sm:%s146] %v319
                %v321 = vld [vmem:[%s153 + $0x298] sm:%s146]
                %322 = vst [vmem:[%s154 + $0x14c] sm:%s146] %v321
                %v323 = vld [vmem:[%s153 + $0x2a0] sm:%s146]
                %324 = vst [vmem:[%s154 + $0x150] sm:%s146] %v323
                %v325 = vld [vmem:[%s153 + $0x2a8] sm:%s146]
                %326 = vst [vmem:[%s154 + $0x154] sm:%s146] %v325
                %v327 = vld [vmem:[%s153 + $0x2b0] sm:%s146]
                %328 = vst [vmem:[%s154 + $0x158] sm:%s146] %v327
                %v329 = vld [vmem:[%s153 + $0x2b8] sm:%s146]
                %330 = vst [vmem:[%s154 + $0x15c] sm:%s146] %v329
                %v331 = vld [vmem:[%s153 + $0x2c0] sm:%s146]
                %332 = vst [vmem:[%s154 + $0x160] sm:%s146] %v331
                %v333 = vld [vmem:[%s153 + $0x2c8] sm:%s146]
                %334 = vst [vmem:[%s154 + $0x164] sm:%s146] %v333
                %v335 = vld [vmem:[%s153 + $0x2d0] sm:%s146]
                %336 = vst [vmem:[%s154 + $0x168] sm:%s146] %v335
                %v337 = vld [vmem:[%s153 + $0x2d8] sm:%s146]
                %338 = vst [vmem:[%s154 + $0x16c] sm:%s146] %v337
                %v339 = vld [vmem:[%s153 + $0x2e0] sm:%s146]
                %340 = vst [vmem:[%s154 + $0x170] sm:%s146] %v339
                %v341 = vld [vmem:[%s153 + $0x2e8] sm:%s146]
                %342 = vst [vmem:[%s154 + $0x174] sm:%s146] %v341
                %v343 = vld [vmem:[%s153 + $0x2f0] sm:%s146]
                %344 = vst [vmem:[%s154 + $0x178] sm:%s146] %v343
                %v345 = vld [vmem:[%s153 + $0x2f8] sm:%s146]
                %346 = vst [vmem:[%s154 + $0x17c] sm:%s146] %v345
                %v347 = vld [vmem:[%s153 + $0x300] sm:%s146]
                %348 = vst [vmem:[%s154 + $0x180] sm:%s146] %v347
                %v349 = vld [vmem:[%s153 + $0x308] sm:%s146]
                %350 = vst [vmem:[%s154 + $0x184] sm:%s146] %v349
                %v351 = vld [vmem:[%s153 + $0x310] sm:%s146]
                %352 = vst [vmem:[%s154 + $0x188] sm:%s146] %v351
                %v353 = vld [vmem:[%s153 + $0x318] sm:%s146]
                %354 = vst [vmem:[%s154 + $0x18c] sm:%s146] %v353
                %v355 = vld [vmem:[%s153 + $0x320] sm:%s146]
                %356 = vst [vmem:[%s154 + $0x190] sm:%s146] %v355
                %v357 = vld [vmem:[%s153 + $0x328] sm:%s146]
                %358 = vst [vmem:[%s154 + $0x194] sm:%s146] %v357
                %v359 = vld [vmem:[%s153 + $0x330] sm:%s146]
                %360 = vst [vmem:[%s154 + $0x198] sm:%s146] %v359
                %v361 = vld [vmem:[%s153 + $0x338] sm:%s146]
                %362 = vst [vmem:[%s154 + $0x19c] sm:%s146] %v361
                %v363 = vld [vmem:[%s153 + $0x340] sm:%s146]
                %364 = vst [vmem:[%s154 + $0x1a0] sm:%s146] %v363
                %v365 = vld [vmem:[%s153 + $0x348] sm:%s146]
                %366 = vst [vmem:[%s154 + $0x1a4] sm:%s146] %v365
                %v367 = vld [vmem:[%s153 + $0x350] sm:%s146]
                %368 = vst [vmem:[%s154 + $0x1a8] sm:%s146] %v367
                %v369 = vld [vmem:[%s153 + $0x358] sm:%s146]
                %370 = vst [vmem:[%s154 + $0x1ac] sm:%s146] %v369
                %v371 = vld [vmem:[%s153 + $0x360] sm:%s146]
                %372 = vst [vmem:[%s154 + $0x1b0] sm:%s146] %v371
                %v373 = vld [vmem:[%s153 + $0x368] sm:%s146]
                %374 = vst [vmem:[%s154 + $0x1b4] sm:%s146] %v373
                %v375 = vld [vmem:[%s153 + $0x370] sm:%s146]
                %376 = vst [vmem:[%s154 + $0x1b8] sm:%s146] %v375
                %v377 = vld [vmem:[%s153 + $0x378] sm:%s146]
                %378 = vst [vmem:[%s154 + $0x1bc] sm:%s146] %v377
                %v379 = vld [vmem:[%s153 + $0x380] sm:%s146]
                %380 = vst [vmem:[%s154 + $0x1c0] sm:%s146] %v379
                %v381 = vld [vmem:[%s153 + $0x388] sm:%s146]
                %382 = vst [vmem:[%s154 + $0x1c4] sm:%s146] %v381
                %v383 = vld [vmem:[%s153 + $0x390] sm:%s146]
                %384 = vst [vmem:[%s154 + $0x1c8] sm:%s146] %v383
                %v385 = vld [vmem:[%s153 + $0x398] sm:%s146]
                %386 = vst [vmem:[%s154 + $0x1cc] sm:%s146] %v385
                %v387 = vld [vmem:[%s153 + $0x3a0] sm:%s146]
                %388 = vst [vmem:[%s154 + $0x1d0] sm:%s146] %v387
                %v389 = vld [vmem:[%s153 + $0x3a8] sm:%s146]
                %390 = vst [vmem:[%s154 + $0x1d4] sm:%s146] %v389
                %v391 = vld [vmem:[%s153 + $0x3b0] sm:%s146]
                %392 = vst [vmem:[%s154 + $0x1d8] sm:%s146] %v391
                %v393 = vld [vmem:[%s153 + $0x3b8] sm:%s146]
                %394 = vst [vmem:[%s154 + $0x1dc] sm:%s146] %v393
                %v395 = vld [vmem:[%s153 + $0x3c0] sm:%s146]
                %396 = vst [vmem:[%s154 + $0x1e0] sm:%s146] %v395
                %v397 = vld [vmem:[%s153 + $0x3c8] sm:%s146]
                %398 = vst [vmem:[%s154 + $0x1e4] sm:%s146] %v397
                %v399 = vld [vmem:[%s153 + $0x3d0] sm:%s146]
                %400 = vst [vmem:[%s154 + $0x1e8] sm:%s146] %v399
                %v401 = vld [vmem:[%s153 + $0x3d8] sm:%s146]
                %402 = vst [vmem:[%s154 + $0x1ec] sm:%s146] %v401
                %v403 = vld [vmem:[%s153 + $0x3e0] sm:%s146]
                %404 = vst [vmem:[%s154 + $0x1f0] sm:%s146] %v403
                %v405 = vld [vmem:[%s153 + $0x3e8] sm:%s146]
                %406 = vst [vmem:[%s154 + $0x1f4] sm:%s146] %v405
                %v407 = vld [vmem:[%s153 + $0x3f0] sm:%s146]
                %408 = vst [vmem:[%s154 + $0x1f8] sm:%s146] %v407
                %v409 = vld [vmem:[%s153 + $0x3f8] sm:%s146]
                %410 = vst [vmem:[%s154 + $0x1fc] sm:%s146] %v409
                %v411 = vld [vmem:[%s153 + $0x400] sm:%s146]
                %412 = vst [vmem:[%s154 + $0x200] sm:%s146] %v411
                %v413 = vld [vmem:[%s153 + $0x408] sm:%s146]
                %414 = vst [vmem:[%s154 + $0x204] sm:%s146] %v413
                %v415 = vld [vmem:[%s153 + $0x410] sm:%s146]
                %416 = vst [vmem:[%s154 + $0x208] sm:%s146] %v415
                %v417 = vld [vmem:[%s153 + $0x418] sm:%s146]
                %418 = vst [vmem:[%s154 + $0x20c] sm:%s146] %v417
                %v419 = vld [vmem:[%s153 + $0x420] sm:%s146]
                %420 = vst [vmem:[%s154 + $0x210] sm:%s146] %v419
                %v421 = vld [vmem:[%s153 + $0x428] sm:%s146]
                %422 = vst [vmem:[%s154 + $0x214] sm:%s146] %v421
                %v423 = vld [vmem:[%s153 + $0x430] sm:%s146]
                %424 = vst [vmem:[%s154 + $0x218] sm:%s146] %v423
                %v425 = vld [vmem:[%s153 + $0x438] sm:%s146]
                %426 = vst [vmem:[%s154 + $0x21c] sm:%s146] %v425
                %v427 = vld [vmem:[%s153 + $0x440] sm:%s146]
                %428 = vst [vmem:[%s154 + $0x220] sm:%s146] %v427
                %v429 = vld [vmem:[%s153 + $0x448] sm:%s146]
                %430 = vst [vmem:[%s154 + $0x224] sm:%s146] %v429
                %v431 = vld [vmem:[%s153 + $0x450] sm:%s146]
                %432 = vst [vmem:[%s154 + $0x228] sm:%s146] %v431
                %v433 = vld [vmem:[%s153 + $0x458] sm:%s146]
                %434 = vst [vmem:[%s154 + $0x22c] sm:%s146] %v433
                %v435 = vld [vmem:[%s153 + $0x460] sm:%s146]
                %436 = vst [vmem:[%s154 + $0x230] sm:%s146] %v435
                %v437 = vld [vmem:[%s153 + $0x468] sm:%s146]
                %438 = vst [vmem:[%s154 + $0x234] sm:%s146] %v437
                %v439 = vld [vmem:[%s153 + $0x470] sm:%s146]
                %440 = vst [vmem:[%s154 + $0x238] sm:%s146] %v439
                %v441 = vld [vmem:[%s153 + $0x478] sm:%s146]
                %442 = vst [vmem:[%s154 + $0x23c] sm:%s146] %v441
                %v443 = vld [vmem:[%s153 + $0x480] sm:%s146]
                %444 = vst [vmem:[%s154 + $0x240] sm:%s146] %v443
                %v445 = vld [vmem:[%s153 + $0x488] sm:%s146]
                %446 = vst [vmem:[%s154 + $0x244] sm:%s146] %v445
                %v447 = vld [vmem:[%s153 + $0x490] sm:%s146]
                %448 = vst [vmem:[%s154 + $0x248] sm:%s146] %v447
                %v449 = vld [vmem:[%s153 + $0x498] sm:%s146]
                %450 = vst [vmem:[%s154 + $0x24c] sm:%s146] %v449
                %v451 = vld [vmem:[%s153 + $0x4a0] sm:%s146]
                %452 = vst [vmem:[%s154 + $0x250] sm:%s146] %v451
                %v453 = vld [vmem:[%s153 + $0x4a8] sm:%s146]
                %454 = vst [vmem:[%s154 + $0x254] sm:%s146] %v453
                %v455 = vld [vmem:[%s153 + $0x4b0] sm:%s146]
                %456 = vst [vmem:[%s154 + $0x258] sm:%s146] %v455
                %v457 = vld [vmem:[%s153 + $0x4b8] sm:%s146]
                %458 = vst [vmem:[%s154 + $0x25c] sm:%s146] %v457
                %v459 = vld [vmem:[%s153 + $0x4c0] sm:%s146]
                %460 = vst [vmem:[%s154 + $0x260] sm:%s146] %v459
                %v461 = vld [vmem:[%s153 + $0x4c8] sm:%s146]
                %462 = vst [vmem:[%s154 + $0x264] sm:%s146] %v461
                %v463 = vld [vmem:[%s153 + $0x4d0] sm:%s146]
                %464 = vst [vmem:[%s154 + $0x268] sm:%s146] %v463
                %v465 = vld [vmem:[%s153 + $0x4d8] sm:%s146]
                %466 = vst [vmem:[%s154 + $0x26c] sm:%s146] %v465
                %v467 = vld [vmem:[%s153 + $0x4e0] sm:%s146]
                %468 = vst [vmem:[%s154 + $0x270] sm:%s146] %v467
                %v469 = vld [vmem:[%s153 + $0x4e8] sm:%s146]
                %470 = vst [vmem:[%s154 + $0x274] sm:%s146] %v469
                %v471 = vld [vmem:[%s153 + $0x4f0] sm:%s146]
                %472 = vst [vmem:[%s154 + $0x278] sm:%s146] %v471
                %v473 = vld [vmem:[%s153 + $0x4f8] sm:%s146]
                %474 = vst [vmem:[%s154 + $0x27c] sm:%s146] %v473
                %v475 = vld [vmem:[%s153 + $0x500] sm:%s146]
                %476 = vst [vmem:[%s154 + $0x280] sm:%s146] %v475
                %v477 = vld [vmem:[%s153 + $0x508] sm:%s146]
                %478 = vst [vmem:[%s154 + $0x284] sm:%s146] %v477
                %v479 = vld [vmem:[%s153 + $0x510] sm:%s146]
                %480 = vst [vmem:[%s154 + $0x288] sm:%s146] %v479
                %v481 = vld [vmem:[%s153 + $0x518] sm:%s146]
                %482 = vst [vmem:[%s154 + $0x28c] sm:%s146] %v481
                %v483 = vld [vmem:[%s153 + $0x520] sm:%s146]
                %484 = vst [vmem:[%s154 + $0x290] sm:%s146] %v483
                %v485 = vld [vmem:[%s153 + $0x528] sm:%s146]
                %486 = vst [vmem:[%s154 + $0x294] sm:%s146] %v485
                %v487 = vld [vmem:[%s153 + $0x530] sm:%s146]
                %488 = vst [vmem:[%s154 + $0x298] sm:%s146] %v487
                %v489 = vld [vmem:[%s153 + $0x538] sm:%s146]
                %490 = vst [vmem:[%s154 + $0x29c] sm:%s146] %v489
                %v491 = vld [vmem:[%s153 + $0x540] sm:%s146]
                %492 = vst [vmem:[%s154 + $0x2a0] sm:%s146] %v491
                %v493 = vld [vmem:[%s153 + $0x548] sm:%s146]
                %494 = vst [vmem:[%s154 + $0x2a4] sm:%s146] %v493
                %v495 = vld [vmem:[%s153 + $0x550] sm:%s146]
                %496 = vst [vmem:[%s154 + $0x2a8] sm:%s146] %v495
                %v497 = vld [vmem:[%s153 + $0x558] sm:%s146]
                %498 = vst [vmem:[%s154 + $0x2ac] sm:%s146] %v497
                %v499 = vld [vmem:[%s153 + $0x560] sm:%s146]
                %500 = vst [vmem:[%s154 + $0x2b0] sm:%s146] %v499
                %v501 = vld [vmem:[%s153 + $0x568] sm:%s146]
                %502 = vst [vmem:[%s154 + $0x2b4] sm:%s146] %v501
                %v503 = vld [vmem:[%s153 + $0x570] sm:%s146]
                %504 = vst [vmem:[%s154 + $0x2b8] sm:%s146] %v503
                %v505 = vld [vmem:[%s153 + $0x578] sm:%s146]
                %506 = vst [vmem:[%s154 + $0x2bc] sm:%s146] %v505
                %v507 = vld [vmem:[%s153 + $0x580] sm:%s146]
                %508 = vst [vmem:[%s154 + $0x2c0] sm:%s146] %v507
                %v509 = vld [vmem:[%s153 + $0x588] sm:%s146]
                %510 = vst [vmem:[%s154 + $0x2c4] sm:%s146] %v509
                %v511 = vld [vmem:[%s153 + $0x590] sm:%s146]
                %512 = vst [vmem:[%s154 + $0x2c8] sm:%s146] %v511
                %v513 = vld [vmem:[%s153 + $0x598] sm:%s146]
                %514 = vst [vmem:[%s154 + $0x2cc] sm:%s146] %v513
                %v515 = vld [vmem:[%s153 + $0x5a0] sm:%s146]
                %516 = vst [vmem:[%s154 + $0x2d0] sm:%s146] %v515
                %v517 = vld [vmem:[%s153 + $0x5a8] sm:%s146]
                %518 = vst [vmem:[%s154 + $0x2d4] sm:%s146] %v517
                %v519 = vld [vmem:[%s153 + $0x5b0] sm:%s146]
                %520 = vst [vmem:[%s154 + $0x2d8] sm:%s146] %v519
                %v521 = vld [vmem:[%s153 + $0x5b8] sm:%s146]
                %522 = vst [vmem:[%s154 + $0x2dc] sm:%s146] %v521
                %v523 = vld [vmem:[%s153 + $0x5c0] sm:%s146]
                %524 = vst [vmem:[%s154 + $0x2e0] sm:%s146] %v523
                %v525 = vld [vmem:[%s153 + $0x5c8] sm:%s146]
                %526 = vst [vmem:[%s154 + $0x2e4] sm:%s146] %v525
                %v527 = vld [vmem:[%s153 + $0x5d0] sm:%s146]
                %528 = vst [vmem:[%s154 + $0x2e8] sm:%s146] %v527
                %v529 = vld [vmem:[%s153 + $0x5d8] sm:%s146]
                %530 = vst [vmem:[%s154 + $0x2ec] sm:%s146] %v529
                %v531 = vld [vmem:[%s153 + $0x5e0] sm:%s146]
                %532 = vst [vmem:[%s154 + $0x2f0] sm:%s146] %v531
                %v533 = vld [vmem:[%s153 + $0x5e8] sm:%s146]
                %534 = vst [vmem:[%s154 + $0x2f4] sm:%s146] %v533
                %v535 = vld [vmem:[%s153 + $0x5f0] sm:%s146]
                %536 = vst [vmem:[%s154 + $0x2f8] sm:%s146] %v535
                %v537 = vld [vmem:[%s153 + $0x5f8] sm:%s146]
                %538 = vst [vmem:[%s154 + $0x2fc] sm:%s146] %v537
                %v539 = vld [vmem:[%s153 + $0x600] sm:%s146]
                %540 = vst [vmem:[%s154 + $0x300] sm:%s146] %v539
                %v541 = vld [vmem:[%s153 + $0x608] sm:%s146]
                %542 = vst [vmem:[%s154 + $0x304] sm:%s146] %v541
                %v543 = vld [vmem:[%s153 + $0x610] sm:%s146]
                %544 = vst [vmem:[%s154 + $0x308] sm:%s146] %v543
                %v545 = vld [vmem:[%s153 + $0x618] sm:%s146]
                %546 = vst [vmem:[%s154 + $0x30c] sm:%s146] %v545
                %v547 = vld [vmem:[%s153 + $0x620] sm:%s146]
                %548 = vst [vmem:[%s154 + $0x310] sm:%s146] %v547
                %v549 = vld [vmem:[%s153 + $0x628] sm:%s146]
                %550 = vst [vmem:[%s154 + $0x314] sm:%s146] %v549
                %v551 = vld [vmem:[%s153 + $0x630] sm:%s146]
                %552 = vst [vmem:[%s154 + $0x318] sm:%s146] %v551
                %v553 = vld [vmem:[%s153 + $0x638] sm:%s146]
                %554 = vst [vmem:[%s154 + $0x31c] sm:%s146] %v553
                %v555 = vld [vmem:[%s153 + $0x640] sm:%s146]
                %556 = vst [vmem:[%s154 + $0x320] sm:%s146] %v555
                %v557 = vld [vmem:[%s153 + $0x648] sm:%s146]
                %558 = vst [vmem:[%s154 + $0x324] sm:%s146] %v557
                %v559 = vld [vmem:[%s153 + $0x650] sm:%s146]
                %560 = vst [vmem:[%s154 + $0x328] sm:%s146] %v559
                %v561 = vld [vmem:[%s153 + $0x658] sm:%s146]
                %562 = vst [vmem:[%s154 + $0x32c] sm:%s146] %v561
                %v563 = vld [vmem:[%s153 + $0x660] sm:%s146]
                %564 = vst [vmem:[%s154 + $0x330] sm:%s146] %v563
                %v565 = vld [vmem:[%s153 + $0x668] sm:%s146]
                %566 = vst [vmem:[%s154 + $0x334] sm:%s146] %v565
                %v567 = vld [vmem:[%s153 + $0x670] sm:%s146]
                %568 = vst [vmem:[%s154 + $0x338] sm:%s146] %v567
                %v569 = vld [vmem:[%s153 + $0x678] sm:%s146]
                %570 = vst [vmem:[%s154 + $0x33c] sm:%s146] %v569
                %v571 = vld [vmem:[%s153 + $0x680] sm:%s146]
                %572 = vst [vmem:[%s154 + $0x340] sm:%s146] %v571
                %v573 = vld [vmem:[%s153 + $0x688] sm:%s146]
                %574 = vst [vmem:[%s154 + $0x344] sm:%s146] %v573
                %v575 = vld [vmem:[%s153 + $0x690] sm:%s146]
                %576 = vst [vmem:[%s154 + $0x348] sm:%s146] %v575
                %v577 = vld [vmem:[%s153 + $0x698] sm:%s146]
                %578 = vst [vmem:[%s154 + $0x34c] sm:%s146] %v577
                %v579 = vld [vmem:[%s153 + $0x6a0] sm:%s146]
                %580 = vst [vmem:[%s154 + $0x350] sm:%s146] %v579
                %v581 = vld [vmem:[%s153 + $0x6a8] sm:%s146]
                %582 = vst [vmem:[%s154 + $0x354] sm:%s146] %v581
                %v583 = vld [vmem:[%s153 + $0x6b0] sm:%s146]
                %584 = vst [vmem:[%s154 + $0x358] sm:%s146] %v583
                %v585 = vld [vmem:[%s153 + $0x6b8] sm:%s146]
                %586 = vst [vmem:[%s154 + $0x35c] sm:%s146] %v585
                %v587 = vld [vmem:[%s153 + $0x6c0] sm:%s146]
                %588 = vst [vmem:[%s154 + $0x360] sm:%s146] %v587
                %v589 = vld [vmem:[%s153 + $0x6c8] sm:%s146]
                %590 = vst [vmem:[%s154 + $0x364] sm:%s146] %v589
                %v591 = vld [vmem:[%s153 + $0x6d0] sm:%s146]
                %592 = vst [vmem:[%s154 + $0x368] sm:%s146] %v591
                %v593 = vld [vmem:[%s153 + $0x6d8] sm:%s146]
                %594 = vst [vmem:[%s154 + $0x36c] sm:%s146] %v593
                %v595 = vld [vmem:[%s153 + $0x6e0] sm:%s146]
                %596 = vst [vmem:[%s154 + $0x370] sm:%s146] %v595
                %v597 = vld [vmem:[%s153 + $0x6e8] sm:%s146]
                %598 = vst [vmem:[%s154 + $0x374] sm:%s146] %v597
                %v599 = vld [vmem:[%s153 + $0x6f0] sm:%s146]
                %600 = vst [vmem:[%s154 + $0x378] sm:%s146] %v599
                %v601 = vld [vmem:[%s153 + $0x6f8] sm:%s146]
                %602 = vst [vmem:[%s154 + $0x37c] sm:%s146] %v601
                %v603 = vld [vmem:[%s153 + $0x700] sm:%s146]
                %604 = vst [vmem:[%s154 + $0x380] sm:%s146] %v603
                %v605 = vld [vmem:[%s153 + $0x708] sm:%s146]
                %606 = vst [vmem:[%s154 + $0x384] sm:%s146] %v605
                %v607 = vld [vmem:[%s153 + $0x710] sm:%s146]
                %608 = vst [vmem:[%s154 + $0x388] sm:%s146] %v607
                %v609 = vld [vmem:[%s153 + $0x718] sm:%s146]
                %610 = vst [vmem:[%s154 + $0x38c] sm:%s146] %v609
                %v611 = vld [vmem:[%s153 + $0x720] sm:%s146]
                %612 = vst [vmem:[%s154 + $0x390] sm:%s146] %v611
                %v613 = vld [vmem:[%s153 + $0x728] sm:%s146]
                %614 = vst [vmem:[%s154 + $0x394] sm:%s146] %v613
                %v615 = vld [vmem:[%s153 + $0x730] sm:%s146]
                %616 = vst [vmem:[%s154 + $0x398] sm:%s146] %v615
                %v617 = vld [vmem:[%s153 + $0x738] sm:%s146]
                %618 = vst [vmem:[%s154 + $0x39c] sm:%s146] %v617
                %v619 = vld [vmem:[%s153 + $0x740] sm:%s146]
                %620 = vst [vmem:[%s154 + $0x3a0] sm:%s146] %v619
                %v621 = vld [vmem:[%s153 + $0x748] sm:%s146]
                %622 = vst [vmem:[%s154 + $0x3a4] sm:%s146] %v621
                %v623 = vld [vmem:[%s153 + $0x750] sm:%s146]
                %624 = vst [vmem:[%s154 + $0x3a8] sm:%s146] %v623
                %v625 = vld [vmem:[%s153 + $0x758] sm:%s146]
                %626 = vst [vmem:[%s154 + $0x3ac] sm:%s146] %v625
                %v627 = vld [vmem:[%s153 + $0x760] sm:%s146]
                %628 = vst [vmem:[%s154 + $0x3b0] sm:%s146] %v627
                %v629 = vld [vmem:[%s153 + $0x768] sm:%s146]
                %630 = vst [vmem:[%s154 + $0x3b4] sm:%s146] %v629
                %v631 = vld [vmem:[%s153 + $0x770] sm:%s146]
                %632 = vst [vmem:[%s154 + $0x3b8] sm:%s146] %v631
                %v633 = vld [vmem:[%s153 + $0x778] sm:%s146]
                %634 = vst [vmem:[%s154 + $0x3bc] sm:%s146] %v633
                %v635 = vld [vmem:[%s153 + $0x780] sm:%s146]
                %636 = vst [vmem:[%s154 + $0x3c0] sm:%s146] %v635
                %v637 = vld [vmem:[%s153 + $0x788] sm:%s146]
                %638 = vst [vmem:[%s154 + $0x3c4] sm:%s146] %v637
                %v639 = vld [vmem:[%s153 + $0x790] sm:%s146]
                %640 = vst [vmem:[%s154 + $0x3c8] sm:%s146] %v639
                %v641 = vld [vmem:[%s153 + $0x798] sm:%s146]
                %642 = vst [vmem:[%s154 + $0x3cc] sm:%s146] %v641
                %v643 = vld [vmem:[%s153 + $0x7a0] sm:%s146]
                %644 = vst [vmem:[%s154 + $0x3d0] sm:%s146] %v643
                %v645 = vld [vmem:[%s153 + $0x7a8] sm:%s146]
                %646 = vst [vmem:[%s154 + $0x3d4] sm:%s146] %v645
                %v647 = vld [vmem:[%s153 + $0x7b0] sm:%s146]
                %648 = vst [vmem:[%s154 + $0x3d8] sm:%s146] %v647
                %v649 = vld [vmem:[%s153 + $0x7b8] sm:%s146]
                %650 = vst [vmem:[%s154 + $0x3dc] sm:%s146] %v649
                %v651 = vld [vmem:[%s153 + $0x7c0] sm:%s146]
                %652 = vst [vmem:[%s154 + $0x3e0] sm:%s146] %v651
                %v653 = vld [vmem:[%s153 + $0x7c8] sm:%s146]
                %654 = vst [vmem:[%s154 + $0x3e4] sm:%s146] %v653
                %v655 = vld [vmem:[%s153 + $0x7d0] sm:%s146]
                %656 = vst [vmem:[%s154 + $0x3e8] sm:%s146] %v655
                %v657 = vld [vmem:[%s153 + $0x7d8] sm:%s146]
                %658 = vst [vmem:[%s154 + $0x3ec] sm:%s146] %v657
                %v659 = vld [vmem:[%s153 + $0x7e0] sm:%s146]
                %660 = vst [vmem:[%s154 + $0x3f0] sm:%s146] %v659
                %v661 = vld [vmem:[%s153 + $0x7e8] sm:%s146]
                %662 = vst [vmem:[%s154 + $0x3f4] sm:%s146] %v661
                %v663 = vld [vmem:[%s153 + $0x7f0] sm:%s146]
                %664 = vst [vmem:[%s154 + $0x3f8] sm:%s146] %v663
                %v665 = vld [vmem:[%s153 + $0x7f8] sm:%s146]
                %666 = vst [vmem:[%s154 + $0x3fc] sm:%s146] %v665
              $region41: #{hypernetwork_forward.3} parent=35 // loop_footer
                %s152 = sadd.s32 1, %s148
              $region42: #{hypernetwork_forward.3} parent=35 // loop_footer_branch
                %147 = sbr.rel target = $region38
              $region43: #{hypernetwork_forward.3} parent=35 // loop_exit
                _
            $region36: #{hypernetwork_forward.3} parent=27 // pred_fallthru
              _
          $region28: #{hypernetwork_forward.3} parent=23 // pred_fallthru
            _
          %1199 = vnop
        $region24: #{hypernetwork_forward.3} parent=19 // pred_fallthru
          _
        // Predicated region
        $region62: #{hypernetwork_forward.3} parent=19 // pred_check
          %p1200 = pneg %p76
        $region63: #{hypernetwork_forward.3} parent=19 // pred_check_branch
          %1202 = sbr.rel (%p1200) target = $region65
        $region64: #{hypernetwork_forward.3} parent=19 // pred_region
          %p1203 = scmp.lt.s32.totalorder %s9, 1
          %s1204 = scalar_select %p1203, %s9, 1
          %s1205 = scalar_lea.vmem %s2, %s1204
        $region65: #{hypernetwork_forward.3} parent=19 // pred_fallthru
          _
      $region20: #{hypernetwork_forward.3} parent=5 // pred_fallthru
        _
      %p1206 = scmp.le.s32.totalorder 1, %s9
      %p1207 = scmp.lt.s32.totalorder %s9, 3
      %p1208 = pnand %p1206, %p1207
      %p1209 = pneg %p1208
      // Predicated region
      $region66: #{hypernetwork_forward.3} parent=5 // pred_check
        _
      $region67: #{hypernetwork_forward.3} parent=5 // pred_check_branch
        %1211 = sbr.rel (%p1208) target = $region69
      $region68: #{hypernetwork_forward.3} parent=5 // pred_region
        %s1212 = ssub.s32 %s9, 1
        %s1213 = sand.u32 %s43, 1
        %s1214 = sand.u32 %s43, 1
        %s1215 = smul.addr %s1214, 1024
        %s1216 = scalar_lea.vmem [#allocation2], %s1215
        // Predicated region
        $region70: #{hypernetwork_forward.3} parent=68 // pred_check
          %p1217 = pneg %p56
        $region71: #{hypernetwork_forward.3} parent=68 // pred_check_branch
          %1219 = sbr.rel (%p1217) target = $region73
        $region72: #{hypernetwork_forward.3} parent=68 // pred_region
          _
        $region73: #{hypernetwork_forward.3} parent=68 // pred_fallthru
          _
        %p1220 = pneg %p30
        %p1221 = pneg %p27
        %s1222 = sand.u32 %s43, 1
        %s1223 = sand.u32 %s43, 1
        %s1224 = smul.addr %s1223, 1024
        %s1225 = scalar_lea.vmem [#allocation2], %s1224
        %p1226 = pneg %p56
        %p1227 = pneg %p53
        %p1228 = scmp.lt.s32.totalorder %s14, 1
        %s1229 = scalar_select %p1228, %s14, 1
        %s1230 = scalar_lea.vmem %s2, %s1229
        %p1231 = pneg %p82
        %p1232 = pneg %p79
        %p1233 = pneg %p108
        %p1234 = pneg %p105
        %p1235 = scmp.lt.s32.totalorder %s14, 1
        %s1236 = scalar_select %p1235, %s14, 1
        %s1237 = smul.addr %s1236, 8
        %s1238 = scalar_lea.vmem %s3, %s1237
        %p1239 = scmp.lt.s32.totalorder %s14, 1
        %s1240 = scalar_select %p1239, %s14, 1
        %s1241 = scalar_lea.vmem %s2, %s1240
        %p1242 = scmp.lt.s32.totalorder %s14, 1
        %s1243 = scalar_select %p1242, %s14, 1
        %s1244 = smul.addr %s1243, 8
        %s1245 = scalar_lea.vmem %s3, %s1244
        %v1247 = vld [vmem:[%s0] sm:$0xff]
        %v1248 = vld [vmem:[%s0 + $0x8] sm:$0xff]
        %v1249 = vld [vmem:[%s0 + $0x10] sm:$0xff]
        %v1250 = vld [vmem:[%s0 + $0x18] sm:$0xff]
        %v1251 = vld [vmem:[%s0 + $0x20] sm:$0xff]
        %v1252 = vld [vmem:[%s0 + $0x28] sm:$0xff]
        %v1253 = vld [vmem:[%s0 + $0x30] sm:$0xff]
        %v1254 = vld [vmem:[%s0 + $0x38] sm:$0xff]
        %v1255 = vld [vmem:[%s1216] sm:$0xf]
        %v1256 = vld [vmem:[%s1216 + $0x4] sm:$0xf]
        %v1257 = vld [vmem:[%s1216 + $0x8] sm:$0xf]
        %v1258 = vld [vmem:[%s1216 + $0xc] sm:$0xf]
        %v1259 = vld [vmem:[%s1216 + $0x10] sm:$0xf]
        %v1260 = vld [vmem:[%s1216 + $0x14] sm:$0xf]
        %v1261 = vld [vmem:[%s1216 + $0x18] sm:$0xf]
        %v1262 = vld [vmem:[%s1216 + $0x1c] sm:$0xf]
        %v1263 = vld [vmem:[%s1216 + $0x20] sm:$0xf]
        %v1264 = vld [vmem:[%s1216 + $0x24] sm:$0xf]
        %v1265 = vld [vmem:[%s1216 + $0x28] sm:$0xf]
        %v1266 = vld [vmem:[%s1216 + $0x2c] sm:$0xf]
        %v1267 = vld [vmem:[%s1216 + $0x30] sm:$0xf]
        %v1268 = vld [vmem:[%s1216 + $0x34] sm:$0xf]
        %v1269 = vld [vmem:[%s1216 + $0x38] sm:$0xf]
        %v1270 = vld [vmem:[%s1216 + $0x3c] sm:$0xf]
        %v1271 = vld [vmem:[%s1216 + $0x40] sm:$0xf]
        %v1272 = vld [vmem:[%s1216 + $0x44] sm:$0xf]
        %v1273 = vld [vmem:[%s1216 + $0x48] sm:$0xf]
        %v1274 = vld [vmem:[%s1216 + $0x4c] sm:$0xf]
        %v1275 = vld [vmem:[%s1216 + $0x50] sm:$0xf]
        %v1276 = vld [vmem:[%s1216 + $0x54] sm:$0xf]
        %v1277 = vld [vmem:[%s1216 + $0x58] sm:$0xf]
        %v1278 = vld [vmem:[%s1216 + $0x5c] sm:$0xf]
        %v1279 = vld [vmem:[%s1216 + $0x60] sm:$0xf]
        %v1280 = vld [vmem:[%s1216 + $0x64] sm:$0xf]
        %v1281 = vld [vmem:[%s1216 + $0x68] sm:$0xf]
        %v1282 = vld [vmem:[%s1216 + $0x6c] sm:$0xf]
        %v1283 = vld [vmem:[%s1216 + $0x70] sm:$0xf]
        %v1284 = vld [vmem:[%s1216 + $0x74] sm:$0xf]
        %v1285 = vld [vmem:[%s1216 + $0x78] sm:$0xf]
        %v1286 = vld [vmem:[%s1216 + $0x7c] sm:$0xf]
        %v1287 = vld [vmem:[%s1216 + $0x80] sm:$0xf]
        %v1288 = vld [vmem:[%s1216 + $0x84] sm:$0xf]
        %v1289 = vld [vmem:[%s1216 + $0x88] sm:$0xf]
        %v1290 = vld [vmem:[%s1216 + $0x8c] sm:$0xf]
        %v1291 = vld [vmem:[%s1216 + $0x90] sm:$0xf]
        %v1292 = vld [vmem:[%s1216 + $0x94] sm:$0xf]
        %v1293 = vld [vmem:[%s1216 + $0x98] sm:$0xf]
        %v1294 = vld [vmem:[%s1216 + $0x9c] sm:$0xf]
        %v1295 = vld [vmem:[%s1216 + $0xa0] sm:$0xf]
        %v1296 = vld [vmem:[%s1216 + $0xa4] sm:$0xf]
        %v1297 = vld [vmem:[%s1216 + $0xa8] sm:$0xf]
        %v1298 = vld [vmem:[%s1216 + $0xac] sm:$0xf]
        %v1299 = vld [vmem:[%s1216 + $0xb0] sm:$0xf]
        %v1300 = vld [vmem:[%s1216 + $0xb4] sm:$0xf]
        %v1301 = vld [vmem:[%s1216 + $0xb8] sm:$0xf]
        %v1302 = vld [vmem:[%s1216 + $0xbc] sm:$0xf]
        %v1303 = vld [vmem:[%s1216 + $0xc0] sm:$0xf]
        %v1304 = vld [vmem:[%s1216 + $0xc4] sm:$0xf]
        %v1305 = vld [vmem:[%s1216 + $0xc8] sm:$0xf]
        %v1306 = vld [vmem:[%s1216 + $0xcc] sm:$0xf]
        %v1307 = vld [vmem:[%s1216 + $0xd0] sm:$0xf]
        %v1308 = vld [vmem:[%s1216 + $0xd4] sm:$0xf]
        %v1309 = vld [vmem:[%s1216 + $0xd8] sm:$0xf]
        %v1310 = vld [vmem:[%s1216 + $0xdc] sm:$0xf]
        %v1311 = vld [vmem:[%s1216 + $0xe0] sm:$0xf]
        %v1312 = vld [vmem:[%s1216 + $0xe4] sm:$0xf]
        %v1313 = vld [vmem:[%s1216 + $0xe8] sm:$0xf]
        %v1314 = vld [vmem:[%s1216 + $0xec] sm:$0xf]
        %v1315 = vld [vmem:[%s1216 + $0xf0] sm:$0xf]
        %v1316 = vld [vmem:[%s1216 + $0xf4] sm:$0xf]
        %v1317 = vld [vmem:[%s1216 + $0xf8] sm:$0xf]
        %v1318 = vld [vmem:[%s1216 + $0xfc] sm:$0xf]
        %v1319 = vld [vmem:[%s1216 + $0x100] sm:$0xf]
        %v1320 = vld [vmem:[%s1216 + $0x104] sm:$0xf]
        %v1321 = vld [vmem:[%s1216 + $0x108] sm:$0xf]
        %v1322 = vld [vmem:[%s1216 + $0x10c] sm:$0xf]
        %v1323 = vld [vmem:[%s1216 + $0x110] sm:$0xf]
        %v1324 = vld [vmem:[%s1216 + $0x114] sm:$0xf]
        %v1325 = vld [vmem:[%s1216 + $0x118] sm:$0xf]
        %v1326 = vld [vmem:[%s1216 + $0x11c] sm:$0xf]
        %v1327 = vld [vmem:[%s1216 + $0x120] sm:$0xf]
        %v1328 = vld [vmem:[%s1216 + $0x124] sm:$0xf]
        %v1329 = vld [vmem:[%s1216 + $0x128] sm:$0xf]
        %v1330 = vld [vmem:[%s1216 + $0x12c] sm:$0xf]
        %v1331 = vld [vmem:[%s1216 + $0x130] sm:$0xf]
        %v1332 = vld [vmem:[%s1216 + $0x134] sm:$0xf]
        %v1333 = vld [vmem:[%s1216 + $0x138] sm:$0xf]
        %v1334 = vld [vmem:[%s1216 + $0x13c] sm:$0xf]
        %v1335 = vld [vmem:[%s1216 + $0x140] sm:$0xf]
        %v1336 = vld [vmem:[%s1216 + $0x144] sm:$0xf]
        %v1337 = vld [vmem:[%s1216 + $0x148] sm:$0xf]
        %v1338 = vld [vmem:[%s1216 + $0x14c] sm:$0xf]
        %v1339 = vld [vmem:[%s1216 + $0x150] sm:$0xf]
        %v1340 = vld [vmem:[%s1216 + $0x154] sm:$0xf]
        %v1341 = vld [vmem:[%s1216 + $0x158] sm:$0xf]
        %v1342 = vld [vmem:[%s1216 + $0x15c] sm:$0xf]
        %v1343 = vld [vmem:[%s1216 + $0x160] sm:$0xf]
        %v1344 = vld [vmem:[%s1216 + $0x164] sm:$0xf]
        %v1345 = vld [vmem:[%s1216 + $0x168] sm:$0xf]
        %v1346 = vld [vmem:[%s1216 + $0x16c] sm:$0xf]
        %v1347 = vld [vmem:[%s1216 + $0x170] sm:$0xf]
        %v1348 = vld [vmem:[%s1216 + $0x174] sm:$0xf]
        %v1349 = vld [vmem:[%s1216 + $0x178] sm:$0xf]
        %v1350 = vld [vmem:[%s1216 + $0x17c] sm:$0xf]
        %v1351 = vld [vmem:[%s1216 + $0x180] sm:$0xf]
        %v1352 = vld [vmem:[%s1216 + $0x184] sm:$0xf]
        %v1353 = vld [vmem:[%s1216 + $0x188] sm:$0xf]
        %v1354 = vld [vmem:[%s1216 + $0x18c] sm:$0xf]
        %v1355 = vld [vmem:[%s1216 + $0x190] sm:$0xf]
        %v1356 = vld [vmem:[%s1216 + $0x194] sm:$0xf]
        %v1357 = vld [vmem:[%s1216 + $0x198] sm:$0xf]
        %v1358 = vld [vmem:[%s1216 + $0x19c] sm:$0xf]
        %v1359 = vld [vmem:[%s1216 + $0x1a0] sm:$0xf]
        %v1360 = vld [vmem:[%s1216 + $0x1a4] sm:$0xf]
        %v1361 = vld [vmem:[%s1216 + $0x1a8] sm:$0xf]
        %v1362 = vld [vmem:[%s1216 + $0x1ac] sm:$0xf]
        %v1363 = vld [vmem:[%s1216 + $0x1b0] sm:$0xf]
        %v1364 = vld [vmem:[%s1216 + $0x1b4] sm:$0xf]
        %v1365 = vld [vmem:[%s1216 + $0x1b8] sm:$0xf]
        %v1366 = vld [vmem:[%s1216 + $0x1bc] sm:$0xf]
        %v1367 = vld [vmem:[%s1216 + $0x1c0] sm:$0xf]
        %v1368 = vld [vmem:[%s1216 + $0x1c4] sm:$0xf]
        %v1369 = vld [vmem:[%s1216 + $0x1c8] sm:$0xf]
        %v1370 = vld [vmem:[%s1216 + $0x1cc] sm:$0xf]
        %v1371 = vld [vmem:[%s1216 + $0x1d0] sm:$0xf]
        %v1372 = vld [vmem:[%s1216 + $0x1d4] sm:$0xf]
        %v1373 = vld [vmem:[%s1216 + $0x1d8] sm:$0xf]
        %v1374 = vld [vmem:[%s1216 + $0x1dc] sm:$0xf]
        %v1375 = vld [vmem:[%s1216 + $0x1e0] sm:$0xf]
        %v1376 = vld [vmem:[%s1216 + $0x1e4] sm:$0xf]
        %v1377 = vld [vmem:[%s1216 + $0x1e8] sm:$0xf]
        %v1378 = vld [vmem:[%s1216 + $0x1ec] sm:$0xf]
        %v1379 = vld [vmem:[%s1216 + $0x1f0] sm:$0xf]
        %v1380 = vld [vmem:[%s1216 + $0x1f4] sm:$0xf]
        %v1381 = vld [vmem:[%s1216 + $0x1f8] sm:$0xf]
        %v1382 = vld [vmem:[%s1216 + $0x1fc] sm:$0xf]
        %v1383 = vld [vmem:[%s1216 + $0x200] sm:$0xf]
        %v1384 = vld [vmem:[%s1216 + $0x204] sm:$0xf]
        %v1385 = vld [vmem:[%s1216 + $0x208] sm:$0xf]
        %v1386 = vld [vmem:[%s1216 + $0x20c] sm:$0xf]
        %v1387 = vld [vmem:[%s1216 + $0x210] sm:$0xf]
        %v1388 = vld [vmem:[%s1216 + $0x214] sm:$0xf]
        %v1389 = vld [vmem:[%s1216 + $0x218] sm:$0xf]
        %v1390 = vld [vmem:[%s1216 + $0x21c] sm:$0xf]
        %v1391 = vld [vmem:[%s1216 + $0x220] sm:$0xf]
        %v1392 = vld [vmem:[%s1216 + $0x224] sm:$0xf]
        %v1393 = vld [vmem:[%s1216 + $0x228] sm:$0xf]
        %v1394 = vld [vmem:[%s1216 + $0x22c] sm:$0xf]
        %v1395 = vld [vmem:[%s1216 + $0x230] sm:$0xf]
        %v1396 = vld [vmem:[%s1216 + $0x234] sm:$0xf]
        %v1397 = vld [vmem:[%s1216 + $0x238] sm:$0xf]
        %v1398 = vld [vmem:[%s1216 + $0x23c] sm:$0xf]
        %v1399 = vld [vmem:[%s1216 + $0x240] sm:$0xf]
        %v1400 = vld [vmem:[%s1216 + $0x244] sm:$0xf]
        %v1401 = vld [vmem:[%s1216 + $0x248] sm:$0xf]
        %v1402 = vld [vmem:[%s1216 + $0x24c] sm:$0xf]
        %v1403 = vld [vmem:[%s1216 + $0x250] sm:$0xf]
        %v1404 = vld [vmem:[%s1216 + $0x254] sm:$0xf]
        %v1405 = vld [vmem:[%s1216 + $0x258] sm:$0xf]
        %v1406 = vld [vmem:[%s1216 + $0x25c] sm:$0xf]
        %v1407 = vld [vmem:[%s1216 + $0x260] sm:$0xf]
        %v1408 = vld [vmem:[%s1216 + $0x264] sm:$0xf]
        %v1409 = vld [vmem:[%s1216 + $0x268] sm:$0xf]
        %v1410 = vld [vmem:[%s1216 + $0x26c] sm:$0xf]
        %v1411 = vld [vmem:[%s1216 + $0x270] sm:$0xf]
        %v1412 = vld [vmem:[%s1216 + $0x274] sm:$0xf]
        %v1413 = vld [vmem:[%s1216 + $0x278] sm:$0xf]
        %v1414 = vld [vmem:[%s1216 + $0x27c] sm:$0xf]
        %v1415 = vld [vmem:[%s1216 + $0x280] sm:$0xf]
        %v1416 = vld [vmem:[%s1216 + $0x284] sm:$0xf]
        %v1417 = vld [vmem:[%s1216 + $0x288] sm:$0xf]
        %v1418 = vld [vmem:[%s1216 + $0x28c] sm:$0xf]
        %v1419 = vld [vmem:[%s1216 + $0x290] sm:$0xf]
        %v1420 = vld [vmem:[%s1216 + $0x294] sm:$0xf]
        %v1421 = vld [vmem:[%s1216 + $0x298] sm:$0xf]
        %v1422 = vld [vmem:[%s1216 + $0x29c] sm:$0xf]
        %v1423 = vld [vmem:[%s1216 + $0x2a0] sm:$0xf]
        %v1424 = vld [vmem:[%s1216 + $0x2a4] sm:$0xf]
        %v1425 = vld [vmem:[%s1216 + $0x2a8] sm:$0xf]
        %v1426 = vld [vmem:[%s1216 + $0x2ac] sm:$0xf]
        %v1427 = vld [vmem:[%s1216 + $0x2b0] sm:$0xf]
        %v1428 = vld [vmem:[%s1216 + $0x2b4] sm:$0xf]
        %v1429 = vld [vmem:[%s1216 + $0x2b8] sm:$0xf]
        %v1430 = vld [vmem:[%s1216 + $0x2bc] sm:$0xf]
        %v1431 = vld [vmem:[%s1216 + $0x2c0] sm:$0xf]
        %v1432 = vld [vmem:[%s1216 + $0x2c4] sm:$0xf]
        %v1433 = vld [vmem:[%s1216 + $0x2c8] sm:$0xf]
        %v1434 = vld [vmem:[%s1216 + $0x2cc] sm:$0xf]
        %v1435 = vld [vmem:[%s1216 + $0x2d0] sm:$0xf]
        %v1436 = vld [vmem:[%s1216 + $0x2d4] sm:$0xf]
        %v1437 = vld [vmem:[%s1216 + $0x2d8] sm:$0xf]
        %v1438 = vld [vmem:[%s1216 + $0x2dc] sm:$0xf]
        %v1439 = vld [vmem:[%s1216 + $0x2e0] sm:$0xf]
        %v1440 = vld [vmem:[%s1216 + $0x2e4] sm:$0xf]
        %v1441 = vld [vmem:[%s1216 + $0x2e8] sm:$0xf]
        %v1442 = vld [vmem:[%s1216 + $0x2ec] sm:$0xf]
        %v1443 = vld [vmem:[%s1216 + $0x2f0] sm:$0xf]
        %v1444 = vld [vmem:[%s1216 + $0x2f4] sm:$0xf]
        %v1445 = vld [vmem:[%s1216 + $0x2f8] sm:$0xf]
        %v1446 = vld [vmem:[%s1216 + $0x2fc] sm:$0xf]
        %v1447 = vld [vmem:[%s1216 + $0x300] sm:$0xf]
        %v1448 = vld [vmem:[%s1216 + $0x304] sm:$0xf]
        %v1449 = vld [vmem:[%s1216 + $0x308] sm:$0xf]
        %v1450 = vld [vmem:[%s1216 + $0x30c] sm:$0xf]
        %v1451 = vld [vmem:[%s1216 + $0x310] sm:$0xf]
        %v1452 = vld [vmem:[%s1216 + $0x314] sm:$0xf]
        %v1453 = vld [vmem:[%s1216 + $0x318] sm:$0xf]
        %v1454 = vld [vmem:[%s1216 + $0x31c] sm:$0xf]
        %v1455 = vld [vmem:[%s1216 + $0x320] sm:$0xf]
        %v1456 = vld [vmem:[%s1216 + $0x324] sm:$0xf]
        %v1457 = vld [vmem:[%s1216 + $0x328] sm:$0xf]
        %v1458 = vld [vmem:[%s1216 + $0x32c] sm:$0xf]
        %v1459 = vld [vmem:[%s1216 + $0x330] sm:$0xf]
        %v1460 = vld [vmem:[%s1216 + $0x334] sm:$0xf]
        %v1461 = vld [vmem:[%s1216 + $0x338] sm:$0xf]
        %v1462 = vld [vmem:[%s1216 + $0x33c] sm:$0xf]
        %v1463 = vld [vmem:[%s1216 + $0x340] sm:$0xf]
        %v1464 = vld [vmem:[%s1216 + $0x344] sm:$0xf]
        %v1465 = vld [vmem:[%s1216 + $0x348] sm:$0xf]
        %v1466 = vld [vmem:[%s1216 + $0x34c] sm:$0xf]
        %v1467 = vld [vmem:[%s1216 + $0x350] sm:$0xf]
        %v1468 = vld [vmem:[%s1216 + $0x354] sm:$0xf]
        %v1469 = vld [vmem:[%s1216 + $0x358] sm:$0xf]
        %v1470 = vld [vmem:[%s1216 + $0x35c] sm:$0xf]
        %v1471 = vld [vmem:[%s1216 + $0x360] sm:$0xf]
        %v1472 = vld [vmem:[%s1216 + $0x364] sm:$0xf]
        %v1473 = vld [vmem:[%s1216 + $0x368] sm:$0xf]
        %v1474 = vld [vmem:[%s1216 + $0x36c] sm:$0xf]
        %v1475 = vld [vmem:[%s1216 + $0x370] sm:$0xf]
        %v1476 = vld [vmem:[%s1216 + $0x374] sm:$0xf]
        %v1477 = vld [vmem:[%s1216 + $0x378] sm:$0xf]
        %v1478 = vld [vmem:[%s1216 + $0x37c] sm:$0xf]
        %v1479 = vld [vmem:[%s1216 + $0x380] sm:$0xf]
        %v1480 = vld [vmem:[%s1216 + $0x384] sm:$0xf]
        %v1481 = vld [vmem:[%s1216 + $0x388] sm:$0xf]
        %v1482 = vld [vmem:[%s1216 + $0x38c] sm:$0xf]
        %v1483 = vld [vmem:[%s1216 + $0x390] sm:$0xf]
        %v1484 = vld [vmem:[%s1216 + $0x394] sm:$0xf]
        %v1485 = vld [vmem:[%s1216 + $0x398] sm:$0xf]
        %v1486 = vld [vmem:[%s1216 + $0x39c] sm:$0xf]
        %v1487 = vld [vmem:[%s1216 + $0x3a0] sm:$0xf]
        %v1488 = vld [vmem:[%s1216 + $0x3a4] sm:$0xf]
        %v1489 = vld [vmem:[%s1216 + $0x3a8] sm:$0xf]
        %v1490 = vld [vmem:[%s1216 + $0x3ac] sm:$0xf]
        %v1491 = vld [vmem:[%s1216 + $0x3b0] sm:$0xf]
        %v1492 = vld [vmem:[%s1216 + $0x3b4] sm:$0xf]
        %v1493 = vld [vmem:[%s1216 + $0x3b8] sm:$0xf]
        %v1494 = vld [vmem:[%s1216 + $0x3bc] sm:$0xf]
        %v1495 = vld [vmem:[%s1216 + $0x3c0] sm:$0xf]
        %v1496 = vld [vmem:[%s1216 + $0x3c4] sm:$0xf]
        %v1497 = vld [vmem:[%s1216 + $0x3c8] sm:$0xf]
        %v1498 = vld [vmem:[%s1216 + $0x3cc] sm:$0xf]
        %v1499 = vld [vmem:[%s1216 + $0x3d0] sm:$0xf]
        %v1500 = vld [vmem:[%s1216 + $0x3d4] sm:$0xf]
        %v1501 = vld [vmem:[%s1216 + $0x3d8] sm:$0xf]
        %v1502 = vld [vmem:[%s1216 + $0x3dc] sm:$0xf]
        %v1503 = vld [vmem:[%s1216 + $0x3e0] sm:$0xf]
        %v1504 = vld [vmem:[%s1216 + $0x3e4] sm:$0xf]
        %v1505 = vld [vmem:[%s1216 + $0x3e8] sm:$0xf]
        %v1506 = vld [vmem:[%s1216 + $0x3ec] sm:$0xf]
        %v1507 = vld [vmem:[%s1216 + $0x3f0] sm:$0xf]
        %v1508 = vld [vmem:[%s1216 + $0x3f4] sm:$0xf]
        %v1509 = vld [vmem:[%s1216 + $0x3f8] sm:$0xf]
        %v1510 = vld [vmem:[%s1216 + $0x3fc] sm:$0xf]
        %v1511 = vld [vmem:[%s1241] sm:$0x1]
        %v1513 = vlaneseq
        %v1514 = vshrl.u32 %v1513, 7
        %v1515 = vsub.s32 0, %v1514
        %v1516 = vrot.slane %v1511, %v1515
        %v1526 = vunpack.c.l.b16 %v1247
        %v1527 = vunpack.c.h.b16 %v1247
        %v1528 = vunpack.c.l.b16 %v1248
        %v1529 = vunpack.c.h.b16 %v1248
        %v1530 = vunpack.c.l.b16 %v1249
        %v1531 = vunpack.c.h.b16 %v1249
        %v1532 = vunpack.c.l.b16 %v1250
        %v1533 = vunpack.c.h.b16 %v1250
        %v1534 = vunpack.c.l.b16 %v1251
        %v1535 = vunpack.c.h.b16 %v1251
        %v1536 = vunpack.c.l.b16 %v1252
        %v1537 = vunpack.c.h.b16 %v1252
        %v1538 = vunpack.c.l.b16 %v1253
        %v1539 = vunpack.c.h.b16 %v1253
        %v1540 = vunpack.c.l.b16 %v1254
        %v1541 = vunpack.c.h.b16 %v1254
        %v1542 = vpack.c.b16 %v1526, %v1526
        %v1543 = vpack.c.b16 %v1527, %v1527
        %v1544 = vpack.c.b16 %v1528, %v1528
        %v1545 = vpack.c.b16 %v1529, %v1529
        %v1546 = vpack.c.b16 %v1530, %v1530
        %v1547 = vpack.c.b16 %v1531, %v1531
        %v1548 = vpack.c.b16 %v1532, %v1532
        %v1549 = vpack.c.b16 %v1533, %v1533
        %v1550 = vpack.c.b16 %v1534, %v1534
        %v1551 = vpack.c.b16 %v1535, %v1535
        %v1552 = vpack.c.b16 %v1536, %v1536
        %v1553 = vpack.c.b16 %v1537, %v1537
        %v1554 = vpack.c.b16 %v1538, %v1538
        %v1555 = vpack.c.b16 %v1539, %v1539
        %v1556 = vpack.c.b16 %v1540, %v1540
        %v1557 = vpack.c.b16 %v1541, %v1541
        %v1830 = vunpack.c.l.b16 %v1255
        %v1831 = vunpack.c.l.b16 %v1256
        %v1832 = vunpack.c.l.b16 %v1257
        %v1833 = vunpack.c.l.b16 %v1258
        %v1834 = vunpack.c.l.b16 %v1259
        %v1835 = vunpack.c.l.b16 %v1260
        %v1836 = vunpack.c.l.b16 %v1261
        %v1837 = vunpack.c.l.b16 %v1262
        %v1838 = vunpack.c.l.b16 %v1263
        %v1839 = vunpack.c.l.b16 %v1264
        %v1840 = vunpack.c.l.b16 %v1265
        %v1841 = vunpack.c.l.b16 %v1266
        %v1842 = vunpack.c.l.b16 %v1267
        %v1843 = vunpack.c.l.b16 %v1268
        %v1844 = vunpack.c.l.b16 %v1269
        %v1845 = vunpack.c.l.b16 %v1270
        %v1846 = vunpack.c.l.b16 %v1271
        %v1847 = vunpack.c.l.b16 %v1272
        %v1848 = vunpack.c.l.b16 %v1273
        %v1849 = vunpack.c.l.b16 %v1274
        %v1850 = vunpack.c.l.b16 %v1275
        %v1851 = vunpack.c.l.b16 %v1276
        %v1852 = vunpack.c.l.b16 %v1277
        %v1853 = vunpack.c.l.b16 %v1278
        %v1854 = vunpack.c.l.b16 %v1279
        %v1855 = vunpack.c.l.b16 %v1280
        %v1856 = vunpack.c.l.b16 %v1281
        %v1857 = vunpack.c.l.b16 %v1282
        %v1858 = vunpack.c.l.b16 %v1283
        %v1859 = vunpack.c.l.b16 %v1284
        %v1860 = vunpack.c.l.b16 %v1285
        %v1861 = vunpack.c.l.b16 %v1286
        %v1862 = vunpack.c.l.b16 %v1287
        %v1863 = vunpack.c.l.b16 %v1288
        %v1864 = vunpack.c.l.b16 %v1289
        %v1865 = vunpack.c.l.b16 %v1290
        %v1866 = vunpack.c.l.b16 %v1291
        %v1867 = vunpack.c.l.b16 %v1292
        %v1868 = vunpack.c.l.b16 %v1293
        %v1869 = vunpack.c.l.b16 %v1294
        %v1870 = vunpack.c.l.b16 %v1295
        %v1871 = vunpack.c.l.b16 %v1296
        %v1872 = vunpack.c.l.b16 %v1297
        %v1873 = vunpack.c.l.b16 %v1298
        %v1874 = vunpack.c.l.b16 %v1299
        %v1875 = vunpack.c.l.b16 %v1300
        %v1876 = vunpack.c.l.b16 %v1301
        %v1877 = vunpack.c.l.b16 %v1302
        %v1878 = vunpack.c.l.b16 %v1303
        %v1879 = vunpack.c.l.b16 %v1304
        %v1880 = vunpack.c.l.b16 %v1305
        %v1881 = vunpack.c.l.b16 %v1306
        %v1882 = vunpack.c.l.b16 %v1307
        %v1883 = vunpack.c.l.b16 %v1308
        %v1884 = vunpack.c.l.b16 %v1309
        %v1885 = vunpack.c.l.b16 %v1310
        %v1886 = vunpack.c.l.b16 %v1311
        %v1887 = vunpack.c.l.b16 %v1312
        %v1888 = vunpack.c.l.b16 %v1313
        %v1889 = vunpack.c.l.b16 %v1314
        %v1890 = vunpack.c.l.b16 %v1315
        %v1891 = vunpack.c.l.b16 %v1316
        %v1892 = vunpack.c.l.b16 %v1317
        %v1893 = vunpack.c.l.b16 %v1318
        %v1894 = vunpack.c.l.b16 %v1319
        %v1895 = vunpack.c.l.b16 %v1320
        %v1896 = vunpack.c.l.b16 %v1321
        %v1897 = vunpack.c.l.b16 %v1322
        %v1898 = vunpack.c.l.b16 %v1323
        %v1899 = vunpack.c.l.b16 %v1324
        %v1900 = vunpack.c.l.b16 %v1325
        %v1901 = vunpack.c.l.b16 %v1326
        %v1902 = vunpack.c.l.b16 %v1327
        %v1903 = vunpack.c.l.b16 %v1328
        %v1904 = vunpack.c.l.b16 %v1329
        %v1905 = vunpack.c.l.b16 %v1330
        %v1906 = vunpack.c.l.b16 %v1331
        %v1907 = vunpack.c.l.b16 %v1332
        %v1908 = vunpack.c.l.b16 %v1333
        %v1909 = vunpack.c.l.b16 %v1334
        %v1910 = vunpack.c.l.b16 %v1335
        %v1911 = vunpack.c.l.b16 %v1336
        %v1912 = vunpack.c.l.b16 %v1337
        %v1913 = vunpack.c.l.b16 %v1338
        %v1914 = vunpack.c.l.b16 %v1339
        %v1915 = vunpack.c.l.b16 %v1340
        %v1916 = vunpack.c.l.b16 %v1341
        %v1917 = vunpack.c.l.b16 %v1342
        %v1918 = vunpack.c.l.b16 %v1343
        %v1919 = vunpack.c.l.b16 %v1344
        %v1920 = vunpack.c.l.b16 %v1345
        %v1921 = vunpack.c.l.b16 %v1346
        %v1922 = vunpack.c.l.b16 %v1347
        %v1923 = vunpack.c.l.b16 %v1348
        %v1924 = vunpack.c.l.b16 %v1349
        %v1925 = vunpack.c.l.b16 %v1350
        %v1926 = vunpack.c.l.b16 %v1351
        %v1927 = vunpack.c.l.b16 %v1352
        %v1928 = vunpack.c.l.b16 %v1353
        %v1929 = vunpack.c.l.b16 %v1354
        %v1930 = vunpack.c.l.b16 %v1355
        %v1931 = vunpack.c.l.b16 %v1356
        %v1932 = vunpack.c.l.b16 %v1357
        %v1933 = vunpack.c.l.b16 %v1358
        %v1934 = vunpack.c.l.b16 %v1359
        %v1935 = vunpack.c.l.b16 %v1360
        %v1936 = vunpack.c.l.b16 %v1361
        %v1937 = vunpack.c.l.b16 %v1362
        %v1938 = vunpack.c.l.b16 %v1363
        %v1939 = vunpack.c.l.b16 %v1364
        %v1940 = vunpack.c.l.b16 %v1365
        %v1941 = vunpack.c.l.b16 %v1366
        %v1942 = vunpack.c.l.b16 %v1367
        %v1943 = vunpack.c.l.b16 %v1368
        %v1944 = vunpack.c.l.b16 %v1369
        %v1945 = vunpack.c.l.b16 %v1370
        %v1946 = vunpack.c.l.b16 %v1371
        %v1947 = vunpack.c.l.b16 %v1372
        %v1948 = vunpack.c.l.b16 %v1373
        %v1949 = vunpack.c.l.b16 %v1374
        %v1950 = vunpack.c.l.b16 %v1375
        %v1951 = vunpack.c.l.b16 %v1376
        %v1952 = vunpack.c.l.b16 %v1377
        %v1953 = vunpack.c.l.b16 %v1378
        %v1954 = vunpack.c.l.b16 %v1379
        %v1955 = vunpack.c.l.b16 %v1380
        %v1956 = vunpack.c.l.b16 %v1381
        %v1957 = vunpack.c.l.b16 %v1382
        %v1958 = vunpack.c.l.b16 %v1383
        %v1959 = vunpack.c.l.b16 %v1384
        %v1960 = vunpack.c.l.b16 %v1385
        %v1961 = vunpack.c.l.b16 %v1386
        %v1962 = vunpack.c.l.b16 %v1387
        %v1963 = vunpack.c.l.b16 %v1388
        %v1964 = vunpack.c.l.b16 %v1389
        %v1965 = vunpack.c.l.b16 %v1390
        %v1966 = vunpack.c.l.b16 %v1391
        %v1967 = vunpack.c.l.b16 %v1392
        %v1968 = vunpack.c.l.b16 %v1393
        %v1969 = vunpack.c.l.b16 %v1394
        %v1970 = vunpack.c.l.b16 %v1395
        %v1971 = vunpack.c.l.b16 %v1396
        %v1972 = vunpack.c.l.b16 %v1397
        %v1973 = vunpack.c.l.b16 %v1398
        %v1974 = vunpack.c.l.b16 %v1399
        %v1975 = vunpack.c.l.b16 %v1400
        %v1976 = vunpack.c.l.b16 %v1401
        %v1977 = vunpack.c.l.b16 %v1402
        %v1978 = vunpack.c.l.b16 %v1403
        %v1979 = vunpack.c.l.b16 %v1404
        %v1980 = vunpack.c.l.b16 %v1405
        %v1981 = vunpack.c.l.b16 %v1406
        %v1982 = vunpack.c.l.b16 %v1407
        %v1983 = vunpack.c.l.b16 %v1408
        %v1984 = vunpack.c.l.b16 %v1409
        %v1985 = vunpack.c.l.b16 %v1410
        %v1986 = vunpack.c.l.b16 %v1411
        %v1987 = vunpack.c.l.b16 %v1412
        %v1988 = vunpack.c.l.b16 %v1413
        %v1989 = vunpack.c.l.b16 %v1414
        %v1990 = vunpack.c.l.b16 %v1415
        %v1991 = vunpack.c.l.b16 %v1416
        %v1992 = vunpack.c.l.b16 %v1417
        %v1993 = vunpack.c.l.b16 %v1418
        %v1994 = vunpack.c.l.b16 %v1419
        %v1995 = vunpack.c.l.b16 %v1420
        %v1996 = vunpack.c.l.b16 %v1421
        %v1997 = vunpack.c.l.b16 %v1422
        %v1998 = vunpack.c.l.b16 %v1423
        %v1999 = vunpack.c.l.b16 %v1424
        %v2000 = vunpack.c.l.b16 %v1425
        %v2001 = vunpack.c.l.b16 %v1426
        %v2002 = vunpack.c.l.b16 %v1427
        %v2003 = vunpack.c.l.b16 %v1428
        %v2004 = vunpack.c.l.b16 %v1429
        %v2005 = vunpack.c.l.b16 %v1430
        %v2006 = vunpack.c.l.b16 %v1431
        %v2007 = vunpack.c.l.b16 %v1432
        %v2008 = vunpack.c.l.b16 %v1433
        %v2009 = vunpack.c.l.b16 %v1434
        %v2010 = vunpack.c.l.b16 %v1435
        %v2011 = vunpack.c.l.b16 %v1436
        %v2012 = vunpack.c.l.b16 %v1437
        %v2013 = vunpack.c.l.b16 %v1438
        %v2014 = vunpack.c.l.b16 %v1439
        %v2015 = vunpack.c.l.b16 %v1440
        %v2016 = vunpack.c.l.b16 %v1441
        %v2017 = vunpack.c.l.b16 %v1442
        %v2018 = vunpack.c.l.b16 %v1443
        %v2019 = vunpack.c.l.b16 %v1444
        %v2020 = vunpack.c.l.b16 %v1445
        %v2021 = vunpack.c.l.b16 %v1446
        %v2022 = vunpack.c.l.b16 %v1447
        %v2023 = vunpack.c.l.b16 %v1448
        %v2024 = vunpack.c.l.b16 %v1449
        %v2025 = vunpack.c.l.b16 %v1450
        %v2026 = vunpack.c.l.b16 %v1451
        %v2027 = vunpack.c.l.b16 %v1452
        %v2028 = vunpack.c.l.b16 %v1453
        %v2029 = vunpack.c.l.b16 %v1454
        %v2030 = vunpack.c.l.b16 %v1455
        %v2031 = vunpack.c.l.b16 %v1456
        %v2032 = vunpack.c.l.b16 %v1457
        %v2033 = vunpack.c.l.b16 %v1458
        %v2034 = vunpack.c.l.b16 %v1459
        %v2035 = vunpack.c.l.b16 %v1460
        %v2036 = vunpack.c.l.b16 %v1461
        %v2037 = vunpack.c.l.b16 %v1462
        %v2038 = vunpack.c.l.b16 %v1463
        %v2039 = vunpack.c.l.b16 %v1464
        %v2040 = vunpack.c.l.b16 %v1465
        %v2041 = vunpack.c.l.b16 %v1466
        %v2042 = vunpack.c.l.b16 %v1467
        %v2043 = vunpack.c.l.b16 %v1468
        %v2044 = vunpack.c.l.b16 %v1469
        %v2045 = vunpack.c.l.b16 %v1470
        %v2046 = vunpack.c.l.b16 %v1471
        %v2047 = vunpack.c.l.b16 %v1472
        %v2048 = vunpack.c.l.b16 %v1473
        %v2049 = vunpack.c.l.b16 %v1474
        %v2050 = vunpack.c.l.b16 %v1475
        %v2051 = vunpack.c.l.b16 %v1476
        %v2052 = vunpack.c.l.b16 %v1477
        %v2053 = vunpack.c.l.b16 %v1478
        %v2054 = vunpack.c.l.b16 %v1479
        %v2055 = vunpack.c.l.b16 %v1480
        %v2056 = vunpack.c.l.b16 %v1481
        %v2057 = vunpack.c.l.b16 %v1482
        %v2058 = vunpack.c.l.b16 %v1483
        %v2059 = vunpack.c.l.b16 %v1484
        %v2060 = vunpack.c.l.b16 %v1485
        %v2061 = vunpack.c.l.b16 %v1486
        %v2062 = vunpack.c.l.b16 %v1487
        %v2063 = vunpack.c.l.b16 %v1488
        %v2064 = vunpack.c.l.b16 %v1489
        %v2065 = vunpack.c.l.b16 %v1490
        %v2066 = vunpack.c.l.b16 %v1491
        %v2067 = vunpack.c.l.b16 %v1492
        %v2068 = vunpack.c.l.b16 %v1493
        %v2069 = vunpack.c.l.b16 %v1494
        %v2070 = vunpack.c.l.b16 %v1495
        %v2071 = vunpack.c.l.b16 %v1496
        %v2072 = vunpack.c.l.b16 %v1497
        %v2073 = vunpack.c.l.b16 %v1498
        %v2074 = vunpack.c.l.b16 %v1499
        %v2075 = vunpack.c.l.b16 %v1500
        %v2076 = vunpack.c.l.b16 %v1501
        %v2077 = vunpack.c.l.b16 %v1502
        %v2078 = vunpack.c.l.b16 %v1503
        %v2079 = vunpack.c.l.b16 %v1504
        %v2080 = vunpack.c.l.b16 %v1505
        %v2081 = vunpack.c.l.b16 %v1506
        %v2082 = vunpack.c.l.b16 %v1507
        %v2083 = vunpack.c.l.b16 %v1508
        %v2084 = vunpack.c.l.b16 %v1509
        %v2085 = vunpack.c.l.b16 %v1510
        %v2086 = vpack.c.b16 %v1831, %v1830
        %v2087 = vpack.c.b16 %v1833, %v1832
        %v2088 = vpack.c.b16 %v1835, %v1834
        %v2089 = vpack.c.b16 %v1837, %v1836
        %v2090 = vpack.c.b16 %v1839, %v1838
        %v2091 = vpack.c.b16 %v1841, %v1840
        %v2092 = vpack.c.b16 %v1843, %v1842
        %v2093 = vpack.c.b16 %v1845, %v1844
        %v2094 = vpack.c.b16 %v1847, %v1846
        %v2095 = vpack.c.b16 %v1849, %v1848
        %v2096 = vpack.c.b16 %v1851, %v1850
        %v2097 = vpack.c.b16 %v1853, %v1852
        %v2098 = vpack.c.b16 %v1855, %v1854
        %v2099 = vpack.c.b16 %v1857, %v1856
        %v2100 = vpack.c.b16 %v1859, %v1858
        %v2101 = vpack.c.b16 %v1861, %v1860
        %v2102 = vpack.c.b16 %v1863, %v1862
        %v2103 = vpack.c.b16 %v1865, %v1864
        %v2104 = vpack.c.b16 %v1867, %v1866
        %v2105 = vpack.c.b16 %v1869, %v1868
        %v2106 = vpack.c.b16 %v1871, %v1870
        %v2107 = vpack.c.b16 %v1873, %v1872
        %v2108 = vpack.c.b16 %v1875, %v1874
        %v2109 = vpack.c.b16 %v1877, %v1876
        %v2110 = vpack.c.b16 %v1879, %v1878
        %v2111 = vpack.c.b16 %v1881, %v1880
        %v2112 = vpack.c.b16 %v1883, %v1882
        %v2113 = vpack.c.b16 %v1885, %v1884
        %v2114 = vpack.c.b16 %v1887, %v1886
        %v2115 = vpack.c.b16 %v1889, %v1888
        %v2116 = vpack.c.b16 %v1891, %v1890
        %v2117 = vpack.c.b16 %v1893, %v1892
        %v2118 = vpack.c.b16 %v1895, %v1894
        %v2119 = vpack.c.b16 %v1897, %v1896
        %v2120 = vpack.c.b16 %v1899, %v1898
        %v2121 = vpack.c.b16 %v1901, %v1900
        %v2122 = vpack.c.b16 %v1903, %v1902
        %v2123 = vpack.c.b16 %v1905, %v1904
        %v2124 = vpack.c.b16 %v1907, %v1906
        %v2125 = vpack.c.b16 %v1909, %v1908
        %v2126 = vpack.c.b16 %v1911, %v1910
        %v2127 = vpack.c.b16 %v1913, %v1912
        %v2128 = vpack.c.b16 %v1915, %v1914
        %v2129 = vpack.c.b16 %v1917, %v1916
        %v2130 = vpack.c.b16 %v1919, %v1918
        %v2131 = vpack.c.b16 %v1921, %v1920
        %v2132 = vpack.c.b16 %v1923, %v1922
        %v2133 = vpack.c.b16 %v1925, %v1924
        %v2134 = vpack.c.b16 %v1927, %v1926
        %v2135 = vpack.c.b16 %v1929, %v1928
        %v2136 = vpack.c.b16 %v1931, %v1930
        %v2137 = vpack.c.b16 %v1933, %v1932
        %v2138 = vpack.c.b16 %v1935, %v1934
        %v2139 = vpack.c.b16 %v1937, %v1936
        %v2140 = vpack.c.b16 %v1939, %v1938
        %v2141 = vpack.c.b16 %v1941, %v1940
        %v2142 = vpack.c.b16 %v1943, %v1942
        %v2143 = vpack.c.b16 %v1945, %v1944
        %v2144 = vpack.c.b16 %v1947, %v1946
        %v2145 = vpack.c.b16 %v1949, %v1948
        %v2146 = vpack.c.b16 %v1951, %v1950
        %v2147 = vpack.c.b16 %v1953, %v1952
        %v2148 = vpack.c.b16 %v1955, %v1954
        %v2149 = vpack.c.b16 %v1957, %v1956
        %v2150 = vpack.c.b16 %v1959, %v1958
        %v2151 = vpack.c.b16 %v1961, %v1960
        %v2152 = vpack.c.b16 %v1963, %v1962
        %v2153 = vpack.c.b16 %v1965, %v1964
        %v2154 = vpack.c.b16 %v1967, %v1966
        %v2155 = vpack.c.b16 %v1969, %v1968
        %v2156 = vpack.c.b16 %v1971, %v1970
        %v2157 = vpack.c.b16 %v1973, %v1972
        %v2158 = vpack.c.b16 %v1975, %v1974
        %v2159 = vpack.c.b16 %v1977, %v1976
        %v2160 = vpack.c.b16 %v1979, %v1978
        %v2161 = vpack.c.b16 %v1981, %v1980
        %v2162 = vpack.c.b16 %v1983, %v1982
        %v2163 = vpack.c.b16 %v1985, %v1984
        %v2164 = vpack.c.b16 %v1987, %v1986
        %v2165 = vpack.c.b16 %v1989, %v1988
        %v2166 = vpack.c.b16 %v1991, %v1990
        %v2167 = vpack.c.b16 %v1993, %v1992
        %v2168 = vpack.c.b16 %v1995, %v1994
        %v2169 = vpack.c.b16 %v1997, %v1996
        %v2170 = vpack.c.b16 %v1999, %v1998
        %v2171 = vpack.c.b16 %v2001, %v2000
        %v2172 = vpack.c.b16 %v2003, %v2002
        %v2173 = vpack.c.b16 %v2005, %v2004
        %v2174 = vpack.c.b16 %v2007, %v2006
        %v2175 = vpack.c.b16 %v2009, %v2008
        %v2176 = vpack.c.b16 %v2011, %v2010
        %v2177 = vpack.c.b16 %v2013, %v2012
        %v2178 = vpack.c.b16 %v2015, %v2014
        %v2179 = vpack.c.b16 %v2017, %v2016
        %v2180 = vpack.c.b16 %v2019, %v2018
        %v2181 = vpack.c.b16 %v2021, %v2020
        %v2182 = vpack.c.b16 %v2023, %v2022
        %v2183 = vpack.c.b16 %v2025, %v2024
        %v2184 = vpack.c.b16 %v2027, %v2026
        %v2185 = vpack.c.b16 %v2029, %v2028
        %v2186 = vpack.c.b16 %v2031, %v2030
        %v2187 = vpack.c.b16 %v2033, %v2032
        %v2188 = vpack.c.b16 %v2035, %v2034
        %v2189 = vpack.c.b16 %v2037, %v2036
        %v2190 = vpack.c.b16 %v2039, %v2038
        %v2191 = vpack.c.b16 %v2041, %v2040
        %v2192 = vpack.c.b16 %v2043, %v2042
        %v2193 = vpack.c.b16 %v2045, %v2044
        %v2194 = vpack.c.b16 %v2047, %v2046
        %v2195 = vpack.c.b16 %v2049, %v2048
        %v2196 = vpack.c.b16 %v2051, %v2050
        %v2197 = vpack.c.b16 %v2053, %v2052
        %v2198 = vpack.c.b16 %v2055, %v2054
        %v2199 = vpack.c.b16 %v2057, %v2056
        %v2200 = vpack.c.b16 %v2059, %v2058
        %v2201 = vpack.c.b16 %v2061, %v2060
        %v2202 = vpack.c.b16 %v2063, %v2062
        %v2203 = vpack.c.b16 %v2065, %v2064
        %v2204 = vpack.c.b16 %v2067, %v2066
        %v2205 = vpack.c.b16 %v2069, %v2068
        %v2206 = vpack.c.b16 %v2071, %v2070
        %v2207 = vpack.c.b16 %v2073, %v2072
        %v2208 = vpack.c.b16 %v2075, %v2074
        %v2209 = vpack.c.b16 %v2077, %v2076
        %v2210 = vpack.c.b16 %v2079, %v2078
        %v2211 = vpack.c.b16 %v2081, %v2080
        %v2212 = vpack.c.b16 %v2083, %v2082
        %v2213 = vpack.c.b16 %v2085, %v2084
        %2342 = vmatprep.subr.bf16.mxu0 0
        %2343 = vmatpush1.bf16.msra.mxu0 %v2093
        %2344 = vmatprep.subr.bf16.mxu0 0
        %2345 = vmatpush1.bf16.msra.mxu0 %v2092
        %2346 = vmatprep.subr.bf16.mxu0 0
        %2347 = vmatpush1.bf16.msra.mxu0 %v2091
        %2348 = vmatprep.subr.bf16.mxu0 0
        %2349 = vmatpush1.bf16.msra.mxu0 %v2090
        %2350 = vmatprep.subr.bf16.mxu0 0
        %2351 = vmatpush1.bf16.msra.mxu0 %v2089
        %2352 = vmatprep.subr.bf16.mxu0 0
        %2353 = vmatpush1.bf16.msra.mxu0 %v2088
        %2354 = vmatprep.subr.bf16.mxu0 0
        %2355 = vmatpush1.bf16.msra.mxu0 %v2087
        %2356 = vmatprep.subr.bf16.mxu0 0
        %2357 = vmatpush1.bf16.msra.mxu0 %v2086
        %2358 = vmatprep.subr.bf16.mxu0 0
        %2359 = vmatpush2.bf16.msra.mxu0 %v2101
        %2360 = vmatprep.subr.bf16.mxu0 0
        %2361 = vmatpush2.bf16.msra.mxu0 %v2100
        %2362 = vmatprep.subr.bf16.mxu0 0
        %2363 = vmatpush2.bf16.msra.mxu0 %v2099
        %2364 = vmatprep.subr.bf16.mxu0 0
        %2365 = vmatpush2.bf16.msra.mxu0 %v2098
        %2366 = vmatprep.subr.bf16.mxu0 0
        %2367 = vmatpush2.bf16.msra.mxu0 %v2097
        %2368 = vmatprep.subr.bf16.mxu0 0
        %2369 = vmatpush2.bf16.msra.mxu0 %v2096
        %2370 = vmatprep.subr.bf16.mxu0 0
        %2371 = vmatpush2.bf16.msra.mxu0 %v2095
        %2372 = vmatprep.subr.bf16.mxu0 0
        %2373 = vmatpush2.bf16.msra.mxu0 %v2094
        %2374 = vmatprep.mubr.bf16.mxu0 %v1543
        %2375 = vmatmul.mubr.bf16.gmra.mxu0 %v1542
        %v2376 = vpop.f32.mrf.mxu0
        %v2377 = vadd.f32 %v1516, %v2376
        %v2378 = vpop.f32.mrf.mxu0
        %v2379 = vpop.f32.mrf.mxu0
        %v2380 = vpop.f32.mrf.mxu0
        %2381 = vdwg.mxu0
        %2382 = vmatprep.subr.bf16.mxu0 0
        %2383 = vmatpush1.bf16.msra.mxu0 %v2109
        %2384 = vmatprep.subr.bf16.mxu0 0
        %2385 = vmatpush1.bf16.msra.mxu0 %v2108
        %2386 = vmatprep.subr.bf16.mxu0 0
        %2387 = vmatpush1.bf16.msra.mxu0 %v2107
        %2388 = vmatprep.subr.bf16.mxu0 0
        %2389 = vmatpush1.bf16.msra.mxu0 %v2106
        %2390 = vmatprep.subr.bf16.mxu0 0
        %2391 = vmatpush1.bf16.msra.mxu0 %v2105
        %2392 = vmatprep.subr.bf16.mxu0 0
        %2393 = vmatpush1.bf16.msra.mxu0 %v2104
        %2394 = vmatprep.subr.bf16.mxu0 0
        %2395 = vmatpush1.bf16.msra.mxu0 %v2103
        %2396 = vmatprep.subr.bf16.mxu0 0
        %2397 = vmatpush1.bf16.msra.mxu0 %v2102
        %2398 = vmatprep.subr.bf16.mxu0 0
        %2399 = vmatpush2.bf16.msra.mxu0 %v2117
        %2400 = vmatprep.subr.bf16.mxu0 0
        %2401 = vmatpush2.bf16.msra.mxu0 %v2116
        %2402 = vmatprep.subr.bf16.mxu0 0
        %2403 = vmatpush2.bf16.msra.mxu0 %v2115
        %2404 = vmatprep.subr.bf16.mxu0 0
        %2405 = vmatpush2.bf16.msra.mxu0 %v2114
        %2406 = vmatprep.subr.bf16.mxu0 0
        %2407 = vmatpush2.bf16.msra.mxu0 %v2113
        %2408 = vmatprep.subr.bf16.mxu0 0
        %2409 = vmatpush2.bf16.msra.mxu0 %v2112
        %2410 = vmatprep.subr.bf16.mxu0 0
        %2411 = vmatpush2.bf16.msra.mxu0 %v2111
        %2412 = vmatprep.subr.bf16.mxu0 0
        %2413 = vmatpush2.bf16.msra.mxu0 %v2110
        %2414 = vmatprep.mubr.bf16.mxu0 %v1545
        %2415 = vmatmul.mubr.bf16.gmra.mxu0 %v1544
        %v2416 = vpop.f32.mrf.mxu0
        %v2417 = vadd.f32 %v2377, %v2416
        %v2418 = vpop.f32.mrf.mxu0
        %v2419 = vpop.f32.mrf.mxu0
        %v2420 = vpop.f32.mrf.mxu0
        %2421 = vdwg.mxu0
        %2422 = vmatprep.subr.bf16.mxu0 0
        %2423 = vmatpush1.bf16.msra.mxu0 %v2125
        %2424 = vmatprep.subr.bf16.mxu0 0
        %2425 = vmatpush1.bf16.msra.mxu0 %v2124
        %2426 = vmatprep.subr.bf16.mxu0 0
        %2427 = vmatpush1.bf16.msra.mxu0 %v2123
        %2428 = vmatprep.subr.bf16.mxu0 0
        %2429 = vmatpush1.bf16.msra.mxu0 %v2122
        %2430 = vmatprep.subr.bf16.mxu0 0
        %2431 = vmatpush1.bf16.msra.mxu0 %v2121
        %2432 = vmatprep.subr.bf16.mxu0 0
        %2433 = vmatpush1.bf16.msra.mxu0 %v2120
        %2434 = vmatprep.subr.bf16.mxu0 0
        %2435 = vmatpush1.bf16.msra.mxu0 %v2119
        %2436 = vmatprep.subr.bf16.mxu0 0
        %2437 = vmatpush1.bf16.msra.mxu0 %v2118
        %2438 = vmatprep.subr.bf16.mxu0 0
        %2439 = vmatpush2.bf16.msra.mxu0 %v2133
        %2440 = vmatprep.subr.bf16.mxu0 0
        %2441 = vmatpush2.bf16.msra.mxu0 %v2132
        %2442 = vmatprep.subr.bf16.mxu0 0
        %2443 = vmatpush2.bf16.msra.mxu0 %v2131
        %2444 = vmatprep.subr.bf16.mxu0 0
        %2445 = vmatpush2.bf16.msra.mxu0 %v2130
        %2446 = vmatprep.subr.bf16.mxu0 0
        %2447 = vmatpush2.bf16.msra.mxu0 %v2129
        %2448 = vmatprep.subr.bf16.mxu0 0
        %2449 = vmatpush2.bf16.msra.mxu0 %v2128
        %2450 = vmatprep.subr.bf16.mxu0 0
        %2451 = vmatpush2.bf16.msra.mxu0 %v2127
        %2452 = vmatprep.subr.bf16.mxu0 0
        %2453 = vmatpush2.bf16.msra.mxu0 %v2126
        %2454 = vmatprep.mubr.bf16.mxu0 %v1547
        %2455 = vmatmul.mubr.bf16.gmra.mxu0 %v1546
        %v2456 = vpop.f32.mrf.mxu0
        %v2457 = vadd.f32 %v2417, %v2456
        %v2458 = vpop.f32.mrf.mxu0
        %v2459 = vpop.f32.mrf.mxu0
        %v2460 = vpop.f32.mrf.mxu0
        %2461 = vdwg.mxu0
        %2462 = vmatprep.subr.bf16.mxu0 0
        %2463 = vmatpush1.bf16.msra.mxu0 %v2141
        %2464 = vmatprep.subr.bf16.mxu0 0
        %2465 = vmatpush1.bf16.msra.mxu0 %v2140
        %2466 = vmatprep.subr.bf16.mxu0 0
        %2467 = vmatpush1.bf16.msra.mxu0 %v2139
        %2468 = vmatprep.subr.bf16.mxu0 0
        %2469 = vmatpush1.bf16.msra.mxu0 %v2138
        %2470 = vmatprep.subr.bf16.mxu0 0
        %2471 = vmatpush1.bf16.msra.mxu0 %v2137
        %2472 = vmatprep.subr.bf16.mxu0 0
        %2473 = vmatpush1.bf16.msra.mxu0 %v2136
        %2474 = vmatprep.subr.bf16.mxu0 0
        %2475 = vmatpush1.bf16.msra.mxu0 %v2135
        %2476 = vmatprep.subr.bf16.mxu0 0
        %2477 = vmatpush1.bf16.msra.mxu0 %v2134
        %2478 = vmatprep.subr.bf16.mxu0 0
        %2479 = vmatpush2.bf16.msra.mxu0 %v2149
        %2480 = vmatprep.subr.bf16.mxu0 0
        %2481 = vmatpush2.bf16.msra.mxu0 %v2148
        %2482 = vmatprep.subr.bf16.mxu0 0
        %2483 = vmatpush2.bf16.msra.mxu0 %v2147
        %2484 = vmatprep.subr.bf16.mxu0 0
        %2485 = vmatpush2.bf16.msra.mxu0 %v2146
        %2486 = vmatprep.subr.bf16.mxu0 0
        %2487 = vmatpush2.bf16.msra.mxu0 %v2145
        %2488 = vmatprep.subr.bf16.mxu0 0
        %2489 = vmatpush2.bf16.msra.mxu0 %v2144
        %2490 = vmatprep.subr.bf16.mxu0 0
        %2491 = vmatpush2.bf16.msra.mxu0 %v2143
        %2492 = vmatprep.subr.bf16.mxu0 0
        %2493 = vmatpush2.bf16.msra.mxu0 %v2142
        %2494 = vmatprep.mubr.bf16.mxu0 %v1549
        %2495 = vmatmul.mubr.bf16.gmra.mxu0 %v1548
        %v2496 = vpop.f32.mrf.mxu0
        %v2497 = vadd.f32 %v2457, %v2496
        %v2498 = vpop.f32.mrf.mxu0
        %v2499 = vpop.f32.mrf.mxu0
        %v2500 = vpop.f32.mrf.mxu0
        %2501 = vdwg.mxu0
        %2502 = vmatprep.subr.bf16.mxu0 0
        %2503 = vmatpush1.bf16.msra.mxu0 %v2157
        %2504 = vmatprep.subr.bf16.mxu0 0
        %2505 = vmatpush1.bf16.msra.mxu0 %v2156
        %2506 = vmatprep.subr.bf16.mxu0 0
        %2507 = vmatpush1.bf16.msra.mxu0 %v2155
        %2508 = vmatprep.subr.bf16.mxu0 0
        %2509 = vmatpush1.bf16.msra.mxu0 %v2154
        %2510 = vmatprep.subr.bf16.mxu0 0
        %2511 = vmatpush1.bf16.msra.mxu0 %v2153
        %2512 = vmatprep.subr.bf16.mxu0 0
        %2513 = vmatpush1.bf16.msra.mxu0 %v2152
        %2514 = vmatprep.subr.bf16.mxu0 0
        %2515 = vmatpush1.bf16.msra.mxu0 %v2151
        %2516 = vmatprep.subr.bf16.mxu0 0
        %2517 = vmatpush1.bf16.msra.mxu0 %v2150
        %2518 = vmatprep.subr.bf16.mxu0 0
        %2519 = vmatpush2.bf16.msra.mxu0 %v2165
        %2520 = vmatprep.subr.bf16.mxu0 0
        %2521 = vmatpush2.bf16.msra.mxu0 %v2164
        %2522 = vmatprep.subr.bf16.mxu0 0
        %2523 = vmatpush2.bf16.msra.mxu0 %v2163
        %2524 = vmatprep.subr.bf16.mxu0 0
        %2525 = vmatpush2.bf16.msra.mxu0 %v2162
        %2526 = vmatprep.subr.bf16.mxu0 0
        %2527 = vmatpush2.bf16.msra.mxu0 %v2161
        %2528 = vmatprep.subr.bf16.mxu0 0
        %2529 = vmatpush2.bf16.msra.mxu0 %v2160
        %2530 = vmatprep.subr.bf16.mxu0 0
        %2531 = vmatpush2.bf16.msra.mxu0 %v2159
        %2532 = vmatprep.subr.bf16.mxu0 0
        %2533 = vmatpush2.bf16.msra.mxu0 %v2158
        %2534 = vmatprep.mubr.bf16.mxu0 %v1551
        %2535 = vmatmul.mubr.bf16.gmra.mxu0 %v1550
        %v2536 = vpop.f32.mrf.mxu0
        %v2537 = vadd.f32 %v2497, %v2536
        %v2538 = vpop.f32.mrf.mxu0
        %v2539 = vpop.f32.mrf.mxu0
        %v2540 = vpop.f32.mrf.mxu0
        %2541 = vdwg.mxu0
        %2542 = vmatprep.subr.bf16.mxu0 0
        %2543 = vmatpush1.bf16.msra.mxu0 %v2173
        %2544 = vmatprep.subr.bf16.mxu0 0
        %2545 = vmatpush1.bf16.msra.mxu0 %v2172
        %2546 = vmatprep.subr.bf16.mxu0 0
        %2547 = vmatpush1.bf16.msra.mxu0 %v2171
        %2548 = vmatprep.subr.bf16.mxu0 0
        %2549 = vmatpush1.bf16.msra.mxu0 %v2170
        %2550 = vmatprep.subr.bf16.mxu0 0
        %2551 = vmatpush1.bf16.msra.mxu0 %v2169
        %2552 = vmatprep.subr.bf16.mxu0 0
        %2553 = vmatpush1.bf16.msra.mxu0 %v2168
        %2554 = vmatprep.subr.bf16.mxu0 0
        %2555 = vmatpush1.bf16.msra.mxu0 %v2167
        %2556 = vmatprep.subr.bf16.mxu0 0
        %2557 = vmatpush1.bf16.msra.mxu0 %v2166
        %2558 = vmatprep.subr.bf16.mxu0 0
        %2559 = vmatpush2.bf16.msra.mxu0 %v2181
        %2560 = vmatprep.subr.bf16.mxu0 0
        %2561 = vmatpush2.bf16.msra.mxu0 %v2180
        %2562 = vmatprep.subr.bf16.mxu0 0
        %2563 = vmatpush2.bf16.msra.mxu0 %v2179
        %2564 = vmatprep.subr.bf16.mxu0 0
        %2565 = vmatpush2.bf16.msra.mxu0 %v2178
        %2566 = vmatprep.subr.bf16.mxu0 0
        %2567 = vmatpush2.bf16.msra.mxu0 %v2177
        %2568 = vmatprep.subr.bf16.mxu0 0
        %2569 = vmatpush2.bf16.msra.mxu0 %v2176
        %2570 = vmatprep.subr.bf16.mxu0 0
        %2571 = vmatpush2.bf16.msra.mxu0 %v2175
        %2572 = vmatprep.subr.bf16.mxu0 0
        %2573 = vmatpush2.bf16.msra.mxu0 %v2174
        %2574 = vmatprep.mubr.bf16.mxu0 %v1553
        %2575 = vmatmul.mubr.bf16.gmra.mxu0 %v1552
        %v2576 = vpop.f32.mrf.mxu0
        %v2577 = vadd.f32 %v2537, %v2576
        %v2578 = vpop.f32.mrf.mxu0
        %v2579 = vpop.f32.mrf.mxu0
        %v2580 = vpop.f32.mrf.mxu0
        %2581 = vdwg.mxu0
        %2582 = vmatprep.subr.bf16.mxu0 0
        %2583 = vmatpush1.bf16.msra.mxu0 %v2189
        %2584 = vmatprep.subr.bf16.mxu0 0
        %2585 = vmatpush1.bf16.msra.mxu0 %v2188
        %2586 = vmatprep.subr.bf16.mxu0 0
        %2587 = vmatpush1.bf16.msra.mxu0 %v2187
        %2588 = vmatprep.subr.bf16.mxu0 0
        %2589 = vmatpush1.bf16.msra.mxu0 %v2186
        %2590 = vmatprep.subr.bf16.mxu0 0
        %2591 = vmatpush1.bf16.msra.mxu0 %v2185
        %2592 = vmatprep.subr.bf16.mxu0 0
        %2593 = vmatpush1.bf16.msra.mxu0 %v2184
        %2594 = vmatprep.subr.bf16.mxu0 0
        %2595 = vmatpush1.bf16.msra.mxu0 %v2183
        %2596 = vmatprep.subr.bf16.mxu0 0
        %2597 = vmatpush1.bf16.msra.mxu0 %v2182
        %2598 = vmatprep.subr.bf16.mxu0 0
        %2599 = vmatpush2.bf16.msra.mxu0 %v2197
        %2600 = vmatprep.subr.bf16.mxu0 0
        %2601 = vmatpush2.bf16.msra.mxu0 %v2196
        %2602 = vmatprep.subr.bf16.mxu0 0
        %2603 = vmatpush2.bf16.msra.mxu0 %v2195
        %2604 = vmatprep.subr.bf16.mxu0 0
        %2605 = vmatpush2.bf16.msra.mxu0 %v2194
        %2606 = vmatprep.subr.bf16.mxu0 0
        %2607 = vmatpush2.bf16.msra.mxu0 %v2193
        %2608 = vmatprep.subr.bf16.mxu0 0
        %2609 = vmatpush2.bf16.msra.mxu0 %v2192
        %2610 = vmatprep.subr.bf16.mxu0 0
        %2611 = vmatpush2.bf16.msra.mxu0 %v2191
        %2612 = vmatprep.subr.bf16.mxu0 0
        %2613 = vmatpush2.bf16.msra.mxu0 %v2190
        %2614 = vmatprep.mubr.bf16.mxu0 %v1555
        %2615 = vmatmul.mubr.bf16.gmra.mxu0 %v1554
        %v2616 = vpop.f32.mrf.mxu0
        %v2617 = vadd.f32 %v2577, %v2616
        %v2618 = vpop.f32.mrf.mxu0
        %v2619 = vpop.f32.mrf.mxu0
        %v2620 = vpop.f32.mrf.mxu0
        %2621 = vdwg.mxu0
        %2622 = vmatprep.subr.bf16.mxu0 0
        %2623 = vmatpush1.bf16.msra.mxu0 %v2205
        %2624 = vmatprep.subr.bf16.mxu0 0
        %2625 = vmatpush1.bf16.msra.mxu0 %v2204
        %2626 = vmatprep.subr.bf16.mxu0 0
        %2627 = vmatpush1.bf16.msra.mxu0 %v2203
        %2628 = vmatprep.subr.bf16.mxu0 0
        %2629 = vmatpush1.bf16.msra.mxu0 %v2202
        %2630 = vmatprep.subr.bf16.mxu0 0
        %2631 = vmatpush1.bf16.msra.mxu0 %v2201
        %2632 = vmatprep.subr.bf16.mxu0 0
        %2633 = vmatpush1.bf16.msra.mxu0 %v2200
        %2634 = vmatprep.subr.bf16.mxu0 0
        %2635 = vmatpush1.bf16.msra.mxu0 %v2199
        %2636 = vmatprep.subr.bf16.mxu0 0
        %2637 = vmatpush1.bf16.msra.mxu0 %v2198
        %2638 = vmatprep.subr.bf16.mxu0 0
        %2639 = vmatpush2.bf16.msra.mxu0 %v2213
        %2640 = vmatprep.subr.bf16.mxu0 0
        %2641 = vmatpush2.bf16.msra.mxu0 %v2212
        %2642 = vmatprep.subr.bf16.mxu0 0
        %2643 = vmatpush2.bf16.msra.mxu0 %v2211
        %2644 = vmatprep.subr.bf16.mxu0 0
        %2645 = vmatpush2.bf16.msra.mxu0 %v2210
        %2646 = vmatprep.subr.bf16.mxu0 0
        %2647 = vmatpush2.bf16.msra.mxu0 %v2209
        %2648 = vmatprep.subr.bf16.mxu0 0
        %2649 = vmatpush2.bf16.msra.mxu0 %v2208
        %2650 = vmatprep.subr.bf16.mxu0 0
        %2651 = vmatpush2.bf16.msra.mxu0 %v2207
        %2652 = vmatprep.subr.bf16.mxu0 0
        %2653 = vmatpush2.bf16.msra.mxu0 %v2206
        %2654 = vmatprep.mubr.bf16.mxu0 %v1557
        %2655 = vmatmul.mubr.bf16.gmra.mxu0 %v1556
        %v2656 = vpop.f32.mrf.mxu0
        %v2657 = vadd.f32 %v2617, %v2656
        %v2658 = vpop.f32.mrf.mxu0
        %v2659 = vpop.f32.mrf.mxu0
        %v2660 = vpop.f32.mrf.mxu0
        %2661 = vdwg.mxu0
        %2662 = vst [vmem:[%s1245] sm:$0xff] %v2657
        %p2663 = scmp.lt.s32.totalorder %s14, 1
        %s2664 = scalar_select %p2663, %s14, 1
        %s2665 = smul.addr %s2664, 8
        %s2666 = scalar_lea.vmem %s3, %s2665
        // Predicated region
        $region74: #{hypernetwork_forward.3} parent=68 // pred_check
          %p2667 = pneg %p105
        $region75: #{hypernetwork_forward.3} parent=68 // pred_check_branch
          %2669 = sbr.rel (%p2667) target = $region77
        $region76: #{hypernetwork_forward.3} parent=68 // pred_region
          _
        $region77: #{hypernetwork_forward.3} parent=68 // pred_fallthru
          _
      $region69: #{hypernetwork_forward.3} parent=5 // pred_fallthru
        _
      %p2670 = scmp.le.s32.totalorder 2, %s9
      // Predicated region
      $region78: #{hypernetwork_forward.3} parent=5 // pred_check
        %p2671 = pneg %p2670
      $region79: #{hypernetwork_forward.3} parent=5 // pred_check_branch
        %2673 = sbr.rel (%p2671) target = $region81
      $region80: #{hypernetwork_forward.3} parent=5 // pred_region
        %s2674 = ssub.s32 %s9, 2
        // Predicated region
        $region82: #{hypernetwork_forward.3} parent=80 // pred_check
          %p2675 = pneg %p111
        $region83: #{hypernetwork_forward.3} parent=80 // pred_check_branch
          %2677 = sbr.rel (%p2675) target = $region85
        $region84: #{hypernetwork_forward.3} parent=80 // pred_region
          %p2678 = scmp.lt.s32.totalorder %s15, 1
          %s2679 = scalar_select %p2678, %s15, 1
          %s2680 = smul.addr %s2679, 8
          %s2681 = scalar_lea.vmem %s3, %s2680
        $region85: #{hypernetwork_forward.3} parent=80 // pred_fallthru
          _
      $region81: #{hypernetwork_forward.3} parent=5 // pred_fallthru
        _
    $region6: #{hypernetwork_forward.3} parent=1 // loop_footer
      %s13 = sadd.s32 1, %s9
    $region7: #{hypernetwork_forward.3} parent=1 // loop_footer_branch
      %8 = sbr.rel target = $region3
    $region8: #{hypernetwork_forward.3} parent=1 // loop_exit
      _

// kernel: hypernetwork_forward.2
$region0: #{hypernetwork_forward.2}
  #allocation0 [shape = 'u32[]', space=smem, size = 0x4, offset = 0x4, fixed_abs, tag = 'smem constant byte address 0x4 - core index']
  #allocation1 [shape = 'u32[144,128]{1,0:T(1,128)}', space=vmem, size = 0x12000, scoped, tag = 'internal scratch']
  %s0 = inlined_call_operand.vmem [shape: f32[8,32], index: 0, kind: input, shape index: {}]
  %s1 = inlined_call_operand.hbm [shape: bf16[32,64], index: 1, kind: input, shape index: {}]
  %s2 = inlined_call_operand.hbm [shape: f32[1,64], index: 2, kind: input, shape index: {}]
  %s3 = inlined_call_operand.hbm [shape: bf16[64,128], index: 3, kind: input, shape index: {}]
  %s4 = inlined_call_operand.hbm [shape: f32[1,128], index: 4, kind: input, shape index: {}]
  %s5 = inlined_call_operand.hbm [shape: bf16[128,512], index: 5, kind: input, shape index: {}]
  %s6 = inlined_call_operand.hbm [shape: f32[1,512], index: 6, kind: input, shape index: {}]
  %s7 = inlined_call_operand.hbm [shape: bf16[512,1024], index: 7, kind: input, shape index: {}]
  %s8 = inlined_call_operand.hbm [shape: f32[1,1024], index: 8, kind: input, shape index: {}]
  %s9 = inlined_call_operand.hbm [shape: bf16[1024,2048], index: 9, kind: input, shape index: {}]
  %s10 = inlined_call_operand.hbm [shape: f32[1,2048], index: 10, kind: input, shape index: {}]
  %s11 = inlined_call_operand.vmem [shape: bf16[8,2048], index: 11, kind: output, shape index: {}]
  %s12 = sld [smem:[#allocation0]]
  $region94: #{hypernetwork_forward.2} parent=0
    _
  %s14 = ssub.s32 1, %s12
  %s15 = scalar_select 0, %s14, %s12
  $region1: #{hypernetwork_forward.2} parent=0
    #allocation2 [shape = 'u8[8192]{0}', space=vmem, size = 0x2000, scoped, tag = 'input window, operand 1, single buffered']
    #allocation3 [shape = 's32[1]{0}', space=sflag, size = 0x4, scoped, tag = 'scoped memory for hypernetwork_forward.2']
    #allocation4 [shape = 'u8[512]{0}', space=vmem, size = 0x400, scoped, tag = 'input window, operand 2, single buffered']
    #allocation5 [shape = 's32[1]{0}', space=sflag, size = 0x4, scoped, tag = 'scoped memory for hypernetwork_forward.2']
    #allocation6 [shape = 'u8[16384]{0}', space=vmem, size = 0x4000, scoped, tag = 'input window, operand 3, single buffered']
    #allocation7 [shape = 'u8[512]{0}', space=vmem, size = 0x400, scoped, tag = 'input window, operand 4, single buffered']
    #allocation8 [shape = 's32[1]{0}', space=sflag, size = 0x4, scoped, tag = 'scoped memory for hypernetwork_forward.2']
    #allocation9 [shape = 'u8[131072]{0}', space=vmem, size = 0x20000, scoped, tag = 'input window, operand 5, single buffered']
    #allocation10 [shape = 'u8[2048]{0}', space=vmem, size = 0x800, scoped, tag = 'input window, operand 6, single buffered']
    #allocation11 [shape = 's32[1]{0}', space=sflag, size = 0x4, scoped, tag = 'scoped memory for hypernetwork_forward.2']
    #allocation12 [shape = 'u8[1048576]{0}', space=vmem, size = 0x100000, scoped, tag = 'input window, operand 7, single buffered']
    #allocation13 [shape = 'u8[4096]{0}', space=vmem, size = 0x1000, scoped, tag = 'input window, operand 8, single buffered']
    #allocation14 [shape = 's32[1]{0}', space=sflag, size = 0x4, scoped, tag = 'scoped memory for hypernetwork_forward.2']
    #allocation15 [shape = 'u8[4194304]{0}', space=vmem, size = 0x400000, scoped, tag = 'input window, operand 9, single buffered']
    #allocation16 [shape = 'u8[8192]{0}', space=vmem, size = 0x2000, scoped, tag = 'input window, operand 10, single buffered']
    #allocation17 [shape = 's32[1]{0}', space=sflag, size = 0x4, scoped, tag = 'scoped memory for hypernetwork_forward.2']
    %16 = vsyncpa [#allocation3], 0
    %17 = vsyncpa [#allocation5], 0
    %18 = vsyncpa [#allocation8], 0
    %19 = vsyncpa [#allocation11], 0
    %20 = vsyncpa [#allocation14], 0
    %21 = vsyncpa [#allocation17], 0
    // Predicated region
    $region2: #{hypernetwork_forward.2} parent=1 // pred_check
      _
    $region3: #{hypernetwork_forward.2} parent=1 // pred_check_branch
      %23 = sbr.rel (0) target = $region5
    $region4: #{hypernetwork_forward.2} parent=1 // pred_region
      _
    $region5: #{hypernetwork_forward.2} parent=1 // pred_fallthru
      _
    // Predicated region
    $region6: #{hypernetwork_forward.2} parent=1 // pred_check
      _
    $region7: #{hypernetwork_forward.2} parent=1 // pred_check_branch
      %25 = sbr.rel (0) target = $region9
    $region8: #{hypernetwork_forward.2} parent=1 // pred_region
      %s27 = ssub.s32 256, 256
      %28 = vsyncadd [#allocation3], %s27
      %s29 = sshll.u32 [#allocation2], 4
      %s30 = int_to_ptr.vmem [resolvable:$true] %s29
      %35 = dma.hbm_to_vmem [thread:$0]  %s1, 256, %s30, [#allocation3], 64, 64, 4
    $region9: #{hypernetwork_forward.2} parent=1 // pred_fallthru
      _
    // Predicated region
    $region10: #{hypernetwork_forward.2} parent=1 // pred_check
      _
    $region11: #{hypernetwork_forward.2} parent=1 // pred_check_branch
      %37 = sbr.rel (0) target = $region13
    $region12: #{hypernetwork_forward.2} parent=1 // pred_region
      %s39 = ssub.s32 16, 16
      %40 = vsyncadd [#allocation5], %s39
      %s42 = sshll.u32 [#allocation4], 4
      %s43 = int_to_ptr.vmem [resolvable:$true] %s42
      %45 = dma.hbm_to_vmem [thread:$0]  %s2, 16, %s43, [#allocation5]
    $region13: #{hypernetwork_forward.2} parent=1 // pred_fallthru
      _
    // Predicated region
    $region14: #{hypernetwork_forward.2} parent=1 // pred_check
      _
    $region15: #{hypernetwork_forward.2} parent=1 // pred_check_branch
      %47 = sbr.rel (0) target = $region17
    $region16: #{hypernetwork_forward.2} parent=1 // pred_region
      %s49 = ssub.s32 512, 512
      %50 = vsyncadd [#allocation5], %s49
      %s51 = sshll.u32 [#allocation6], 4
      %s52 = int_to_ptr.vmem [resolvable:$true] %s51
      %57 = dma.hbm_to_vmem [thread:$0]  %s3, 512, %s52, [#allocation5], 64, 64, 4
    $region17: #{hypernetwork_forward.2} parent=1 // pred_fallthru
      _
    // Predicated region
    $region18: #{hypernetwork_forward.2} parent=1 // pred_check
      _
    $region19: #{hypernetwork_forward.2} parent=1 // pred_check_branch
      %59 = sbr.rel (0) target = $region21
    $region20: #{hypernetwork_forward.2} parent=1 // pred_region
      %s61 = ssub.s32 16, 16
      %62 = vsyncadd [#allocation8], %s61
      %s64 = sshll.u32 [#allocation7], 4
      %s65 = int_to_ptr.vmem [resolvable:$true] %s64
      %67 = dma.hbm_to_vmem [thread:$0]  %s4, 16, %s65, [#allocation8]
    $region21: #{hypernetwork_forward.2} parent=1 // pred_fallthru
      _
    // Predicated region
    $region22: #{hypernetwork_forward.2} parent=1 // pred_check
      _
    $region23: #{hypernetwork_forward.2} parent=1 // pred_check_branch
      %69 = sbr.rel (0) target = $region25
    $region24: #{hypernetwork_forward.2} parent=1 // pred_region
      %s71 = ssub.s32 4096, 4096
      %72 = vsyncadd [#allocation8], %s71
      %s73 = sshll.u32 [#allocation9], 4
      %s74 = int_to_ptr.vmem [resolvable:$true] %s73
      %79 = dma.hbm_to_vmem [thread:$0]  %s5, 4096, %s74, [#allocation8], 256, 256, 16
    $region25: #{hypernetwork_forward.2} parent=1 // pred_fallthru
      _
    // Predicated region
    $region26: #{hypernetwork_forward.2} parent=1 // pred_check
      _
    $region27: #{hypernetwork_forward.2} parent=1 // pred_check_branch
      %81 = sbr.rel (0) target = $region29
    $region28: #{hypernetwork_forward.2} parent=1 // pred_region
      %s83 = ssub.s32 64, 64
      %84 = vsyncadd [#allocation11], %s83
      %s86 = sshll.u32 [#allocation10], 4
      %s87 = int_to_ptr.vmem [resolvable:$true] %s86
      %89 = dma.hbm_to_vmem [thread:$0]  %s6, 64, %s87, [#allocation11]
    $region29: #{hypernetwork_forward.2} parent=1 // pred_fallthru
      _
    // Predicated region
    $region30: #{hypernetwork_forward.2} parent=1 // pred_check
      _
    $region31: #{hypernetwork_forward.2} parent=1 // pred_check_branch
      %91 = sbr.rel (0) target = $region33
    $region32: #{hypernetwork_forward.2} parent=1 // pred_region
      %s93 = ssub.s32 32768, 32768
      %94 = vsyncadd [#allocation11], %s93
      %s95 = sshll.u32 [#allocation12], 4
      %s96 = int_to_ptr.vmem [resolvable:$true] %s95
      %101 = dma.hbm_to_vmem [thread:$0]  %s7, 32768, %s96, [#allocation11], 512, 512, 32
    $region33: #{hypernetwork_forward.2} parent=1 // pred_fallthru
      _
    // Predicated region
    $region34: #{hypernetwork_forward.2} parent=1 // pred_check
      _
    $region35: #{hypernetwork_forward.2} parent=1 // pred_check_branch
      %103 = sbr.rel (0) target = $region37
    $region36: #{hypernetwork_forward.2} parent=1 // pred_region
      %s105 = ssub.s32 128, 128
      %106 = vsyncadd [#allocation14], %s105
      %s108 = sshll.u32 [#allocation13], 4
      %s109 = int_to_ptr.vmem [resolvable:$true] %s108
      %111 = dma.hbm_to_vmem [thread:$0]  %s8, 128, %s109, [#allocation14]
    $region37: #{hypernetwork_forward.2} parent=1 // pred_fallthru
      _
    // Predicated region
    $region38: #{hypernetwork_forward.2} parent=1 // pred_check
      _
    $region39: #{hypernetwork_forward.2} parent=1 // pred_check_branch
      %113 = sbr.rel (0) target = $region41
    $region40: #{hypernetwork_forward.2} parent=1 // pred_region
      %s115 = ssub.s32 131072, 131072
      %116 = vsyncadd [#allocation14], %s115
      %s117 = sshll.u32 [#allocation15], 4
      %s118 = int_to_ptr.vmem [resolvable:$true] %s117
      %123 = dma.hbm_to_vmem [thread:$0]  %s9, 131072, %s118, [#allocation14], 1024, 1024, 64
    $region41: #{hypernetwork_forward.2} parent=1 // pred_fallthru
      _
    // Predicated region
    $region42: #{hypernetwork_forward.2} parent=1 // pred_check
      _
    $region43: #{hypernetwork_forward.2} parent=1 // pred_check_branch
      %125 = sbr.rel (0) target = $region45
    $region44: #{hypernetwork_forward.2} parent=1 // pred_region
      %s127 = ssub.s32 256, 256
      %128 = vsyncadd [#allocation17], %s127
      %s130 = sshll.u32 [#allocation16], 4
      %s131 = int_to_ptr.vmem [resolvable:$true] %s130
      %133 = dma.hbm_to_vmem [thread:$0]  %s10, 256, %s131, [#allocation17]
    $region45: #{hypernetwork_forward.2} parent=1 // pred_fallthru
      _
    // Predicated region
    $region46: #{hypernetwork_forward.2} parent=1 // pred_check
      _
    $region47: #{hypernetwork_forward.2} parent=1 // pred_check_branch
      %135 = sbr.rel (0) target = $region49
    $region48: #{hypernetwork_forward.2} parent=1 // pred_region
      %136 = dma.done [#allocation3], 256
    $region49: #{hypernetwork_forward.2} parent=1 // pred_fallthru
      _
    // Predicated region
    $region50: #{hypernetwork_forward.2} parent=1 // pred_check
      _
    $region51: #{hypernetwork_forward.2} parent=1 // pred_check_branch
      %138 = sbr.rel (0) target = $region53
    $region52: #{hypernetwork_forward.2} parent=1 // pred_region
      %139 = dma.done [#allocation5], 16
    $region53: #{hypernetwork_forward.2} parent=1 // pred_fallthru
      _
    // Predicated region
    $region54: #{hypernetwork_forward.2} parent=1 // pred_check
      _
    $region55: #{hypernetwork_forward.2} parent=1 // pred_check_branch
      %141 = sbr.rel (0) target = $region57
    $region56: #{hypernetwork_forward.2} parent=1 // pred_region
      %142 = dma.done [#allocation5], 512
    $region57: #{hypernetwork_forward.2} parent=1 // pred_fallthru
      _
    // Predicated region
    $region58: #{hypernetwork_forward.2} parent=1 // pred_check
      _
    $region59: #{hypernetwork_forward.2} parent=1 // pred_check_branch
      %144 = sbr.rel (0) target = $region61
    $region60: #{hypernetwork_forward.2} parent=1 // pred_region
      %145 = dma.done [#allocation8], 16
    $region61: #{hypernetwork_forward.2} parent=1 // pred_fallthru
      _
    // Predicated region
    $region62: #{hypernetwork_forward.2} parent=1 // pred_check
      _
    $region63: #{hypernetwork_forward.2} parent=1 // pred_check_branch
      %147 = sbr.rel (0) target = $region65
    $region64: #{hypernetwork_forward.2} parent=1 // pred_region
      %148 = dma.done [#allocation8], 4096
    $region65: #{hypernetwork_forward.2} parent=1 // pred_fallthru
      _
    // Predicated region
    $region66: #{hypernetwork_forward.2} parent=1 // pred_check
      _
    $region67: #{hypernetwork_forward.2} parent=1 // pred_check_branch
      %150 = sbr.rel (0) target = $region69
    $region68: #{hypernetwork_forward.2} parent=1 // pred_region
      %151 = dma.done [#allocation11], 64
    $region69: #{hypernetwork_forward.2} parent=1 // pred_fallthru
      _
    // Predicated region
    $region70: #{hypernetwork_forward.2} parent=1 // pred_check
      _
    $region71: #{hypernetwork_forward.2} parent=1 // pred_check_branch
      %153 = sbr.rel (0) target = $region73
    $region72: #{hypernetwork_forward.2} parent=1 // pred_region
      %154 = dma.done [#allocation11], 32768
    $region73: #{hypernetwork_forward.2} parent=1 // pred_fallthru
      _
    // Predicated region
    $region74: #{hypernetwork_forward.2} parent=1 // pred_check
      _
    $region75: #{hypernetwork_forward.2} parent=1 // pred_check_branch
      %156 = sbr.rel (0) target = $region77
    $region76: #{hypernetwork_forward.2} parent=1 // pred_region
      %157 = dma.done [#allocation14], 128
    $region77: #{hypernetwork_forward.2} parent=1 // pred_fallthru
      _
    // Predicated region
    $region78: #{hypernetwork_forward.2} parent=1 // pred_check
      _
    $region79: #{hypernetwork_forward.2} parent=1 // pred_check_branch
      %159 = sbr.rel (0) target = $region81
    $region80: #{hypernetwork_forward.2} parent=1 // pred_region
      %160 = dma.done [#allocation14], 131072
    $region81: #{hypernetwork_forward.2} parent=1 // pred_fallthru
      _
    // Predicated region
    $region82: #{hypernetwork_forward.2} parent=1 // pred_check
      _
    $region83: #{hypernetwork_forward.2} parent=1 // pred_check_branch
      %162 = sbr.rel (0) target = $region85
    $region84: #{hypernetwork_forward.2} parent=1 // pred_region
      %163 = dma.done [#allocation17], 256
    $region85: #{hypernetwork_forward.2} parent=1 // pred_fallthru
      _
    %v165 = vld [vmem:[%s0] sm:$0xff]
    %v166 = vpack.c.bf16 %v165, %v165
    %v167 = vld [vmem:[#allocation2] sm:$0xf]
    %v168 = vld [vmem:[#allocation2 + $0x4] sm:$0xf]
    %v169 = vld [vmem:[#allocation2 + $0x8] sm:$0xf]
    %v170 = vld [vmem:[#allocation2 + $0xc] sm:$0xf]
    %v171 = vld [vmem:[#allocation4] sm:$0x1]
    %v173 = vlaneseq
    %v174 = vshrl.u32 %v173, 7
    %v175 = vsub.s32 0, %v174
    %v176 = vrot.slane %v171, %v175
    %v182 = vunpack.c.l.b16 %v167
    %v183 = vunpack.c.l.b16 %v168
    %v184 = vunpack.c.l.b16 %v169
    %v185 = vunpack.c.l.b16 %v170
    %v186 = vpack.c.b16 %v183, %v182
    %v187 = vpack.c.b16 %v185, %v184
    %vm190 = vcmask 261120
    %v192 = vsel %vm190, %v166, 0
    %194 = vmatprep.subr.bf16.mxu0 0
    %195 = vmatpush1.bf16.msra.mxu0 0
    %196 = vmatprep.subr.bf16.mxu0 0
    %197 = vmatpush1.bf16.msra.mxu0 0
    %198 = vmatprep.subr.bf16.mxu0 0
    %199 = vmatpush1.bf16.msra.mxu0 0
    %200 = vmatprep.subr.bf16.mxu0 0
    %201 = vmatpush1.bf16.msra.mxu0 0
    %202 = vmatprep.subr.bf16.mxu0 0
    %203 = vmatpush1.bf16.msra.mxu0 0
    %204 = vmatprep.subr.bf16.mxu0 0
    %205 = vmatpush1.bf16.msra.mxu0 0
    %206 = vmatprep.subr.bf16.mxu0 0
    %207 = vmatpush1.bf16.msra.mxu0 %v187
    %208 = vmatprep.subr.bf16.mxu0 0
    %209 = vmatpush1.bf16.msra.mxu0 %v186
    %210 = vmatprep.subr.bf16.mxu0 0
    %211 = vmatpush2.bf16.msra.mxu0 0
    %212 = vmatprep.subr.bf16.mxu0 0
    %213 = vmatpush2.bf16.msra.mxu0 0
    %214 = vmatprep.subr.bf16.mxu0 0
    %215 = vmatpush2.bf16.msra.mxu0 0
    %216 = vmatprep.subr.bf16.mxu0 0
    %217 = vmatpush2.bf16.msra.mxu0 0
    %218 = vmatprep.subr.bf16.mxu0 0
    %219 = vmatpush2.bf16.msra.mxu0 0
    %220 = vmatprep.subr.bf16.mxu0 0
    %221 = vmatpush2.bf16.msra.mxu0 0
    %222 = vmatprep.subr.bf16.mxu0 0
    %223 = vmatpush2.bf16.msra.mxu0 0
    %224 = vmatprep.subr.bf16.mxu0 0
    %225 = vmatpush2.bf16.msra.mxu0 0
    %226 = vmatprep.mubr.bf16.mxu0 0
    %227 = vmatmul.mubr.bf16.gmra.mxu0 %v192
    %v228 = vpop.f32.mrf.mxu0
    %v229 = vadd.f32 %v176, %v228
    %v230 = vpop.f32.mrf.mxu0
    %v231 = vpop.f32.mrf.mxu0
    %v232 = vpop.f32.mrf.mxu0
    %233 = vdwg.mxu0
    %v234 = vmax.f32 %v229, 0.0
    %v235 = vpack.c.bf16 %v234, %v234
    %v236 = vld [vmem:[#allocation6] sm:$0xf]
    %v237 = vld [vmem:[#allocation6 + $0x4] sm:$0xf]
    %v238 = vld [vmem:[#allocation6 + $0x8] sm:$0xf]
    %v239 = vld [vmem:[#allocation6 + $0xc] sm:$0xf]
    %v240 = vld [vmem:[#allocation6 + $0x10] sm:$0xf]
    %v241 = vld [vmem:[#allocation6 + $0x14] sm:$0xf]
    %v242 = vld [vmem:[#allocation6 + $0x18] sm:$0xf]
    %v243 = vld [vmem:[#allocation6 + $0x1c] sm:$0xf]
    %v244 = vld [vmem:[#allocation7] sm:$0x1]
    %v246 = vlaneseq
    %v247 = vshrl.u32 %v246, 7
    %v248 = vsub.s32 0, %v247
    %v249 = vrot.slane %v244, %v248
    %v259 = vunpack.c.l.b16 %v236
    %v260 = vunpack.c.l.b16 %v237
    %v261 = vunpack.c.l.b16 %v238
    %v262 = vunpack.c.l.b16 %v239
    %v263 = vunpack.c.l.b16 %v240
    %v264 = vunpack.c.l.b16 %v241
    %v265 = vunpack.c.l.b16 %v242
    %v266 = vunpack.c.l.b16 %v243
    %v267 = vpack.c.b16 %v260, %v259
    %v268 = vpack.c.b16 %v262, %v261
    %v269 = vpack.c.b16 %v264, %v263
    %v270 = vpack.c.b16 %v266, %v265
    %vm275 = vcmask 523264
    %v277 = vsel %vm275, %v235, 0
    %279 = vmatprep.subr.bf16.mxu0 0
    %280 = vmatpush1.bf16.msra.mxu0 0
    %281 = vmatprep.subr.bf16.mxu0 0
    %282 = vmatpush1.bf16.msra.mxu0 0
    %283 = vmatprep.subr.bf16.mxu0 0
    %284 = vmatpush1.bf16.msra.mxu0 0
    %285 = vmatprep.subr.bf16.mxu0 0
    %286 = vmatpush1.bf16.msra.mxu0 0
    %287 = vmatprep.subr.bf16.mxu0 0
    %288 = vmatpush1.bf16.msra.mxu0 %v270
    %289 = vmatprep.subr.bf16.mxu0 0
    %290 = vmatpush1.bf16.msra.mxu0 %v269
    %291 = vmatprep.subr.bf16.mxu0 0
    %292 = vmatpush1.bf16.msra.mxu0 %v268
    %293 = vmatprep.subr.bf16.mxu0 0
    %294 = vmatpush1.bf16.msra.mxu0 %v267
    %295 = vmatprep.subr.bf16.mxu0 0
    %296 = vmatpush2.bf16.msra.mxu0 0
    %297 = vmatprep.subr.bf16.mxu0 0
    %298 = vmatpush2.bf16.msra.mxu0 0
    %299 = vmatprep.subr.bf16.mxu0 0
    %300 = vmatpush2.bf16.msra.mxu0 0
    %301 = vmatprep.subr.bf16.mxu0 0
    %302 = vmatpush2.bf16.msra.mxu0 0
    %303 = vmatprep.subr.bf16.mxu0 0
    %304 = vmatpush2.bf16.msra.mxu0 0
    %305 = vmatprep.subr.bf16.mxu0 0
    %306 = vmatpush2.bf16.msra.mxu0 0
    %307 = vmatprep.subr.bf16.mxu0 0
    %308 = vmatpush2.bf16.msra.mxu0 0
    %309 = vmatprep.subr.bf16.mxu0 0
    %310 = vmatpush2.bf16.msra.mxu0 0
    %311 = vmatprep.mubr.bf16.mxu0 0
    %312 = vmatmul.mubr.bf16.gmra.mxu0 %v277
    %v313 = vpop.f32.mrf.mxu0
    %v314 = vadd.f32 %v249, %v313
    %v315 = vpop.f32.mrf.mxu0
    %v316 = vpop.f32.mrf.mxu0
    %v317 = vpop.f32.mrf.mxu0
    %318 = vdwg.mxu0
    %v319 = vmax.f32 %v314, 0.0
    %v320 = vpack.c.bf16 %v319, %v319
    %v321 = vld [vmem:[#allocation9] sm:$0xff]
    %v322 = vld [vmem:[#allocation9 + $0x8] sm:$0xff]
    %v323 = vld [vmem:[#allocation9 + $0x10] sm:$0xff]
    %v324 = vld [vmem:[#allocation9 + $0x18] sm:$0xff]
    %v325 = vld [vmem:[#allocation9 + $0x20] sm:$0xff]
    %v326 = vld [vmem:[#allocation9 + $0x28] sm:$0xff]
    %v327 = vld [vmem:[#allocation9 + $0x30] sm:$0xff]
    %v328 = vld [vmem:[#allocation9 + $0x38] sm:$0xff]
    %v329 = vld [vmem:[#allocation9 + $0x40] sm:$0xff]
    %v330 = vld [vmem:[#allocation9 + $0x48] sm:$0xff]
    %v331 = vld [vmem:[#allocation9 + $0x50] sm:$0xff]
    %v332 = vld [vmem:[#allocation9 + $0x58] sm:$0xff]
    %v333 = vld [vmem:[#allocation9 + $0x60] sm:$0xff]
    %v334 = vld [vmem:[#allocation9 + $0x68] sm:$0xff]
    %v335 = vld [vmem:[#allocation9 + $0x70] sm:$0xff]
    %v336 = vld [vmem:[#allocation9 + $0x78] sm:$0xff]
    %v337 = vld [vmem:[#allocation9 + $0x80] sm:$0xff]
    %v338 = vld [vmem:[#allocation9 + $0x88] sm:$0xff]
    %v339 = vld [vmem:[#allocation9 + $0x90] sm:$0xff]
    %v340 = vld [vmem:[#allocation9 + $0x98] sm:$0xff]
    %v341 = vld [vmem:[#allocation9 + $0xa0] sm:$0xff]
    %v342 = vld [vmem:[#allocation9 + $0xa8] sm:$0xff]
    %v343 = vld [vmem:[#allocation9 + $0xb0] sm:$0xff]
    %v344 = vld [vmem:[#allocation9 + $0xb8] sm:$0xff]
    %v345 = vld [vmem:[#allocation9 + $0xc0] sm:$0xff]
    %v346 = vld [vmem:[#allocation9 + $0xc8] sm:$0xff]
    %v347 = vld [vmem:[#allocation9 + $0xd0] sm:$0xff]
    %v348 = vld [vmem:[#allocation9 + $0xd8] sm:$0xff]
    %v349 = vld [vmem:[#allocation9 + $0xe0] sm:$0xff]
    %v350 = vld [vmem:[#allocation9 + $0xe8] sm:$0xff]
    %v351 = vld [vmem:[#allocation9 + $0xf0] sm:$0xff]
    %v352 = vld [vmem:[#allocation9 + $0xf8] sm:$0xff]
    %v353 = vld [vmem:[#allocation10] sm:$0xf]
    %v355 = vlaneseq
    %v356 = vshrl.u32 %v355, 7
    %v357 = vsub.s32 0, %v356
    %v358 = vrot.slane %v353, %v357
    %v359 = vlaneseq
    %v360 = vshrl.u32 %v359, 7
    %v361 = vsub.s32 1, %v360
    %v362 = vrot.slane %v353, %v361
    %v363 = vlaneseq
    %v364 = vshrl.u32 %v363, 7
    %v365 = vsub.s32 2, %v364
    %v366 = vrot.slane %v353, %v365
    %v367 = vlaneseq
    %v368 = vshrl.u32 %v367, 7
    %v369 = vsub.s32 3, %v368
    %v370 = vrot.slane %v353, %v369
    %v407 = vunpack.c.l.b16 %v321
    %v408 = vunpack.c.h.b16 %v321
    %v409 = vunpack.c.l.b16 %v322
    %v410 = vunpack.c.h.b16 %v322
    %v411 = vunpack.c.l.b16 %v323
    %v412 = vunpack.c.h.b16 %v323
    %v413 = vunpack.c.l.b16 %v324
    %v414 = vunpack.c.h.b16 %v324
    %v415 = vunpack.c.l.b16 %v325
    %v416 = vunpack.c.h.b16 %v325
    %v417 = vunpack.c.l.b16 %v326
    %v418 = vunpack.c.h.b16 %v326
    %v419 = vunpack.c.l.b16 %v327
    %v420 = vunpack.c.h.b16 %v327
    %v421 = vunpack.c.l.b16 %v328
    %v422 = vunpack.c.h.b16 %v328
    %v423 = vunpack.c.l.b16 %v329
    %v424 = vunpack.c.h.b16 %v329
    %v425 = vunpack.c.l.b16 %v330
    %v426 = vunpack.c.h.b16 %v330
    %v427 = vunpack.c.l.b16 %v331
    %v428 = vunpack.c.h.b16 %v331
    %v429 = vunpack.c.l.b16 %v332
    %v430 = vunpack.c.h.b16 %v332
    %v431 = vunpack.c.l.b16 %v333
    %v432 = vunpack.c.h.b16 %v333
    %v433 = vunpack.c.l.b16 %v334
    %v434 = vunpack.c.h.b16 %v334
    %v435 = vunpack.c.l.b16 %v335
    %v436 = vunpack.c.h.b16 %v335
    %v437 = vunpack.c.l.b16 %v336
    %v438 = vunpack.c.h.b16 %v336
    %v439 = vunpack.c.l.b16 %v337
    %v440 = vunpack.c.h.b16 %v337
    %v441 = vunpack.c.l.b16 %v338
    %v442 = vunpack.c.h.b16 %v338
    %v443 = vunpack.c.l.b16 %v339
    %v444 = vunpack.c.h.b16 %v339
    %v445 = vunpack.c.l.b16 %v340
    %v446 = vunpack.c.h.b16 %v340
    %v447 = vunpack.c.l.b16 %v341
    %v448 = vunpack.c.h.b16 %v341
    %v449 = vunpack.c.l.b16 %v342
    %v450 = vunpack.c.h.b16 %v342
    %v451 = vunpack.c.l.b16 %v343
    %v452 = vunpack.c.h.b16 %v343
    %v453 = vunpack.c.l.b16 %v344
    %v454 = vunpack.c.h.b16 %v344
    %v455 = vunpack.c.l.b16 %v345
    %v456 = vunpack.c.h.b16 %v345
    %v457 = vunpack.c.l.b16 %v346
    %v458 = vunpack.c.h.b16 %v346
    %v459 = vunpack.c.l.b16 %v347
    %v460 = vunpack.c.h.b16 %v347
    %v461 = vunpack.c.l.b16 %v348
    %v462 = vunpack.c.h.b16 %v348
    %v463 = vunpack.c.l.b16 %v349
    %v464 = vunpack.c.h.b16 %v349
    %v465 = vunpack.c.l.b16 %v350
    %v466 = vunpack.c.h.b16 %v350
    %v467 = vunpack.c.l.b16 %v351
    %v468 = vunpack.c.h.b16 %v351
    %v469 = vunpack.c.l.b16 %v352
    %v470 = vunpack.c.h.b16 %v352
    %v471 = vpack.c.b16 %v411, %v407
    %v472 = vpack.c.b16 %v412, %v408
    %v473 = vpack.c.b16 %v413, %v409
    %v474 = vpack.c.b16 %v414, %v410
    %v475 = vpack.c.b16 %v419, %v415
    %v476 = vpack.c.b16 %v420, %v416
    %v477 = vpack.c.b16 %v421, %v417
    %v478 = vpack.c.b16 %v422, %v418
    %v479 = vpack.c.b16 %v427, %v423
    %v480 = vpack.c.b16 %v428, %v424
    %v481 = vpack.c.b16 %v429, %v425
    %v482 = vpack.c.b16 %v430, %v426
    %v483 = vpack.c.b16 %v435, %v431
    %v484 = vpack.c.b16 %v436, %v432
    %v485 = vpack.c.b16 %v437, %v433
    %v486 = vpack.c.b16 %v438, %v434
    %v487 = vpack.c.b16 %v443, %v439
    %v488 = vpack.c.b16 %v444, %v440
    %v489 = vpack.c.b16 %v445, %v441
    %v490 = vpack.c.b16 %v446, %v442
    %v491 = vpack.c.b16 %v451, %v447
    %v492 = vpack.c.b16 %v452, %v448
    %v493 = vpack.c.b16 %v453, %v449
    %v494 = vpack.c.b16 %v454, %v450
    %v495 = vpack.c.b16 %v459, %v455
    %v496 = vpack.c.b16 %v460, %v456
    %v497 = vpack.c.b16 %v461, %v457
    %v498 = vpack.c.b16 %v462, %v458
    %v499 = vpack.c.b16 %v467, %v463
    %v500 = vpack.c.b16 %v468, %v464
    %v501 = vpack.c.b16 %v469, %v465
    %v502 = vpack.c.b16 %v470, %v466
    %535 = vmatprep.subr.bf16.mxu0 %v500
    %536 = vmatpush1.bf16.msra.mxu0 %v499
    %537 = vmatprep.subr.bf16.mxu0 %v496
    %538 = vmatpush1.bf16.msra.mxu0 %v495
    %539 = vmatprep.subr.bf16.mxu0 %v492
    %540 = vmatpush1.bf16.msra.mxu0 %v491
    %541 = vmatprep.subr.bf16.mxu0 %v488
    %542 = vmatpush1.bf16.msra.mxu0 %v487
    %543 = vmatprep.subr.bf16.mxu0 %v484
    %544 = vmatpush1.bf16.msra.mxu0 %v483
    %545 = vmatprep.subr.bf16.mxu0 %v480
    %546 = vmatpush1.bf16.msra.mxu0 %v479
    %547 = vmatprep.subr.bf16.mxu0 %v476
    %548 = vmatpush1.bf16.msra.mxu0 %v475
    %549 = vmatprep.subr.bf16.mxu0 %v472
    %550 = vmatpush1.bf16.msra.mxu0 %v471
    %551 = vmatprep.subr.bf16.mxu0 0
    %552 = vmatpush2.bf16.msra.mxu0 0
    %553 = vmatprep.subr.bf16.mxu0 0
    %554 = vmatpush2.bf16.msra.mxu0 0
    %555 = vmatprep.subr.bf16.mxu0 0
    %556 = vmatpush2.bf16.msra.mxu0 0
    %557 = vmatprep.subr.bf16.mxu0 0
    %558 = vmatpush2.bf16.msra.mxu0 0
    %559 = vmatprep.subr.bf16.mxu0 0
    %560 = vmatpush2.bf16.msra.mxu0 0
    %561 = vmatprep.subr.bf16.mxu0 0
    %562 = vmatpush2.bf16.msra.mxu0 0
    %563 = vmatprep.subr.bf16.mxu0 0
    %564 = vmatpush2.bf16.msra.mxu0 0
    %565 = vmatprep.subr.bf16.mxu0 0
    %566 = vmatpush2.bf16.msra.mxu0 0
    %567 = vmatprep.mubr.bf16.mxu0 0
    %568 = vmatmul.mubr.bf16.gmra.mxu0 %v320
    %v569 = vpop.f32.mrf.mxu0
    %v570 = vadd.f32 %v358, %v569
    %v571 = vpop.f32.mrf.mxu0
    %v572 = vadd.f32 %v362, %v571
    %v573 = vpop.f32.mrf.mxu0
    %v574 = vpop.f32.mrf.mxu0
    %575 = vdwg.mxu0
    %576 = vmatprep.subr.bf16.mxu0 %v502
    %577 = vmatpush1.bf16.msra.mxu0 %v501
    %578 = vmatprep.subr.bf16.mxu0 %v498
    %579 = vmatpush1.bf16.msra.mxu0 %v497
    %580 = vmatprep.subr.bf16.mxu0 %v494
    %581 = vmatpush1.bf16.msra.mxu0 %v493
    %582 = vmatprep.subr.bf16.mxu0 %v490
    %583 = vmatpush1.bf16.msra.mxu0 %v489
    %584 = vmatprep.subr.bf16.mxu0 %v486
    %585 = vmatpush1.bf16.msra.mxu0 %v485
    %586 = vmatprep.subr.bf16.mxu0 %v482
    %587 = vmatpush1.bf16.msra.mxu0 %v481
    %588 = vmatprep.subr.bf16.mxu0 %v478
    %589 = vmatpush1.bf16.msra.mxu0 %v477
    %590 = vmatprep.subr.bf16.mxu0 %v474
    %591 = vmatpush1.bf16.msra.mxu0 %v473
    %592 = vmatprep.subr.bf16.mxu0 0
    %593 = vmatpush2.bf16.msra.mxu0 0
    %594 = vmatprep.subr.bf16.mxu0 0
    %595 = vmatpush2.bf16.msra.mxu0 0
    %596 = vmatprep.subr.bf16.mxu0 0
    %597 = vmatpush2.bf16.msra.mxu0 0
    %598 = vmatprep.subr.bf16.mxu0 0
    %599 = vmatpush2.bf16.msra.mxu0 0
    %600 = vmatprep.subr.bf16.mxu0 0
    %601 = vmatpush2.bf16.msra.mxu0 0
    %602 = vmatprep.subr.bf16.mxu0 0
    %603 = vmatpush2.bf16.msra.mxu0 0
    %604 = vmatprep.subr.bf16.mxu0 0
    %605 = vmatpush2.bf16.msra.mxu0 0
    %606 = vmatprep.subr.bf16.mxu0 0
    %607 = vmatpush2.bf16.msra.mxu0 0
    %608 = vmatprep.mubr.bf16.mxu0 0
    %609 = vmatmul.mubr.bf16.gmra.mxu0 %v320
    %v610 = vpop.f32.mrf.mxu0
    %v611 = vadd.f32 %v366, %v610
    %v612 = vpop.f32.mrf.mxu0
    %v613 = vadd.f32 %v370, %v612
    %v614 = vpop.f32.mrf.mxu0
    %v615 = vpop.f32.mrf.mxu0
    %616 = vdwg.mxu0
    %v617 = vmax.f32 %v570, 0.0
    %v618 = vmax.f32 %v572, 0.0
    %v619 = vmax.f32 %v611, 0.0
    %v620 = vmax.f32 %v613, 0.0
    %v621 = vpack.c.bf16 %v617, %v617
    %v622 = vpack.c.bf16 %v618, %v618
    %v623 = vpack.c.bf16 %v619, %v619
    %v624 = vpack.c.bf16 %v620, %v620
    %v625 = vld [vmem:[#allocation12] sm:$0xff]
    %v626 = vld [vmem:[#allocation12 + $0x8] sm:$0xff]
    %v627 = vld [vmem:[#allocation12 + $0x10] sm:$0xff]
    %v628 = vld [vmem:[#allocation12 + $0x18] sm:$0xff]
    %v629 = vld [vmem:[#allocation12 + $0x20] sm:$0xff]
    %v630 = vld [vmem:[#allocation12 + $0x28] sm:$0xff]
    %v631 = vld [vmem:[#allocation12 + $0x30] sm:$0xff]
    %v632 = vld [vmem:[#allocation12 + $0x38] sm:$0xff]
    %v633 = vld [vmem:[#allocation12 + $0x40] sm:$0xff]
    %v634 = vld [vmem:[#allocation12 + $0x48] sm:$0xff]
    %v635 = vld [vmem:[#allocation12 + $0x50] sm:$0xff]
    %v636 = vld [vmem:[#allocation12 + $0x58] sm:$0xff]
    %v637 = vld [vmem:[#allocation12 + $0x60] sm:$0xff]
    %v638 = vld [vmem:[#allocation12 + $0x68] sm:$0xff]
    %v639 = vld [vmem:[#allocation12 + $0x70] sm:$0xff]
    %v640 = vld [vmem:[#allocation12 + $0x78] sm:$0xff]
    %v641 = vld [vmem:[#allocation12 + $0x80] sm:$0xff]
    %v642 = vld [vmem:[#allocation12 + $0x88] sm:$0xff]
    %v643 = vld [vmem:[#allocation12 + $0x90] sm:$0xff]
    %v644 = vld [vmem:[#allocation12 + $0x98] sm:$0xff]
    %v645 = vld [vmem:[#allocation12 + $0xa0] sm:$0xff]
    %v646 = vld [vmem:[#allocation12 + $0xa8] sm:$0xff]
    %v647 = vld [vmem:[#allocation12 + $0xb0] sm:$0xff]
    %v648 = vld [vmem:[#allocation12 + $0xb8] sm:$0xff]
    %v649 = vld [vmem:[#allocation12 + $0xc0] sm:$0xff]
    %v650 = vld [vmem:[#allocation12 + $0xc8] sm:$0xff]
    %v651 = vld [vmem:[#allocation12 + $0xd0] sm:$0xff]
    %v652 = vld [vmem:[#allocation12 + $0xd8] sm:$0xff]
    %v653 = vld [vmem:[#allocation12 + $0xe0] sm:$0xff]
    %v654 = vld [vmem:[#allocation12 + $0xe8] sm:$0xff]
    %v655 = vld [vmem:[#allocation12 + $0xf0] sm:$0xff]
    %v656 = vld [vmem:[#allocation12 + $0xf8] sm:$0xff]
    %v657 = vld [vmem:[#allocation12 + $0x100] sm:$0xff]
    %v658 = vld [vmem:[#allocation12 + $0x108] sm:$0xff]
    %v659 = vld [vmem:[#allocation12 + $0x110] sm:$0xff]
    %v660 = vld [vmem:[#allocation12 + $0x118] sm:$0xff]
    %v661 = vld [vmem:[#allocation12 + $0x120] sm:$0xff]
    %v662 = vld [vmem:[#allocation12 + $0x128] sm:$0xff]
    %v663 = vld [vmem:[#allocation12 + $0x130] sm:$0xff]
    %v664 = vld [vmem:[#allocation12 + $0x138] sm:$0xff]
    %v665 = vld [vmem:[#allocation12 + $0x140] sm:$0xff]
    %v666 = vld [vmem:[#allocation12 + $0x148] sm:$0xff]
    %v667 = vld [vmem:[#allocation12 + $0x150] sm:$0xff]
    %v668 = vld [vmem:[#allocation12 + $0x158] sm:$0xff]
    %v669 = vld [vmem:[#allocation12 + $0x160] sm:$0xff]
    %v670 = vld [vmem:[#allocation12 + $0x168] sm:$0xff]
    %v671 = vld [vmem:[#allocation12 + $0x170] sm:$0xff]
    %v672 = vld [vmem:[#allocation12 + $0x178] sm:$0xff]
    %v673 = vld [vmem:[#allocation12 + $0x180] sm:$0xff]
    %v674 = vld [vmem:[#allocation12 + $0x188] sm:$0xff]
    %v675 = vld [vmem:[#allocation12 + $0x190] sm:$0xff]
    %v676 = vld [vmem:[#allocation12 + $0x198] sm:$0xff]
    %v677 = vld [vmem:[#allocation12 + $0x1a0] sm:$0xff]
    %v678 = vld [vmem:[#allocation12 + $0x1a8] sm:$0xff]
    %v679 = vld [vmem:[#allocation12 + $0x1b0] sm:$0xff]
    %v680 = vld [vmem:[#allocation12 + $0x1b8] sm:$0xff]
    %v681 = vld [vmem:[#allocation12 + $0x1c0] sm:$0xff]
    %v682 = vld [vmem:[#allocation12 + $0x1c8] sm:$0xff]
    %v683 = vld [vmem:[#allocation12 + $0x1d0] sm:$0xff]
    %v684 = vld [vmem:[#allocation12 + $0x1d8] sm:$0xff]
    %v685 = vld [vmem:[#allocation12 + $0x1e0] sm:$0xff]
    %v686 = vld [vmem:[#allocation12 + $0x1e8] sm:$0xff]
    %v687 = vld [vmem:[#allocation12 + $0x1f0] sm:$0xff]
    %v688 = vld [vmem:[#allocation12 + $0x1f8] sm:$0xff]
    %v689 = vld [vmem:[#allocation12 + $0x200] sm:$0xff]
    %v690 = vld [vmem:[#allocation12 + $0x208] sm:$0xff]
    %v691 = vld [vmem:[#allocation12 + $0x210] sm:$0xff]
    %v692 = vld [vmem:[#allocation12 + $0x218] sm:$0xff]
    %v693 = vld [vmem:[#allocation12 + $0x220] sm:$0xff]
    %v694 = vld [vmem:[#allocation12 + $0x228] sm:$0xff]
    %v695 = vld [vmem:[#allocation12 + $0x230] sm:$0xff]
    %v696 = vld [vmem:[#allocation12 + $0x238] sm:$0xff]
    %v697 = vld [vmem:[#allocation12 + $0x240] sm:$0xff]
    %v698 = vld [vmem:[#allocation12 + $0x248] sm:$0xff]
    %v699 = vld [vmem:[#allocation12 + $0x250] sm:$0xff]
    %v700 = vld [vmem:[#allocation12 + $0x258] sm:$0xff]
    %v701 = vld [vmem:[#allocation12 + $0x260] sm:$0xff]
    %v702 = vld [vmem:[#allocation12 + $0x268] sm:$0xff]
    %v703 = vld [vmem:[#allocation12 + $0x270] sm:$0xff]
    %v704 = vld [vmem:[#allocation12 + $0x278] sm:$0xff]
    %v705 = vld [vmem:[#allocation12 + $0x280] sm:$0xff]
    %v706 = vld [vmem:[#allocation12 + $0x288] sm:$0xff]
    %v707 = vld [vmem:[#allocation12 + $0x290] sm:$0xff]
    %v708 = vld [vmem:[#allocation12 + $0x298] sm:$0xff]
    %v709 = vld [vmem:[#allocation12 + $0x2a0] sm:$0xff]
    %v710 = vld [vmem:[#allocation12 + $0x2a8] sm:$0xff]
    %v711 = vld [vmem:[#allocation12 + $0x2b0] sm:$0xff]
    %v712 = vld [vmem:[#allocation12 + $0x2b8] sm:$0xff]
    %v713 = vld [vmem:[#allocation12 + $0x2c0] sm:$0xff]
    %v714 = vld [vmem:[#allocation12 + $0x2c8] sm:$0xff]
    %v715 = vld [vmem:[#allocation12 + $0x2d0] sm:$0xff]
    %v716 = vld [vmem:[#allocation12 + $0x2d8] sm:$0xff]
    %v717 = vld [vmem:[#allocation12 + $0x2e0] sm:$0xff]
    %v718 = vld [vmem:[#allocation12 + $0x2e8] sm:$0xff]
    %v719 = vld [vmem:[#allocation12 + $0x2f0] sm:$0xff]
    %v720 = vld [vmem:[#allocation12 + $0x2f8] sm:$0xff]
    %v721 = vld [vmem:[#allocation12 + $0x300] sm:$0xff]
    %v722 = vld [vmem:[#allocation12 + $0x308] sm:$0xff]
    %v723 = vld [vmem:[#allocation12 + $0x310] sm:$0xff]
    %v724 = vld [vmem:[#allocation12 + $0x318] sm:$0xff]
    %v725 = vld [vmem:[#allocation12 + $0x320] sm:$0xff]
    %v726 = vld [vmem:[#allocation12 + $0x328] sm:$0xff]
    %v727 = vld [vmem:[#allocation12 + $0x330] sm:$0xff]
    %v728 = vld [vmem:[#allocation12 + $0x338] sm:$0xff]
    %v729 = vld [vmem:[#allocation12 + $0x340] sm:$0xff]
    %v730 = vld [vmem:[#allocation12 + $0x348] sm:$0xff]
    %v731 = vld [vmem:[#allocation12 + $0x350] sm:$0xff]
    %v732 = vld [vmem:[#allocation12 + $0x358] sm:$0xff]
    %v733 = vld [vmem:[#allocation12 + $0x360] sm:$0xff]
    %v734 = vld [vmem:[#allocation12 + $0x368] sm:$0xff]
    %v735 = vld [vmem:[#allocation12 + $0x370] sm:$0xff]
    %v736 = vld [vmem:[#allocation12 + $0x378] sm:$0xff]
    %v737 = vld [vmem:[#allocation12 + $0x380] sm:$0xff]
    %v738 = vld [vmem:[#allocation12 + $0x388] sm:$0xff]
    %v739 = vld [vmem:[#allocation12 + $0x390] sm:$0xff]
    %v740 = vld [vmem:[#allocation12 + $0x398] sm:$0xff]
    %v741 = vld [vmem:[#allocation12 + $0x3a0] sm:$0xff]
    %v742 = vld [vmem:[#allocation12 + $0x3a8] sm:$0xff]
    %v743 = vld [vmem:[#allocation12 + $0x3b0] sm:$0xff]
    %v744 = vld [vmem:[#allocation12 + $0x3b8] sm:$0xff]
    %v745 = vld [vmem:[#allocation12 + $0x3c0] sm:$0xff]
    %v746 = vld [vmem:[#allocation12 + $0x3c8] sm:$0xff]
    %v747 = vld [vmem:[#allocation12 + $0x3d0] sm:$0xff]
    %v748 = vld [vmem:[#allocation12 + $0x3d8] sm:$0xff]
    %v749 = vld [vmem:[#allocation12 + $0x3e0] sm:$0xff]
    %v750 = vld [vmem:[#allocation12 + $0x3e8] sm:$0xff]
    %v751 = vld [vmem:[#allocation12 + $0x3f0] sm:$0xff]
    %v752 = vld [vmem:[#allocation12 + $0x3f8] sm:$0xff]
    %v753 = vld [vmem:[#allocation12 + $0x400] sm:$0xff]
    %v754 = vld [vmem:[#allocation12 + $0x408] sm:$0xff]
    %v755 = vld [vmem:[#allocation12 + $0x410] sm:$0xff]
    %v756 = vld [vmem:[#allocation12 + $0x418] sm:$0xff]
    %v757 = vld [vmem:[#allocation12 + $0x420] sm:$0xff]
    %v758 = vld [vmem:[#allocation12 + $0x428] sm:$0xff]
    %v759 = vld [vmem:[#allocation12 + $0x430] sm:$0xff]
    %v760 = vld [vmem:[#allocation12 + $0x438] sm:$0xff]
    %v761 = vld [vmem:[#allocation12 + $0x440] sm:$0xff]
    %v762 = vld [vmem:[#allocation12 + $0x448] sm:$0xff]
    %v763 = vld [vmem:[#allocation12 + $0x450] sm:$0xff]
    %v764 = vld [vmem:[#allocation12 + $0x458] sm:$0xff]
    %v765 = vld [vmem:[#allocation12 + $0x460] sm:$0xff]
    %v766 = vld [vmem:[#allocation12 + $0x468] sm:$0xff]
    %v767 = vld [vmem:[#allocation12 + $0x470] sm:$0xff]
    %v768 = vld [vmem:[#allocation12 + $0x478] sm:$0xff]
    %v769 = vld [vmem:[#allocation12 + $0x480] sm:$0xff]
    %v770 = vld [vmem:[#allocation12 + $0x488] sm:$0xff]
    %v771 = vld [vmem:[#allocation12 + $0x490] sm:$0xff]
    %v772 = vld [vmem:[#allocation12 + $0x498] sm:$0xff]
    %v773 = vld [vmem:[#allocation12 + $0x4a0] sm:$0xff]
    %v774 = vld [vmem:[#allocation12 + $0x4a8] sm:$0xff]
    %v775 = vld [vmem:[#allocation12 + $0x4b0] sm:$0xff]
    %v776 = vld [vmem:[#allocation12 + $0x4b8] sm:$0xff]
    %v777 = vld [vmem:[#allocation12 + $0x4c0] sm:$0xff]
    %v778 = vld [vmem:[#allocation12 + $0x4c8] sm:$0xff]
    %v779 = vld [vmem:[#allocation12 + $0x4d0] sm:$0xff]
    %v780 = vld [vmem:[#allocation12 + $0x4d8] sm:$0xff]
    %v781 = vld [vmem:[#allocation12 + $0x4e0] sm:$0xff]
    %v782 = vld [vmem:[#allocation12 + $0x4e8] sm:$0xff]
    %v783 = vld [vmem:[#allocation12 + $0x4f0] sm:$0xff]
    %v784 = vld [vmem:[#allocation12 + $0x4f8] sm:$0xff]
    %v785 = vld [vmem:[#allocation12 + $0x500] sm:$0xff]
    %v786 = vld [vmem:[#allocation12 + $0x508] sm:$0xff]
    %v787 = vld [vmem:[#allocation12 + $0x510] sm:$0xff]
    %v788 = vld [vmem:[#allocation12 + $0x518] sm:$0xff]
    %v789 = vld [vmem:[#allocation12 + $0x520] sm:$0xff]
    %v790 = vld [vmem:[#allocation12 + $0x528] sm:$0xff]
    %v791 = vld [vmem:[#allocation12 + $0x530] sm:$0xff]
    %v792 = vld [vmem:[#allocation12 + $0x538] sm:$0xff]
    %v793 = vld [vmem:[#allocation12 + $0x540] sm:$0xff]
    %v794 = vld [vmem:[#allocation12 + $0x548] sm:$0xff]
    %v795 = vld [vmem:[#allocation12 + $0x550] sm:$0xff]
    %v796 = vld [vmem:[#allocation12 + $0x558] sm:$0xff]
    %v797 = vld [vmem:[#allocation12 + $0x560] sm:$0xff]
    %v798 = vld [vmem:[#allocation12 + $0x568] sm:$0xff]
    %v799 = vld [vmem:[#allocation12 + $0x570] sm:$0xff]
    %v800 = vld [vmem:[#allocation12 + $0x578] sm:$0xff]
    %v801 = vld [vmem:[#allocation12 + $0x580] sm:$0xff]
    %v802 = vld [vmem:[#allocation12 + $0x588] sm:$0xff]
    %v803 = vld [vmem:[#allocation12 + $0x590] sm:$0xff]
    %v804 = vld [vmem:[#allocation12 + $0x598] sm:$0xff]
    %v805 = vld [vmem:[#allocation12 + $0x5a0] sm:$0xff]
    %v806 = vld [vmem:[#allocation12 + $0x5a8] sm:$0xff]
    %v807 = vld [vmem:[#allocation12 + $0x5b0] sm:$0xff]
    %v808 = vld [vmem:[#allocation12 + $0x5b8] sm:$0xff]
    %v809 = vld [vmem:[#allocation12 + $0x5c0] sm:$0xff]
    %v810 = vld [vmem:[#allocation12 + $0x5c8] sm:$0xff]
    %v811 = vld [vmem:[#allocation12 + $0x5d0] sm:$0xff]
    %v812 = vld [vmem:[#allocation12 + $0x5d8] sm:$0xff]
    %v813 = vld [vmem:[#allocation12 + $0x5e0] sm:$0xff]
    %v814 = vld [vmem:[#allocation12 + $0x5e8] sm:$0xff]
    %v815 = vld [vmem:[#allocation12 + $0x5f0] sm:$0xff]
    %v816 = vld [vmem:[#allocation12 + $0x5f8] sm:$0xff]
    %v817 = vld [vmem:[#allocation12 + $0x600] sm:$0xff]
    %v818 = vld [vmem:[#allocation12 + $0x608] sm:$0xff]
    %v819 = vld [vmem:[#allocation12 + $0x610] sm:$0xff]
    %v820 = vld [vmem:[#allocation12 + $0x618] sm:$0xff]
    %v821 = vld [vmem:[#allocation12 + $0x620] sm:$0xff]
    %v822 = vld [vmem:[#allocation12 + $0x628] sm:$0xff]
    %v823 = vld [vmem:[#allocation12 + $0x630] sm:$0xff]
    %v824 = vld [vmem:[#allocation12 + $0x638] sm:$0xff]
    %v825 = vld [vmem:[#allocation12 + $0x640] sm:$0xff]
    %v826 = vld [vmem:[#allocation12 + $0x648] sm:$0xff]
    %v827 = vld [vmem:[#allocation12 + $0x650] sm:$0xff]
    %v828 = vld [vmem:[#allocation12 + $0x658] sm:$0xff]
    %v829 = vld [vmem:[#allocation12 + $0x660] sm:$0xff]
    %v830 = vld [vmem:[#allocation12 + $0x668] sm:$0xff]
    %v831 = vld [vmem:[#allocation12 + $0x670] sm:$0xff]
    %v832 = vld [vmem:[#allocation12 + $0x678] sm:$0xff]
    %v833 = vld [vmem:[#allocation12 + $0x680] sm:$0xff]
    %v834 = vld [vmem:[#allocation12 + $0x688] sm:$0xff]
    %v835 = vld [vmem:[#allocation12 + $0x690] sm:$0xff]
    %v836 = vld [vmem:[#allocation12 + $0x698] sm:$0xff]
    %v837 = vld [vmem:[#allocation12 + $0x6a0] sm:$0xff]
    %v838 = vld [vmem:[#allocation12 + $0x6a8] sm:$0xff]
    %v839 = vld [vmem:[#allocation12 + $0x6b0] sm:$0xff]
    %v840 = vld [vmem:[#allocation12 + $0x6b8] sm:$0xff]
    %v841 = vld [vmem:[#allocation12 + $0x6c0] sm:$0xff]
    %v842 = vld [vmem:[#allocation12 + $0x6c8] sm:$0xff]
    %v843 = vld [vmem:[#allocation12 + $0x6d0] sm:$0xff]
    %v844 = vld [vmem:[#allocation12 + $0x6d8] sm:$0xff]
    %v845 = vld [vmem:[#allocation12 + $0x6e0] sm:$0xff]
    %v846 = vld [vmem:[#allocation12 + $0x6e8] sm:$0xff]
    %v847 = vld [vmem:[#allocation12 + $0x6f0] sm:$0xff]
    %v848 = vld [vmem:[#allocation12 + $0x6f8] sm:$0xff]
    %v849 = vld [vmem:[#allocation12 + $0x700] sm:$0xff]
    %v850 = vld [vmem:[#allocation12 + $0x708] sm:$0xff]
    %v851 = vld [vmem:[#allocation12 + $0x710] sm:$0xff]
    %v852 = vld [vmem:[#allocation12 + $0x718] sm:$0xff]
    %v853 = vld [vmem:[#allocation12 + $0x720] sm:$0xff]
    %v854 = vld [vmem:[#allocation12 + $0x728] sm:$0xff]
    %v855 = vld [vmem:[#allocation12 + $0x730] sm:$0xff]
    %v856 = vld [vmem:[#allocation12 + $0x738] sm:$0xff]
    %v857 = vld [vmem:[#allocation12 + $0x740] sm:$0xff]
    %v858 = vld [vmem:[#allocation12 + $0x748] sm:$0xff]
    %v859 = vld [vmem:[#allocation12 + $0x750] sm:$0xff]
    %v860 = vld [vmem:[#allocation12 + $0x758] sm:$0xff]
    %v861 = vld [vmem:[#allocation12 + $0x760] sm:$0xff]
    %v862 = vld [vmem:[#allocation12 + $0x768] sm:$0xff]
    %v863 = vld [vmem:[#allocation12 + $0x770] sm:$0xff]
    %v864 = vld [vmem:[#allocation12 + $0x778] sm:$0xff]
    %v865 = vld [vmem:[#allocation12 + $0x780] sm:$0xff]
    %v866 = vld [vmem:[#allocation12 + $0x788] sm:$0xff]
    %v867 = vld [vmem:[#allocation12 + $0x790] sm:$0xff]
    %v868 = vld [vmem:[#allocation12 + $0x798] sm:$0xff]
    %v869 = vld [vmem:[#allocation12 + $0x7a0] sm:$0xff]
    %v870 = vld [vmem:[#allocation12 + $0x7a8] sm:$0xff]
    %v871 = vld [vmem:[#allocation12 + $0x7b0] sm:$0xff]
    %v872 = vld [vmem:[#allocation12 + $0x7b8] sm:$0xff]
    %v873 = vld [vmem:[#allocation12 + $0x7c0] sm:$0xff]
    %v874 = vld [vmem:[#allocation12 + $0x7c8] sm:$0xff]
    %v875 = vld [vmem:[#allocation12 + $0x7d0] sm:$0xff]
    %v876 = vld [vmem:[#allocation12 + $0x7d8] sm:$0xff]
    %v877 = vld [vmem:[#allocation12 + $0x7e0] sm:$0xff]
    %v878 = vld [vmem:[#allocation12 + $0x7e8] sm:$0xff]
    %v879 = vld [vmem:[#allocation12 + $0x7f0] sm:$0xff]
    %v880 = vld [vmem:[#allocation12 + $0x7f8] sm:$0xff]
    %v881 = vld [vmem:[#allocation13] sm:$0xff]
    %v883 = vlaneseq
    %v884 = vshrl.u32 %v883, 7
    %v885 = vsub.s32 0, %v884
    %v886 = vrot.slane %v881, %v885
    %v887 = vlaneseq
    %v888 = vshrl.u32 %v887, 7
    %v889 = vsub.s32 1, %v888
    %v890 = vrot.slane %v881, %v889
    %v891 = vlaneseq
    %v892 = vshrl.u32 %v891, 7
    %v893 = vsub.s32 2, %v892
    %v894 = vrot.slane %v881, %v893
    %v895 = vlaneseq
    %v896 = vshrl.u32 %v895, 7
    %v897 = vsub.s32 3, %v896
    %v898 = vrot.slane %v881, %v897
    %v899 = vlaneseq
    %v900 = vshrl.u32 %v899, 7
    %v901 = vsub.s32 4, %v900
    %v902 = vrot.slane %v881, %v901
    %v903 = vlaneseq
    %v904 = vshrl.u32 %v903, 7
    %v905 = vsub.s32 5, %v904
    %v906 = vrot.slane %v881, %v905
    %v907 = vlaneseq
    %v908 = vshrl.u32 %v907, 7
    %v909 = vsub.s32 6, %v908
    %v910 = vrot.slane %v881, %v909
    %v911 = vlaneseq
    %v912 = vshrl.u32 %v911, 7
    %v913 = vsub.s32 7, %v912
    %v914 = vrot.slane %v881, %v913
    %v1179 = vunpack.c.l.b16 %v625
    %v1180 = vunpack.c.h.b16 %v625
    %v1181 = vunpack.c.l.b16 %v626
    %v1182 = vunpack.c.h.b16 %v626
    %v1183 = vunpack.c.l.b16 %v627
    %v1184 = vunpack.c.h.b16 %v627
    %v1185 = vunpack.c.l.b16 %v628
    %v1186 = vunpack.c.h.b16 %v628
    %v1187 = vunpack.c.l.b16 %v629
    %v1188 = vunpack.c.h.b16 %v629
    %v1189 = vunpack.c.l.b16 %v630
    %v1190 = vunpack.c.h.b16 %v630
    %v1191 = vunpack.c.l.b16 %v631
    %v1192 = vunpack.c.h.b16 %v631
    %v1193 = vunpack.c.l.b16 %v632
    %v1194 = vunpack.c.h.b16 %v632
    %v1195 = vunpack.c.l.b16 %v633
    %v1196 = vunpack.c.h.b16 %v633
    %v1197 = vunpack.c.l.b16 %v634
    %v1198 = vunpack.c.h.b16 %v634
    %v1199 = vunpack.c.l.b16 %v635
    %v1200 = vunpack.c.h.b16 %v635
    %v1201 = vunpack.c.l.b16 %v636
    %v1202 = vunpack.c.h.b16 %v636
    %v1203 = vunpack.c.l.b16 %v637
    %v1204 = vunpack.c.h.b16 %v637
    %v1205 = vunpack.c.l.b16 %v638
    %v1206 = vunpack.c.h.b16 %v638
    %v1207 = vunpack.c.l.b16 %v639
    %v1208 = vunpack.c.h.b16 %v639
    %v1209 = vunpack.c.l.b16 %v640
    %v1210 = vunpack.c.h.b16 %v640
    %v1211 = vunpack.c.l.b16 %v641
    %v1212 = vunpack.c.h.b16 %v641
    %v1213 = vunpack.c.l.b16 %v642
    %v1214 = vunpack.c.h.b16 %v642
    %v1215 = vunpack.c.l.b16 %v643
    %v1216 = vunpack.c.h.b16 %v643
    %v1217 = vunpack.c.l.b16 %v644
    %v1218 = vunpack.c.h.b16 %v644
    %v1219 = vunpack.c.l.b16 %v645
    %v1220 = vunpack.c.h.b16 %v645
    %v1221 = vunpack.c.l.b16 %v646
    %v1222 = vunpack.c.h.b16 %v646
    %v1223 = vunpack.c.l.b16 %v647
    %v1224 = vunpack.c.h.b16 %v647
    %v1225 = vunpack.c.l.b16 %v648
    %v1226 = vunpack.c.h.b16 %v648
    %v1227 = vunpack.c.l.b16 %v649
    %v1228 = vunpack.c.h.b16 %v649
    %v1229 = vunpack.c.l.b16 %v650
    %v1230 = vunpack.c.h.b16 %v650
    %v1231 = vunpack.c.l.b16 %v651
    %v1232 = vunpack.c.h.b16 %v651
    %v1233 = vunpack.c.l.b16 %v652
    %v1234 = vunpack.c.h.b16 %v652
    %v1235 = vunpack.c.l.b16 %v653
    %v1236 = vunpack.c.h.b16 %v653
    %v1237 = vunpack.c.l.b16 %v654
    %v1238 = vunpack.c.h.b16 %v654
    %v1239 = vunpack.c.l.b16 %v655
    %v1240 = vunpack.c.h.b16 %v655
    %v1241 = vunpack.c.l.b16 %v656
    %v1242 = vunpack.c.h.b16 %v656
    %v1243 = vunpack.c.l.b16 %v657
    %v1244 = vunpack.c.h.b16 %v657
    %v1245 = vunpack.c.l.b16 %v658
    %v1246 = vunpack.c.h.b16 %v658
    %v1247 = vunpack.c.l.b16 %v659
    %v1248 = vunpack.c.h.b16 %v659
    %v1249 = vunpack.c.l.b16 %v660
    %v1250 = vunpack.c.h.b16 %v660
    %v1251 = vunpack.c.l.b16 %v661
    %v1252 = vunpack.c.h.b16 %v661
    %v1253 = vunpack.c.l.b16 %v662
    %v1254 = vunpack.c.h.b16 %v662
    %v1255 = vunpack.c.l.b16 %v663
    %v1256 = vunpack.c.h.b16 %v663
    %v1257 = vunpack.c.l.b16 %v664
    %v1258 = vunpack.c.h.b16 %v664
    %v1259 = vunpack.c.l.b16 %v665
    %v1260 = vunpack.c.h.b16 %v665
    %v1261 = vunpack.c.l.b16 %v666
    %v1262 = vunpack.c.h.b16 %v666
    %v1263 = vunpack.c.l.b16 %v667
    %v1264 = vunpack.c.h.b16 %v667
    %v1265 = vunpack.c.l.b16 %v668
    %v1266 = vunpack.c.h.b16 %v668
    %v1267 = vunpack.c.l.b16 %v669
    %v1268 = vunpack.c.h.b16 %v669
    %v1269 = vunpack.c.l.b16 %v670
    %v1270 = vunpack.c.h.b16 %v670
    %v1271 = vunpack.c.l.b16 %v671
    %v1272 = vunpack.c.h.b16 %v671
    %v1273 = vunpack.c.l.b16 %v672
    %v1274 = vunpack.c.h.b16 %v672
    %v1275 = vunpack.c.l.b16 %v673
    %v1276 = vunpack.c.h.b16 %v673
    %v1277 = vunpack.c.l.b16 %v674
    %v1278 = vunpack.c.h.b16 %v674
    %v1279 = vunpack.c.l.b16 %v675
    %v1280 = vunpack.c.h.b16 %v675
    %v1281 = vunpack.c.l.b16 %v676
    %v1282 = vunpack.c.h.b16 %v676
    %v1283 = vunpack.c.l.b16 %v677
    %v1284 = vunpack.c.h.b16 %v677
    %v1285 = vunpack.c.l.b16 %v678
    %v1286 = vunpack.c.h.b16 %v678
    %v1287 = vunpack.c.l.b16 %v679
    %v1288 = vunpack.c.h.b16 %v679
    %v1289 = vunpack.c.l.b16 %v680
    %v1290 = vunpack.c.h.b16 %v680
    %v1291 = vunpack.c.l.b16 %v681
    %v1292 = vunpack.c.h.b16 %v681
    %v1293 = vunpack.c.l.b16 %v682
    %v1294 = vunpack.c.h.b16 %v682
    %v1295 = vunpack.c.l.b16 %v683
    %v1296 = vunpack.c.h.b16 %v683
    %v1297 = vunpack.c.l.b16 %v684
    %v1298 = vunpack.c.h.b16 %v684
    %v1299 = vunpack.c.l.b16 %v685
    %v1300 = vunpack.c.h.b16 %v685
    %v1301 = vunpack.c.l.b16 %v686
    %v1302 = vunpack.c.h.b16 %v686
    %v1303 = vunpack.c.l.b16 %v687
    %v1304 = vunpack.c.h.b16 %v687
    %v1305 = vunpack.c.l.b16 %v688
    %v1306 = vunpack.c.h.b16 %v688
    %v1307 = vunpack.c.l.b16 %v689
    %v1308 = vunpack.c.h.b16 %v689
    %v1309 = vunpack.c.l.b16 %v690
    %v1310 = vunpack.c.h.b16 %v690
    %v1311 = vunpack.c.l.b16 %v691
    %v1312 = vunpack.c.h.b16 %v691
    %v1313 = vunpack.c.l.b16 %v692
    %v1314 = vunpack.c.h.b16 %v692
    %v1315 = vunpack.c.l.b16 %v693
    %v1316 = vunpack.c.h.b16 %v693
    %v1317 = vunpack.c.l.b16 %v694
    %v1318 = vunpack.c.h.b16 %v694
    %v1319 = vunpack.c.l.b16 %v695
    %v1320 = vunpack.c.h.b16 %v695
    %v1321 = vunpack.c.l.b16 %v696
    %v1322 = vunpack.c.h.b16 %v696
    %v1323 = vunpack.c.l.b16 %v697
    %v1324 = vunpack.c.h.b16 %v697
    %v1325 = vunpack.c.l.b16 %v698
    %v1326 = vunpack.c.h.b16 %v698
    %v1327 = vunpack.c.l.b16 %v699
    %v1328 = vunpack.c.h.b16 %v699
    %v1329 = vunpack.c.l.b16 %v700
    %v1330 = vunpack.c.h.b16 %v700
    %v1331 = vunpack.c.l.b16 %v701
    %v1332 = vunpack.c.h.b16 %v701
    %v1333 = vunpack.c.l.b16 %v702
    %v1334 = vunpack.c.h.b16 %v702
    %v1335 = vunpack.c.l.b16 %v703
    %v1336 = vunpack.c.h.b16 %v703
    %v1337 = vunpack.c.l.b16 %v704
    %v1338 = vunpack.c.h.b16 %v704
    %v1339 = vunpack.c.l.b16 %v705
    %v1340 = vunpack.c.h.b16 %v705
    %v1341 = vunpack.c.l.b16 %v706
    %v1342 = vunpack.c.h.b16 %v706
    %v1343 = vunpack.c.l.b16 %v707
    %v1344 = vunpack.c.h.b16 %v707
    %v1345 = vunpack.c.l.b16 %v708
    %v1346 = vunpack.c.h.b16 %v708
    %v1347 = vunpack.c.l.b16 %v709
    %v1348 = vunpack.c.h.b16 %v709
    %v1349 = vunpack.c.l.b16 %v710
    %v1350 = vunpack.c.h.b16 %v710
    %v1351 = vunpack.c.l.b16 %v711
    %v1352 = vunpack.c.h.b16 %v711
    %v1353 = vunpack.c.l.b16 %v712
    %v1354 = vunpack.c.h.b16 %v712
    %v1355 = vunpack.c.l.b16 %v713
    %v1356 = vunpack.c.h.b16 %v713
    %v1357 = vunpack.c.l.b16 %v714
    %v1358 = vunpack.c.h.b16 %v714
    %v1359 = vunpack.c.l.b16 %v715
    %v1360 = vunpack.c.h.b16 %v715
    %v1361 = vunpack.c.l.b16 %v716
    %v1362 = vunpack.c.h.b16 %v716
    %v1363 = vunpack.c.l.b16 %v717
    %v1364 = vunpack.c.h.b16 %v717
    %v1365 = vunpack.c.l.b16 %v718
    %v1366 = vunpack.c.h.b16 %v718
    %v1367 = vunpack.c.l.b16 %v719
    %v1368 = vunpack.c.h.b16 %v719
    %v1369 = vunpack.c.l.b16 %v720
    %v1370 = vunpack.c.h.b16 %v720
    %v1371 = vunpack.c.l.b16 %v721
    %v1372 = vunpack.c.h.b16 %v721
    %v1373 = vunpack.c.l.b16 %v722
    %v1374 = vunpack.c.h.b16 %v722
    %v1375 = vunpack.c.l.b16 %v723
    %v1376 = vunpack.c.h.b16 %v723
    %v1377 = vunpack.c.l.b16 %v724
    %v1378 = vunpack.c.h.b16 %v724
    %v1379 = vunpack.c.l.b16 %v725
    %v1380 = vunpack.c.h.b16 %v725
    %v1381 = vunpack.c.l.b16 %v726
    %v1382 = vunpack.c.h.b16 %v726
    %v1383 = vunpack.c.l.b16 %v727
    %v1384 = vunpack.c.h.b16 %v727
    %v1385 = vunpack.c.l.b16 %v728
    %v1386 = vunpack.c.h.b16 %v728
    %v1387 = vunpack.c.l.b16 %v729
    %v1388 = vunpack.c.h.b16 %v729
    %v1389 = vunpack.c.l.b16 %v730
    %v1390 = vunpack.c.h.b16 %v730
    %v1391 = vunpack.c.l.b16 %v731
    %v1392 = vunpack.c.h.b16 %v731
    %v1393 = vunpack.c.l.b16 %v732
    %v1394 = vunpack.c.h.b16 %v732
    %v1395 = vunpack.c.l.b16 %v733
    %v1396 = vunpack.c.h.b16 %v733
    %v1397 = vunpack.c.l.b16 %v734
    %v1398 = vunpack.c.h.b16 %v734
    %v1399 = vunpack.c.l.b16 %v735
    %v1400 = vunpack.c.h.b16 %v735
    %v1401 = vunpack.c.l.b16 %v736
    %v1402 = vunpack.c.h.b16 %v736
    %v1403 = vunpack.c.l.b16 %v737
    %v1404 = vunpack.c.h.b16 %v737
    %v1405 = vunpack.c.l.b16 %v738
    %v1406 = vunpack.c.h.b16 %v738
    %v1407 = vunpack.c.l.b16 %v739
    %v1408 = vunpack.c.h.b16 %v739
    %v1409 = vunpack.c.l.b16 %v740
    %v1410 = vunpack.c.h.b16 %v740
    %v1411 = vunpack.c.l.b16 %v741
    %v1412 = vunpack.c.h.b16 %v741
    %v1413 = vunpack.c.l.b16 %v742
    %v1414 = vunpack.c.h.b16 %v742
    %v1415 = vunpack.c.l.b16 %v743
    %v1416 = vunpack.c.h.b16 %v743
    %v1417 = vunpack.c.l.b16 %v744
    %v1418 = vunpack.c.h.b16 %v744
    %v1419 = vunpack.c.l.b16 %v745
    %v1420 = vunpack.c.h.b16 %v745
    %v1421 = vunpack.c.l.b16 %v746
    %v1422 = vunpack.c.h.b16 %v746
    %v1423 = vunpack.c.l.b16 %v747
    %v1424 = vunpack.c.h.b16 %v747
    %v1425 = vunpack.c.l.b16 %v748
    %v1426 = vunpack.c.h.b16 %v748
    %v1427 = vunpack.c.l.b16 %v749
    %v1428 = vunpack.c.h.b16 %v749
    %v1429 = vunpack.c.l.b16 %v750
    %v1430 = vunpack.c.h.b16 %v750
    %v1431 = vunpack.c.l.b16 %v751
    %v1432 = vunpack.c.h.b16 %v751
    %v1433 = vunpack.c.l.b16 %v752
    %v1434 = vunpack.c.h.b16 %v752
    %v1435 = vunpack.c.l.b16 %v753
    %v1436 = vunpack.c.h.b16 %v753
    %v1437 = vunpack.c.l.b16 %v754
    %v1438 = vunpack.c.h.b16 %v754
    %v1439 = vunpack.c.l.b16 %v755
    %v1440 = vunpack.c.h.b16 %v755
    %v1441 = vunpack.c.l.b16 %v756
    %v1442 = vunpack.c.h.b16 %v756
    %v1443 = vunpack.c.l.b16 %v757
    %v1444 = vunpack.c.h.b16 %v757
    %v1445 = vunpack.c.l.b16 %v758
    %v1446 = vunpack.c.h.b16 %v758
    %v1447 = vunpack.c.l.b16 %v759
    %v1448 = vunpack.c.h.b16 %v759
    %v1449 = vunpack.c.l.b16 %v760
    %v1450 = vunpack.c.h.b16 %v760
    %v1451 = vunpack.c.l.b16 %v761
    %v1452 = vunpack.c.h.b16 %v761
    %v1453 = vunpack.c.l.b16 %v762
    %v1454 = vunpack.c.h.b16 %v762
    %v1455 = vunpack.c.l.b16 %v763
    %v1456 = vunpack.c.h.b16 %v763
    %v1457 = vunpack.c.l.b16 %v764
    %v1458 = vunpack.c.h.b16 %v764
    %v1459 = vunpack.c.l.b16 %v765
    %v1460 = vunpack.c.h.b16 %v765
    %v1461 = vunpack.c.l.b16 %v766
    %v1462 = vunpack.c.h.b16 %v766
    %v1463 = vunpack.c.l.b16 %v767
    %v1464 = vunpack.c.h.b16 %v767
    %v1465 = vunpack.c.l.b16 %v768
    %v1466 = vunpack.c.h.b16 %v768
    %v1467 = vunpack.c.l.b16 %v769
    %v1468 = vunpack.c.h.b16 %v769
    %v1469 = vunpack.c.l.b16 %v770
    %v1470 = vunpack.c.h.b16 %v770
    %v1471 = vunpack.c.l.b16 %v771
    %v1472 = vunpack.c.h.b16 %v771
    %v1473 = vunpack.c.l.b16 %v772
    %v1474 = vunpack.c.h.b16 %v772
    %v1475 = vunpack.c.l.b16 %v773
    %v1476 = vunpack.c.h.b16 %v773
    %v1477 = vunpack.c.l.b16 %v774
    %v1478 = vunpack.c.h.b16 %v774
    %v1479 = vunpack.c.l.b16 %v775
    %v1480 = vunpack.c.h.b16 %v775
    %v1481 = vunpack.c.l.b16 %v776
    %v1482 = vunpack.c.h.b16 %v776
    %v1483 = vunpack.c.l.b16 %v777
    %v1484 = vunpack.c.h.b16 %v777
    %v1485 = vunpack.c.l.b16 %v778
    %v1486 = vunpack.c.h.b16 %v778
    %v1487 = vunpack.c.l.b16 %v779
    %v1488 = vunpack.c.h.b16 %v779
    %v1489 = vunpack.c.l.b16 %v780
    %v1490 = vunpack.c.h.b16 %v780
    %v1491 = vunpack.c.l.b16 %v781
    %v1492 = vunpack.c.h.b16 %v781
    %v1493 = vunpack.c.l.b16 %v782
    %v1494 = vunpack.c.h.b16 %v782
    %v1495 = vunpack.c.l.b16 %v783
    %v1496 = vunpack.c.h.b16 %v783
    %v1497 = vunpack.c.l.b16 %v784
    %v1498 = vunpack.c.h.b16 %v784
    %v1499 = vunpack.c.l.b16 %v785
    %v1500 = vunpack.c.h.b16 %v785
    %v1501 = vunpack.c.l.b16 %v786
    %v1502 = vunpack.c.h.b16 %v786
    %v1503 = vunpack.c.l.b16 %v787
    %v1504 = vunpack.c.h.b16 %v787
    %v1505 = vunpack.c.l.b16 %v788
    %v1506 = vunpack.c.h.b16 %v788
    %v1507 = vunpack.c.l.b16 %v789
    %v1508 = vunpack.c.h.b16 %v789
    %v1509 = vunpack.c.l.b16 %v790
    %v1510 = vunpack.c.h.b16 %v790
    %v1511 = vunpack.c.l.b16 %v791
    %v1512 = vunpack.c.h.b16 %v791
    %v1513 = vunpack.c.l.b16 %v792
    %v1514 = vunpack.c.h.b16 %v792
    %v1515 = vunpack.c.l.b16 %v793
    %v1516 = vunpack.c.h.b16 %v793
    %v1517 = vunpack.c.l.b16 %v794
    %v1518 = vunpack.c.h.b16 %v794
    %v1519 = vunpack.c.l.b16 %v795
    %v1520 = vunpack.c.h.b16 %v795
    %v1521 = vunpack.c.l.b16 %v796
    %v1522 = vunpack.c.h.b16 %v796
    %v1523 = vunpack.c.l.b16 %v797
    %v1524 = vunpack.c.h.b16 %v797
    %v1525 = vunpack.c.l.b16 %v798
    %v1526 = vunpack.c.h.b16 %v798
    %v1527 = vunpack.c.l.b16 %v799
    %v1528 = vunpack.c.h.b16 %v799
    %v1529 = vunpack.c.l.b16 %v800
    %v1530 = vunpack.c.h.b16 %v800
    %v1531 = vunpack.c.l.b16 %v801
    %v1532 = vunpack.c.h.b16 %v801
    %v1533 = vunpack.c.l.b16 %v802
    %v1534 = vunpack.c.h.b16 %v802
    %v1535 = vunpack.c.l.b16 %v803
    %v1536 = vunpack.c.h.b16 %v803
    %v1537 = vunpack.c.l.b16 %v804
    %v1538 = vunpack.c.h.b16 %v804
    %v1539 = vunpack.c.l.b16 %v805
    %v1540 = vunpack.c.h.b16 %v805
    %v1541 = vunpack.c.l.b16 %v806
    %v1542 = vunpack.c.h.b16 %v806
    %v1543 = vunpack.c.l.b16 %v807
    %v1544 = vunpack.c.h.b16 %v807
    %v1545 = vunpack.c.l.b16 %v808
    %v1546 = vunpack.c.h.b16 %v808
    %v1547 = vunpack.c.l.b16 %v809
    %v1548 = vunpack.c.h.b16 %v809
    %v1549 = vunpack.c.l.b16 %v810
    %v1550 = vunpack.c.h.b16 %v810
    %v1551 = vunpack.c.l.b16 %v811
    %v1552 = vunpack.c.h.b16 %v811
    %v1553 = vunpack.c.l.b16 %v812
    %v1554 = vunpack.c.h.b16 %v812
    %v1555 = vunpack.c.l.b16 %v813
    %v1556 = vunpack.c.h.b16 %v813
    %v1557 = vunpack.c.l.b16 %v814
    %v1558 = vunpack.c.h.b16 %v814
    %v1559 = vunpack.c.l.b16 %v815
    %v1560 = vunpack.c.h.b16 %v815
    %v1561 = vunpack.c.l.b16 %v816
    %v1562 = vunpack.c.h.b16 %v816
    %v1563 = vunpack.c.l.b16 %v817
    %v1564 = vunpack.c.h.b16 %v817
    %v1565 = vunpack.c.l.b16 %v818
    %v1566 = vunpack.c.h.b16 %v818
    %v1567 = vunpack.c.l.b16 %v819
    %v1568 = vunpack.c.h.b16 %v819
    %v1569 = vunpack.c.l.b16 %v820
    %v1570 = vunpack.c.h.b16 %v820
    %v1571 = vunpack.c.l.b16 %v821
    %v1572 = vunpack.c.h.b16 %v821
    %v1573 = vunpack.c.l.b16 %v822
    %v1574 = vunpack.c.h.b16 %v822
    %v1575 = vunpack.c.l.b16 %v823
    %v1576 = vunpack.c.h.b16 %v823
    %v1577 = vunpack.c.l.b16 %v824
    %v1578 = vunpack.c.h.b16 %v824
    %v1579 = vunpack.c.l.b16 %v825
    %v1580 = vunpack.c.h.b16 %v825
    %v1581 = vunpack.c.l.b16 %v826
    %v1582 = vunpack.c.h.b16 %v826
    %v1583 = vunpack.c.l.b16 %v827
    %v1584 = vunpack.c.h.b16 %v827
    %v1585 = vunpack.c.l.b16 %v828
    %v1586 = vunpack.c.h.b16 %v828
    %v1587 = vunpack.c.l.b16 %v829
    %v1588 = vunpack.c.h.b16 %v829
    %v1589 = vunpack.c.l.b16 %v830
    %v1590 = vunpack.c.h.b16 %v830
    %v1591 = vunpack.c.l.b16 %v831
    %v1592 = vunpack.c.h.b16 %v831
    %v1593 = vunpack.c.l.b16 %v832
    %v1594 = vunpack.c.h.b16 %v832
    %v1595 = vunpack.c.l.b16 %v833
    %v1596 = vunpack.c.h.b16 %v833
    %v1597 = vunpack.c.l.b16 %v834
    %v1598 = vunpack.c.h.b16 %v834
    %v1599 = vunpack.c.l.b16 %v835
    %v1600 = vunpack.c.h.b16 %v835
    %v1601 = vunpack.c.l.b16 %v836
    %v1602 = vunpack.c.h.b16 %v836
    %v1603 = vunpack.c.l.b16 %v837
    %v1604 = vunpack.c.h.b16 %v837
    %v1605 = vunpack.c.l.b16 %v838
    %v1606 = vunpack.c.h.b16 %v838
    %v1607 = vunpack.c.l.b16 %v839
    %v1608 = vunpack.c.h.b16 %v839
    %v1609 = vunpack.c.l.b16 %v840
    %v1610 = vunpack.c.h.b16 %v840
    %v1611 = vunpack.c.l.b16 %v841
    %v1612 = vunpack.c.h.b16 %v841
    %v1613 = vunpack.c.l.b16 %v842
    %v1614 = vunpack.c.h.b16 %v842
    %v1615 = vunpack.c.l.b16 %v843
    %v1616 = vunpack.c.h.b16 %v843
    %v1617 = vunpack.c.l.b16 %v844
    %v1618 = vunpack.c.h.b16 %v844
    %v1619 = vunpack.c.l.b16 %v845
    %v1620 = vunpack.c.h.b16 %v845
    %v1621 = vunpack.c.l.b16 %v846
    %v1622 = vunpack.c.h.b16 %v846
    %v1623 = vunpack.c.l.b16 %v847
    %v1624 = vunpack.c.h.b16 %v847
    %v1625 = vunpack.c.l.b16 %v848
    %v1626 = vunpack.c.h.b16 %v848
    %v1627 = vunpack.c.l.b16 %v849
    %v1628 = vunpack.c.h.b16 %v849
    %v1629 = vunpack.c.l.b16 %v850
    %v1630 = vunpack.c.h.b16 %v850
    %v1631 = vunpack.c.l.b16 %v851
    %v1632 = vunpack.c.h.b16 %v851
    %v1633 = vunpack.c.l.b16 %v852
    %v1634 = vunpack.c.h.b16 %v852
    %v1635 = vunpack.c.l.b16 %v853
    %v1636 = vunpack.c.h.b16 %v853
    %v1637 = vunpack.c.l.b16 %v854
    %v1638 = vunpack.c.h.b16 %v854
    %v1639 = vunpack.c.l.b16 %v855
    %v1640 = vunpack.c.h.b16 %v855
    %v1641 = vunpack.c.l.b16 %v856
    %v1642 = vunpack.c.h.b16 %v856
    %v1643 = vunpack.c.l.b16 %v857
    %v1644 = vunpack.c.h.b16 %v857
    %v1645 = vunpack.c.l.b16 %v858
    %v1646 = vunpack.c.h.b16 %v858
    %v1647 = vunpack.c.l.b16 %v859
    %v1648 = vunpack.c.h.b16 %v859
    %v1649 = vunpack.c.l.b16 %v860
    %v1650 = vunpack.c.h.b16 %v860
    %v1651 = vunpack.c.l.b16 %v861
    %v1652 = vunpack.c.h.b16 %v861
    %v1653 = vunpack.c.l.b16 %v862
    %v1654 = vunpack.c.h.b16 %v862
    %v1655 = vunpack.c.l.b16 %v863
    %v1656 = vunpack.c.h.b16 %v863
    %v1657 = vunpack.c.l.b16 %v864
    %v1658 = vunpack.c.h.b16 %v864
    %v1659 = vunpack.c.l.b16 %v865
    %v1660 = vunpack.c.h.b16 %v865
    %v1661 = vunpack.c.l.b16 %v866
    %v1662 = vunpack.c.h.b16 %v866
    %v1663 = vunpack.c.l.b16 %v867
    %v1664 = vunpack.c.h.b16 %v867
    %v1665 = vunpack.c.l.b16 %v868
    %v1666 = vunpack.c.h.b16 %v868
    %v1667 = vunpack.c.l.b16 %v869
    %v1668 = vunpack.c.h.b16 %v869
    %v1669 = vunpack.c.l.b16 %v870
    %v1670 = vunpack.c.h.b16 %v870
    %v1671 = vunpack.c.l.b16 %v871
    %v1672 = vunpack.c.h.b16 %v871
    %v1673 = vunpack.c.l.b16 %v872
    %v1674 = vunpack.c.h.b16 %v872
    %v1675 = vunpack.c.l.b16 %v873
    %v1676 = vunpack.c.h.b16 %v873
    %v1677 = vunpack.c.l.b16 %v874
    %v1678 = vunpack.c.h.b16 %v874
    %v1679 = vunpack.c.l.b16 %v875
    %v1680 = vunpack.c.h.b16 %v875
    %v1681 = vunpack.c.l.b16 %v876
    %v1682 = vunpack.c.h.b16 %v876
    %v1683 = vunpack.c.l.b16 %v877
    %v1684 = vunpack.c.h.b16 %v877
    %v1685 = vunpack.c.l.b16 %v878
    %v1686 = vunpack.c.h.b16 %v878
    %v1687 = vunpack.c.l.b16 %v879
    %v1688 = vunpack.c.h.b16 %v879
    %v1689 = vunpack.c.l.b16 %v880
    %v1690 = vunpack.c.h.b16 %v880
    %v1691 = vpack.c.b16 %v1187, %v1179
    %v1692 = vpack.c.b16 %v1188, %v1180
    %v1693 = vpack.c.b16 %v1189, %v1181
    %v1694 = vpack.c.b16 %v1190, %v1182
    %v1695 = vpack.c.b16 %v1191, %v1183
    %v1696 = vpack.c.b16 %v1192, %v1184
    %v1697 = vpack.c.b16 %v1193, %v1185
    %v1698 = vpack.c.b16 %v1194, %v1186
    %v1699 = vpack.c.b16 %v1203, %v1195
    %v1700 = vpack.c.b16 %v1204, %v1196
    %v1701 = vpack.c.b16 %v1205, %v1197
    %v1702 = vpack.c.b16 %v1206, %v1198
    %v1703 = vpack.c.b16 %v1207, %v1199
    %v1704 = vpack.c.b16 %v1208, %v1200
    %v1705 = vpack.c.b16 %v1209, %v1201
    %v1706 = vpack.c.b16 %v1210, %v1202
    %v1707 = vpack.c.b16 %v1219, %v1211
    %v1708 = vpack.c.b16 %v1220, %v1212
    %v1709 = vpack.c.b16 %v1221, %v1213
    %v1710 = vpack.c.b16 %v1222, %v1214
    %v1711 = vpack.c.b16 %v1223, %v1215
    %v1712 = vpack.c.b16 %v1224, %v1216
    %v1713 = vpack.c.b16 %v1225, %v1217
    %v1714 = vpack.c.b16 %v1226, %v1218
    %v1715 = vpack.c.b16 %v1235, %v1227
    %v1716 = vpack.c.b16 %v1236, %v1228
    %v1717 = vpack.c.b16 %v1237, %v1229
    %v1718 = vpack.c.b16 %v1238, %v1230
    %v1719 = vpack.c.b16 %v1239, %v1231
    %v1720 = vpack.c.b16 %v1240, %v1232
    %v1721 = vpack.c.b16 %v1241, %v1233
    %v1722 = vpack.c.b16 %v1242, %v1234
    %v1723 = vpack.c.b16 %v1251, %v1243
    %v1724 = vpack.c.b16 %v1252, %v1244
    %v1725 = vpack.c.b16 %v1253, %v1245
    %v1726 = vpack.c.b16 %v1254, %v1246
    %v1727 = vpack.c.b16 %v1255, %v1247
    %v1728 = vpack.c.b16 %v1256, %v1248
    %v1729 = vpack.c.b16 %v1257, %v1249
    %v1730 = vpack.c.b16 %v1258, %v1250
    %v1731 = vpack.c.b16 %v1267, %v1259
    %v1732 = vpack.c.b16 %v1268, %v1260
    %v1733 = vpack.c.b16 %v1269, %v1261
    %v1734 = vpack.c.b16 %v1270, %v1262
    %v1735 = vpack.c.b16 %v1271, %v1263
    %v1736 = vpack.c.b16 %v1272, %v1264
    %v1737 = vpack.c.b16 %v1273, %v1265
    %v1738 = vpack.c.b16 %v1274, %v1266
    %v1739 = vpack.c.b16 %v1283, %v1275
    %v1740 = vpack.c.b16 %v1284, %v1276
    %v1741 = vpack.c.b16 %v1285, %v1277
    %v1742 = vpack.c.b16 %v1286, %v1278
    %v1743 = vpack.c.b16 %v1287, %v1279
    %v1744 = vpack.c.b16 %v1288, %v1280
    %v1745 = vpack.c.b16 %v1289, %v1281
    %v1746 = vpack.c.b16 %v1290, %v1282
    %v1747 = vpack.c.b16 %v1299, %v1291
    %v1748 = vpack.c.b16 %v1300, %v1292
    %v1749 = vpack.c.b16 %v1301, %v1293
    %v1750 = vpack.c.b16 %v1302, %v1294
    %v1751 = vpack.c.b16 %v1303, %v1295
    %v1752 = vpack.c.b16 %v1304, %v1296
    %v1753 = vpack.c.b16 %v1305, %v1297
    %v1754 = vpack.c.b16 %v1306, %v1298
    %v1755 = vpack.c.b16 %v1315, %v1307
    %v1756 = vpack.c.b16 %v1316, %v1308
    %v1757 = vpack.c.b16 %v1317, %v1309
    %v1758 = vpack.c.b16 %v1318, %v1310
    %v1759 = vpack.c.b16 %v1319, %v1311
    %v1760 = vpack.c.b16 %v1320, %v1312
    %v1761 = vpack.c.b16 %v1321, %v1313
    %v1762 = vpack.c.b16 %v1322, %v1314
    %v1763 = vpack.c.b16 %v1331, %v1323
    %v1764 = vpack.c.b16 %v1332, %v1324
    %v1765 = vpack.c.b16 %v1333, %v1325
    %v1766 = vpack.c.b16 %v1334, %v1326
    %v1767 = vpack.c.b16 %v1335, %v1327
    %v1768 = vpack.c.b16 %v1336, %v1328
    %v1769 = vpack.c.b16 %v1337, %v1329
    %v1770 = vpack.c.b16 %v1338, %v1330
    %v1771 = vpack.c.b16 %v1347, %v1339
    %v1772 = vpack.c.b16 %v1348, %v1340
    %v1773 = vpack.c.b16 %v1349, %v1341
    %v1774 = vpack.c.b16 %v1350, %v1342
    %v1775 = vpack.c.b16 %v1351, %v1343
    %v1776 = vpack.c.b16 %v1352, %v1344
    %v1777 = vpack.c.b16 %v1353, %v1345
    %v1778 = vpack.c.b16 %v1354, %v1346
    %v1779 = vpack.c.b16 %v1363, %v1355
    %v1780 = vpack.c.b16 %v1364, %v1356
    %v1781 = vpack.c.b16 %v1365, %v1357
    %v1782 = vpack.c.b16 %v1366, %v1358
    %v1783 = vpack.c.b16 %v1367, %v1359
    %v1784 = vpack.c.b16 %v1368, %v1360
    %v1785 = vpack.c.b16 %v1369, %v1361
    %v1786 = vpack.c.b16 %v1370, %v1362
    %v1787 = vpack.c.b16 %v1379, %v1371
    %v1788 = vpack.c.b16 %v1380, %v1372
    %v1789 = vpack.c.b16 %v1381, %v1373
    %v1790 = vpack.c.b16 %v1382, %v1374
    %v1791 = vpack.c.b16 %v1383, %v1375
    %v1792 = vpack.c.b16 %v1384, %v1376
    %v1793 = vpack.c.b16 %v1385, %v1377
    %v1794 = vpack.c.b16 %v1386, %v1378
    %v1795 = vpack.c.b16 %v1395, %v1387
    %v1796 = vpack.c.b16 %v1396, %v1388
    %v1797 = vpack.c.b16 %v1397, %v1389
    %v1798 = vpack.c.b16 %v1398, %v1390
    %v1799 = vpack.c.b16 %v1399, %v1391
    %v1800 = vpack.c.b16 %v1400, %v1392
    %v1801 = vpack.c.b16 %v1401, %v1393
    %v1802 = vpack.c.b16 %v1402, %v1394
    %v1803 = vpack.c.b16 %v1411, %v1403
    %v1804 = vpack.c.b16 %v1412, %v1404
    %v1805 = vpack.c.b16 %v1413, %v1405
    %v1806 = vpack.c.b16 %v1414, %v1406
    %v1807 = vpack.c.b16 %v1415, %v1407
    %v1808 = vpack.c.b16 %v1416, %v1408
    %v1809 = vpack.c.b16 %v1417, %v1409
    %v1810 = vpack.c.b16 %v1418, %v1410
    %v1811 = vpack.c.b16 %v1427, %v1419
    %v1812 = vpack.c.b16 %v1428, %v1420
    %v1813 = vpack.c.b16 %v1429, %v1421
    %v1814 = vpack.c.b16 %v1430, %v1422
    %v1815 = vpack.c.b16 %v1431, %v1423
    %v1816 = vpack.c.b16 %v1432, %v1424
    %v1817 = vpack.c.b16 %v1433, %v1425
    %v1818 = vpack.c.b16 %v1434, %v1426
    %v1819 = vpack.c.b16 %v1443, %v1435
    %v1820 = vpack.c.b16 %v1444, %v1436
    %v1821 = vpack.c.b16 %v1445, %v1437
    %v1822 = vpack.c.b16 %v1446, %v1438
    %v1823 = vpack.c.b16 %v1447, %v1439
    %v1824 = vpack.c.b16 %v1448, %v1440
    %v1825 = vpack.c.b16 %v1449, %v1441
    %v1826 = vpack.c.b16 %v1450, %v1442
    %v1827 = vpack.c.b16 %v1459, %v1451
    %v1828 = vpack.c.b16 %v1460, %v1452
    %v1829 = vpack.c.b16 %v1461, %v1453
    %v1830 = vpack.c.b16 %v1462, %v1454
    %v1831 = vpack.c.b16 %v1463, %v1455
    %v1832 = vpack.c.b16 %v1464, %v1456
    %v1833 = vpack.c.b16 %v1465, %v1457
    %v1834 = vpack.c.b16 %v1466, %v1458
    %v1835 = vpack.c.b16 %v1475, %v1467
    %v1836 = vpack.c.b16 %v1476, %v1468
    %v1837 = vpack.c.b16 %v1477, %v1469
    %v1838 = vpack.c.b16 %v1478, %v1470
    %v1839 = vpack.c.b16 %v1479, %v1471
    %v1840 = vpack.c.b16 %v1480, %v1472
    %v1841 = vpack.c.b16 %v1481, %v1473
    %v1842 = vpack.c.b16 %v1482, %v1474
    %v1843 = vpack.c.b16 %v1491, %v1483
    %v1844 = vpack.c.b16 %v1492, %v1484
    %v1845 = vpack.c.b16 %v1493, %v1485
    %v1846 = vpack.c.b16 %v1494, %v1486
    %v1847 = vpack.c.b16 %v1495, %v1487
    %v1848 = vpack.c.b16 %v1496, %v1488
    %v1849 = vpack.c.b16 %v1497, %v1489
    %v1850 = vpack.c.b16 %v1498, %v1490
    %v1851 = vpack.c.b16 %v1507, %v1499
    %v1852 = vpack.c.b16 %v1508, %v1500
    %v1853 = vpack.c.b16 %v1509, %v1501
    %v1854 = vpack.c.b16 %v1510, %v1502
    %v1855 = vpack.c.b16 %v1511, %v1503
    %v1856 = vpack.c.b16 %v1512, %v1504
    %v1857 = vpack.c.b16 %v1513, %v1505
    %v1858 = vpack.c.b16 %v1514, %v1506
    %v1859 = vpack.c.b16 %v1523, %v1515
    %v1860 = vpack.c.b16 %v1524, %v1516
    %v1861 = vpack.c.b16 %v1525, %v1517
    %v1862 = vpack.c.b16 %v1526, %v1518
    %v1863 = vpack.c.b16 %v1527, %v1519
    %v1864 = vpack.c.b16 %v1528, %v1520
    %v1865 = vpack.c.b16 %v1529, %v1521
    %v1866 = vpack.c.b16 %v1530, %v1522
    %v1867 = vpack.c.b16 %v1539, %v1531
    %v1868 = vpack.c.b16 %v1540, %v1532
    %v1869 = vpack.c.b16 %v1541, %v1533
    %v1870 = vpack.c.b16 %v1542, %v1534
    %v1871 = vpack.c.b16 %v1543, %v1535
    %v1872 = vpack.c.b16 %v1544, %v1536
    %v1873 = vpack.c.b16 %v1545, %v1537
    %v1874 = vpack.c.b16 %v1546, %v1538
    %v1875 = vpack.c.b16 %v1555, %v1547
    %v1876 = vpack.c.b16 %v1556, %v1548
    %v1877 = vpack.c.b16 %v1557, %v1549
    %v1878 = vpack.c.b16 %v1558, %v1550
    %v1879 = vpack.c.b16 %v1559, %v1551
    %v1880 = vpack.c.b16 %v1560, %v1552
    %v1881 = vpack.c.b16 %v1561, %v1553
    %v1882 = vpack.c.b16 %v1562, %v1554
    %v1883 = vpack.c.b16 %v1571, %v1563
    %v1884 = vpack.c.b16 %v1572, %v1564
    %v1885 = vpack.c.b16 %v1573, %v1565
    %v1886 = vpack.c.b16 %v1574, %v1566
    %v1887 = vpack.c.b16 %v1575, %v1567
    %v1888 = vpack.c.b16 %v1576, %v1568
    %v1889 = vpack.c.b16 %v1577, %v1569
    %v1890 = vpack.c.b16 %v1578, %v1570
    %v1891 = vpack.c.b16 %v1587, %v1579
    %v1892 = vpack.c.b16 %v1588, %v1580
    %v1893 = vpack.c.b16 %v1589, %v1581
    %v1894 = vpack.c.b16 %v1590, %v1582
    %v1895 = vpack.c.b16 %v1591, %v1583
    %v1896 = vpack.c.b16 %v1592, %v1584
    %v1897 = vpack.c.b16 %v1593, %v1585
    %v1898 = vpack.c.b16 %v1594, %v1586
    %v1899 = vpack.c.b16 %v1603, %v1595
    %v1900 = vpack.c.b16 %v1604, %v1596
    %v1901 = vpack.c.b16 %v1605, %v1597
    %v1902 = vpack.c.b16 %v1606, %v1598
    %v1903 = vpack.c.b16 %v1607, %v1599
    %v1904 = vpack.c.b16 %v1608, %v1600
    %v1905 = vpack.c.b16 %v1609, %v1601
    %v1906 = vpack.c.b16 %v1610, %v1602
    %v1907 = vpack.c.b16 %v1619, %v1611
    %v1908 = vpack.c.b16 %v1620, %v1612
    %v1909 = vpack.c.b16 %v1621, %v1613
    %v1910 = vpack.c.b16 %v1622, %v1614
    %v1911 = vpack.c.b16 %v1623, %v1615
    %v1912 = vpack.c.b16 %v1624, %v1616
    %v1913 = vpack.c.b16 %v1625, %v1617
    %v1914 = vpack.c.b16 %v1626, %v1618
    %v1915 = vpack.c.b16 %v1635, %v1627
    %v1916 = vpack.c.b16 %v1636, %v1628
    %v1917 = vpack.c.b16 %v1637, %v1629
    %v1918 = vpack.c.b16 %v1638, %v1630
    %v1919 = vpack.c.b16 %v1639, %v1631
    %v1920 = vpack.c.b16 %v1640, %v1632
    %v1921 = vpack.c.b16 %v1641, %v1633
    %v1922 = vpack.c.b16 %v1642, %v1634
    %v1923 = vpack.c.b16 %v1651, %v1643
    %v1924 = vpack.c.b16 %v1652, %v1644
    %v1925 = vpack.c.b16 %v1653, %v1645
    %v1926 = vpack.c.b16 %v1654, %v1646
    %v1927 = vpack.c.b16 %v1655, %v1647
    %v1928 = vpack.c.b16 %v1656, %v1648
    %v1929 = vpack.c.b16 %v1657, %v1649
    %v1930 = vpack.c.b16 %v1658, %v1650
    %v1931 = vpack.c.b16 %v1667, %v1659
    %v1932 = vpack.c.b16 %v1668, %v1660
    %v1933 = vpack.c.b16 %v1669, %v1661
    %v1934 = vpack.c.b16 %v1670, %v1662
    %v1935 = vpack.c.b16 %v1671, %v1663
    %v1936 = vpack.c.b16 %v1672, %v1664
    %v1937 = vpack.c.b16 %v1673, %v1665
    %v1938 = vpack.c.b16 %v1674, %v1666
    %v1939 = vpack.c.b16 %v1683, %v1675
    %v1940 = vpack.c.b16 %v1684, %v1676
    %v1941 = vpack.c.b16 %v1685, %v1677
    %v1942 = vpack.c.b16 %v1686, %v1678
    %v1943 = vpack.c.b16 %v1687, %v1679
    %v1944 = vpack.c.b16 %v1688, %v1680
    %v1945 = vpack.c.b16 %v1689, %v1681
    %v1946 = vpack.c.b16 %v1690, %v1682
    %2203 = vmatprep.subr.bf16.mxu0 %v1748
    %2204 = vmatpush1.bf16.msra.mxu0 %v1747
    %2205 = vmatprep.subr.bf16.mxu0 %v1740
    %2206 = vmatpush1.bf16.msra.mxu0 %v1739
    %2207 = vmatprep.subr.bf16.mxu0 %v1732
    %2208 = vmatpush1.bf16.msra.mxu0 %v1731
    %2209 = vmatprep.subr.bf16.mxu0 %v1724
    %2210 = vmatpush1.bf16.msra.mxu0 %v1723
    %2211 = vmatprep.subr.bf16.mxu0 %v1716
    %2212 = vmatpush1.bf16.msra.mxu0 %v1715
    %2213 = vmatprep.subr.bf16.mxu0 %v1708
    %2214 = vmatpush1.bf16.msra.mxu0 %v1707
    %2215 = vmatprep.subr.bf16.mxu0 %v1700
    %2216 = vmatpush1.bf16.msra.mxu0 %v1699
    %2217 = vmatprep.subr.bf16.mxu0 %v1692
    %2218 = vmatpush1.bf16.msra.mxu0 %v1691
    %2219 = vmatprep.subr.bf16.mxu0 %v1812
    %2220 = vmatpush2.bf16.msra.mxu0 %v1811
    %2221 = vmatprep.subr.bf16.mxu0 %v1804
    %2222 = vmatpush2.bf16.msra.mxu0 %v1803
    %2223 = vmatprep.subr.bf16.mxu0 %v1796
    %2224 = vmatpush2.bf16.msra.mxu0 %v1795
    %2225 = vmatprep.subr.bf16.mxu0 %v1788
    %2226 = vmatpush2.bf16.msra.mxu0 %v1787
    %2227 = vmatprep.subr.bf16.mxu0 %v1780
    %2228 = vmatpush2.bf16.msra.mxu0 %v1779
    %2229 = vmatprep.subr.bf16.mxu0 %v1772
    %2230 = vmatpush2.bf16.msra.mxu0 %v1771
    %2231 = vmatprep.subr.bf16.mxu0 %v1764
    %2232 = vmatpush2.bf16.msra.mxu0 %v1763
    %2233 = vmatprep.subr.bf16.mxu0 %v1756
    %2234 = vmatpush2.bf16.msra.mxu0 %v1755
    %2235 = vmatprep.mubr.bf16.mxu0 %v622
    %2236 = vmatmul.mubr.bf16.gmra.mxu0 %v621
    %v2237 = vpop.f32.mrf.mxu0
    %v2238 = vadd.f32 %v886, %v2237
    %v2239 = vpop.f32.mrf.mxu0
    %v2240 = vadd.f32 %v890, %v2239
    %v2241 = vpop.f32.mrf.mxu0
    %v2242 = vpop.f32.mrf.mxu0
    %2243 = vdwg.mxu0
    %2244 = vmatprep.subr.bf16.mxu0 %v1876
    %2245 = vmatpush1.bf16.msra.mxu0 %v1875
    %2246 = vmatprep.subr.bf16.mxu0 %v1868
    %2247 = vmatpush1.bf16.msra.mxu0 %v1867
    %2248 = vmatprep.subr.bf16.mxu0 %v1860
    %2249 = vmatpush1.bf16.msra.mxu0 %v1859
    %2250 = vmatprep.subr.bf16.mxu0 %v1852
    %2251 = vmatpush1.bf16.msra.mxu0 %v1851
    %2252 = vmatprep.subr.bf16.mxu0 %v1844
    %2253 = vmatpush1.bf16.msra.mxu0 %v1843
    %2254 = vmatprep.subr.bf16.mxu0 %v1836
    %2255 = vmatpush1.bf16.msra.mxu0 %v1835
    %2256 = vmatprep.subr.bf16.mxu0 %v1828
    %2257 = vmatpush1.bf16.msra.mxu0 %v1827
    %2258 = vmatprep.subr.bf16.mxu0 %v1820
    %2259 = vmatpush1.bf16.msra.mxu0 %v1819
    %2260 = vmatprep.subr.bf16.mxu0 %v1940
    %2261 = vmatpush2.bf16.msra.mxu0 %v1939
    %2262 = vmatprep.subr.bf16.mxu0 %v1932
    %2263 = vmatpush2.bf16.msra.mxu0 %v1931
    %2264 = vmatprep.subr.bf16.mxu0 %v1924
    %2265 = vmatpush2.bf16.msra.mxu0 %v1923
    %2266 = vmatprep.subr.bf16.mxu0 %v1916
    %2267 = vmatpush2.bf16.msra.mxu0 %v1915
    %2268 = vmatprep.subr.bf16.mxu0 %v1908
    %2269 = vmatpush2.bf16.msra.mxu0 %v1907
    %2270 = vmatprep.subr.bf16.mxu0 %v1900
    %2271 = vmatpush2.bf16.msra.mxu0 %v1899
    %2272 = vmatprep.subr.bf16.mxu0 %v1892
    %2273 = vmatpush2.bf16.msra.mxu0 %v1891
    %2274 = vmatprep.subr.bf16.mxu0 %v1884
    %2275 = vmatpush2.bf16.msra.mxu0 %v1883
    %2276 = vmatprep.mubr.bf16.mxu0 %v624
    %2277 = vmatmul.mubr.bf16.gmra.mxu0 %v623
    %v2278 = vpop.f32.mrf.mxu0
    %v2279 = vadd.f32 %v2238, %v2278
    %v2280 = vpop.f32.mrf.mxu0
    %v2281 = vadd.f32 %v2240, %v2280
    %v2282 = vpop.f32.mrf.mxu0
    %v2283 = vpop.f32.mrf.mxu0
    %2284 = vdwg.mxu0
    %2285 = vmatprep.subr.bf16.mxu0 %v1750
    %2286 = vmatpush1.bf16.msra.mxu0 %v1749
    %2287 = vmatprep.subr.bf16.mxu0 %v1742
    %2288 = vmatpush1.bf16.msra.mxu0 %v1741
    %2289 = vmatprep.subr.bf16.mxu0 %v1734
    %2290 = vmatpush1.bf16.msra.mxu0 %v1733
    %2291 = vmatprep.subr.bf16.mxu0 %v1726
    %2292 = vmatpush1.bf16.msra.mxu0 %v1725
    %2293 = vmatprep.subr.bf16.mxu0 %v1718
    %2294 = vmatpush1.bf16.msra.mxu0 %v1717
    %2295 = vmatprep.subr.bf16.mxu0 %v1710
    %2296 = vmatpush1.bf16.msra.mxu0 %v1709
    %2297 = vmatprep.subr.bf16.mxu0 %v1702
    %2298 = vmatpush1.bf16.msra.mxu0 %v1701
    %2299 = vmatprep.subr.bf16.mxu0 %v1694
    %2300 = vmatpush1.bf16.msra.mxu0 %v1693
    %2301 = vmatprep.subr.bf16.mxu0 %v1814
    %2302 = vmatpush2.bf16.msra.mxu0 %v1813
    %2303 = vmatprep.subr.bf16.mxu0 %v1806
    %2304 = vmatpush2.bf16.msra.mxu0 %v1805
    %2305 = vmatprep.subr.bf16.mxu0 %v1798
    %2306 = vmatpush2.bf16.msra.mxu0 %v1797
    %2307 = vmatprep.subr.bf16.mxu0 %v1790
    %2308 = vmatpush2.bf16.msra.mxu0 %v1789
    %2309 = vmatprep.subr.bf16.mxu0 %v1782
    %2310 = vmatpush2.bf16.msra.mxu0 %v1781
    %2311 = vmatprep.subr.bf16.mxu0 %v1774
    %2312 = vmatpush2.bf16.msra.mxu0 %v1773
    %2313 = vmatprep.subr.bf16.mxu0 %v1766
    %2314 = vmatpush2.bf16.msra.mxu0 %v1765
    %2315 = vmatprep.subr.bf16.mxu0 %v1758
    %2316 = vmatpush2.bf16.msra.mxu0 %v1757
    %2317 = vmatprep.mubr.bf16.mxu0 %v622
    %2318 = vmatmul.mubr.bf16.gmra.mxu0 %v621
    %v2319 = vpop.f32.mrf.mxu0
    %v2320 = vadd.f32 %v894, %v2319
    %v2321 = vpop.f32.mrf.mxu0
    %v2322 = vadd.f32 %v898, %v2321
    %v2323 = vpop.f32.mrf.mxu0
    %v2324 = vpop.f32.mrf.mxu0
    %2325 = vdwg.mxu0
    %2326 = vmatprep.subr.bf16.mxu0 %v1878
    %2327 = vmatpush1.bf16.msra.mxu0 %v1877
    %2328 = vmatprep.subr.bf16.mxu0 %v1870
    %2329 = vmatpush1.bf16.msra.mxu0 %v1869
    %2330 = vmatprep.subr.bf16.mxu0 %v1862
    %2331 = vmatpush1.bf16.msra.mxu0 %v1861
    %2332 = vmatprep.subr.bf16.mxu0 %v1854
    %2333 = vmatpush1.bf16.msra.mxu0 %v1853
    %2334 = vmatprep.subr.bf16.mxu0 %v1846
    %2335 = vmatpush1.bf16.msra.mxu0 %v1845
    %2336 = vmatprep.subr.bf16.mxu0 %v1838
    %2337 = vmatpush1.bf16.msra.mxu0 %v1837
    %2338 = vmatprep.subr.bf16.mxu0 %v1830
    %2339 = vmatpush1.bf16.msra.mxu0 %v1829
    %2340 = vmatprep.subr.bf16.mxu0 %v1822
    %2341 = vmatpush1.bf16.msra.mxu0 %v1821
    %2342 = vmatprep.subr.bf16.mxu0 %v1942
    %2343 = vmatpush2.bf16.msra.mxu0 %v1941
    %2344 = vmatprep.subr.bf16.mxu0 %v1934
    %2345 = vmatpush2.bf16.msra.mxu0 %v1933
    %2346 = vmatprep.subr.bf16.mxu0 %v1926
    %2347 = vmatpush2.bf16.msra.mxu0 %v1925
    %2348 = vmatprep.subr.bf16.mxu0 %v1918
    %2349 = vmatpush2.bf16.msra.mxu0 %v1917
    %2350 = vmatprep.subr.bf16.mxu0 %v1910
    %2351 = vmatpush2.bf16.msra.mxu0 %v1909
    %2352 = vmatprep.subr.bf16.mxu0 %v1902
    %2353 = vmatpush2.bf16.msra.mxu0 %v1901
    %2354 = vmatprep.subr.bf16.mxu0 %v1894
    %2355 = vmatpush2.bf16.msra.mxu0 %v1893
    %2356 = vmatprep.subr.bf16.mxu0 %v1886
    %2357 = vmatpush2.bf16.msra.mxu0 %v1885
    %2358 = vmatprep.mubr.bf16.mxu0 %v624
    %2359 = vmatmul.mubr.bf16.gmra.mxu0 %v623
    %v2360 = vpop.f32.mrf.mxu0
    %v2361 = vadd.f32 %v2320, %v2360
    %v2362 = vpop.f32.mrf.mxu0
    %v2363 = vadd.f32 %v2322, %v2362
    %v2364 = vpop.f32.mrf.mxu0
    %v2365 = vpop.f32.mrf.mxu0
    %2366 = vdwg.mxu0
    %2367 = vmatprep.subr.bf16.mxu0 %v1752
    %2368 = vmatpush1.bf16.msra.mxu0 %v1751
    %2369 = vmatprep.subr.bf16.mxu0 %v1744
    %2370 = vmatpush1.bf16.msra.mxu0 %v1743
    %2371 = vmatprep.subr.bf16.mxu0 %v1736
    %2372 = vmatpush1.bf16.msra.mxu0 %v1735
    %2373 = vmatprep.subr.bf16.mxu0 %v1728
    %2374 = vmatpush1.bf16.msra.mxu0 %v1727
    %2375 = vmatprep.subr.bf16.mxu0 %v1720
    %2376 = vmatpush1.bf16.msra.mxu0 %v1719
    %2377 = vmatprep.subr.bf16.mxu0 %v1712
    %2378 = vmatpush1.bf16.msra.mxu0 %v1711
    %2379 = vmatprep.subr.bf16.mxu0 %v1704
    %2380 = vmatpush1.bf16.msra.mxu0 %v1703
    %2381 = vmatprep.subr.bf16.mxu0 %v1696
    %2382 = vmatpush1.bf16.msra.mxu0 %v1695
    %2383 = vmatprep.subr.bf16.mxu0 %v1816
    %2384 = vmatpush2.bf16.msra.mxu0 %v1815
    %2385 = vmatprep.subr.bf16.mxu0 %v1808
    %2386 = vmatpush2.bf16.msra.mxu0 %v1807
    %2387 = vmatprep.subr.bf16.mxu0 %v1800
    %2388 = vmatpush2.bf16.msra.mxu0 %v1799
    %2389 = vmatprep.subr.bf16.mxu0 %v1792
    %2390 = vmatpush2.bf16.msra.mxu0 %v1791
    %2391 = vmatprep.subr.bf16.mxu0 %v1784
    %2392 = vmatpush2.bf16.msra.mxu0 %v1783
    %2393 = vmatprep.subr.bf16.mxu0 %v1776
    %2394 = vmatpush2.bf16.msra.mxu0 %v1775
    %2395 = vmatprep.subr.bf16.mxu0 %v1768
    %2396 = vmatpush2.bf16.msra.mxu0 %v1767
    %2397 = vmatprep.subr.bf16.mxu0 %v1760
    %2398 = vmatpush2.bf16.msra.mxu0 %v1759
    %2399 = vmatprep.mubr.bf16.mxu0 %v622
    %2400 = vmatmul.mubr.bf16.gmra.mxu0 %v621
    %v2401 = vpop.f32.mrf.mxu0
    %v2402 = vadd.f32 %v902, %v2401
    %v2403 = vpop.f32.mrf.mxu0
    %v2404 = vadd.f32 %v906, %v2403
    %v2405 = vpop.f32.mrf.mxu0
    %v2406 = vpop.f32.mrf.mxu0
    %2407 = vdwg.mxu0
    %2408 = vmatprep.subr.bf16.mxu0 %v1880
    %2409 = vmatpush1.bf16.msra.mxu0 %v1879
    %2410 = vmatprep.subr.bf16.mxu0 %v1872
    %2411 = vmatpush1.bf16.msra.mxu0 %v1871
    %2412 = vmatprep.subr.bf16.mxu0 %v1864
    %2413 = vmatpush1.bf16.msra.mxu0 %v1863
    %2414 = vmatprep.subr.bf16.mxu0 %v1856
    %2415 = vmatpush1.bf16.msra.mxu0 %v1855
    %2416 = vmatprep.subr.bf16.mxu0 %v1848
    %2417 = vmatpush1.bf16.msra.mxu0 %v1847
    %2418 = vmatprep.subr.bf16.mxu0 %v1840
    %2419 = vmatpush1.bf16.msra.mxu0 %v1839
    %2420 = vmatprep.subr.bf16.mxu0 %v1832
    %2421 = vmatpush1.bf16.msra.mxu0 %v1831
    %2422 = vmatprep.subr.bf16.mxu0 %v1824
    %2423 = vmatpush1.bf16.msra.mxu0 %v1823
    %2424 = vmatprep.subr.bf16.mxu0 %v1944
    %2425 = vmatpush2.bf16.msra.mxu0 %v1943
    %2426 = vmatprep.subr.bf16.mxu0 %v1936
    %2427 = vmatpush2.bf16.msra.mxu0 %v1935
    %2428 = vmatprep.subr.bf16.mxu0 %v1928
    %2429 = vmatpush2.bf16.msra.mxu0 %v1927
    %2430 = vmatprep.subr.bf16.mxu0 %v1920
    %2431 = vmatpush2.bf16.msra.mxu0 %v1919
    %2432 = vmatprep.subr.bf16.mxu0 %v1912
    %2433 = vmatpush2.bf16.msra.mxu0 %v1911
    %2434 = vmatprep.subr.bf16.mxu0 %v1904
    %2435 = vmatpush2.bf16.msra.mxu0 %v1903
    %2436 = vmatprep.subr.bf16.mxu0 %v1896
    %2437 = vmatpush2.bf16.msra.mxu0 %v1895
    %2438 = vmatprep.subr.bf16.mxu0 %v1888
    %2439 = vmatpush2.bf16.msra.mxu0 %v1887
    %2440 = vmatprep.mubr.bf16.mxu0 %v624
    %2441 = vmatmul.mubr.bf16.gmra.mxu0 %v623
    %v2442 = vpop.f32.mrf.mxu0
    %v2443 = vadd.f32 %v2402, %v2442
    %v2444 = vpop.f32.mrf.mxu0
    %v2445 = vadd.f32 %v2404, %v2444
    %v2446 = vpop.f32.mrf.mxu0
    %v2447 = vpop.f32.mrf.mxu0
    %2448 = vdwg.mxu0
    %2449 = vmatprep.subr.bf16.mxu0 %v1754
    %2450 = vmatpush1.bf16.msra.mxu0 %v1753
    %2451 = vmatprep.subr.bf16.mxu0 %v1746
    %2452 = vmatpush1.bf16.msra.mxu0 %v1745
    %2453 = vmatprep.subr.bf16.mxu0 %v1738
    %2454 = vmatpush1.bf16.msra.mxu0 %v1737
    %2455 = vmatprep.subr.bf16.mxu0 %v1730
    %2456 = vmatpush1.bf16.msra.mxu0 %v1729
    %2457 = vmatprep.subr.bf16.mxu0 %v1722
    %2458 = vmatpush1.bf16.msra.mxu0 %v1721
    %2459 = vmatprep.subr.bf16.mxu0 %v1714
    %2460 = vmatpush1.bf16.msra.mxu0 %v1713
    %2461 = vmatprep.subr.bf16.mxu0 %v1706
    %2462 = vmatpush1.bf16.msra.mxu0 %v1705
    %2463 = vmatprep.subr.bf16.mxu0 %v1698
    %2464 = vmatpush1.bf16.msra.mxu0 %v1697
    %2465 = vmatprep.subr.bf16.mxu0 %v1818
    %2466 = vmatpush2.bf16.msra.mxu0 %v1817
    %2467 = vmatprep.subr.bf16.mxu0 %v1810
    %2468 = vmatpush2.bf16.msra.mxu0 %v1809
    %2469 = vmatprep.subr.bf16.mxu0 %v1802
    %2470 = vmatpush2.bf16.msra.mxu0 %v1801
    %2471 = vmatprep.subr.bf16.mxu0 %v1794
    %2472 = vmatpush2.bf16.msra.mxu0 %v1793
    %2473 = vmatprep.subr.bf16.mxu0 %v1786
    %2474 = vmatpush2.bf16.msra.mxu0 %v1785
    %2475 = vmatprep.subr.bf16.mxu0 %v1778
    %2476 = vmatpush2.bf16.msra.mxu0 %v1777
    %2477 = vmatprep.subr.bf16.mxu0 %v1770
    %2478 = vmatpush2.bf16.msra.mxu0 %v1769
    %2479 = vmatprep.subr.bf16.mxu0 %v1762
    %2480 = vmatpush2.bf16.msra.mxu0 %v1761
    %2481 = vmatprep.mubr.bf16.mxu0 %v622
    %2482 = vmatmul.mubr.bf16.gmra.mxu0 %v621
    %v2483 = vpop.f32.mrf.mxu0
    %v2484 = vadd.f32 %v910, %v2483
    %v2485 = vpop.f32.mrf.mxu0
    %v2486 = vadd.f32 %v914, %v2485
    %v2487 = vpop.f32.mrf.mxu0
    %v2488 = vpop.f32.mrf.mxu0
    %2489 = vdwg.mxu0
    %2490 = vmatprep.subr.bf16.mxu0 %v1882
    %2491 = vmatpush1.bf16.msra.mxu0 %v1881
    %2492 = vmatprep.subr.bf16.mxu0 %v1874
    %2493 = vmatpush1.bf16.msra.mxu0 %v1873
    %2494 = vmatprep.subr.bf16.mxu0 %v1866
    %2495 = vmatpush1.bf16.msra.mxu0 %v1865
    %2496 = vmatprep.subr.bf16.mxu0 %v1858
    %2497 = vmatpush1.bf16.msra.mxu0 %v1857
    %2498 = vmatprep.subr.bf16.mxu0 %v1850
    %2499 = vmatpush1.bf16.msra.mxu0 %v1849
    %2500 = vmatprep.subr.bf16.mxu0 %v1842
    %2501 = vmatpush1.bf16.msra.mxu0 %v1841
    %2502 = vmatprep.subr.bf16.mxu0 %v1834
    %2503 = vmatpush1.bf16.msra.mxu0 %v1833
    %2504 = vmatprep.subr.bf16.mxu0 %v1826
    %2505 = vmatpush1.bf16.msra.mxu0 %v1825
    %2506 = vmatprep.subr.bf16.mxu0 %v1946
    %2507 = vmatpush2.bf16.msra.mxu0 %v1945
    %2508 = vmatprep.subr.bf16.mxu0 %v1938
    %2509 = vmatpush2.bf16.msra.mxu0 %v1937
    %2510 = vmatprep.subr.bf16.mxu0 %v1930
    %2511 = vmatpush2.bf16.msra.mxu0 %v1929
    %2512 = vmatprep.subr.bf16.mxu0 %v1922
    %2513 = vmatpush2.bf16.msra.mxu0 %v1921
    %2514 = vmatprep.subr.bf16.mxu0 %v1914
    %2515 = vmatpush2.bf16.msra.mxu0 %v1913
    %2516 = vmatprep.subr.bf16.mxu0 %v1906
    %2517 = vmatpush2.bf16.msra.mxu0 %v1905
    %2518 = vmatprep.subr.bf16.mxu0 %v1898
    %2519 = vmatpush2.bf16.msra.mxu0 %v1897
    %2520 = vmatprep.subr.bf16.mxu0 %v1890
    %2521 = vmatpush2.bf16.msra.mxu0 %v1889
    %2522 = vmatprep.mubr.bf16.mxu0 %v624
    %2523 = vmatmul.mubr.bf16.gmra.mxu0 %v623
    %v2524 = vpop.f32.mrf.mxu0
    %v2525 = vadd.f32 %v2484, %v2524
    %v2526 = vpop.f32.mrf.mxu0
    %v2527 = vadd.f32 %v2486, %v2526
    %v2528 = vpop.f32.mrf.mxu0
    %v2529 = vpop.f32.mrf.mxu0
    %2530 = vdwg.mxu0
    %v2531 = vmax.f32 %v2279, 0.0
    %v2532 = vmax.f32 %v2281, 0.0
    %v2533 = vmax.f32 %v2361, 0.0
    %v2534 = vmax.f32 %v2363, 0.0
    %v2535 = vmax.f32 %v2443, 0.0
    %v2536 = vmax.f32 %v2445, 0.0
    %v2537 = vmax.f32 %v2525, 0.0
    %v2538 = vmax.f32 %v2527, 0.0
    %v2539 = vpack.c.bf16 %v2531, %v2531
    %v2540 = vpack.c.bf16 %v2532, %v2532
    %v2541 = vpack.c.bf16 %v2533, %v2533
    %v2542 = vpack.c.bf16 %v2534, %v2534
    %v2543 = vpack.c.bf16 %v2535, %v2535
    %v2544 = vpack.c.bf16 %v2536, %v2536
    %v2545 = vpack.c.bf16 %v2537, %v2537
    %v2546 = vpack.c.bf16 %v2538, %v2538
    %v2547 = vld [vmem:[#allocation15] sm:$0xff]
    %v2548 = vld [vmem:[#allocation15 + $0x8] sm:$0xff]
    %v2549 = vld [vmem:[#allocation15 + $0x10] sm:$0xff]
    %v2550 = vld [vmem:[#allocation15 + $0x18] sm:$0xff]
    %v2551 = vld [vmem:[#allocation15 + $0x20] sm:$0xff]
    %v2552 = vld [vmem:[#allocation15 + $0x28] sm:$0xff]
    %v2553 = vld [vmem:[#allocation15 + $0x30] sm:$0xff]
    %v2554 = vld [vmem:[#allocation15 + $0x38] sm:$0xff]
    %v2555 = vld [vmem:[#allocation15 + $0x40] sm:$0xff]
    %v2556 = vld [vmem:[#allocation15 + $0x48] sm:$0xff]
    %v2557 = vld [vmem:[#allocation15 + $0x50] sm:$0xff]
    %v2558 = vld [vmem:[#allocation15 + $0x58] sm:$0xff]
    %v2559 = vld [vmem:[#allocation15 + $0x60] sm:$0xff]
    %v2560 = vld [vmem:[#allocation15 + $0x68] sm:$0xff]
    %v2561 = vld [vmem:[#allocation15 + $0x70] sm:$0xff]
    %v2562 = vld [vmem:[#allocation15 + $0x78] sm:$0xff]
    %v2563 = vld [vmem:[#allocation15 + $0x80] sm:$0xff]
    %v2564 = vld [vmem:[#allocation15 + $0x88] sm:$0xff]
    %v2565 = vld [vmem:[#allocation15 + $0x90] sm:$0xff]
    %v2566 = vld [vmem:[#allocation15 + $0x98] sm:$0xff]
    %v2567 = vld [vmem:[#allocation15 + $0xa0] sm:$0xff]
    %v2568 = vld [vmem:[#allocation15 + $0xa8] sm:$0xff]
    %v2569 = vld [vmem:[#allocation15 + $0xb0] sm:$0xff]
    %v2570 = vld [vmem:[#allocation15 + $0xb8] sm:$0xff]
    %v2571 = vld [vmem:[#allocation15 + $0xc0] sm:$0xff]
    %v2572 = vld [vmem:[#allocation15 + $0xc8] sm:$0xff]
    %v2573 = vld [vmem:[#allocation15 + $0xd0] sm:$0xff]
    %v2574 = vld [vmem:[#allocation15 + $0xd8] sm:$0xff]
    %v2575 = vld [vmem:[#allocation15 + $0xe0] sm:$0xff]
    %v2576 = vld [vmem:[#allocation15 + $0xe8] sm:$0xff]
    %v2577 = vld [vmem:[#allocation15 + $0xf0] sm:$0xff]
    %v2578 = vld [vmem:[#allocation15 + $0xf8] sm:$0xff]
    %v2579 = vld [vmem:[#allocation15 + $0x100] sm:$0xff]
    %v2580 = vld [vmem:[#allocation15 + $0x108] sm:$0xff]
    %v2581 = vld [vmem:[#allocation15 + $0x110] sm:$0xff]
    %v2582 = vld [vmem:[#allocation15 + $0x118] sm:$0xff]
    %v2583 = vld [vmem:[#allocation15 + $0x120] sm:$0xff]
    %v2584 = vld [vmem:[#allocation15 + $0x128] sm:$0xff]
    %v2585 = vld [vmem:[#allocation15 + $0x130] sm:$0xff]
    %v2586 = vld [vmem:[#allocation15 + $0x138] sm:$0xff]
    %v2587 = vld [vmem:[#allocation15 + $0x140] sm:$0xff]
    %v2588 = vld [vmem:[#allocation15 + $0x148] sm:$0xff]
    %v2589 = vld [vmem:[#allocation15 + $0x150] sm:$0xff]
    %v2590 = vld [vmem:[#allocation15 + $0x158] sm:$0xff]
    %v2591 = vld [vmem:[#allocation15 + $0x160] sm:$0xff]
    %v2592 = vld [vmem:[#allocation15 + $0x168] sm:$0xff]
    %v2593 = vld [vmem:[#allocation15 + $0x170] sm:$0xff]
    %v2594 = vld [vmem:[#allocation15 + $0x178] sm:$0xff]
    %v2595 = vld [vmem:[#allocation15 + $0x180] sm:$0xff]
    %v2596 = vld [vmem:[#allocation15 + $0x188] sm:$0xff]
    %v2597 = vld [vmem:[#allocation15 + $0x190] sm:$0xff]
    %v2598 = vld [vmem:[#allocation15 + $0x198] sm:$0xff]
    %v2599 = vld [vmem:[#allocation15 + $0x1a0] sm:$0xff]
    %v2600 = vld [vmem:[#allocation15 + $0x1a8] sm:$0xff]
    %v2601 = vld [vmem:[#allocation15 + $0x1b0] sm:$0xff]
    %v2602 = vld [vmem:[#allocation15 + $0x1b8] sm:$0xff]
    %v2603 = vld [vmem:[#allocation15 + $0x1c0] sm:$0xff]
    %v2604 = vld [vmem:[#allocation15 + $0x1c8] sm:$0xff]
    %v2605 = vld [vmem:[#allocation15 + $0x1d0] sm:$0xff]
    %v2606 = vld [vmem:[#allocation15 + $0x1d8] sm:$0xff]
    %v2607 = vld [vmem:[#allocation15 + $0x1e0] sm:$0xff]
    %v2608 = vld [vmem:[#allocation15 + $0x1e8] sm:$0xff]
    %v2609 = vld [vmem:[#allocation15 + $0x1f0] sm:$0xff]
    %v2610 = vld [vmem:[#allocation15 + $0x1f8] sm:$0xff]
    %v2611 = vld [vmem:[#allocation15 + $0x200] sm:$0xff]
    %v2612 = vld [vmem:[#allocation15 + $0x208] sm:$0xff]
    %v2613 = vld [vmem:[#allocation15 + $0x210] sm:$0xff]
    %v2614 = vld [vmem:[#allocation15 + $0x218] sm:$0xff]
    %v2615 = vld [vmem:[#allocation15 + $0x220] sm:$0xff]
    %v2616 = vld [vmem:[#allocation15 + $0x228] sm:$0xff]
    %v2617 = vld [vmem:[#allocation15 + $0x230] sm:$0xff]
    %v2618 = vld [vmem:[#allocation15 + $0x238] sm:$0xff]
    %v2619 = vld [vmem:[#allocation15 + $0x240] sm:$0xff]
    %v2620 = vld [vmem:[#allocation15 + $0x248] sm:$0xff]
    %v2621 = vld [vmem:[#allocation15 + $0x250] sm:$0xff]
    %v2622 = vld [vmem:[#allocation15 + $0x258] sm:$0xff]
    %v2623 = vld [vmem:[#allocation15 + $0x260] sm:$0xff]
    %v2624 = vld [vmem:[#allocation15 + $0x268] sm:$0xff]
    %v2625 = vld [vmem:[#allocation15 + $0x270] sm:$0xff]
    %v2626 = vld [vmem:[#allocation15 + $0x278] sm:$0xff]
    %v2627 = vld [vmem:[#allocation15 + $0x280] sm:$0xff]
    %v2628 = vld [vmem:[#allocation15 + $0x288] sm:$0xff]
    %v2629 = vld [vmem:[#allocation15 + $0x290] sm:$0xff]
    %v2630 = vld [vmem:[#allocation15 + $0x298] sm:$0xff]
    %v2631 = vld [vmem:[#allocation15 + $0x2a0] sm:$0xff]
    %v2632 = vld [vmem:[#allocation15 + $0x2a8] sm:$0xff]
    %v2633 = vld [vmem:[#allocation15 + $0x2b0] sm:$0xff]
    %v2634 = vld [vmem:[#allocation15 + $0x2b8] sm:$0xff]
    %v2635 = vld [vmem:[#allocation15 + $0x2c0] sm:$0xff]
    %v2636 = vld [vmem:[#allocation15 + $0x2c8] sm:$0xff]
    %v2637 = vld [vmem:[#allocation15 + $0x2d0] sm:$0xff]
    %v2638 = vld [vmem:[#allocation15 + $0x2d8] sm:$0xff]
    %v2639 = vld [vmem:[#allocation15 + $0x2e0] sm:$0xff]
    %v2640 = vld [vmem:[#allocation15 + $0x2e8] sm:$0xff]
    %v2641 = vld [vmem:[#allocation15 + $0x2f0] sm:$0xff]
    %v2642 = vld [vmem:[#allocation15 + $0x2f8] sm:$0xff]
    %v2643 = vld [vmem:[#allocation15 + $0x300] sm:$0xff]
    %v2644 = vld [vmem:[#allocation15 + $0x308] sm:$0xff]
    %v2645 = vld [vmem:[#allocation15 + $0x310] sm:$0xff]
    %v2646 = vld [vmem:[#allocation15 + $0x318] sm:$0xff]
    %v2647 = vld [vmem:[#allocation15 + $0x320] sm:$0xff]
    %v2648 = vld [vmem:[#allocation15 + $0x328] sm:$0xff]
    %v2649 = vld [vmem:[#allocation15 + $0x330] sm:$0xff]
    %v2650 = vld [vmem:[#allocation15 + $0x338] sm:$0xff]
    %v2651 = vld [vmem:[#allocation15 + $0x340] sm:$0xff]
    %v2652 = vld [vmem:[#allocation15 + $0x348] sm:$0xff]
    %v2653 = vld [vmem:[#allocation15 + $0x350] sm:$0xff]
    %v2654 = vld [vmem:[#allocation15 + $0x358] sm:$0xff]
    %v2655 = vld [vmem:[#allocation15 + $0x360] sm:$0xff]
    %v2656 = vld [vmem:[#allocation15 + $0x368] sm:$0xff]
    %v2657 = vld [vmem:[#allocation15 + $0x370] sm:$0xff]
    %v2658 = vld [vmem:[#allocation15 + $0x378] sm:$0xff]
    %v2659 = vld [vmem:[#allocation15 + $0x380] sm:$0xff]
    %v2660 = vld [vmem:[#allocation15 + $0x388] sm:$0xff]
    %v2661 = vld [vmem:[#allocation15 + $0x390] sm:$0xff]
    %v2662 = vld [vmem:[#allocation15 + $0x398] sm:$0xff]
    %v2663 = vld [vmem:[#allocation15 + $0x3a0] sm:$0xff]
    %v2664 = vld [vmem:[#allocation15 + $0x3a8] sm:$0xff]
    %v2665 = vld [vmem:[#allocation15 + $0x3b0] sm:$0xff]
    %v2666 = vld [vmem:[#allocation15 + $0x3b8] sm:$0xff]
    %v2667 = vld [vmem:[#allocation15 + $0x3c0] sm:$0xff]
    %v2668 = vld [vmem:[#allocation15 + $0x3c8] sm:$0xff]
    %v2669 = vld [vmem:[#allocation15 + $0x3d0] sm:$0xff]
    %v2670 = vld [vmem:[#allocation15 + $0x3d8] sm:$0xff]
    %v2671 = vld [vmem:[#allocation15 + $0x3e0] sm:$0xff]
    %v2672 = vld [vmem:[#allocation15 + $0x3e8] sm:$0xff]
    %v2673 = vld [vmem:[#allocation15 + $0x3f0] sm:$0xff]
    %v2674 = vld [vmem:[#allocation15 + $0x3f8] sm:$0xff]
    %v2675 = vld [vmem:[#allocation15 + $0x400] sm:$0xff]
    %v2676 = vld [vmem:[#allocation15 + $0x408] sm:$0xff]
    %v2677 = vld [vmem:[#allocation15 + $0x410] sm:$0xff]
    %v2678 = vld [vmem:[#allocation15 + $0x418] sm:$0xff]
    %v2679 = vld [vmem:[#allocation15 + $0x420] sm:$0xff]
    %v2680 = vld [vmem:[#allocation15 + $0x428] sm:$0xff]
    %v2681 = vld [vmem:[#allocation15 + $0x430] sm:$0xff]
    %v2682 = vld [vmem:[#allocation15 + $0x438] sm:$0xff]
    %v2683 = vld [vmem:[#allocation15 + $0x440] sm:$0xff]
    %v2684 = vld [vmem:[#allocation15 + $0x448] sm:$0xff]
    %v2685 = vld [vmem:[#allocation15 + $0x450] sm:$0xff]
    %v2686 = vld [vmem:[#allocation15 + $0x458] sm:$0xff]
    %v2687 = vld [vmem:[#allocation15 + $0x460] sm:$0xff]
    %v2688 = vld [vmem:[#allocation15 + $0x468] sm:$0xff]
    %v2689 = vld [vmem:[#allocation15 + $0x470] sm:$0xff]
    %v2690 = vld [vmem:[#allocation15 + $0x478] sm:$0xff]
    %v2691 = vld [vmem:[#allocation15 + $0x480] sm:$0xff]
    %v2692 = vld [vmem:[#allocation15 + $0x488] sm:$0xff]
    %v2693 = vld [vmem:[#allocation15 + $0x490] sm:$0xff]
    %v2694 = vld [vmem:[#allocation15 + $0x498] sm:$0xff]
    %v2695 = vld [vmem:[#allocation15 + $0x4a0] sm:$0xff]
    %v2696 = vld [vmem:[#allocation15 + $0x4a8] sm:$0xff]
    %v2697 = vld [vmem:[#allocation15 + $0x4b0] sm:$0xff]
    %v2698 = vld [vmem:[#allocation15 + $0x4b8] sm:$0xff]
    %v2699 = vld [vmem:[#allocation15 + $0x4c0] sm:$0xff]
    %v2700 = vld [vmem:[#allocation15 + $0x4c8] sm:$0xff]
    %v2701 = vld [vmem:[#allocation15 + $0x4d0] sm:$0xff]
    %v2702 = vld [vmem:[#allocation15 + $0x4d8] sm:$0xff]
    %v2703 = vld [vmem:[#allocation15 + $0x4e0] sm:$0xff]
    %v2704 = vld [vmem:[#allocation15 + $0x4e8] sm:$0xff]
    %v2705 = vld [vmem:[#allocation15 + $0x4f0] sm:$0xff]
    %v2706 = vld [vmem:[#allocation15 + $0x4f8] sm:$0xff]
    %v2707 = vld [vmem:[#allocation15 + $0x500] sm:$0xff]
    %v2708 = vld [vmem:[#allocation15 + $0x508] sm:$0xff]
    %v2709 = vld [vmem:[#allocation15 + $0x510] sm:$0xff]
    %v2710 = vld [vmem:[#allocation15 + $0x518] sm:$0xff]
    %v2711 = vld [vmem:[#allocation15 + $0x520] sm:$0xff]
    %v2712 = vld [vmem:[#allocation15 + $0x528] sm:$0xff]
    %v2713 = vld [vmem:[#allocation15 + $0x530] sm:$0xff]
    %v2714 = vld [vmem:[#allocation15 + $0x538] sm:$0xff]
    %v2715 = vld [vmem:[#allocation15 + $0x540] sm:$0xff]
    %v2716 = vld [vmem:[#allocation15 + $0x548] sm:$0xff]
    %v2717 = vld [vmem:[#allocation15 + $0x550] sm:$0xff]
    %v2718 = vld [vmem:[#allocation15 + $0x558] sm:$0xff]
    %v2719 = vld [vmem:[#allocation15 + $0x560] sm:$0xff]
    %v2720 = vld [vmem:[#allocation15 + $0x568] sm:$0xff]
    %v2721 = vld [vmem:[#allocation15 + $0x570] sm:$0xff]
    %v2722 = vld [vmem:[#allocation15 + $0x578] sm:$0xff]
    %v2723 = vld [vmem:[#allocation15 + $0x580] sm:$0xff]
    %v2724 = vld [vmem:[#allocation15 + $0x588] sm:$0xff]
    %v2725 = vld [vmem:[#allocation15 + $0x590] sm:$0xff]
    %v2726 = vld [vmem:[#allocation15 + $0x598] sm:$0xff]
    %v2727 = vld [vmem:[#allocation15 + $0x5a0] sm:$0xff]
    %v2728 = vld [vmem:[#allocation15 + $0x5a8] sm:$0xff]
    %v2729 = vld [vmem:[#allocation15 + $0x5b0] sm:$0xff]
    %v2730 = vld [vmem:[#allocation15 + $0x5b8] sm:$0xff]
    %v2731 = vld [vmem:[#allocation15 + $0x5c0] sm:$0xff]
    %v2732 = vld [vmem:[#allocation15 + $0x5c8] sm:$0xff]
    %v2733 = vld [vmem:[#allocation15 + $0x5d0] sm:$0xff]
    %v2734 = vld [vmem:[#allocation15 + $0x5d8] sm:$0xff]
    %v2735 = vld [vmem:[#allocation15 + $0x5e0] sm:$0xff]
    %v2736 = vld [vmem:[#allocation15 + $0x5e8] sm:$0xff]
    %v2737 = vld [vmem:[#allocation15 + $0x5f0] sm:$0xff]
    %v2738 = vld [vmem:[#allocation15 + $0x5f8] sm:$0xff]
    %v2739 = vld [vmem:[#allocation15 + $0x600] sm:$0xff]
    %v2740 = vld [vmem:[#allocation15 + $0x608] sm:$0xff]
    %v2741 = vld [vmem:[#allocation15 + $0x610] sm:$0xff]
    %v2742 = vld [vmem:[#allocation15 + $0x618] sm:$0xff]
    %v2743 = vld [vmem:[#allocation15 + $0x620] sm:$0xff]
    %v2744 = vld [vmem:[#allocation15 + $0x628] sm:$0xff]
    %v2745 = vld [vmem:[#allocation15 + $0x630] sm:$0xff]
    %v2746 = vld [vmem:[#allocation15 + $0x638] sm:$0xff]
    %v2747 = vld [vmem:[#allocation15 + $0x640] sm:$0xff]
    %v2748 = vld [vmem:[#allocation15 + $0x648] sm:$0xff]
    %v2749 = vld [vmem:[#allocation15 + $0x650] sm:$0xff]
    %v2750 = vld [vmem:[#allocation15 + $0x658] sm:$0xff]
    %v2751 = vld [vmem:[#allocation15 + $0x660] sm:$0xff]
    %v2752 = vld [vmem:[#allocation15 + $0x668] sm:$0xff]
    %v2753 = vld [vmem:[#allocation15 + $0x670] sm:$0xff]
    %v2754 = vld [vmem:[#allocation15 + $0x678] sm:$0xff]
    %v2755 = vld [vmem:[#allocation15 + $0x680] sm:$0xff]
    %v2756 = vld [vmem:[#allocation15 + $0x688] sm:$0xff]
    %v2757 = vld [vmem:[#allocation15 + $0x690] sm:$0xff]
    %v2758 = vld [vmem:[#allocation15 + $0x698] sm:$0xff]
    %v2759 = vld [vmem:[#allocation15 + $0x6a0] sm:$0xff]
    %v2760 = vld [vmem:[#allocation15 + $0x6a8] sm:$0xff]
    %v2761 = vld [vmem:[#allocation15 + $0x6b0] sm:$0xff]
    %v2762 = vld [vmem:[#allocation15 + $0x6b8] sm:$0xff]
    %v2763 = vld [vmem:[#allocation15 + $0x6c0] sm:$0xff]
    %v2764 = vld [vmem:[#allocation15 + $0x6c8] sm:$0xff]
    %v2765 = vld [vmem:[#allocation15 + $0x6d0] sm:$0xff]
    %v2766 = vld [vmem:[#allocation15 + $0x6d8] sm:$0xff]
    %v2767 = vld [vmem:[#allocation15 + $0x6e0] sm:$0xff]
    %v2768 = vld [vmem:[#allocation15 + $0x6e8] sm:$0xff]
    %v2769 = vld [vmem:[#allocation15 + $0x6f0] sm:$0xff]
    %v2770 = vld [vmem:[#allocation15 + $0x6f8] sm:$0xff]
    %v2771 = vld [vmem:[#allocation15 + $0x700] sm:$0xff]
    %v2772 = vld [vmem:[#allocation15 + $0x708] sm:$0xff]
    %v2773 = vld [vmem:[#allocation15 + $0x710] sm:$0xff]
    %v2774 = vld [vmem:[#allocation15 + $0x718] sm:$0xff]
    %v2775 = vld [vmem:[#allocation15 + $0x720] sm:$0xff]
    %v2776 = vld [vmem:[#allocation15 + $0x728] sm:$0xff]
    %v2777 = vld [vmem:[#allocation15 + $0x730] sm:$0xff]
    %v2778 = vld [vmem:[#allocation15 + $0x738] sm:$0xff]
    %v2779 = vld [vmem:[#allocation15 + $0x740] sm:$0xff]
    %v2780 = vld [vmem:[#allocation15 + $0x748] sm:$0xff]
    %v2781 = vld [vmem:[#allocation15 + $0x750] sm:$0xff]
    %v2782 = vld [vmem:[#allocation15 + $0x758] sm:$0xff]
    %v2783 = vld [vmem:[#allocation15 + $0x760] sm:$0xff]
    %v2784 = vld [vmem:[#allocation15 + $0x768] sm:$0xff]
    %v2785 = vld [vmem:[#allocation15 + $0x770] sm:$0xff]
    %v2786 = vld [vmem:[#allocation15 + $0x778] sm:$0xff]
    %v2787 = vld [vmem:[#allocation15 + $0x780] sm:$0xff]
    %v2788 = vld [vmem:[#allocation15 + $0x788] sm:$0xff]
    %v2789 = vld [vmem:[#allocation15 + $0x790] sm:$0xff]
    %v2790 = vld [vmem:[#allocation15 + $0x798] sm:$0xff]
    %v2791 = vld [vmem:[#allocation15 + $0x7a0] sm:$0xff]
    %v2792 = vld [vmem:[#allocation15 + $0x7a8] sm:$0xff]
    %v2793 = vld [vmem:[#allocation15 + $0x7b0] sm:$0xff]
    %v2794 = vld [vmem:[#allocation15 + $0x7b8] sm:$0xff]
    %v2795 = vld [vmem:[#allocation15 + $0x7c0] sm:$0xff]
    %v2796 = vld [vmem:[#allocation15 + $0x7c8] sm:$0xff]
    %v2797 = vld [vmem:[#allocation15 + $0x7d0] sm:$0xff]
    %v2798 = vld [vmem:[#allocation15 + $0x7d8] sm:$0xff]
    %v2799 = vld [vmem:[#allocation15 + $0x7e0] sm:$0xff]
    %v2800 = vld [vmem:[#allocation15 + $0x7e8] sm:$0xff]
    %v2801 = vld [vmem:[#allocation15 + $0x7f0] sm:$0xff]
    %v2802 = vld [vmem:[#allocation15 + $0x7f8] sm:$0xff]
    %v2803 = vld [vmem:[#allocation15 + $0x800] sm:$0xff]
    %v2804 = vld [vmem:[#allocation15 + $0x808] sm:$0xff]
    %v2805 = vld [vmem:[#allocation15 + $0x810] sm:$0xff]
    %v2806 = vld [vmem:[#allocation15 + $0x818] sm:$0xff]
    %v2807 = vld [vmem:[#allocation15 + $0x820] sm:$0xff]
    %v2808 = vld [vmem:[#allocation15 + $0x828] sm:$0xff]
    %v2809 = vld [vmem:[#allocation15 + $0x830] sm:$0xff]
    %v2810 = vld [vmem:[#allocation15 + $0x838] sm:$0xff]
    %v2811 = vld [vmem:[#allocation15 + $0x840] sm:$0xff]
    %v2812 = vld [vmem:[#allocation15 + $0x848] sm:$0xff]
    %v2813 = vld [vmem:[#allocation15 + $0x850] sm:$0xff]
    %v2814 = vld [vmem:[#allocation15 + $0x858] sm:$0xff]
    %v2815 = vld [vmem:[#allocation15 + $0x860] sm:$0xff]
    %v2816 = vld [vmem:[#allocation15 + $0x868] sm:$0xff]
    %v2817 = vld [vmem:[#allocation15 + $0x870] sm:$0xff]
    %v2818 = vld [vmem:[#allocation15 + $0x878] sm:$0xff]
    %v2819 = vld [vmem:[#allocation15 + $0x880] sm:$0xff]
    %v2820 = vld [vmem:[#allocation15 + $0x888] sm:$0xff]
    %v2821 = vld [vmem:[#allocation15 + $0x890] sm:$0xff]
    %v2822 = vld [vmem:[#allocation15 + $0x898] sm:$0xff]
    %v2823 = vld [vmem:[#allocation15 + $0x8a0] sm:$0xff]
    %v2824 = vld [vmem:[#allocation15 + $0x8a8] sm:$0xff]
    %v2825 = vld [vmem:[#allocation15 + $0x8b0] sm:$0xff]
    %v2826 = vld [vmem:[#allocation15 + $0x8b8] sm:$0xff]
    %v2827 = vld [vmem:[#allocation15 + $0x8c0] sm:$0xff]
    %v2828 = vld [vmem:[#allocation15 + $0x8c8] sm:$0xff]
    %v2829 = vld [vmem:[#allocation15 + $0x8d0] sm:$0xff]
    %v2830 = vld [vmem:[#allocation15 + $0x8d8] sm:$0xff]
    %v2831 = vld [vmem:[#allocation15 + $0x8e0] sm:$0xff]
    %v2832 = vld [vmem:[#allocation15 + $0x8e8] sm:$0xff]
    %v2833 = vld [vmem:[#allocation15 + $0x8f0] sm:$0xff]
    %v2834 = vld [vmem:[#allocation15 + $0x8f8] sm:$0xff]
    %v2835 = vld [vmem:[#allocation15 + $0x900] sm:$0xff]
    %v2836 = vld [vmem:[#allocation15 + $0x908] sm:$0xff]
    %v2837 = vld [vmem:[#allocation15 + $0x910] sm:$0xff]
    %v2838 = vld [vmem:[#allocation15 + $0x918] sm:$0xff]
    %v2839 = vld [vmem:[#allocation15 + $0x920] sm:$0xff]
    %v2840 = vld [vmem:[#allocation15 + $0x928] sm:$0xff]
    %v2841 = vld [vmem:[#allocation15 + $0x930] sm:$0xff]
    %v2842 = vld [vmem:[#allocation15 + $0x938] sm:$0xff]
    %v2843 = vld [vmem:[#allocation15 + $0x940] sm:$0xff]
    %v2844 = vld [vmem:[#allocation15 + $0x948] sm:$0xff]
    %v2845 = vld [vmem:[#allocation15 + $0x950] sm:$0xff]
    %v2846 = vld [vmem:[#allocation15 + $0x958] sm:$0xff]
    %v2847 = vld [vmem:[#allocation15 + $0x960] sm:$0xff]
    %v2848 = vld [vmem:[#allocation15 + $0x968] sm:$0xff]
    %v2849 = vld [vmem:[#allocation15 + $0x970] sm:$0xff]
    %v2850 = vld [vmem:[#allocation15 + $0x978] sm:$0xff]
    %v2851 = vld [vmem:[#allocation15 + $0x980] sm:$0xff]
    %v2852 = vld [vmem:[#allocation15 + $0x988] sm:$0xff]
    %v2853 = vld [vmem:[#allocation15 + $0x990] sm:$0xff]
    %v2854 = vld [vmem:[#allocation15 + $0x998] sm:$0xff]
    %v2855 = vld [vmem:[#allocation15 + $0x9a0] sm:$0xff]
    %v2856 = vld [vmem:[#allocation15 + $0x9a8] sm:$0xff]
    %v2857 = vld [vmem:[#allocation15 + $0x9b0] sm:$0xff]
    %v2858 = vld [vmem:[#allocation15 + $0x9b8] sm:$0xff]
    %v2859 = vld [vmem:[#allocation15 + $0x9c0] sm:$0xff]
    %v2860 = vld [vmem:[#allocation15 + $0x9c8] sm:$0xff]
    %v2861 = vld [vmem:[#allocation15 + $0x9d0] sm:$0xff]
    %v2862 = vld [vmem:[#allocation15 + $0x9d8] sm:$0xff]
    %v2863 = vld [vmem:[#allocation15 + $0x9e0] sm:$0xff]
    %v2864 = vld [vmem:[#allocation15 + $0x9e8] sm:$0xff]
    %v2865 = vld [vmem:[#allocation15 + $0x9f0] sm:$0xff]
    %v2866 = vld [vmem:[#allocation15 + $0x9f8] sm:$0xff]
    %v2867 = vld [vmem:[#allocation15 + $0xa00] sm:$0xff]
    %v2868 = vld [vmem:[#allocation15 + $0xa08] sm:$0xff]
    %v2869 = vld [vmem:[#allocation15 + $0xa10] sm:$0xff]
    %v2870 = vld [vmem:[#allocation15 + $0xa18] sm:$0xff]
    %v2871 = vld [vmem:[#allocation15 + $0xa20] sm:$0xff]
    %v2872 = vld [vmem:[#allocation15 + $0xa28] sm:$0xff]
    %v2873 = vld [vmem:[#allocation15 + $0xa30] sm:$0xff]
    %v2874 = vld [vmem:[#allocation15 + $0xa38] sm:$0xff]
    %v2875 = vld [vmem:[#allocation15 + $0xa40] sm:$0xff]
    %v2876 = vld [vmem:[#allocation15 + $0xa48] sm:$0xff]
    %v2877 = vld [vmem:[#allocation15 + $0xa50] sm:$0xff]
    %v2878 = vld [vmem:[#allocation15 + $0xa58] sm:$0xff]
    %v2879 = vld [vmem:[#allocation15 + $0xa60] sm:$0xff]
    %v2880 = vld [vmem:[#allocation15 + $0xa68] sm:$0xff]
    %v2881 = vld [vmem:[#allocation15 + $0xa70] sm:$0xff]
    %v2882 = vld [vmem:[#allocation15 + $0xa78] sm:$0xff]
    %v2883 = vld [vmem:[#allocation15 + $0xa80] sm:$0xff]
    %v2884 = vld [vmem:[#allocation15 + $0xa88] sm:$0xff]
    %v2885 = vld [vmem:[#allocation15 + $0xa90] sm:$0xff]
    %v2886 = vld [vmem:[#allocation15 + $0xa98] sm:$0xff]
    %v2887 = vld [vmem:[#allocation15 + $0xaa0] sm:$0xff]
    %v2888 = vld [vmem:[#allocation15 + $0xaa8] sm:$0xff]
    %v2889 = vld [vmem:[#allocation15 + $0xab0] sm:$0xff]
    %v2890 = vld [vmem:[#allocation15 + $0xab8] sm:$0xff]
    %v2891 = vld [vmem:[#allocation15 + $0xac0] sm:$0xff]
    %v2892 = vld [vmem:[#allocation15 + $0xac8] sm:$0xff]
    %v2893 = vld [vmem:[#allocation15 + $0xad0] sm:$0xff]
    %v2894 = vld [vmem:[#allocation15 + $0xad8] sm:$0xff]
    %v2895 = vld [vmem:[#allocation15 + $0xae0] sm:$0xff]
    %v2896 = vld [vmem:[#allocation15 + $0xae8] sm:$0xff]
    %v2897 = vld [vmem:[#allocation15 + $0xaf0] sm:$0xff]
    %v2898 = vld [vmem:[#allocation15 + $0xaf8] sm:$0xff]
    %v2899 = vld [vmem:[#allocation15 + $0xb00] sm:$0xff]
    %v2900 = vld [vmem:[#allocation15 + $0xb08] sm:$0xff]
    %v2901 = vld [vmem:[#allocation15 + $0xb10] sm:$0xff]
    %v2902 = vld [vmem:[#allocation15 + $0xb18] sm:$0xff]
    %v2903 = vld [vmem:[#allocation15 + $0xb20] sm:$0xff]
    %v2904 = vld [vmem:[#allocation15 + $0xb28] sm:$0xff]
    %v2905 = vld [vmem:[#allocation15 + $0xb30] sm:$0xff]
    %v2906 = vld [vmem:[#allocation15 + $0xb38] sm:$0xff]
    %v2907 = vld [vmem:[#allocation15 + $0xb40] sm:$0xff]
    %v2908 = vld [vmem:[#allocation15 + $0xb48] sm:$0xff]
    %v2909 = vld [vmem:[#allocation15 + $0xb50] sm:$0xff]
    %v2910 = vld [vmem:[#allocation15 + $0xb58] sm:$0xff]
    %v2911 = vld [vmem:[#allocation15 + $0xb60] sm:$0xff]
    %v2912 = vld [vmem:[#allocation15 + $0xb68] sm:$0xff]
    %v2913 = vld [vmem:[#allocation15 + $0xb70] sm:$0xff]
    %v2914 = vld [vmem:[#allocation15 + $0xb78] sm:$0xff]
    %v2915 = vld [vmem:[#allocation15 + $0xb80] sm:$0xff]
    %v2916 = vld [vmem:[#allocation15 + $0xb88] sm:$0xff]
    %v2917 = vld [vmem:[#allocation15 + $0xb90] sm:$0xff]
    %v2918 = vld [vmem:[#allocation15 + $0xb98] sm:$0xff]
    %v2919 = vld [vmem:[#allocation15 + $0xba0] sm:$0xff]
    %v2920 = vld [vmem:[#allocation15 + $0xba8] sm:$0xff]
    %v2921 = vld [vmem:[#allocation15 + $0xbb0] sm:$0xff]
    %v2922 = vld [vmem:[#allocation15 + $0xbb8] sm:$0xff]
    %v2923 = vld [vmem:[#allocation15 + $0xbc0] sm:$0xff]
    %v2924 = vld [vmem:[#allocation15 + $0xbc8] sm:$0xff]
    %v2925 = vld [vmem:[#allocation15 + $0xbd0] sm:$0xff]
    %v2926 = vld [vmem:[#allocation15 + $0xbd8] sm:$0xff]
    %v2927 = vld [vmem:[#allocation15 + $0xbe0] sm:$0xff]
    %v2928 = vld [vmem:[#allocation15 + $0xbe8] sm:$0xff]
    %v2929 = vld [vmem:[#allocation15 + $0xbf0] sm:$0xff]
    %v2930 = vld [vmem:[#allocation15 + $0xbf8] sm:$0xff]
    %v2931 = vld [vmem:[#allocation15 + $0xc00] sm:$0xff]
    %v2932 = vld [vmem:[#allocation15 + $0xc08] sm:$0xff]
    %v2933 = vld [vmem:[#allocation15 + $0xc10] sm:$0xff]
    %v2934 = vld [vmem:[#allocation15 + $0xc18] sm:$0xff]
    %v2935 = vld [vmem:[#allocation15 + $0xc20] sm:$0xff]
    %v2936 = vld [vmem:[#allocation15 + $0xc28] sm:$0xff]
    %v2937 = vld [vmem:[#allocation15 + $0xc30] sm:$0xff]
    %v2938 = vld [vmem:[#allocation15 + $0xc38] sm:$0xff]
    %v2939 = vld [vmem:[#allocation15 + $0xc40] sm:$0xff]
    %v2940 = vld [vmem:[#allocation15 + $0xc48] sm:$0xff]
    %v2941 = vld [vmem:[#allocation15 + $0xc50] sm:$0xff]
    %v2942 = vld [vmem:[#allocation15 + $0xc58] sm:$0xff]
    %v2943 = vld [vmem:[#allocation15 + $0xc60] sm:$0xff]
    %v2944 = vld [vmem:[#allocation15 + $0xc68] sm:$0xff]
    %v2945 = vld [vmem:[#allocation15 + $0xc70] sm:$0xff]
    %v2946 = vld [vmem:[#allocation15 + $0xc78] sm:$0xff]
    %v2947 = vld [vmem:[#allocation15 + $0xc80] sm:$0xff]
    %v2948 = vld [vmem:[#allocation15 + $0xc88] sm:$0xff]
    %v2949 = vld [vmem:[#allocation15 + $0xc90] sm:$0xff]
    %v2950 = vld [vmem:[#allocation15 + $0xc98] sm:$0xff]
    %v2951 = vld [vmem:[#allocation15 + $0xca0] sm:$0xff]
    %v2952 = vld [vmem:[#allocation15 + $0xca8] sm:$0xff]
    %v2953 = vld [vmem:[#allocation15 + $0xcb0] sm:$0xff]
    %v2954 = vld [vmem:[#allocation15 + $0xcb8] sm:$0xff]
    %v2955 = vld [vmem:[#allocation15 + $0xcc0] sm:$0xff]
    %v2956 = vld [vmem:[#allocation15 + $0xcc8] sm:$0xff]
    %v2957 = vld [vmem:[#allocation15 + $0xcd0] sm:$0xff]
    %v2958 = vld [vmem:[#allocation15 + $0xcd8] sm:$0xff]
    %v2959 = vld [vmem:[#allocation15 + $0xce0] sm:$0xff]
    %v2960 = vld [vmem:[#allocation15 + $0xce8] sm:$0xff]
    %v2961 = vld [vmem:[#allocation15 + $0xcf0] sm:$0xff]
    %v2962 = vld [vmem:[#allocation15 + $0xcf8] sm:$0xff]
    %v2963 = vld [vmem:[#allocation15 + $0xd00] sm:$0xff]
    %v2964 = vld [vmem:[#allocation15 + $0xd08] sm:$0xff]
    %v2965 = vld [vmem:[#allocation15 + $0xd10] sm:$0xff]
    %v2966 = vld [vmem:[#allocation15 + $0xd18] sm:$0xff]
    %v2967 = vld [vmem:[#allocation15 + $0xd20] sm:$0xff]
    %v2968 = vld [vmem:[#allocation15 + $0xd28] sm:$0xff]
    %v2969 = vld [vmem:[#allocation15 + $0xd30] sm:$0xff]
    %v2970 = vld [vmem:[#allocation15 + $0xd38] sm:$0xff]
    %v2971 = vld [vmem:[#allocation15 + $0xd40] sm:$0xff]
    %v2972 = vld [vmem:[#allocation15 + $0xd48] sm:$0xff]
    %v2973 = vld [vmem:[#allocation15 + $0xd50] sm:$0xff]
    %v2974 = vld [vmem:[#allocation15 + $0xd58] sm:$0xff]
    %v2975 = vld [vmem:[#allocation15 + $0xd60] sm:$0xff]
    %v2976 = vld [vmem:[#allocation15 + $0xd68] sm:$0xff]
    %v2977 = vld [vmem:[#allocation15 + $0xd70] sm:$0xff]
    %v2978 = vld [vmem:[#allocation15 + $0xd78] sm:$0xff]
    %v2979 = vld [vmem:[#allocation15 + $0xd80] sm:$0xff]
    %v2980 = vld [vmem:[#allocation15 + $0xd88] sm:$0xff]
    %v2981 = vld [vmem:[#allocation15 + $0xd90] sm:$0xff]
    %v2982 = vld [vmem:[#allocation15 + $0xd98] sm:$0xff]
    %v2983 = vld [vmem:[#allocation15 + $0xda0] sm:$0xff]
    %v2984 = vld [vmem:[#allocation15 + $0xda8] sm:$0xff]
    %v2985 = vld [vmem:[#allocation15 + $0xdb0] sm:$0xff]
    %v2986 = vld [vmem:[#allocation15 + $0xdb8] sm:$0xff]
    %v2987 = vld [vmem:[#allocation15 + $0xdc0] sm:$0xff]
    %v2988 = vld [vmem:[#allocation15 + $0xdc8] sm:$0xff]
    %v2989 = vld [vmem:[#allocation15 + $0xdd0] sm:$0xff]
    %v2990 = vld [vmem:[#allocation15 + $0xdd8] sm:$0xff]
    %v2991 = vld [vmem:[#allocation15 + $0xde0] sm:$0xff]
    %v2992 = vld [vmem:[#allocation15 + $0xde8] sm:$0xff]
    %v2993 = vld [vmem:[#allocation15 + $0xdf0] sm:$0xff]
    %v2994 = vld [vmem:[#allocation15 + $0xdf8] sm:$0xff]
    %v2995 = vld [vmem:[#allocation15 + $0xe00] sm:$0xff]
    %v2996 = vld [vmem:[#allocation15 + $0xe08] sm:$0xff]
    %v2997 = vld [vmem:[#allocation15 + $0xe10] sm:$0xff]
    %v2998 = vld [vmem:[#allocation15 + $0xe18] sm:$0xff]
    %v2999 = vld [vmem:[#allocation15 + $0xe20] sm:$0xff]
    %v3000 = vld [vmem:[#allocation15 + $0xe28] sm:$0xff]
    %v3001 = vld [vmem:[#allocation15 + $0xe30] sm:$0xff]
    %v3002 = vld [vmem:[#allocation15 + $0xe38] sm:$0xff]
    %v3003 = vld [vmem:[#allocation15 + $0xe40] sm:$0xff]
    %v3004 = vld [vmem:[#allocation15 + $0xe48] sm:$0xff]
    %v3005 = vld [vmem:[#allocation15 + $0xe50] sm:$0xff]
    %v3006 = vld [vmem:[#allocation15 + $0xe58] sm:$0xff]
    %v3007 = vld [vmem:[#allocation15 + $0xe60] sm:$0xff]
    %v3008 = vld [vmem:[#allocation15 + $0xe68] sm:$0xff]
    %v3009 = vld [vmem:[#allocation15 + $0xe70] sm:$0xff]
    %v3010 = vld [vmem:[#allocation15 + $0xe78] sm:$0xff]
    %v3011 = vld [vmem:[#allocation15 + $0xe80] sm:$0xff]
    %v3012 = vld [vmem:[#allocation15 + $0xe88] sm:$0xff]
    %v3013 = vld [vmem:[#allocation15 + $0xe90] sm:$0xff]
    %v3014 = vld [vmem:[#allocation15 + $0xe98] sm:$0xff]
    %v3015 = vld [vmem:[#allocation15 + $0xea0] sm:$0xff]
    %v3016 = vld [vmem:[#allocation15 + $0xea8] sm:$0xff]
    %v3017 = vld [vmem:[#allocation15 + $0xeb0] sm:$0xff]
    %v3018 = vld [vmem:[#allocation15 + $0xeb8] sm:$0xff]
    %v3019 = vld [vmem:[#allocation15 + $0xec0] sm:$0xff]
    %v3020 = vld [vmem:[#allocation15 + $0xec8] sm:$0xff]
    %v3021 = vld [vmem:[#allocation15 + $0xed0] sm:$0xff]
    %v3022 = vld [vmem:[#allocation15 + $0xed8] sm:$0xff]
    %v3023 = vld [vmem:[#allocation15 + $0xee0] sm:$0xff]
    %v3024 = vld [vmem:[#allocation15 + $0xee8] sm:$0xff]
    %v3025 = vld [vmem:[#allocation15 + $0xef0] sm:$0xff]
    %v3026 = vld [vmem:[#allocation15 + $0xef8] sm:$0xff]
    %v3027 = vld [vmem:[#allocation15 + $0xf00] sm:$0xff]
    %v3028 = vld [vmem:[#allocation15 + $0xf08] sm:$0xff]
    %v3029 = vld [vmem:[#allocation15 + $0xf10] sm:$0xff]
    %v3030 = vld [vmem:[#allocation15 + $0xf18] sm:$0xff]
    %v3031 = vld [vmem:[#allocation15 + $0xf20] sm:$0xff]
    %v3032 = vld [vmem:[#allocation15 + $0xf28] sm:$0xff]
    %v3033 = vld [vmem:[#allocation15 + $0xf30] sm:$0xff]
    %v3034 = vld [vmem:[#allocation15 + $0xf38] sm:$0xff]
    %v3035 = vld [vmem:[#allocation15 + $0xf40] sm:$0xff]
    %v3036 = vld [vmem:[#allocation15 + $0xf48] sm:$0xff]
    %v3037 = vld [vmem:[#allocation15 + $0xf50] sm:$0xff]
    %v3038 = vld [vmem:[#allocation15 + $0xf58] sm:$0xff]
    %v3039 = vld [vmem:[#allocation15 + $0xf60] sm:$0xff]
    %v3040 = vld [vmem:[#allocation15 + $0xf68] sm:$0xff]
    %v3041 = vld [vmem:[#allocation15 + $0xf70] sm:$0xff]
    %v3042 = vld [vmem:[#allocation15 + $0xf78] sm:$0xff]
    %v3043 = vld [vmem:[#allocation15 + $0xf80] sm:$0xff]
    %v3044 = vld [vmem:[#allocation15 + $0xf88] sm:$0xff]
    %v3045 = vld [vmem:[#allocation15 + $0xf90] sm:$0xff]
    %v3046 = vld [vmem:[#allocation15 + $0xf98] sm:$0xff]
    %v3047 = vld [vmem:[#allocation15 + $0xfa0] sm:$0xff]
    %v3048 = vld [vmem:[#allocation15 + $0xfa8] sm:$0xff]
    %v3049 = vld [vmem:[#allocation15 + $0xfb0] sm:$0xff]
    %v3050 = vld [vmem:[#allocation15 + $0xfb8] sm:$0xff]
    %v3051 = vld [vmem:[#allocation15 + $0xfc0] sm:$0xff]
    %v3052 = vld [vmem:[#allocation15 + $0xfc8] sm:$0xff]
    %v3053 = vld [vmem:[#allocation15 + $0xfd0] sm:$0xff]
    %v3054 = vld [vmem:[#allocation15 + $0xfd8] sm:$0xff]
    %v3055 = vld [vmem:[#allocation15 + $0xfe0] sm:$0xff]
    %v3056 = vld [vmem:[#allocation15 + $0xfe8] sm:$0xff]
    %v3057 = vld [vmem:[#allocation15 + $0xff0] sm:$0xff]
    %v3058 = vld [vmem:[#allocation15 + $0xff8] sm:$0xff]
    %v3059 = vld [vmem:[#allocation15 + $0x1000] sm:$0xff]
    %v3060 = vld [vmem:[#allocation15 + $0x1008] sm:$0xff]
    %v3061 = vld [vmem:[#allocation15 + $0x1010] sm:$0xff]
    %v3062 = vld [vmem:[#allocation15 + $0x1018] sm:$0xff]
    %v3063 = vld [vmem:[#allocation15 + $0x1020] sm:$0xff]
    %v3064 = vld [vmem:[#allocation15 + $0x1028] sm:$0xff]
    %v3065 = vld [vmem:[#allocation15 + $0x1030] sm:$0xff]
    %v3066 = vld [vmem:[#allocation15 + $0x1038] sm:$0xff]
    %v3067 = vld [vmem:[#allocation15 + $0x1040] sm:$0xff]
    %v3068 = vld [vmem:[#allocation15 + $0x1048] sm:$0xff]
    %v3069 = vld [vmem:[#allocation15 + $0x1050] sm:$0xff]
    %v3070 = vld [vmem:[#allocation15 + $0x1058] sm:$0xff]
    %v3071 = vld [vmem:[#allocation15 + $0x1060] sm:$0xff]
    %v3072 = vld [vmem:[#allocation15 + $0x1068] sm:$0xff]
    %v3073 = vld [vmem:[#allocation15 + $0x1070] sm:$0xff]
    %v3074 = vld [vmem:[#allocation15 + $0x1078] sm:$0xff]
    %v3075 = vld [vmem:[#allocation15 + $0x1080] sm:$0xff]
    %v3076 = vld [vmem:[#allocation15 + $0x1088] sm:$0xff]
    %v3077 = vld [vmem:[#allocation15 + $0x1090] sm:$0xff]
    %v3078 = vld [vmem:[#allocation15 + $0x1098] sm:$0xff]
    %v3079 = vld [vmem:[#allocation15 + $0x10a0] sm:$0xff]
    %v3080 = vld [vmem:[#allocation15 + $0x10a8] sm:$0xff]
    %v3081 = vld [vmem:[#allocation15 + $0x10b0] sm:$0xff]
    %v3082 = vld [vmem:[#allocation15 + $0x10b8] sm:$0xff]
    %v3083 = vld [vmem:[#allocation15 + $0x10c0] sm:$0xff]
    %v3084 = vld [vmem:[#allocation15 + $0x10c8] sm:$0xff]
    %v3085 = vld [vmem:[#allocation15 + $0x10d0] sm:$0xff]
    %v3086 = vld [vmem:[#allocation15 + $0x10d8] sm:$0xff]
    %v3087 = vld [vmem:[#allocation15 + $0x10e0] sm:$0xff]
    %v3088 = vld [vmem:[#allocation15 + $0x10e8] sm:$0xff]
    %v3089 = vld [vmem:[#allocation15 + $0x10f0] sm:$0xff]
    %v3090 = vld [vmem:[#allocation15 + $0x10f8] sm:$0xff]
    %v3091 = vld [vmem:[#allocation15 + $0x1100] sm:$0xff]
    %v3092 = vld [vmem:[#allocation15 + $0x1108] sm:$0xff]
    %v3093 = vld [vmem:[#allocation15 + $0x1110] sm:$0xff]
    %v3094 = vld [vmem:[#allocation15 + $0x1118] sm:$0xff]
    %v3095 = vld [vmem:[#allocation15 + $0x1120] sm:$0xff]
    %v3096 = vld [vmem:[#allocation15 + $0x1128] sm:$0xff]
    %v3097 = vld [vmem:[#allocation15 + $0x1130] sm:$0xff]
    %v3098 = vld [vmem:[#allocation15 + $0x1138] sm:$0xff]
    %v3099 = vld [vmem:[#allocation15 + $0x1140] sm:$0xff]
    %v3100 = vld [vmem:[#allocation15 + $0x1148] sm:$0xff]
    %v3101 = vld [vmem:[#allocation15 + $0x1150] sm:$0xff]
    %v3102 = vld [vmem:[#allocation15 + $0x1158] sm:$0xff]
    %v3103 = vld [vmem:[#allocation15 + $0x1160] sm:$0xff]
    %v3104 = vld [vmem:[#allocation15 + $0x1168] sm:$0xff]
    %v3105 = vld [vmem:[#allocation15 + $0x1170] sm:$0xff]
    %v3106 = vld [vmem:[#allocation15 + $0x1178] sm:$0xff]
    %v3107 = vld [vmem:[#allocation15 + $0x1180] sm:$0xff]
    %v3108 = vld [vmem:[#allocation15 + $0x1188] sm:$0xff]
    %v3109 = vld [vmem:[#allocation15 + $0x1190] sm:$0xff]
    %v3110 = vld [vmem:[#allocation15 + $0x1198] sm:$0xff]
    %v3111 = vld [vmem:[#allocation15 + $0x11a0] sm:$0xff]
    %v3112 = vld [vmem:[#allocation15 + $0x11a8] sm:$0xff]
    %v3113 = vld [vmem:[#allocation15 + $0x11b0] sm:$0xff]
    %v3114 = vld [vmem:[#allocation15 + $0x11b8] sm:$0xff]
    %v3115 = vld [vmem:[#allocation15 + $0x11c0] sm:$0xff]
    %v3116 = vld [vmem:[#allocation15 + $0x11c8] sm:$0xff]
    %v3117 = vld [vmem:[#allocation15 + $0x11d0] sm:$0xff]
    %v3118 = vld [vmem:[#allocation15 + $0x11d8] sm:$0xff]
    %v3119 = vld [vmem:[#allocation15 + $0x11e0] sm:$0xff]
    %v3120 = vld [vmem:[#allocation15 + $0x11e8] sm:$0xff]
    %v3121 = vld [vmem:[#allocation15 + $0x11f0] sm:$0xff]
    %v3122 = vld [vmem:[#allocation15 + $0x11f8] sm:$0xff]
    %v3123 = vld [vmem:[#allocation15 + $0x1200] sm:$0xff]
    %v3124 = vld [vmem:[#allocation15 + $0x1208] sm:$0xff]
    %v3125 = vld [vmem:[#allocation15 + $0x1210] sm:$0xff]
    %v3126 = vld [vmem:[#allocation15 + $0x1218] sm:$0xff]
    %v3127 = vld [vmem:[#allocation15 + $0x1220] sm:$0xff]
    %v3128 = vld [vmem:[#allocation15 + $0x1228] sm:$0xff]
    %v3129 = vld [vmem:[#allocation15 + $0x1230] sm:$0xff]
    %v3130 = vld [vmem:[#allocation15 + $0x1238] sm:$0xff]
    %v3131 = vld [vmem:[#allocation15 + $0x1240] sm:$0xff]
    %v3132 = vld [vmem:[#allocation15 + $0x1248] sm:$0xff]
    %v3133 = vld [vmem:[#allocation15 + $0x1250] sm:$0xff]
    %v3134 = vld [vmem:[#allocation15 + $0x1258] sm:$0xff]
    %v3135 = vld [vmem:[#allocation15 + $0x1260] sm:$0xff]
    %v3136 = vld [vmem:[#allocation15 + $0x1268] sm:$0xff]
    %v3137 = vld [vmem:[#allocation15 + $0x1270] sm:$0xff]
    %v3138 = vld [vmem:[#allocation15 + $0x1278] sm:$0xff]
    %v3139 = vld [vmem:[#allocation15 + $0x1280] sm:$0xff]
    %v3140 = vld [vmem:[#allocation15 + $0x1288] sm:$0xff]
    %v3141 = vld [vmem:[#allocation15 + $0x1290] sm:$0xff]
    %v3142 = vld [vmem:[#allocation15 + $0x1298] sm:$0xff]
    %v3143 = vld [vmem:[#allocation15 + $0x12a0] sm:$0xff]
    %v3144 = vld [vmem:[#allocation15 + $0x12a8] sm:$0xff]
    %v3145 = vld [vmem:[#allocation15 + $0x12b0] sm:$0xff]
    %v3146 = vld [vmem:[#allocation15 + $0x12b8] sm:$0xff]
    %v3147 = vld [vmem:[#allocation15 + $0x12c0] sm:$0xff]
    %v3148 = vld [vmem:[#allocation15 + $0x12c8] sm:$0xff]
    %v3149 = vld [vmem:[#allocation15 + $0x12d0] sm:$0xff]
    %v3150 = vld [vmem:[#allocation15 + $0x12d8] sm:$0xff]
    %v3151 = vld [vmem:[#allocation15 + $0x12e0] sm:$0xff]
    %v3152 = vld [vmem:[#allocation15 + $0x12e8] sm:$0xff]
    %v3153 = vld [vmem:[#allocation15 + $0x12f0] sm:$0xff]
    %v3154 = vld [vmem:[#allocation15 + $0x12f8] sm:$0xff]
    %v3155 = vld [vmem:[#allocation15 + $0x1300] sm:$0xff]
    %v3156 = vld [vmem:[#allocation15 + $0x1308] sm:$0xff]
    %v3157 = vld [vmem:[#allocation15 + $0x1310] sm:$0xff]
    %v3158 = vld [vmem:[#allocation15 + $0x1318] sm:$0xff]
    %v3159 = vld [vmem:[#allocation15 + $0x1320] sm:$0xff]
    %v3160 = vld [vmem:[#allocation15 + $0x1328] sm:$0xff]
    %v3161 = vld [vmem:[#allocation15 + $0x1330] sm:$0xff]
    %v3162 = vld [vmem:[#allocation15 + $0x1338] sm:$0xff]
    %v3163 = vld [vmem:[#allocation15 + $0x1340] sm:$0xff]
    %v3164 = vld [vmem:[#allocation15 + $0x1348] sm:$0xff]
    %v3165 = vld [vmem:[#allocation15 + $0x1350] sm:$0xff]
    %v3166 = vld [vmem:[#allocation15 + $0x1358] sm:$0xff]
    %v3167 = vld [vmem:[#allocation15 + $0x1360] sm:$0xff]
    %v3168 = vld [vmem:[#allocation15 + $0x1368] sm:$0xff]
    %v3169 = vld [vmem:[#allocation15 + $0x1370] sm:$0xff]
    %v3170 = vld [vmem:[#allocation15 + $0x1378] sm:$0xff]
    %v3171 = vld [vmem:[#allocation15 + $0x1380] sm:$0xff]
    %v3172 = vld [vmem:[#allocation15 + $0x1388] sm:$0xff]
    %v3173 = vld [vmem:[#allocation15 + $0x1390] sm:$0xff]
    %v3174 = vld [vmem:[#allocation15 + $0x1398] sm:$0xff]
    %v3175 = vld [vmem:[#allocation15 + $0x13a0] sm:$0xff]
    %v3176 = vld [vmem:[#allocation15 + $0x13a8] sm:$0xff]
    %v3177 = vld [vmem:[#allocation15 + $0x13b0] sm:$0xff]
    %v3178 = vld [vmem:[#allocation15 + $0x13b8] sm:$0xff]
    %v3179 = vld [vmem:[#allocation15 + $0x13c0] sm:$0xff]
    %v3180 = vld [vmem:[#allocation15 + $0x13c8] sm:$0xff]
    %v3181 = vld [vmem:[#allocation15 + $0x13d0] sm:$0xff]
    %v3182 = vld [vmem:[#allocation15 + $0x13d8] sm:$0xff]
    %v3183 = vld [vmem:[#allocation15 + $0x13e0] sm:$0xff]
    %v3184 = vld [vmem:[#allocation15 + $0x13e8] sm:$0xff]
    %v3185 = vld [vmem:[#allocation15 + $0x13f0] sm:$0xff]
    %v3186 = vld [vmem:[#allocation15 + $0x13f8] sm:$0xff]
    %v3187 = vld [vmem:[#allocation15 + $0x1400] sm:$0xff]
    %v3188 = vld [vmem:[#allocation15 + $0x1408] sm:$0xff]
    %v3189 = vld [vmem:[#allocation15 + $0x1410] sm:$0xff]
    %v3190 = vld [vmem:[#allocation15 + $0x1418] sm:$0xff]
    %v3191 = vld [vmem:[#allocation15 + $0x1420] sm:$0xff]
    %v3192 = vld [vmem:[#allocation15 + $0x1428] sm:$0xff]
    %v3193 = vld [vmem:[#allocation15 + $0x1430] sm:$0xff]
    %v3194 = vld [vmem:[#allocation15 + $0x1438] sm:$0xff]
    %v3195 = vld [vmem:[#allocation15 + $0x1440] sm:$0xff]
    %v3196 = vld [vmem:[#allocation15 + $0x1448] sm:$0xff]
    %v3197 = vld [vmem:[#allocation15 + $0x1450] sm:$0xff]
    %v3198 = vld [vmem:[#allocation15 + $0x1458] sm:$0xff]
    %v3199 = vld [vmem:[#allocation15 + $0x1460] sm:$0xff]
    %v3200 = vld [vmem:[#allocation15 + $0x1468] sm:$0xff]
    %v3201 = vld [vmem:[#allocation15 + $0x1470] sm:$0xff]
    %v3202 = vld [vmem:[#allocation15 + $0x1478] sm:$0xff]
    %v3203 = vld [vmem:[#allocation15 + $0x1480] sm:$0xff]
    %v3204 = vld [vmem:[#allocation15 + $0x1488] sm:$0xff]
    %v3205 = vld [vmem:[#allocation15 + $0x1490] sm:$0xff]
    %v3206 = vld [vmem:[#allocation15 + $0x1498] sm:$0xff]
    %v3207 = vld [vmem:[#allocation15 + $0x14a0] sm:$0xff]
    %v3208 = vld [vmem:[#allocation15 + $0x14a8] sm:$0xff]
    %v3209 = vld [vmem:[#allocation15 + $0x14b0] sm:$0xff]
    %v3210 = vld [vmem:[#allocation15 + $0x14b8] sm:$0xff]
    %v3211 = vld [vmem:[#allocation15 + $0x14c0] sm:$0xff]
    %v3212 = vld [vmem:[#allocation15 + $0x14c8] sm:$0xff]
    %v3213 = vld [vmem:[#allocation15 + $0x14d0] sm:$0xff]
    %v3214 = vld [vmem:[#allocation15 + $0x14d8] sm:$0xff]
    %v3215 = vld [vmem:[#allocation15 + $0x14e0] sm:$0xff]
    %v3216 = vld [vmem:[#allocation15 + $0x14e8] sm:$0xff]
    %v3217 = vld [vmem:[#allocation15 + $0x14f0] sm:$0xff]
    %v3218 = vld [vmem:[#allocation15 + $0x14f8] sm:$0xff]
    %v3219 = vld [vmem:[#allocation15 + $0x1500] sm:$0xff]
    %v3220 = vld [vmem:[#allocation15 + $0x1508] sm:$0xff]
    %v3221 = vld [vmem:[#allocation15 + $0x1510] sm:$0xff]
    %v3222 = vld [vmem:[#allocation15 + $0x1518] sm:$0xff]
    %v3223 = vld [vmem:[#allocation15 + $0x1520] sm:$0xff]
    %v3224 = vld [vmem:[#allocation15 + $0x1528] sm:$0xff]
    %v3225 = vld [vmem:[#allocation15 + $0x1530] sm:$0xff]
    %v3226 = vld [vmem:[#allocation15 + $0x1538] sm:$0xff]
    %v3227 = vld [vmem:[#allocation15 + $0x1540] sm:$0xff]
    %v3228 = vld [vmem:[#allocation15 + $0x1548] sm:$0xff]
    %v3229 = vld [vmem:[#allocation15 + $0x1550] sm:$0xff]
    %v3230 = vld [vmem:[#allocation15 + $0x1558] sm:$0xff]
    %v3231 = vld [vmem:[#allocation15 + $0x1560] sm:$0xff]
    %v3232 = vld [vmem:[#allocation15 + $0x1568] sm:$0xff]
    %v3233 = vld [vmem:[#allocation15 + $0x1570] sm:$0xff]
    %v3234 = vld [vmem:[#allocation15 + $0x1578] sm:$0xff]
    %v3235 = vld [vmem:[#allocation15 + $0x1580] sm:$0xff]
    %v3236 = vld [vmem:[#allocation15 + $0x1588] sm:$0xff]
    %v3237 = vld [vmem:[#allocation15 + $0x1590] sm:$0xff]
    %v3238 = vld [vmem:[#allocation15 + $0x1598] sm:$0xff]
    %v3239 = vld [vmem:[#allocation15 + $0x15a0] sm:$0xff]
    %v3240 = vld [vmem:[#allocation15 + $0x15a8] sm:$0xff]
    %v3241 = vld [vmem:[#allocation15 + $0x15b0] sm:$0xff]
    %v3242 = vld [vmem:[#allocation15 + $0x15b8] sm:$0xff]
    %v3243 = vld [vmem:[#allocation15 + $0x15c0] sm:$0xff]
    %v3244 = vld [vmem:[#allocation15 + $0x15c8] sm:$0xff]
    %v3245 = vld [vmem:[#allocation15 + $0x15d0] sm:$0xff]
    %v3246 = vld [vmem:[#allocation15 + $0x15d8] sm:$0xff]
    %v3247 = vld [vmem:[#allocation15 + $0x15e0] sm:$0xff]
    %v3248 = vld [vmem:[#allocation15 + $0x15e8] sm:$0xff]
    %v3249 = vld [vmem:[#allocation15 + $0x15f0] sm:$0xff]
    %v3250 = vld [vmem:[#allocation15 + $0x15f8] sm:$0xff]
    %v3251 = vld [vmem:[#allocation15 + $0x1600] sm:$0xff]
    %v3252 = vld [vmem:[#allocation15 + $0x1608] sm:$0xff]
    %v3253 = vld [vmem:[#allocation15 + $0x1610] sm:$0xff]
    %v3254 = vld [vmem:[#allocation15 + $0x1618] sm:$0xff]
    %v3255 = vld [vmem:[#allocation15 + $0x1620] sm:$0xff]
    %v3256 = vld [vmem:[#allocation15 + $0x1628] sm:$0xff]
    %v3257 = vld [vmem:[#allocation15 + $0x1630] sm:$0xff]
    %v3258 = vld [vmem:[#allocation15 + $0x1638] sm:$0xff]
    %v3259 = vld [vmem:[#allocation15 + $0x1640] sm:$0xff]
    %v3260 = vld [vmem:[#allocation15 + $0x1648] sm:$0xff]
    %v3261 = vld [vmem:[#allocation15 + $0x1650] sm:$0xff]
    %v3262 = vld [vmem:[#allocation15 + $0x1658] sm:$0xff]
    %v3263 = vld [vmem:[#allocation15 + $0x1660] sm:$0xff]
    %v3264 = vld [vmem:[#allocation15 + $0x1668] sm:$0xff]
    %v3265 = vld [vmem:[#allocation15 + $0x1670] sm:$0xff]
    %v3266 = vld [vmem:[#allocation15 + $0x1678] sm:$0xff]
    %v3267 = vld [vmem:[#allocation15 + $0x1680] sm:$0xff]
    %v3268 = vld [vmem:[#allocation15 + $0x1688] sm:$0xff]
    %v3269 = vld [vmem:[#allocation15 + $0x1690] sm:$0xff]
    %v3270 = vld [vmem:[#allocation15 + $0x1698] sm:$0xff]
    %v3271 = vld [vmem:[#allocation15 + $0x16a0] sm:$0xff]
    %v3272 = vld [vmem:[#allocation15 + $0x16a8] sm:$0xff]
    %v3273 = vld [vmem:[#allocation15 + $0x16b0] sm:$0xff]
    %v3274 = vld [vmem:[#allocation15 + $0x16b8] sm:$0xff]
    %v3275 = vld [vmem:[#allocation15 + $0x16c0] sm:$0xff]
    %v3276 = vld [vmem:[#allocation15 + $0x16c8] sm:$0xff]
    %v3277 = vld [vmem:[#allocation15 + $0x16d0] sm:$0xff]
    %v3278 = vld [vmem:[#allocation15 + $0x16d8] sm:$0xff]
    %v3279 = vld [vmem:[#allocation15 + $0x16e0] sm:$0xff]
    %v3280 = vld [vmem:[#allocation15 + $0x16e8] sm:$0xff]
    %v3281 = vld [vmem:[#allocation15 + $0x16f0] sm:$0xff]
    %v3282 = vld [vmem:[#allocation15 + $0x16f8] sm:$0xff]
    %v3283 = vld [vmem:[#allocation15 + $0x1700] sm:$0xff]
    %v3284 = vld [vmem:[#allocation15 + $0x1708] sm:$0xff]
    %v3285 = vld [vmem:[#allocation15 + $0x1710] sm:$0xff]
    %v3286 = vld [vmem:[#allocation15 + $0x1718] sm:$0xff]
    %v3287 = vld [vmem:[#allocation15 + $0x1720] sm:$0xff]
    %v3288 = vld [vmem:[#allocation15 + $0x1728] sm:$0xff]
    %v3289 = vld [vmem:[#allocation15 + $0x1730] sm:$0xff]
    %v3290 = vld [vmem:[#allocation15 + $0x1738] sm:$0xff]
    %v3291 = vld [vmem:[#allocation15 + $0x1740] sm:$0xff]
    %v3292 = vld [vmem:[#allocation15 + $0x1748] sm:$0xff]
    %v3293 = vld [vmem:[#allocation15 + $0x1750] sm:$0xff]
    %v3294 = vld [vmem:[#allocation15 + $0x1758] sm:$0xff]
    %v3295 = vld [vmem:[#allocation15 + $0x1760] sm:$0xff]
    %v3296 = vld [vmem:[#allocation15 + $0x1768] sm:$0xff]
    %v3297 = vld [vmem:[#allocation15 + $0x1770] sm:$0xff]
    %v3298 = vld [vmem:[#allocation15 + $0x1778] sm:$0xff]
    %v3299 = vld [vmem:[#allocation15 + $0x1780] sm:$0xff]
    %v3300 = vld [vmem:[#allocation15 + $0x1788] sm:$0xff]
    %v3301 = vld [vmem:[#allocation15 + $0x1790] sm:$0xff]
    %v3302 = vld [vmem:[#allocation15 + $0x1798] sm:$0xff]
    %v3303 = vld [vmem:[#allocation15 + $0x17a0] sm:$0xff]
    %v3304 = vld [vmem:[#allocation15 + $0x17a8] sm:$0xff]
    %v3305 = vld [vmem:[#allocation15 + $0x17b0] sm:$0xff]
    %v3306 = vld [vmem:[#allocation15 + $0x17b8] sm:$0xff]
    %v3307 = vld [vmem:[#allocation15 + $0x17c0] sm:$0xff]
    %v3308 = vld [vmem:[#allocation15 + $0x17c8] sm:$0xff]
    %v3309 = vld [vmem:[#allocation15 + $0x17d0] sm:$0xff]
    %v3310 = vld [vmem:[#allocation15 + $0x17d8] sm:$0xff]
    %v3311 = vld [vmem:[#allocation15 + $0x17e0] sm:$0xff]
    %v3312 = vld [vmem:[#allocation15 + $0x17e8] sm:$0xff]
    %v3313 = vld [vmem:[#allocation15 + $0x17f0] sm:$0xff]
    %v3314 = vld [vmem:[#allocation15 + $0x17f8] sm:$0xff]
    %v3315 = vld [vmem:[#allocation15 + $0x1800] sm:$0xff]
    %v3316 = vld [vmem:[#allocation15 + $0x1808] sm:$0xff]
    %v3317 = vld [vmem:[#allocation15 + $0x1810] sm:$0xff]
    %v3318 = vld [vmem:[#allocation15 + $0x1818] sm:$0xff]
    %v3319 = vld [vmem:[#allocation15 + $0x1820] sm:$0xff]
    %v3320 = vld [vmem:[#allocation15 + $0x1828] sm:$0xff]
    %v3321 = vld [vmem:[#allocation15 + $0x1830] sm:$0xff]
    %v3322 = vld [vmem:[#allocation15 + $0x1838] sm:$0xff]
    %v3323 = vld [vmem:[#allocation15 + $0x1840] sm:$0xff]
    %v3324 = vld [vmem:[#allocation15 + $0x1848] sm:$0xff]
    %v3325 = vld [vmem:[#allocation15 + $0x1850] sm:$0xff]
    %v3326 = vld [vmem:[#allocation15 + $0x1858] sm:$0xff]
    %v3327 = vld [vmem:[#allocation15 + $0x1860] sm:$0xff]
    %v3328 = vld [vmem:[#allocation15 + $0x1868] sm:$0xff]
    %v3329 = vld [vmem:[#allocation15 + $0x1870] sm:$0xff]
    %v3330 = vld [vmem:[#allocation15 + $0x1878] sm:$0xff]
    %v3331 = vld [vmem:[#allocation15 + $0x1880] sm:$0xff]
    %v3332 = vld [vmem:[#allocation15 + $0x1888] sm:$0xff]
    %v3333 = vld [vmem:[#allocation15 + $0x1890] sm:$0xff]
    %v3334 = vld [vmem:[#allocation15 + $0x1898] sm:$0xff]
    %v3335 = vld [vmem:[#allocation15 + $0x18a0] sm:$0xff]
    %v3336 = vld [vmem:[#allocation15 + $0x18a8] sm:$0xff]
    %v3337 = vld [vmem:[#allocation15 + $0x18b0] sm:$0xff]
    %v3338 = vld [vmem:[#allocation15 + $0x18b8] sm:$0xff]
    %v3339 = vld [vmem:[#allocation15 + $0x18c0] sm:$0xff]
    %v3340 = vld [vmem:[#allocation15 + $0x18c8] sm:$0xff]
    %v3341 = vld [vmem:[#allocation15 + $0x18d0] sm:$0xff]
    %v3342 = vld [vmem:[#allocation15 + $0x18d8] sm:$0xff]
    %v3343 = vld [vmem:[#allocation15 + $0x18e0] sm:$0xff]
    %v3344 = vld [vmem:[#allocation15 + $0x18e8] sm:$0xff]
    %v3345 = vld [vmem:[#allocation15 + $0x18f0] sm:$0xff]
    %v3346 = vld [vmem:[#allocation15 + $0x18f8] sm:$0xff]
    %v3347 = vld [vmem:[#allocation15 + $0x1900] sm:$0xff]
    %v3348 = vld [vmem:[#allocation15 + $0x1908] sm:$0xff]
    %v3349 = vld [vmem:[#allocation15 + $0x1910] sm:$0xff]
    %v3350 = vld [vmem:[#allocation15 + $0x1918] sm:$0xff]
    %v3351 = vld [vmem:[#allocation15 + $0x1920] sm:$0xff]
    %v3352 = vld [vmem:[#allocation15 + $0x1928] sm:$0xff]
    %v3353 = vld [vmem:[#allocation15 + $0x1930] sm:$0xff]
    %v3354 = vld [vmem:[#allocation15 + $0x1938] sm:$0xff]
    %v3355 = vld [vmem:[#allocation15 + $0x1940] sm:$0xff]
    %v3356 = vld [vmem:[#allocation15 + $0x1948] sm:$0xff]
    %v3357 = vld [vmem:[#allocation15 + $0x1950] sm:$0xff]
    %v3358 = vld [vmem:[#allocation15 + $0x1958] sm:$0xff]
    %v3359 = vld [vmem:[#allocation15 + $0x1960] sm:$0xff]
    %v3360 = vld [vmem:[#allocation15 + $0x1968] sm:$0xff]
    %v3361 = vld [vmem:[#allocation15 + $0x1970] sm:$0xff]
    %v3362 = vld [vmem:[#allocation15 + $0x1978] sm:$0xff]
    %v3363 = vld [vmem:[#allocation15 + $0x1980] sm:$0xff]
    %v3364 = vld [vmem:[#allocation15 + $0x1988] sm:$0xff]
    %v3365 = vld [vmem:[#allocation15 + $0x1990] sm:$0xff]
    %v3366 = vld [vmem:[#allocation15 + $0x1998] sm:$0xff]
    %v3367 = vld [vmem:[#allocation15 + $0x19a0] sm:$0xff]
    %v3368 = vld [vmem:[#allocation15 + $0x19a8] sm:$0xff]
    %v3369 = vld [vmem:[#allocation15 + $0x19b0] sm:$0xff]
    %v3370 = vld [vmem:[#allocation15 + $0x19b8] sm:$0xff]
    %v3371 = vld [vmem:[#allocation15 + $0x19c0] sm:$0xff]
    %v3372 = vld [vmem:[#allocation15 + $0x19c8] sm:$0xff]
    %v3373 = vld [vmem:[#allocation15 + $0x19d0] sm:$0xff]
    %v3374 = vld [vmem:[#allocation15 + $0x19d8] sm:$0xff]
    %v3375 = vld [vmem:[#allocation15 + $0x19e0] sm:$0xff]
    %v3376 = vld [vmem:[#allocation15 + $0x19e8] sm:$0xff]
    %v3377 = vld [vmem:[#allocation15 + $0x19f0] sm:$0xff]
    %v3378 = vld [vmem:[#allocation15 + $0x19f8] sm:$0xff]
    %v3379 = vld [vmem:[#allocation15 + $0x1a00] sm:$0xff]
    %v3380 = vld [vmem:[#allocation15 + $0x1a08] sm:$0xff]
    %v3381 = vld [vmem:[#allocation15 + $0x1a10] sm:$0xff]
    %v3382 = vld [vmem:[#allocation15 + $0x1a18] sm:$0xff]
    %v3383 = vld [vmem:[#allocation15 + $0x1a20] sm:$0xff]
    %v3384 = vld [vmem:[#allocation15 + $0x1a28] sm:$0xff]
    %v3385 = vld [vmem:[#allocation15 + $0x1a30] sm:$0xff]
    %v3386 = vld [vmem:[#allocation15 + $0x1a38] sm:$0xff]
    %v3387 = vld [vmem:[#allocation15 + $0x1a40] sm:$0xff]
    %v3388 = vld [vmem:[#allocation15 + $0x1a48] sm:$0xff]
    %v3389 = vld [vmem:[#allocation15 + $0x1a50] sm:$0xff]
    %v3390 = vld [vmem:[#allocation15 + $0x1a58] sm:$0xff]
    %v3391 = vld [vmem:[#allocation15 + $0x1a60] sm:$0xff]
    %v3392 = vld [vmem:[#allocation15 + $0x1a68] sm:$0xff]
    %v3393 = vld [vmem:[#allocation15 + $0x1a70] sm:$0xff]
    %v3394 = vld [vmem:[#allocation15 + $0x1a78] sm:$0xff]
    %v3395 = vld [vmem:[#allocation15 + $0x1a80] sm:$0xff]
    %v3396 = vld [vmem:[#allocation15 + $0x1a88] sm:$0xff]
    %v3397 = vld [vmem:[#allocation15 + $0x1a90] sm:$0xff]
    %v3398 = vld [vmem:[#allocation15 + $0x1a98] sm:$0xff]
    %v3399 = vld [vmem:[#allocation15 + $0x1aa0] sm:$0xff]
    %v3400 = vld [vmem:[#allocation15 + $0x1aa8] sm:$0xff]
    %v3401 = vld [vmem:[#allocation15 + $0x1ab0] sm:$0xff]
    %v3402 = vld [vmem:[#allocation15 + $0x1ab8] sm:$0xff]
    %v3403 = vld [vmem:[#allocation15 + $0x1ac0] sm:$0xff]
    %v3404 = vld [vmem:[#allocation15 + $0x1ac8] sm:$0xff]
    %v3405 = vld [vmem:[#allocation15 + $0x1ad0] sm:$0xff]
    %v3406 = vld [vmem:[#allocation15 + $0x1ad8] sm:$0xff]
    %v3407 = vld [vmem:[#allocation15 + $0x1ae0] sm:$0xff]
    %v3408 = vld [vmem:[#allocation15 + $0x1ae8] sm:$0xff]
    %v3409 = vld [vmem:[#allocation15 + $0x1af0] sm:$0xff]
    %v3410 = vld [vmem:[#allocation15 + $0x1af8] sm:$0xff]
    %v3411 = vld [vmem:[#allocation15 + $0x1b00] sm:$0xff]
    %v3412 = vld [vmem:[#allocation15 + $0x1b08] sm:$0xff]
    %v3413 = vld [vmem:[#allocation15 + $0x1b10] sm:$0xff]
    %v3414 = vld [vmem:[#allocation15 + $0x1b18] sm:$0xff]
    %v3415 = vld [vmem:[#allocation15 + $0x1b20] sm:$0xff]
    %v3416 = vld [vmem:[#allocation15 + $0x1b28] sm:$0xff]
    %v3417 = vld [vmem:[#allocation15 + $0x1b30] sm:$0xff]
    %v3418 = vld [vmem:[#allocation15 + $0x1b38] sm:$0xff]
    %v3419 = vld [vmem:[#allocation15 + $0x1b40] sm:$0xff]
    %v3420 = vld [vmem:[#allocation15 + $0x1b48] sm:$0xff]
    %v3421 = vld [vmem:[#allocation15 + $0x1b50] sm:$0xff]
    %v3422 = vld [vmem:[#allocation15 + $0x1b58] sm:$0xff]
    %v3423 = vld [vmem:[#allocation15 + $0x1b60] sm:$0xff]
    %v3424 = vld [vmem:[#allocation15 + $0x1b68] sm:$0xff]
    %v3425 = vld [vmem:[#allocation15 + $0x1b70] sm:$0xff]
    %v3426 = vld [vmem:[#allocation15 + $0x1b78] sm:$0xff]
    %v3427 = vld [vmem:[#allocation15 + $0x1b80] sm:$0xff]
    %v3428 = vld [vmem:[#allocation15 + $0x1b88] sm:$0xff]
    %v3429 = vld [vmem:[#allocation15 + $0x1b90] sm:$0xff]
    %v3430 = vld [vmem:[#allocation15 + $0x1b98] sm:$0xff]
    %v3431 = vld [vmem:[#allocation15 + $0x1ba0] sm:$0xff]
    %v3432 = vld [vmem:[#allocation15 + $0x1ba8] sm:$0xff]
    %v3433 = vld [vmem:[#allocation15 + $0x1bb0] sm:$0xff]
    %v3434 = vld [vmem:[#allocation15 + $0x1bb8] sm:$0xff]
    %v3435 = vld [vmem:[#allocation15 + $0x1bc0] sm:$0xff]
    %v3436 = vld [vmem:[#allocation15 + $0x1bc8] sm:$0xff]
    %v3437 = vld [vmem:[#allocation15 + $0x1bd0] sm:$0xff]
    %v3438 = vld [vmem:[#allocation15 + $0x1bd8] sm:$0xff]
    %v3439 = vld [vmem:[#allocation15 + $0x1be0] sm:$0xff]
    %v3440 = vld [vmem:[#allocation15 + $0x1be8] sm:$0xff]
    %v3441 = vld [vmem:[#allocation15 + $0x1bf0] sm:$0xff]
    %v3442 = vld [vmem:[#allocation15 + $0x1bf8] sm:$0xff]
    %v3443 = vld [vmem:[#allocation15 + $0x1c00] sm:$0xff]
    %v3444 = vld [vmem:[#allocation15 + $0x1c08] sm:$0xff]
    %v3445 = vld [vmem:[#allocation15 + $0x1c10] sm:$0xff]
    %v3446 = vld [vmem:[#allocation15 + $0x1c18] sm:$0xff]
    %v3447 = vld [vmem:[#allocation15 + $0x1c20] sm:$0xff]
    %v3448 = vld [vmem:[#allocation15 + $0x1c28] sm:$0xff]
    %v3449 = vld [vmem:[#allocation15 + $0x1c30] sm:$0xff]
    %v3450 = vld [vmem:[#allocation15 + $0x1c38] sm:$0xff]
    %v3451 = vld [vmem:[#allocation15 + $0x1c40] sm:$0xff]
    %v3452 = vld [vmem:[#allocation15 + $0x1c48] sm:$0xff]
    %v3453 = vld [vmem:[#allocation15 + $0x1c50] sm:$0xff]
    %v3454 = vld [vmem:[#allocation15 + $0x1c58] sm:$0xff]
    %v3455 = vld [vmem:[#allocation15 + $0x1c60] sm:$0xff]
    %v3456 = vld [vmem:[#allocation15 + $0x1c68] sm:$0xff]
    %v3457 = vld [vmem:[#allocation15 + $0x1c70] sm:$0xff]
    %v3458 = vld [vmem:[#allocation15 + $0x1c78] sm:$0xff]
    %v3459 = vld [vmem:[#allocation15 + $0x1c80] sm:$0xff]
    %v3460 = vld [vmem:[#allocation15 + $0x1c88] sm:$0xff]
    %v3461 = vld [vmem:[#allocation15 + $0x1c90] sm:$0xff]
    %v3462 = vld [vmem:[#allocation15 + $0x1c98] sm:$0xff]
    %v3463 = vld [vmem:[#allocation15 + $0x1ca0] sm:$0xff]
    %v3464 = vld [vmem:[#allocation15 + $0x1ca8] sm:$0xff]
    %v3465 = vld [vmem:[#allocation15 + $0x1cb0] sm:$0xff]
    %v3466 = vld [vmem:[#allocation15 + $0x1cb8] sm:$0xff]
    %v3467 = vld [vmem:[#allocation15 + $0x1cc0] sm:$0xff]
    %v3468 = vld [vmem:[#allocation15 + $0x1cc8] sm:$0xff]
    %v3469 = vld [vmem:[#allocation15 + $0x1cd0] sm:$0xff]
    %v3470 = vld [vmem:[#allocation15 + $0x1cd8] sm:$0xff]
    %v3471 = vld [vmem:[#allocation15 + $0x1ce0] sm:$0xff]
    %v3472 = vld [vmem:[#allocation15 + $0x1ce8] sm:$0xff]
    %v3473 = vld [vmem:[#allocation15 + $0x1cf0] sm:$0xff]
    %v3474 = vld [vmem:[#allocation15 + $0x1cf8] sm:$0xff]
    %v3475 = vld [vmem:[#allocation15 + $0x1d00] sm:$0xff]
    %v3476 = vld [vmem:[#allocation15 + $0x1d08] sm:$0xff]
    %v3477 = vld [vmem:[#allocation15 + $0x1d10] sm:$0xff]
    %v3478 = vld [vmem:[#allocation15 + $0x1d18] sm:$0xff]
    %v3479 = vld [vmem:[#allocation15 + $0x1d20] sm:$0xff]
    %v3480 = vld [vmem:[#allocation15 + $0x1d28] sm:$0xff]
    %v3481 = vld [vmem:[#allocation15 + $0x1d30] sm:$0xff]
    %v3482 = vld [vmem:[#allocation15 + $0x1d38] sm:$0xff]
    %v3483 = vld [vmem:[#allocation15 + $0x1d40] sm:$0xff]
    %v3484 = vld [vmem:[#allocation15 + $0x1d48] sm:$0xff]
    %v3485 = vld [vmem:[#allocation15 + $0x1d50] sm:$0xff]
    %v3486 = vld [vmem:[#allocation15 + $0x1d58] sm:$0xff]
    %v3487 = vld [vmem:[#allocation15 + $0x1d60] sm:$0xff]
    %v3488 = vld [vmem:[#allocation15 + $0x1d68] sm:$0xff]
    %v3489 = vld [vmem:[#allocation15 + $0x1d70] sm:$0xff]
    %v3490 = vld [vmem:[#allocation15 + $0x1d78] sm:$0xff]
    %v3491 = vld [vmem:[#allocation15 + $0x1d80] sm:$0xff]
    %v3492 = vld [vmem:[#allocation15 + $0x1d88] sm:$0xff]
    %v3493 = vld [vmem:[#allocation15 + $0x1d90] sm:$0xff]
    %v3494 = vld [vmem:[#allocation15 + $0x1d98] sm:$0xff]
    %v3495 = vld [vmem:[#allocation15 + $0x1da0] sm:$0xff]
    %v3496 = vld [vmem:[#allocation15 + $0x1da8] sm:$0xff]
    %v3497 = vld [vmem:[#allocation15 + $0x1db0] sm:$0xff]
    %v3498 = vld [vmem:[#allocation15 + $0x1db8] sm:$0xff]
    %v3499 = vld [vmem:[#allocation15 + $0x1dc0] sm:$0xff]
    %v3500 = vld [vmem:[#allocation15 + $0x1dc8] sm:$0xff]
    %v3501 = vld [vmem:[#allocation15 + $0x1dd0] sm:$0xff]
    %v3502 = vld [vmem:[#allocation15 + $0x1dd8] sm:$0xff]
    %v3503 = vld [vmem:[#allocation15 + $0x1de0] sm:$0xff]
    %v3504 = vld [vmem:[#allocation15 + $0x1de8] sm:$0xff]
    %v3505 = vld [vmem:[#allocation15 + $0x1df0] sm:$0xff]
    %v3506 = vld [vmem:[#allocation15 + $0x1df8] sm:$0xff]
    %v3507 = vld [vmem:[#allocation15 + $0x1e00] sm:$0xff]
    %v3508 = vld [vmem:[#allocation15 + $0x1e08] sm:$0xff]
    %v3509 = vld [vmem:[#allocation15 + $0x1e10] sm:$0xff]
    %v3510 = vld [vmem:[#allocation15 + $0x1e18] sm:$0xff]
    %v3511 = vld [vmem:[#allocation15 + $0x1e20] sm:$0xff]
    %v3512 = vld [vmem:[#allocation15 + $0x1e28] sm:$0xff]
    %v3513 = vld [vmem:[#allocation15 + $0x1e30] sm:$0xff]
    %v3514 = vld [vmem:[#allocation15 + $0x1e38] sm:$0xff]
    %v3515 = vld [vmem:[#allocation15 + $0x1e40] sm:$0xff]
    %v3516 = vld [vmem:[#allocation15 + $0x1e48] sm:$0xff]
    %v3517 = vld [vmem:[#allocation15 + $0x1e50] sm:$0xff]
    %v3518 = vld [vmem:[#allocation15 + $0x1e58] sm:$0xff]
    %v3519 = vld [vmem:[#allocation15 + $0x1e60] sm:$0xff]
    %v3520 = vld [vmem:[#allocation15 + $0x1e68] sm:$0xff]
    %v3521 = vld [vmem:[#allocation15 + $0x1e70] sm:$0xff]
    %v3522 = vld [vmem:[#allocation15 + $0x1e78] sm:$0xff]
    %v3523 = vld [vmem:[#allocation15 + $0x1e80] sm:$0xff]
    %v3524 = vld [vmem:[#allocation15 + $0x1e88] sm:$0xff]
    %v3525 = vld [vmem:[#allocation15 + $0x1e90] sm:$0xff]
    %v3526 = vld [vmem:[#allocation15 + $0x1e98] sm:$0xff]
    %v3527 = vld [vmem:[#allocation15 + $0x1ea0] sm:$0xff]
    %v3528 = vld [vmem:[#allocation15 + $0x1ea8] sm:$0xff]
    %v3529 = vld [vmem:[#allocation15 + $0x1eb0] sm:$0xff]
    %v3530 = vld [vmem:[#allocation15 + $0x1eb8] sm:$0xff]
    %v3531 = vld [vmem:[#allocation15 + $0x1ec0] sm:$0xff]
    %v3532 = vld [vmem:[#allocation15 + $0x1ec8] sm:$0xff]
    %v3533 = vld [vmem:[#allocation15 + $0x1ed0] sm:$0xff]
    %v3534 = vld [vmem:[#allocation15 + $0x1ed8] sm:$0xff]
    %v3535 = vld [vmem:[#allocation15 + $0x1ee0] sm:$0xff]
    %v3536 = vld [vmem:[#allocation15 + $0x1ee8] sm:$0xff]
    %v3537 = vld [vmem:[#allocation15 + $0x1ef0] sm:$0xff]
    %v3538 = vld [vmem:[#allocation15 + $0x1ef8] sm:$0xff]
    %v3539 = vld [vmem:[#allocation15 + $0x1f00] sm:$0xff]
    %v3540 = vld [vmem:[#allocation15 + $0x1f08] sm:$0xff]
    %v3541 = vld [vmem:[#allocation15 + $0x1f10] sm:$0xff]
    %v3542 = vld [vmem:[#allocation15 + $0x1f18] sm:$0xff]
    %v3543 = vld [vmem:[#allocation15 + $0x1f20] sm:$0xff]
    %v3544 = vld [vmem:[#allocation15 + $0x1f28] sm:$0xff]
    %v3545 = vld [vmem:[#allocation15 + $0x1f30] sm:$0xff]
    %v3546 = vld [vmem:[#allocation15 + $0x1f38] sm:$0xff]
    %v3547 = vld [vmem:[#allocation15 + $0x1f40] sm:$0xff]
    %v3548 = vld [vmem:[#allocation15 + $0x1f48] sm:$0xff]
    %v3549 = vld [vmem:[#allocation15 + $0x1f50] sm:$0xff]
    %v3550 = vld [vmem:[#allocation15 + $0x1f58] sm:$0xff]
    %v3551 = vld [vmem:[#allocation15 + $0x1f60] sm:$0xff]
    %v3552 = vld [vmem:[#allocation15 + $0x1f68] sm:$0xff]
    %v3553 = vld [vmem:[#allocation15 + $0x1f70] sm:$0xff]
    %v3554 = vld [vmem:[#allocation15 + $0x1f78] sm:$0xff]
    %v3555 = vld [vmem:[#allocation15 + $0x1f80] sm:$0xff]
    %v3556 = vld [vmem:[#allocation15 + $0x1f88] sm:$0xff]
    %v3557 = vld [vmem:[#allocation15 + $0x1f90] sm:$0xff]
    %v3558 = vld [vmem:[#allocation15 + $0x1f98] sm:$0xff]
    %v3559 = vld [vmem:[#allocation15 + $0x1fa0] sm:$0xff]
    %v3560 = vld [vmem:[#allocation15 + $0x1fa8] sm:$0xff]
    %v3561 = vld [vmem:[#allocation15 + $0x1fb0] sm:$0xff]
    %v3562 = vld [vmem:[#allocation15 + $0x1fb8] sm:$0xff]
    %v3563 = vld [vmem:[#allocation15 + $0x1fc0] sm:$0xff]
    %v3564 = vld [vmem:[#allocation15 + $0x1fc8] sm:$0xff]
    %v3565 = vld [vmem:[#allocation15 + $0x1fd0] sm:$0xff]
    %v3566 = vld [vmem:[#allocation15 + $0x1fd8] sm:$0xff]
    %v3567 = vld [vmem:[#allocation15 + $0x1fe0] sm:$0xff]
    %v3568 = vld [vmem:[#allocation15 + $0x1fe8] sm:$0xff]
    %v3569 = vld [vmem:[#allocation15 + $0x1ff0] sm:$0xff]
    %v3570 = vld [vmem:[#allocation15 + $0x1ff8] sm:$0xff]
    %v3571 = vld [vmem:[#allocation16] sm:$0xff]
    %v3572 = vld [vmem:[#allocation16 + $0x8] sm:$0xff]
    %v3575 = vlaneseq
    %v3576 = vshrl.u32 %v3575, 7
    %v3577 = vsub.s32 0, %v3576
    %v3578 = vrot.slane %v3571, %v3577
    %v3579 = vlaneseq
    %v3580 = vshrl.u32 %v3579, 7
    %v3581 = vsub.s32 1, %v3580
    %v3582 = vrot.slane %v3571, %v3581
    %v3583 = vlaneseq
    %v3584 = vshrl.u32 %v3583, 7
    %v3585 = vsub.s32 2, %v3584
    %v3586 = vrot.slane %v3571, %v3585
    %v3587 = vlaneseq
    %v3588 = vshrl.u32 %v3587, 7
    %v3589 = vsub.s32 3, %v3588
    %v3590 = vrot.slane %v3571, %v3589
    %v3591 = vlaneseq
    %v3592 = vshrl.u32 %v3591, 7
    %v3593 = vsub.s32 4, %v3592
    %v3594 = vrot.slane %v3571, %v3593
    %v3595 = vlaneseq
    %v3596 = vshrl.u32 %v3595, 7
    %v3597 = vsub.s32 5, %v3596
    %v3598 = vrot.slane %v3571, %v3597
    %v3599 = vlaneseq
    %v3600 = vshrl.u32 %v3599, 7
    %v3601 = vsub.s32 6, %v3600
    %v3602 = vrot.slane %v3571, %v3601
    %v3603 = vlaneseq
    %v3604 = vshrl.u32 %v3603, 7
    %v3605 = vsub.s32 7, %v3604
    %v3606 = vrot.slane %v3571, %v3605
    %v3607 = vlaneseq
    %v3608 = vshrl.u32 %v3607, 7
    %v3609 = vsub.s32 0, %v3608
    %v3610 = vrot.slane %v3572, %v3609
    %v3611 = vlaneseq
    %v3612 = vshrl.u32 %v3611, 7
    %v3613 = vsub.s32 1, %v3612
    %v3614 = vrot.slane %v3572, %v3613
    %v3615 = vlaneseq
    %v3616 = vshrl.u32 %v3615, 7
    %v3617 = vsub.s32 2, %v3616
    %v3618 = vrot.slane %v3572, %v3617
    %v3619 = vlaneseq
    %v3620 = vshrl.u32 %v3619, 7
    %v3621 = vsub.s32 3, %v3620
    %v3622 = vrot.slane %v3572, %v3621
    %v3623 = vlaneseq
    %v3624 = vshrl.u32 %v3623, 7
    %v3625 = vsub.s32 4, %v3624
    %v3626 = vrot.slane %v3572, %v3625
    %v3627 = vlaneseq
    %v3628 = vshrl.u32 %v3627, 7
    %v3629 = vsub.s32 5, %v3628
    %v3630 = vrot.slane %v3572, %v3629
    %v3631 = vlaneseq
    %v3632 = vshrl.u32 %v3631, 7
    %v3633 = vsub.s32 6, %v3632
    %v3634 = vrot.slane %v3572, %v3633
    %v3635 = vlaneseq
    %v3636 = vshrl.u32 %v3635, 7
    %v3637 = vsub.s32 7, %v3636
    %v3638 = vrot.slane %v3572, %v3637
    %v4679 = vunpack.c.l.b16 %v2547
    %v4680 = vunpack.c.h.b16 %v2547
    %v4681 = vunpack.c.l.b16 %v2548
    %v4682 = vunpack.c.h.b16 %v2548
    %v4683 = vunpack.c.l.b16 %v2549
    %v4684 = vunpack.c.h.b16 %v2549
    %v4685 = vunpack.c.l.b16 %v2550
    %v4686 = vunpack.c.h.b16 %v2550
    %v4687 = vunpack.c.l.b16 %v2551
    %v4688 = vunpack.c.h.b16 %v2551
    %v4689 = vunpack.c.l.b16 %v2552
    %v4690 = vunpack.c.h.b16 %v2552
    %v4691 = vunpack.c.l.b16 %v2553
    %v4692 = vunpack.c.h.b16 %v2553
    %v4693 = vunpack.c.l.b16 %v2554
    %v4694 = vunpack.c.h.b16 %v2554
    %v4695 = vunpack.c.l.b16 %v2555
    %v4696 = vunpack.c.h.b16 %v2555
    %v4697 = vunpack.c.l.b16 %v2556
    %v4698 = vunpack.c.h.b16 %v2556
    %v4699 = vunpack.c.l.b16 %v2557
    %v4700 = vunpack.c.h.b16 %v2557
    %v4701 = vunpack.c.l.b16 %v2558
    %v4702 = vunpack.c.h.b16 %v2558
    %v4703 = vunpack.c.l.b16 %v2559
    %v4704 = vunpack.c.h.b16 %v2559
    %v4705 = vunpack.c.l.b16 %v2560
    %v4706 = vunpack.c.h.b16 %v2560
    %v4707 = vunpack.c.l.b16 %v2561
    %v4708 = vunpack.c.h.b16 %v2561
    %v4709 = vunpack.c.l.b16 %v2562
    %v4710 = vunpack.c.h.b16 %v2562
    %v4711 = vunpack.c.l.b16 %v2563
    %v4712 = vunpack.c.h.b16 %v2563
    %v4713 = vunpack.c.l.b16 %v2564
    %v4714 = vunpack.c.h.b16 %v2564
    %v4715 = vunpack.c.l.b16 %v2565
    %v4716 = vunpack.c.h.b16 %v2565
    %v4717 = vunpack.c.l.b16 %v2566
    %v4718 = vunpack.c.h.b16 %v2566
    %v4719 = vunpack.c.l.b16 %v2567
    %v4720 = vunpack.c.h.b16 %v2567
    %v4721 = vunpack.c.l.b16 %v2568
    %v4722 = vunpack.c.h.b16 %v2568
    %v4723 = vunpack.c.l.b16 %v2569
    %v4724 = vunpack.c.h.b16 %v2569
    %v4725 = vunpack.c.l.b16 %v2570
    %v4726 = vunpack.c.h.b16 %v2570
    %v4727 = vunpack.c.l.b16 %v2571
    %v4728 = vunpack.c.h.b16 %v2571
    %v4729 = vunpack.c.l.b16 %v2572
    %v4730 = vunpack.c.h.b16 %v2572
    %v4731 = vunpack.c.l.b16 %v2573
    %v4732 = vunpack.c.h.b16 %v2573
    %v4733 = vunpack.c.l.b16 %v2574
    %v4734 = vunpack.c.h.b16 %v2574
    %v4735 = vunpack.c.l.b16 %v2575
    %v4736 = vunpack.c.h.b16 %v2575
    %v4737 = vunpack.c.l.b16 %v2576
    %v4738 = vunpack.c.h.b16 %v2576
    %v4739 = vunpack.c.l.b16 %v2577
    %v4740 = vunpack.c.h.b16 %v2577
    %v4741 = vunpack.c.l.b16 %v2578
    %v4742 = vunpack.c.h.b16 %v2578
    %v4743 = vunpack.c.l.b16 %v2579
    %v4744 = vunpack.c.h.b16 %v2579
    %v4745 = vunpack.c.l.b16 %v2580
    %v4746 = vunpack.c.h.b16 %v2580
    %v4747 = vunpack.c.l.b16 %v2581
    %v4748 = vunpack.c.h.b16 %v2581
    %v4749 = vunpack.c.l.b16 %v2582
    %v4750 = vunpack.c.h.b16 %v2582
    %v4751 = vunpack.c.l.b16 %v2583
    %v4752 = vunpack.c.h.b16 %v2583
    %v4753 = vunpack.c.l.b16 %v2584
    %v4754 = vunpack.c.h.b16 %v2584
    %v4755 = vunpack.c.l.b16 %v2585
    %v4756 = vunpack.c.h.b16 %v2585
    %v4757 = vunpack.c.l.b16 %v2586
    %v4758 = vunpack.c.h.b16 %v2586
    %v4759 = vunpack.c.l.b16 %v2587
    %v4760 = vunpack.c.h.b16 %v2587
    %v4761 = vunpack.c.l.b16 %v2588
    %v4762 = vunpack.c.h.b16 %v2588
    %v4763 = vunpack.c.l.b16 %v2589
    %v4764 = vunpack.c.h.b16 %v2589
    %v4765 = vunpack.c.l.b16 %v2590
    %v4766 = vunpack.c.h.b16 %v2590
    %v4767 = vunpack.c.l.b16 %v2591
    %v4768 = vunpack.c.h.b16 %v2591
    %v4769 = vunpack.c.l.b16 %v2592
    %v4770 = vunpack.c.h.b16 %v2592
    %v4771 = vunpack.c.l.b16 %v2593
    %v4772 = vunpack.c.h.b16 %v2593
    %v4773 = vunpack.c.l.b16 %v2594
    %v4774 = vunpack.c.h.b16 %v2594
    %v4775 = vunpack.c.l.b16 %v2595
    %v4776 = vunpack.c.h.b16 %v2595
    %v4777 = vunpack.c.l.b16 %v2596
    %v4778 = vunpack.c.h.b16 %v2596
    %v4779 = vunpack.c.l.b16 %v2597
    %v4780 = vunpack.c.h.b16 %v2597
    %v4781 = vunpack.c.l.b16 %v2598
    %v4782 = vunpack.c.h.b16 %v2598
    %v4783 = vunpack.c.l.b16 %v2599
    %v4784 = vunpack.c.h.b16 %v2599
    %v4785 = vunpack.c.l.b16 %v2600
    %v4786 = vunpack.c.h.b16 %v2600
    %v4787 = vunpack.c.l.b16 %v2601
    %v4788 = vunpack.c.h.b16 %v2601
    %v4789 = vunpack.c.l.b16 %v2602
    %v4790 = vunpack.c.h.b16 %v2602
    %v4791 = vunpack.c.l.b16 %v2603
    %v4792 = vunpack.c.h.b16 %v2603
    %v4793 = vunpack.c.l.b16 %v2604
    %v4794 = vunpack.c.h.b16 %v2604
    %v4795 = vunpack.c.l.b16 %v2605
    %v4796 = vunpack.c.h.b16 %v2605
    %v4797 = vunpack.c.l.b16 %v2606
    %v4798 = vunpack.c.h.b16 %v2606
    %v4799 = vunpack.c.l.b16 %v2607
    %v4800 = vunpack.c.h.b16 %v2607
    %v4801 = vunpack.c.l.b16 %v2608
    %v4802 = vunpack.c.h.b16 %v2608
    %v4803 = vunpack.c.l.b16 %v2609
    %v4804 = vunpack.c.h.b16 %v2609
    %v4805 = vunpack.c.l.b16 %v2610
    %v4806 = vunpack.c.h.b16 %v2610
    %v4807 = vunpack.c.l.b16 %v2611
    %v4808 = vunpack.c.h.b16 %v2611
    %v4809 = vunpack.c.l.b16 %v2612
    %v4810 = vunpack.c.h.b16 %v2612
    %v4811 = vunpack.c.l.b16 %v2613
    %v4812 = vunpack.c.h.b16 %v2613
    %v4813 = vunpack.c.l.b16 %v2614
    %v4814 = vunpack.c.h.b16 %v2614
    %v4815 = vunpack.c.l.b16 %v2615
    %v4816 = vunpack.c.h.b16 %v2615
    %v4817 = vunpack.c.l.b16 %v2616
    %v4818 = vunpack.c.h.b16 %v2616
    %v4819 = vunpack.c.l.b16 %v2617
    %v4820 = vunpack.c.h.b16 %v2617
    %v4821 = vunpack.c.l.b16 %v2618
    %v4822 = vunpack.c.h.b16 %v2618
    %v4823 = vunpack.c.l.b16 %v2619
    %v4824 = vunpack.c.h.b16 %v2619
    %v4825 = vunpack.c.l.b16 %v2620
    %v4826 = vunpack.c.h.b16 %v2620
    %v4827 = vunpack.c.l.b16 %v2621
    %v4828 = vunpack.c.h.b16 %v2621
    %v4829 = vunpack.c.l.b16 %v2622
    %v4830 = vunpack.c.h.b16 %v2622
    %v4831 = vunpack.c.l.b16 %v2623
    %v4832 = vunpack.c.h.b16 %v2623
    %v4833 = vunpack.c.l.b16 %v2624
    %v4834 = vunpack.c.h.b16 %v2624
    %v4835 = vunpack.c.l.b16 %v2625
    %v4836 = vunpack.c.h.b16 %v2625
    %v4837 = vunpack.c.l.b16 %v2626
    %v4838 = vunpack.c.h.b16 %v2626
    %v4839 = vunpack.c.l.b16 %v2627
    %v4840 = vunpack.c.h.b16 %v2627
    %v4841 = vunpack.c.l.b16 %v2628
    %v4842 = vunpack.c.h.b16 %v2628
    %v4843 = vunpack.c.l.b16 %v2629
    %v4844 = vunpack.c.h.b16 %v2629
    %v4845 = vunpack.c.l.b16 %v2630
    %v4846 = vunpack.c.h.b16 %v2630
    %v4847 = vunpack.c.l.b16 %v2631
    %v4848 = vunpack.c.h.b16 %v2631
    %v4849 = vunpack.c.l.b16 %v2632
    %v4850 = vunpack.c.h.b16 %v2632
    %v4851 = vunpack.c.l.b16 %v2633
    %v4852 = vunpack.c.h.b16 %v2633
    %v4853 = vunpack.c.l.b16 %v2634
    %v4854 = vunpack.c.h.b16 %v2634
    %v4855 = vunpack.c.l.b16 %v2635
    %v4856 = vunpack.c.h.b16 %v2635
    %v4857 = vunpack.c.l.b16 %v2636
    %v4858 = vunpack.c.h.b16 %v2636
    %v4859 = vunpack.c.l.b16 %v2637
    %v4860 = vunpack.c.h.b16 %v2637
    %v4861 = vunpack.c.l.b16 %v2638
    %v4862 = vunpack.c.h.b16 %v2638
    %v4863 = vunpack.c.l.b16 %v2639
    %v4864 = vunpack.c.h.b16 %v2639
    %v4865 = vunpack.c.l.b16 %v2640
    %v4866 = vunpack.c.h.b16 %v2640
    %v4867 = vunpack.c.l.b16 %v2641
    %v4868 = vunpack.c.h.b16 %v2641
    %v4869 = vunpack.c.l.b16 %v2642
    %v4870 = vunpack.c.h.b16 %v2642
    %v4871 = vunpack.c.l.b16 %v2643
    %v4872 = vunpack.c.h.b16 %v2643
    %v4873 = vunpack.c.l.b16 %v2644
    %v4874 = vunpack.c.h.b16 %v2644
    %v4875 = vunpack.c.l.b16 %v2645
    %v4876 = vunpack.c.h.b16 %v2645
    %v4877 = vunpack.c.l.b16 %v2646
    %v4878 = vunpack.c.h.b16 %v2646
    %v4879 = vunpack.c.l.b16 %v2647
    %v4880 = vunpack.c.h.b16 %v2647
    %v4881 = vunpack.c.l.b16 %v2648
    %v4882 = vunpack.c.h.b16 %v2648
    %v4883 = vunpack.c.l.b16 %v2649
    %v4884 = vunpack.c.h.b16 %v2649
    %v4885 = vunpack.c.l.b16 %v2650
    %v4886 = vunpack.c.h.b16 %v2650
    %v4887 = vunpack.c.l.b16 %v2651
    %v4888 = vunpack.c.h.b16 %v2651
    %v4889 = vunpack.c.l.b16 %v2652
    %v4890 = vunpack.c.h.b16 %v2652
    %v4891 = vunpack.c.l.b16 %v2653
    %v4892 = vunpack.c.h.b16 %v2653
    %v4893 = vunpack.c.l.b16 %v2654
    %v4894 = vunpack.c.h.b16 %v2654
    %v4895 = vunpack.c.l.b16 %v2655
    %v4896 = vunpack.c.h.b16 %v2655
    %v4897 = vunpack.c.l.b16 %v2656
    %v4898 = vunpack.c.h.b16 %v2656
    %v4899 = vunpack.c.l.b16 %v2657
    %v4900 = vunpack.c.h.b16 %v2657
    %v4901 = vunpack.c.l.b16 %v2658
    %v4902 = vunpack.c.h.b16 %v2658
    %v4903 = vunpack.c.l.b16 %v2659
    %v4904 = vunpack.c.h.b16 %v2659
    %v4905 = vunpack.c.l.b16 %v2660
    %v4906 = vunpack.c.h.b16 %v2660
    %v4907 = vunpack.c.l.b16 %v2661
    %v4908 = vunpack.c.h.b16 %v2661
    %v4909 = vunpack.c.l.b16 %v2662
    %v4910 = vunpack.c.h.b16 %v2662
    %v4911 = vunpack.c.l.b16 %v2663
    %v4912 = vunpack.c.h.b16 %v2663
    %v4913 = vunpack.c.l.b16 %v2664
    %v4914 = vunpack.c.h.b16 %v2664
    %v4915 = vunpack.c.l.b16 %v2665
    %v4916 = vunpack.c.h.b16 %v2665
    %v4917 = vunpack.c.l.b16 %v2666
    %v4918 = vunpack.c.h.b16 %v2666
    %v4919 = vunpack.c.l.b16 %v2667
    %v4920 = vunpack.c.h.b16 %v2667
    %v4921 = vunpack.c.l.b16 %v2668
    %v4922 = vunpack.c.h.b16 %v2668
    %v4923 = vunpack.c.l.b16 %v2669
    %v4924 = vunpack.c.h.b16 %v2669
    %v4925 = vunpack.c.l.b16 %v2670
    %v4926 = vunpack.c.h.b16 %v2670
    %v4927 = vunpack.c.l.b16 %v2671
    %v4928 = vunpack.c.h.b16 %v2671
    %v4929 = vunpack.c.l.b16 %v2672
    %v4930 = vunpack.c.h.b16 %v2672
    %v4931 = vunpack.c.l.b16 %v2673
    %v4932 = vunpack.c.h.b16 %v2673
    %v4933 = vunpack.c.l.b16 %v2674
    %v4934 = vunpack.c.h.b16 %v2674
    %v4935 = vunpack.c.l.b16 %v2675
    %v4936 = vunpack.c.h.b16 %v2675
    %v4937 = vunpack.c.l.b16 %v2676
    %v4938 = vunpack.c.h.b16 %v2676
    %v4939 = vunpack.c.l.b16 %v2677
    %v4940 = vunpack.c.h.b16 %v2677
    %v4941 = vunpack.c.l.b16 %v2678
    %v4942 = vunpack.c.h.b16 %v2678
    %v4943 = vunpack.c.l.b16 %v2679
    %v4944 = vunpack.c.h.b16 %v2679
    %v4945 = vunpack.c.l.b16 %v2680
    %v4946 = vunpack.c.h.b16 %v2680
    %v4947 = vunpack.c.l.b16 %v2681
    %v4948 = vunpack.c.h.b16 %v2681
    %v4949 = vunpack.c.l.b16 %v2682
    %v4950 = vunpack.c.h.b16 %v2682
    %v4951 = vunpack.c.l.b16 %v2683
    %v4952 = vunpack.c.h.b16 %v2683
    %v4953 = vunpack.c.l.b16 %v2684
    %v4954 = vunpack.c.h.b16 %v2684
    %v4955 = vunpack.c.l.b16 %v2685
    %v4956 = vunpack.c.h.b16 %v2685
    %v4957 = vunpack.c.l.b16 %v2686
    %v4958 = vunpack.c.h.b16 %v2686
    %v4959 = vunpack.c.l.b16 %v2687
    %v4960 = vunpack.c.h.b16 %v2687
    %v4961 = vunpack.c.l.b16 %v2688
    %v4962 = vunpack.c.h.b16 %v2688
    %v4963 = vunpack.c.l.b16 %v2689
    %v4964 = vunpack.c.h.b16 %v2689
    %v4965 = vunpack.c.l.b16 %v2690
    %v4966 = vunpack.c.h.b16 %v2690
    %v4967 = vunpack.c.l.b16 %v2691
    %v4968 = vunpack.c.h.b16 %v2691
    %v4969 = vunpack.c.l.b16 %v2692
    %v4970 = vunpack.c.h.b16 %v2692
    %v4971 = vunpack.c.l.b16 %v2693
    %v4972 = vunpack.c.h.b16 %v2693
    %v4973 = vunpack.c.l.b16 %v2694
    %v4974 = vunpack.c.h.b16 %v2694
    %v4975 = vunpack.c.l.b16 %v2695
    %v4976 = vunpack.c.h.b16 %v2695
    %v4977 = vunpack.c.l.b16 %v2696
    %v4978 = vunpack.c.h.b16 %v2696
    %v4979 = vunpack.c.l.b16 %v2697
    %v4980 = vunpack.c.h.b16 %v2697
    %v4981 = vunpack.c.l.b16 %v2698
    %v4982 = vunpack.c.h.b16 %v2698
    %v4983 = vunpack.c.l.b16 %v2699
    %v4984 = vunpack.c.h.b16 %v2699
    %v4985 = vunpack.c.l.b16 %v2700
    %v4986 = vunpack.c.h.b16 %v2700
    %v4987 = vunpack.c.l.b16 %v2701
    %v4988 = vunpack.c.h.b16 %v2701
    %v4989 = vunpack.c.l.b16 %v2702
    %v4990 = vunpack.c.h.b16 %v2702
    %v4991 = vunpack.c.l.b16 %v2703
    %v4992 = vunpack.c.h.b16 %v2703
    %v4993 = vunpack.c.l.b16 %v2704
    %v4994 = vunpack.c.h.b16 %v2704
    %v4995 = vunpack.c.l.b16 %v2705
    %v4996 = vunpack.c.h.b16 %v2705
    %v4997 = vunpack.c.l.b16 %v2706
    %v4998 = vunpack.c.h.b16 %v2706
    %v4999 = vunpack.c.l.b16 %v2707
    %v5000 = vunpack.c.h.b16 %v2707
    %v5001 = vunpack.c.l.b16 %v2708
    %v5002 = vunpack.c.h.b16 %v2708
    %v5003 = vunpack.c.l.b16 %v2709
    %v5004 = vunpack.c.h.b16 %v2709
    %v5005 = vunpack.c.l.b16 %v2710
    %v5006 = vunpack.c.h.b16 %v2710
    %v5007 = vunpack.c.l.b16 %v2711
    %v5008 = vunpack.c.h.b16 %v2711
    %v5009 = vunpack.c.l.b16 %v2712
    %v5010 = vunpack.c.h.b16 %v2712
    %v5011 = vunpack.c.l.b16 %v2713
    %v5012 = vunpack.c.h.b16 %v2713
    %v5013 = vunpack.c.l.b16 %v2714
    %v5014 = vunpack.c.h.b16 %v2714
    %v5015 = vunpack.c.l.b16 %v2715
    %v5016 = vunpack.c.h.b16 %v2715
    %v5017 = vunpack.c.l.b16 %v2716
    %v5018 = vunpack.c.h.b16 %v2716
    %v5019 = vunpack.c.l.b16 %v2717
    %v5020 = vunpack.c.h.b16 %v2717
    %v5021 = vunpack.c.l.b16 %v2718
    %v5022 = vunpack.c.h.b16 %v2718
    %v5023 = vunpack.c.l.b16 %v2719
    %v5024 = vunpack.c.h.b16 %v2719
    %v5025 = vunpack.c.l.b16 %v2720
    %v5026 = vunpack.c.h.b16 %v2720
    %v5027 = vunpack.c.l.b16 %v2721
    %v5028 = vunpack.c.h.b16 %v2721
    %v5029 = vunpack.c.l.b16 %v2722
    %v5030 = vunpack.c.h.b16 %v2722
    %v5031 = vunpack.c.l.b16 %v2723
    %v5032 = vunpack.c.h.b16 %v2723
    %v5033 = vunpack.c.l.b16 %v2724
    %v5034 = vunpack.c.h.b16 %v2724
    %v5035 = vunpack.c.l.b16 %v2725
    %v5036 = vunpack.c.h.b16 %v2725
    %v5037 = vunpack.c.l.b16 %v2726
    %v5038 = vunpack.c.h.b16 %v2726
    %v5039 = vunpack.c.l.b16 %v2727
    %v5040 = vunpack.c.h.b16 %v2727
    %v5041 = vunpack.c.l.b16 %v2728
    %v5042 = vunpack.c.h.b16 %v2728
    %v5043 = vunpack.c.l.b16 %v2729
    %v5044 = vunpack.c.h.b16 %v2729
    %v5045 = vunpack.c.l.b16 %v2730
    %v5046 = vunpack.c.h.b16 %v2730
    %v5047 = vunpack.c.l.b16 %v2731
    %v5048 = vunpack.c.h.b16 %v2731
    %v5049 = vunpack.c.l.b16 %v2732
    %v5050 = vunpack.c.h.b16 %v2732
    %v5051 = vunpack.c.l.b16 %v2733
    %v5052 = vunpack.c.h.b16 %v2733
    %v5053 = vunpack.c.l.b16 %v2734
    %v5054 = vunpack.c.h.b16 %v2734
    %v5055 = vunpack.c.l.b16 %v2735
    %v5056 = vunpack.c.h.b16 %v2735
    %v5057 = vunpack.c.l.b16 %v2736
    %v5058 = vunpack.c.h.b16 %v2736
    %v5059 = vunpack.c.l.b16 %v2737
    %v5060 = vunpack.c.h.b16 %v2737
    %v5061 = vunpack.c.l.b16 %v2738
    %v5062 = vunpack.c.h.b16 %v2738
    %v5063 = vunpack.c.l.b16 %v2739
    %v5064 = vunpack.c.h.b16 %v2739
    %v5065 = vunpack.c.l.b16 %v2740
    %v5066 = vunpack.c.h.b16 %v2740
    %v5067 = vunpack.c.l.b16 %v2741
    %v5068 = vunpack.c.h.b16 %v2741
    %v5069 = vunpack.c.l.b16 %v2742
    %v5070 = vunpack.c.h.b16 %v2742
    %v5071 = vunpack.c.l.b16 %v2743
    %v5072 = vunpack.c.h.b16 %v2743
    %v5073 = vunpack.c.l.b16 %v2744
    %v5074 = vunpack.c.h.b16 %v2744
    %v5075 = vunpack.c.l.b16 %v2745
    %v5076 = vunpack.c.h.b16 %v2745
    %v5077 = vunpack.c.l.b16 %v2746
    %v5078 = vunpack.c.h.b16 %v2746
    %v5079 = vunpack.c.l.b16 %v2747
    %v5080 = vunpack.c.h.b16 %v2747
    %v5081 = vunpack.c.l.b16 %v2748
    %v5082 = vunpack.c.h.b16 %v2748
    %v5083 = vunpack.c.l.b16 %v2749
    %v5084 = vunpack.c.h.b16 %v2749
    %v5085 = vunpack.c.l.b16 %v2750
    %v5086 = vunpack.c.h.b16 %v2750
    %v5087 = vunpack.c.l.b16 %v2751
    %v5088 = vunpack.c.h.b16 %v2751
    %v5089 = vunpack.c.l.b16 %v2752
    %v5090 = vunpack.c.h.b16 %v2752
    %v5091 = vunpack.c.l.b16 %v2753
    %v5092 = vunpack.c.h.b16 %v2753
    %v5093 = vunpack.c.l.b16 %v2754
    %v5094 = vunpack.c.h.b16 %v2754
    %v5095 = vunpack.c.l.b16 %v2755
    %v5096 = vunpack.c.h.b16 %v2755
    %v5097 = vunpack.c.l.b16 %v2756
    %v5098 = vunpack.c.h.b16 %v2756
    %v5099 = vunpack.c.l.b16 %v2757
    %v5100 = vunpack.c.h.b16 %v2757
    %v5101 = vunpack.c.l.b16 %v2758
    %v5102 = vunpack.c.h.b16 %v2758
    %v5103 = vunpack.c.l.b16 %v2759
    %v5104 = vunpack.c.h.b16 %v2759
    %v5105 = vunpack.c.l.b16 %v2760
    %v5106 = vunpack.c.h.b16 %v2760
    %v5107 = vunpack.c.l.b16 %v2761
    %v5108 = vunpack.c.h.b16 %v2761
    %v5109 = vunpack.c.l.b16 %v2762
    %v5110 = vunpack.c.h.b16 %v2762
    %v5111 = vunpack.c.l.b16 %v2763
    %v5112 = vunpack.c.h.b16 %v2763
    %v5113 = vunpack.c.l.b16 %v2764
    %v5114 = vunpack.c.h.b16 %v2764
    %v5115 = vunpack.c.l.b16 %v2765
    %v5116 = vunpack.c.h.b16 %v2765
    %v5117 = vunpack.c.l.b16 %v2766
    %v5118 = vunpack.c.h.b16 %v2766
    %v5119 = vunpack.c.l.b16 %v2767
    %v5120 = vunpack.c.h.b16 %v2767
    %v5121 = vunpack.c.l.b16 %v2768
    %v5122 = vunpack.c.h.b16 %v2768
    %v5123 = vunpack.c.l.b16 %v2769
    %v5124 = vunpack.c.h.b16 %v2769
    %v5125 = vunpack.c.l.b16 %v2770
    %v5126 = vunpack.c.h.b16 %v2770
    %v5127 = vunpack.c.l.b16 %v2771
    %v5128 = vunpack.c.h.b16 %v2771
    %v5129 = vunpack.c.l.b16 %v2772
    %v5130 = vunpack.c.h.b16 %v2772
    %v5131 = vunpack.c.l.b16 %v2773
    %v5132 = vunpack.c.h.b16 %v2773
    %v5133 = vunpack.c.l.b16 %v2774
    %v5134 = vunpack.c.h.b16 %v2774
    %v5135 = vunpack.c.l.b16 %v2775
    %v5136 = vunpack.c.h.b16 %v2775
    %v5137 = vunpack.c.l.b16 %v2776
    %v5138 = vunpack.c.h.b16 %v2776
    %v5139 = vunpack.c.l.b16 %v2777
    %v5140 = vunpack.c.h.b16 %v2777
    %v5141 = vunpack.c.l.b16 %v2778
    %v5142 = vunpack.c.h.b16 %v2778
    %v5143 = vunpack.c.l.b16 %v2779
    %v5144 = vunpack.c.h.b16 %v2779
    %v5145 = vunpack.c.l.b16 %v2780
    %v5146 = vunpack.c.h.b16 %v2780
    %v5147 = vunpack.c.l.b16 %v2781
    %v5148 = vunpack.c.h.b16 %v2781
    %v5149 = vunpack.c.l.b16 %v2782
    %v5150 = vunpack.c.h.b16 %v2782
    %v5151 = vunpack.c.l.b16 %v2783
    %v5152 = vunpack.c.h.b16 %v2783
    %v5153 = vunpack.c.l.b16 %v2784
    %v5154 = vunpack.c.h.b16 %v2784
    %v5155 = vunpack.c.l.b16 %v2785
    %v5156 = vunpack.c.h.b16 %v2785
    %v5157 = vunpack.c.l.b16 %v2786
    %v5158 = vunpack.c.h.b16 %v2786
    %v5159 = vunpack.c.l.b16 %v2787
    %v5160 = vunpack.c.h.b16 %v2787
    %v5161 = vunpack.c.l.b16 %v2788
    %v5162 = vunpack.c.h.b16 %v2788
    %v5163 = vunpack.c.l.b16 %v2789
    %v5164 = vunpack.c.h.b16 %v2789
    %v5165 = vunpack.c.l.b16 %v2790
    %v5166 = vunpack.c.h.b16 %v2790
    %v5167 = vunpack.c.l.b16 %v2791
    %v5168 = vunpack.c.h.b16 %v2791
    %v5169 = vunpack.c.l.b16 %v2792
    %v5170 = vunpack.c.h.b16 %v2792
    %v5171 = vunpack.c.l.b16 %v2793
    %v5172 = vunpack.c.h.b16 %v2793
    %v5173 = vunpack.c.l.b16 %v2794
    %v5174 = vunpack.c.h.b16 %v2794
    %v5175 = vunpack.c.l.b16 %v2795
    %v5176 = vunpack.c.h.b16 %v2795
    %v5177 = vunpack.c.l.b16 %v2796
    %v5178 = vunpack.c.h.b16 %v2796
    %v5179 = vunpack.c.l.b16 %v2797
    %v5180 = vunpack.c.h.b16 %v2797
    %v5181 = vunpack.c.l.b16 %v2798
    %v5182 = vunpack.c.h.b16 %v2798
    %v5183 = vunpack.c.l.b16 %v2799
    %v5184 = vunpack.c.h.b16 %v2799
    %v5185 = vunpack.c.l.b16 %v2800
    %v5186 = vunpack.c.h.b16 %v2800
    %v5187 = vunpack.c.l.b16 %v2801
    %v5188 = vunpack.c.h.b16 %v2801
    %v5189 = vunpack.c.l.b16 %v2802
    %v5190 = vunpack.c.h.b16 %v2802
    %v5191 = vunpack.c.l.b16 %v2803
    %v5192 = vunpack.c.h.b16 %v2803
    %v5193 = vunpack.c.l.b16 %v2804
    %v5194 = vunpack.c.h.b16 %v2804
    %v5195 = vunpack.c.l.b16 %v2805
    %v5196 = vunpack.c.h.b16 %v2805
    %v5197 = vunpack.c.l.b16 %v2806
    %v5198 = vunpack.c.h.b16 %v2806
    %v5199 = vunpack.c.l.b16 %v2807
    %v5200 = vunpack.c.h.b16 %v2807
    %v5201 = vunpack.c.l.b16 %v2808
    %v5202 = vunpack.c.h.b16 %v2808
    %v5203 = vunpack.c.l.b16 %v2809
    %v5204 = vunpack.c.h.b16 %v2809
    %v5205 = vunpack.c.l.b16 %v2810
    %v5206 = vunpack.c.h.b16 %v2810
    %v5207 = vunpack.c.l.b16 %v2811
    %v5208 = vunpack.c.h.b16 %v2811
    %v5209 = vunpack.c.l.b16 %v2812
    %v5210 = vunpack.c.h.b16 %v2812
    %v5211 = vunpack.c.l.b16 %v2813
    %v5212 = vunpack.c.h.b16 %v2813
    %v5213 = vunpack.c.l.b16 %v2814
    %v5214 = vunpack.c.h.b16 %v2814
    %v5215 = vunpack.c.l.b16 %v2815
    %v5216 = vunpack.c.h.b16 %v2815
    %v5217 = vunpack.c.l.b16 %v2816
    %v5218 = vunpack.c.h.b16 %v2816
    %v5219 = vunpack.c.l.b16 %v2817
    %v5220 = vunpack.c.h.b16 %v2817
    %v5221 = vunpack.c.l.b16 %v2818
    %v5222 = vunpack.c.h.b16 %v2818
    %v5223 = vunpack.c.l.b16 %v2819
    %v5224 = vunpack.c.h.b16 %v2819
    %v5225 = vunpack.c.l.b16 %v2820
    %v5226 = vunpack.c.h.b16 %v2820
    %v5227 = vunpack.c.l.b16 %v2821
    %v5228 = vunpack.c.h.b16 %v2821
    %v5229 = vunpack.c.l.b16 %v2822
    %v5230 = vunpack.c.h.b16 %v2822
    %v5231 = vunpack.c.l.b16 %v2823
    %v5232 = vunpack.c.h.b16 %v2823
    %v5233 = vunpack.c.l.b16 %v2824
    %v5234 = vunpack.c.h.b16 %v2824
    %v5235 = vunpack.c.l.b16 %v2825
    %v5236 = vunpack.c.h.b16 %v2825
    %v5237 = vunpack.c.l.b16 %v2826
    %v5238 = vunpack.c.h.b16 %v2826
    %v5239 = vunpack.c.l.b16 %v2827
    %v5240 = vunpack.c.h.b16 %v2827
    %v5241 = vunpack.c.l.b16 %v2828
    %v5242 = vunpack.c.h.b16 %v2828
    %v5243 = vunpack.c.l.b16 %v2829
    %v5244 = vunpack.c.h.b16 %v2829
    %v5245 = vunpack.c.l.b16 %v2830
    %v5246 = vunpack.c.h.b16 %v2830
    %v5247 = vunpack.c.l.b16 %v2831
    %v5248 = vunpack.c.h.b16 %v2831
    %v5249 = vunpack.c.l.b16 %v2832
    %v5250 = vunpack.c.h.b16 %v2832
    %v5251 = vunpack.c.l.b16 %v2833
    %v5252 = vunpack.c.h.b16 %v2833
    %v5253 = vunpack.c.l.b16 %v2834
    %v5254 = vunpack.c.h.b16 %v2834
    %v5255 = vunpack.c.l.b16 %v2835
    %v5256 = vunpack.c.h.b16 %v2835
    %v5257 = vunpack.c.l.b16 %v2836
    %v5258 = vunpack.c.h.b16 %v2836
    %v5259 = vunpack.c.l.b16 %v2837
    %v5260 = vunpack.c.h.b16 %v2837
    %v5261 = vunpack.c.l.b16 %v2838
    %v5262 = vunpack.c.h.b16 %v2838
    %v5263 = vunpack.c.l.b16 %v2839
    %v5264 = vunpack.c.h.b16 %v2839
    %v5265 = vunpack.c.l.b16 %v2840
    %v5266 = vunpack.c.h.b16 %v2840
    %v5267 = vunpack.c.l.b16 %v2841
    %v5268 = vunpack.c.h.b16 %v2841
    %v5269 = vunpack.c.l.b16 %v2842
    %v5270 = vunpack.c.h.b16 %v2842
    %v5271 = vunpack.c.l.b16 %v2843
    %v5272 = vunpack.c.h.b16 %v2843
    %v5273 = vunpack.c.l.b16 %v2844
    %v5274 = vunpack.c.h.b16 %v2844
    %v5275 = vunpack.c.l.b16 %v2845
    %v5276 = vunpack.c.h.b16 %v2845
    %v5277 = vunpack.c.l.b16 %v2846
    %v5278 = vunpack.c.h.b16 %v2846
    %v5279 = vunpack.c.l.b16 %v2847
    %v5280 = vunpack.c.h.b16 %v2847
    %v5281 = vunpack.c.l.b16 %v2848
    %v5282 = vunpack.c.h.b16 %v2848
    %v5283 = vunpack.c.l.b16 %v2849
    %v5284 = vunpack.c.h.b16 %v2849
    %v5285 = vunpack.c.l.b16 %v2850
    %v5286 = vunpack.c.h.b16 %v2850
    %v5287 = vunpack.c.l.b16 %v2851
    %v5288 = vunpack.c.h.b16 %v2851
    %v5289 = vunpack.c.l.b16 %v2852
    %v5290 = vunpack.c.h.b16 %v2852
    %v5291 = vunpack.c.l.b16 %v2853
    %v5292 = vunpack.c.h.b16 %v2853
    %v5293 = vunpack.c.l.b16 %v2854
    %v5294 = vunpack.c.h.b16 %v2854
    %v5295 = vunpack.c.l.b16 %v2855
    %v5296 = vunpack.c.h.b16 %v2855
    %v5297 = vunpack.c.l.b16 %v2856
    %v5298 = vunpack.c.h.b16 %v2856
    %v5299 = vunpack.c.l.b16 %v2857
    %v5300 = vunpack.c.h.b16 %v2857
    %v5301 = vunpack.c.l.b16 %v2858
    %v5302 = vunpack.c.h.b16 %v2858
    %v5303 = vunpack.c.l.b16 %v2859
    %v5304 = vunpack.c.h.b16 %v2859
    %v5305 = vunpack.c.l.b16 %v2860
    %v5306 = vunpack.c.h.b16 %v2860
    %v5307 = vunpack.c.l.b16 %v2861
    %v5308 = vunpack.c.h.b16 %v2861
    %v5309 = vunpack.c.l.b16 %v2862
    %v5310 = vunpack.c.h.b16 %v2862
    %v5311 = vunpack.c.l.b16 %v2863
    %v5312 = vunpack.c.h.b16 %v2863
    %v5313 = vunpack.c.l.b16 %v2864
    %v5314 = vunpack.c.h.b16 %v2864
    %v5315 = vunpack.c.l.b16 %v2865
    %v5316 = vunpack.c.h.b16 %v2865
    %v5317 = vunpack.c.l.b16 %v2866
    %v5318 = vunpack.c.h.b16 %v2866
    %v5319 = vunpack.c.l.b16 %v2867
    %v5320 = vunpack.c.h.b16 %v2867
    %v5321 = vunpack.c.l.b16 %v2868
    %v5322 = vunpack.c.h.b16 %v2868
    %v5323 = vunpack.c.l.b16 %v2869
    %v5324 = vunpack.c.h.b16 %v2869
    %v5325 = vunpack.c.l.b16 %v2870
    %v5326 = vunpack.c.h.b16 %v2870
    %v5327 = vunpack.c.l.b16 %v2871
    %v5328 = vunpack.c.h.b16 %v2871
    %v5329 = vunpack.c.l.b16 %v2872
    %v5330 = vunpack.c.h.b16 %v2872
    %v5331 = vunpack.c.l.b16 %v2873
    %v5332 = vunpack.c.h.b16 %v2873
    %v5333 = vunpack.c.l.b16 %v2874
    %v5334 = vunpack.c.h.b16 %v2874
    %v5335 = vunpack.c.l.b16 %v2875
    %v5336 = vunpack.c.h.b16 %v2875
    %v5337 = vunpack.c.l.b16 %v2876
    %v5338 = vunpack.c.h.b16 %v2876
    %v5339 = vunpack.c.l.b16 %v2877
    %v5340 = vunpack.c.h.b16 %v2877
    %v5341 = vunpack.c.l.b16 %v2878
    %v5342 = vunpack.c.h.b16 %v2878
    %v5343 = vunpack.c.l.b16 %v2879
    %v5344 = vunpack.c.h.b16 %v2879
    %v5345 = vunpack.c.l.b16 %v2880
    %v5346 = vunpack.c.h.b16 %v2880
    %v5347 = vunpack.c.l.b16 %v2881
    %v5348 = vunpack.c.h.b16 %v2881
    %v5349 = vunpack.c.l.b16 %v2882
    %v5350 = vunpack.c.h.b16 %v2882
    %v5351 = vunpack.c.l.b16 %v2883
    %v5352 = vunpack.c.h.b16 %v2883
    %v5353 = vunpack.c.l.b16 %v2884
    %v5354 = vunpack.c.h.b16 %v2884
    %v5355 = vunpack.c.l.b16 %v2885
    %v5356 = vunpack.c.h.b16 %v2885
    %v5357 = vunpack.c.l.b16 %v2886
    %v5358 = vunpack.c.h.b16 %v2886
    %v5359 = vunpack.c.l.b16 %v2887
    %v5360 = vunpack.c.h.b16 %v2887
    %v5361 = vunpack.c.l.b16 %v2888
    %v5362 = vunpack.c.h.b16 %v2888
    %v5363 = vunpack.c.l.b16 %v2889
    %v5364 = vunpack.c.h.b16 %v2889
    %v5365 = vunpack.c.l.b16 %v2890
    %v5366 = vunpack.c.h.b16 %v2890
    %v5367 = vunpack.c.l.b16 %v2891
    %v5368 = vunpack.c.h.b16 %v2891
    %v5369 = vunpack.c.l.b16 %v2892
    %v5370 = vunpack.c.h.b16 %v2892
    %v5371 = vunpack.c.l.b16 %v2893
    %v5372 = vunpack.c.h.b16 %v2893
    %v5373 = vunpack.c.l.b16 %v2894
    %v5374 = vunpack.c.h.b16 %v2894
    %v5375 = vunpack.c.l.b16 %v2895
    %v5376 = vunpack.c.h.b16 %v2895
    %v5377 = vunpack.c.l.b16 %v2896
    %v5378 = vunpack.c.h.b16 %v2896
    %v5379 = vunpack.c.l.b16 %v2897
    %v5380 = vunpack.c.h.b16 %v2897
    %v5381 = vunpack.c.l.b16 %v2898
    %v5382 = vunpack.c.h.b16 %v2898
    %v5383 = vunpack.c.l.b16 %v2899
    %v5384 = vunpack.c.h.b16 %v2899
    %v5385 = vunpack.c.l.b16 %v2900
    %v5386 = vunpack.c.h.b16 %v2900
    %v5387 = vunpack.c.l.b16 %v2901
    %v5388 = vunpack.c.h.b16 %v2901
    %v5389 = vunpack.c.l.b16 %v2902
    %v5390 = vunpack.c.h.b16 %v2902
    %v5391 = vunpack.c.l.b16 %v2903
    %v5392 = vunpack.c.h.b16 %v2903
    %v5393 = vunpack.c.l.b16 %v2904
    %v5394 = vunpack.c.h.b16 %v2904
    %v5395 = vunpack.c.l.b16 %v2905
    %v5396 = vunpack.c.h.b16 %v2905
    %v5397 = vunpack.c.l.b16 %v2906
    %v5398 = vunpack.c.h.b16 %v2906
    %v5399 = vunpack.c.l.b16 %v2907
    %v5400 = vunpack.c.h.b16 %v2907
    %v5401 = vunpack.c.l.b16 %v2908
    %v5402 = vunpack.c.h.b16 %v2908
    %v5403 = vunpack.c.l.b16 %v2909
    %v5404 = vunpack.c.h.b16 %v2909
    %v5405 = vunpack.c.l.b16 %v2910
    %v5406 = vunpack.c.h.b16 %v2910
    %v5407 = vunpack.c.l.b16 %v2911
    %v5408 = vunpack.c.h.b16 %v2911
    %v5409 = vunpack.c.l.b16 %v2912
    %v5410 = vunpack.c.h.b16 %v2912
    %v5411 = vunpack.c.l.b16 %v2913
    %v5412 = vunpack.c.h.b16 %v2913
    %v5413 = vunpack.c.l.b16 %v2914
    %v5414 = vunpack.c.h.b16 %v2914
    %v5415 = vunpack.c.l.b16 %v2915
    %v5416 = vunpack.c.h.b16 %v2915
    %v5417 = vunpack.c.l.b16 %v2916
    %v5418 = vunpack.c.h.b16 %v2916
    %v5419 = vunpack.c.l.b16 %v2917
    %v5420 = vunpack.c.h.b16 %v2917
    %v5421 = vunpack.c.l.b16 %v2918
    %v5422 = vunpack.c.h.b16 %v2918
    %v5423 = vunpack.c.l.b16 %v2919
    %v5424 = vunpack.c.h.b16 %v2919
    %v5425 = vunpack.c.l.b16 %v2920
    %v5426 = vunpack.c.h.b16 %v2920
    %v5427 = vunpack.c.l.b16 %v2921
    %v5428 = vunpack.c.h.b16 %v2921
    %v5429 = vunpack.c.l.b16 %v2922
    %v5430 = vunpack.c.h.b16 %v2922
    %v5431 = vunpack.c.l.b16 %v2923
    %v5432 = vunpack.c.h.b16 %v2923
    %v5433 = vunpack.c.l.b16 %v2924
    %v5434 = vunpack.c.h.b16 %v2924
    %v5435 = vunpack.c.l.b16 %v2925
    %v5436 = vunpack.c.h.b16 %v2925
    %v5437 = vunpack.c.l.b16 %v2926
    %v5438 = vunpack.c.h.b16 %v2926
    %v5439 = vunpack.c.l.b16 %v2927
    %v5440 = vunpack.c.h.b16 %v2927
    %v5441 = vunpack.c.l.b16 %v2928
    %v5442 = vunpack.c.h.b16 %v2928
    %v5443 = vunpack.c.l.b16 %v2929
    %v5444 = vunpack.c.h.b16 %v2929
    %v5445 = vunpack.c.l.b16 %v2930
    %v5446 = vunpack.c.h.b16 %v2930
    %v5447 = vunpack.c.l.b16 %v2931
    %v5448 = vunpack.c.h.b16 %v2931
    %v5449 = vunpack.c.l.b16 %v2932
    %v5450 = vunpack.c.h.b16 %v2932
    %v5451 = vunpack.c.l.b16 %v2933
    %v5452 = vunpack.c.h.b16 %v2933
    %v5453 = vunpack.c.l.b16 %v2934
    %v5454 = vunpack.c.h.b16 %v2934
    %v5455 = vunpack.c.l.b16 %v2935
    %v5456 = vunpack.c.h.b16 %v2935
    %v5457 = vunpack.c.l.b16 %v2936
    %v5458 = vunpack.c.h.b16 %v2936
    %v5459 = vunpack.c.l.b16 %v2937
    %v5460 = vunpack.c.h.b16 %v2937
    %v5461 = vunpack.c.l.b16 %v2938
    %v5462 = vunpack.c.h.b16 %v2938
    %v5463 = vunpack.c.l.b16 %v2939
    %v5464 = vunpack.c.h.b16 %v2939
    %v5465 = vunpack.c.l.b16 %v2940
    %v5466 = vunpack.c.h.b16 %v2940
    %v5467 = vunpack.c.l.b16 %v2941
    %v5468 = vunpack.c.h.b16 %v2941
    %v5469 = vunpack.c.l.b16 %v2942
    %v5470 = vunpack.c.h.b16 %v2942
    %v5471 = vunpack.c.l.b16 %v2943
    %v5472 = vunpack.c.h.b16 %v2943
    %v5473 = vunpack.c.l.b16 %v2944
    %v5474 = vunpack.c.h.b16 %v2944
    %v5475 = vunpack.c.l.b16 %v2945
    %v5476 = vunpack.c.h.b16 %v2945
    %v5477 = vunpack.c.l.b16 %v2946
    %v5478 = vunpack.c.h.b16 %v2946
    %v5479 = vunpack.c.l.b16 %v2947
    %v5480 = vunpack.c.h.b16 %v2947
    %v5481 = vunpack.c.l.b16 %v2948
    %v5482 = vunpack.c.h.b16 %v2948
    %v5483 = vunpack.c.l.b16 %v2949
    %v5484 = vunpack.c.h.b16 %v2949
    %v5485 = vunpack.c.l.b16 %v2950
    %v5486 = vunpack.c.h.b16 %v2950
    %v5487 = vunpack.c.l.b16 %v2951
    %v5488 = vunpack.c.h.b16 %v2951
    %v5489 = vunpack.c.l.b16 %v2952
    %v5490 = vunpack.c.h.b16 %v2952
    %v5491 = vunpack.c.l.b16 %v2953
    %v5492 = vunpack.c.h.b16 %v2953
    %v5493 = vunpack.c.l.b16 %v2954
    %v5494 = vunpack.c.h.b16 %v2954
    %v5495 = vunpack.c.l.b16 %v2955
    %v5496 = vunpack.c.h.b16 %v2955
    %v5497 = vunpack.c.l.b16 %v2956
    %v5498 = vunpack.c.h.b16 %v2956
    %v5499 = vunpack.c.l.b16 %v2957
    %v5500 = vunpack.c.h.b16 %v2957
    %v5501 = vunpack.c.l.b16 %v2958
    %v5502 = vunpack.c.h.b16 %v2958
    %v5503 = vunpack.c.l.b16 %v2959
    %v5504 = vunpack.c.h.b16 %v2959
    %v5505 = vunpack.c.l.b16 %v2960
    %v5506 = vunpack.c.h.b16 %v2960
    %v5507 = vunpack.c.l.b16 %v2961
    %v5508 = vunpack.c.h.b16 %v2961
    %v5509 = vunpack.c.l.b16 %v2962
    %v5510 = vunpack.c.h.b16 %v2962
    %v5511 = vunpack.c.l.b16 %v2963
    %v5512 = vunpack.c.h.b16 %v2963
    %v5513 = vunpack.c.l.b16 %v2964
    %v5514 = vunpack.c.h.b16 %v2964
    %v5515 = vunpack.c.l.b16 %v2965
    %v5516 = vunpack.c.h.b16 %v2965
    %v5517 = vunpack.c.l.b16 %v2966
    %v5518 = vunpack.c.h.b16 %v2966
    %v5519 = vunpack.c.l.b16 %v2967
    %v5520 = vunpack.c.h.b16 %v2967
    %v5521 = vunpack.c.l.b16 %v2968
    %v5522 = vunpack.c.h.b16 %v2968
    %v5523 = vunpack.c.l.b16 %v2969
    %v5524 = vunpack.c.h.b16 %v2969
    %v5525 = vunpack.c.l.b16 %v2970
    %v5526 = vunpack.c.h.b16 %v2970
    %v5527 = vunpack.c.l.b16 %v2971
    %v5528 = vunpack.c.h.b16 %v2971
    %v5529 = vunpack.c.l.b16 %v2972
    %v5530 = vunpack.c.h.b16 %v2972
    %v5531 = vunpack.c.l.b16 %v2973
    %v5532 = vunpack.c.h.b16 %v2973
    %v5533 = vunpack.c.l.b16 %v2974
    %v5534 = vunpack.c.h.b16 %v2974
    %v5535 = vunpack.c.l.b16 %v2975
    %v5536 = vunpack.c.h.b16 %v2975
    %v5537 = vunpack.c.l.b16 %v2976
    %v5538 = vunpack.c.h.b16 %v2976
    %v5539 = vunpack.c.l.b16 %v2977
    %v5540 = vunpack.c.h.b16 %v2977
    %v5541 = vunpack.c.l.b16 %v2978
    %v5542 = vunpack.c.h.b16 %v2978
    %v5543 = vunpack.c.l.b16 %v2979
    %v5544 = vunpack.c.h.b16 %v2979
    %v5545 = vunpack.c.l.b16 %v2980
    %v5546 = vunpack.c.h.b16 %v2980
    %v5547 = vunpack.c.l.b16 %v2981
    %v5548 = vunpack.c.h.b16 %v2981
    %v5549 = vunpack.c.l.b16 %v2982
    %v5550 = vunpack.c.h.b16 %v2982
    %v5551 = vunpack.c.l.b16 %v2983
    %v5552 = vunpack.c.h.b16 %v2983
    %v5553 = vunpack.c.l.b16 %v2984
    %v5554 = vunpack.c.h.b16 %v2984
    %v5555 = vunpack.c.l.b16 %v2985
    %v5556 = vunpack.c.h.b16 %v2985
    %v5557 = vunpack.c.l.b16 %v2986
    %v5558 = vunpack.c.h.b16 %v2986
    %v5559 = vunpack.c.l.b16 %v2987
    %v5560 = vunpack.c.h.b16 %v2987
    %v5561 = vunpack.c.l.b16 %v2988
    %v5562 = vunpack.c.h.b16 %v2988
    %v5563 = vunpack.c.l.b16 %v2989
    %v5564 = vunpack.c.h.b16 %v2989
    %v5565 = vunpack.c.l.b16 %v2990
    %v5566 = vunpack.c.h.b16 %v2990
    %v5567 = vunpack.c.l.b16 %v2991
    %v5568 = vunpack.c.h.b16 %v2991
    %v5569 = vunpack.c.l.b16 %v2992
    %v5570 = vunpack.c.h.b16 %v2992
    %v5571 = vunpack.c.l.b16 %v2993
    %v5572 = vunpack.c.h.b16 %v2993
    %v5573 = vunpack.c.l.b16 %v2994
    %v5574 = vunpack.c.h.b16 %v2994
    %v5575 = vunpack.c.l.b16 %v2995
    %v5576 = vunpack.c.h.b16 %v2995
    %v5577 = vunpack.c.l.b16 %v2996
    %v5578 = vunpack.c.h.b16 %v2996
    %v5579 = vunpack.c.l.b16 %v2997
    %v5580 = vunpack.c.h.b16 %v2997
    %v5581 = vunpack.c.l.b16 %v2998
    %v5582 = vunpack.c.h.b16 %v2998
    %v5583 = vunpack.c.l.b16 %v2999
    %v5584 = vunpack.c.h.b16 %v2999
    %v5585 = vunpack.c.l.b16 %v3000
    %v5586 = vunpack.c.h.b16 %v3000
    %v5587 = vunpack.c.l.b16 %v3001
    %v5588 = vunpack.c.h.b16 %v3001
    %v5589 = vunpack.c.l.b16 %v3002
    %v5590 = vunpack.c.h.b16 %v3002
    %v5591 = vunpack.c.l.b16 %v3003
    %v5592 = vunpack.c.h.b16 %v3003
    %v5593 = vunpack.c.l.b16 %v3004
    %v5594 = vunpack.c.h.b16 %v3004
    %v5595 = vunpack.c.l.b16 %v3005
    %v5596 = vunpack.c.h.b16 %v3005
    %v5597 = vunpack.c.l.b16 %v3006
    %v5598 = vunpack.c.h.b16 %v3006
    %v5599 = vunpack.c.l.b16 %v3007
    %v5600 = vunpack.c.h.b16 %v3007
    %v5601 = vunpack.c.l.b16 %v3008
    %v5602 = vunpack.c.h.b16 %v3008
    %v5603 = vunpack.c.l.b16 %v3009
    %v5604 = vunpack.c.h.b16 %v3009
    %v5605 = vunpack.c.l.b16 %v3010
    %v5606 = vunpack.c.h.b16 %v3010
    %v5607 = vunpack.c.l.b16 %v3011
    %v5608 = vunpack.c.h.b16 %v3011
    %v5609 = vunpack.c.l.b16 %v3012
    %v5610 = vunpack.c.h.b16 %v3012
    %v5611 = vunpack.c.l.b16 %v3013
    %v5612 = vunpack.c.h.b16 %v3013
    %v5613 = vunpack.c.l.b16 %v3014
    %v5614 = vunpack.c.h.b16 %v3014
    %v5615 = vunpack.c.l.b16 %v3015
    %v5616 = vunpack.c.h.b16 %v3015
    %v5617 = vunpack.c.l.b16 %v3016
    %v5618 = vunpack.c.h.b16 %v3016
    %v5619 = vunpack.c.l.b16 %v3017
    %v5620 = vunpack.c.h.b16 %v3017
    %v5621 = vunpack.c.l.b16 %v3018
    %v5622 = vunpack.c.h.b16 %v3018
    %v5623 = vunpack.c.l.b16 %v3019
    %v5624 = vunpack.c.h.b16 %v3019
    %v5625 = vunpack.c.l.b16 %v3020
    %v5626 = vunpack.c.h.b16 %v3020
    %v5627 = vunpack.c.l.b16 %v3021
    %v5628 = vunpack.c.h.b16 %v3021
    %v5629 = vunpack.c.l.b16 %v3022
    %v5630 = vunpack.c.h.b16 %v3022
    %v5631 = vunpack.c.l.b16 %v3023
    %v5632 = vunpack.c.h.b16 %v3023
    %v5633 = vunpack.c.l.b16 %v3024
    %v5634 = vunpack.c.h.b16 %v3024
    %v5635 = vunpack.c.l.b16 %v3025
    %v5636 = vunpack.c.h.b16 %v3025
    %v5637 = vunpack.c.l.b16 %v3026
    %v5638 = vunpack.c.h.b16 %v3026
    %v5639 = vunpack.c.l.b16 %v3027
    %v5640 = vunpack.c.h.b16 %v3027
    %v5641 = vunpack.c.l.b16 %v3028
    %v5642 = vunpack.c.h.b16 %v3028
    %v5643 = vunpack.c.l.b16 %v3029
    %v5644 = vunpack.c.h.b16 %v3029
    %v5645 = vunpack.c.l.b16 %v3030
    %v5646 = vunpack.c.h.b16 %v3030
    %v5647 = vunpack.c.l.b16 %v3031
    %v5648 = vunpack.c.h.b16 %v3031
    %v5649 = vunpack.c.l.b16 %v3032
    %v5650 = vunpack.c.h.b16 %v3032
    %v5651 = vunpack.c.l.b16 %v3033
    %v5652 = vunpack.c.h.b16 %v3033
    %v5653 = vunpack.c.l.b16 %v3034
    %v5654 = vunpack.c.h.b16 %v3034
    %v5655 = vunpack.c.l.b16 %v3035
    %v5656 = vunpack.c.h.b16 %v3035
    %v5657 = vunpack.c.l.b16 %v3036
    %v5658 = vunpack.c.h.b16 %v3036
    %v5659 = vunpack.c.l.b16 %v3037
    %v5660 = vunpack.c.h.b16 %v3037
    %v5661 = vunpack.c.l.b16 %v3038
    %v5662 = vunpack.c.h.b16 %v3038
    %v5663 = vunpack.c.l.b16 %v3039
    %v5664 = vunpack.c.h.b16 %v3039
    %v5665 = vunpack.c.l.b16 %v3040
    %v5666 = vunpack.c.h.b16 %v3040
    %v5667 = vunpack.c.l.b16 %v3041
    %v5668 = vunpack.c.h.b16 %v3041
    %v5669 = vunpack.c.l.b16 %v3042
    %v5670 = vunpack.c.h.b16 %v3042
    %v5671 = vunpack.c.l.b16 %v3043
    %v5672 = vunpack.c.h.b16 %v3043
    %v5673 = vunpack.c.l.b16 %v3044
    %v5674 = vunpack.c.h.b16 %v3044
    %v5675 = vunpack.c.l.b16 %v3045
    %v5676 = vunpack.c.h.b16 %v3045
    %v5677 = vunpack.c.l.b16 %v3046
    %v5678 = vunpack.c.h.b16 %v3046
    %v5679 = vunpack.c.l.b16 %v3047
    %v5680 = vunpack.c.h.b16 %v3047
    %v5681 = vunpack.c.l.b16 %v3048
    %v5682 = vunpack.c.h.b16 %v3048
    %v5683 = vunpack.c.l.b16 %v3049
    %v5684 = vunpack.c.h.b16 %v3049
    %v5685 = vunpack.c.l.b16 %v3050
    %v5686 = vunpack.c.h.b16 %v3050
    %v5687 = vunpack.c.l.b16 %v3051
    %v5688 = vunpack.c.h.b16 %v3051
    %v5689 = vunpack.c.l.b16 %v3052
    %v5690 = vunpack.c.h.b16 %v3052
    %v5691 = vunpack.c.l.b16 %v3053
    %v5692 = vunpack.c.h.b16 %v3053
    %v5693 = vunpack.c.l.b16 %v3054
    %v5694 = vunpack.c.h.b16 %v3054
    %v5695 = vunpack.c.l.b16 %v3055
    %v5696 = vunpack.c.h.b16 %v3055
    %v5697 = vunpack.c.l.b16 %v3056
    %v5698 = vunpack.c.h.b16 %v3056
    %v5699 = vunpack.c.l.b16 %v3057
    %v5700 = vunpack.c.h.b16 %v3057
    %v5701 = vunpack.c.l.b16 %v3058
    %v5702 = vunpack.c.h.b16 %v3058
    %v5703 = vunpack.c.l.b16 %v3059
    %v5704 = vunpack.c.h.b16 %v3059
    %v5705 = vunpack.c.l.b16 %v3060
    %v5706 = vunpack.c.h.b16 %v3060
    %v5707 = vunpack.c.l.b16 %v3061
    %v5708 = vunpack.c.h.b16 %v3061
    %v5709 = vunpack.c.l.b16 %v3062
    %v5710 = vunpack.c.h.b16 %v3062
    %v5711 = vunpack.c.l.b16 %v3063
    %v5712 = vunpack.c.h.b16 %v3063
    %v5713 = vunpack.c.l.b16 %v3064
    %v5714 = vunpack.c.h.b16 %v3064
    %v5715 = vunpack.c.l.b16 %v3065
    %v5716 = vunpack.c.h.b16 %v3065
    %v5717 = vunpack.c.l.b16 %v3066
    %v5718 = vunpack.c.h.b16 %v3066
    %v5719 = vunpack.c.l.b16 %v3067
    %v5720 = vunpack.c.h.b16 %v3067
    %v5721 = vunpack.c.l.b16 %v3068
    %v5722 = vunpack.c.h.b16 %v3068
    %v5723 = vunpack.c.l.b16 %v3069
    %v5724 = vunpack.c.h.b16 %v3069
    %v5725 = vunpack.c.l.b16 %v3070
    %v5726 = vunpack.c.h.b16 %v3070
    %v5727 = vunpack.c.l.b16 %v3071
    %v5728 = vunpack.c.h.b16 %v3071
    %v5729 = vunpack.c.l.b16 %v3072
    %v5730 = vunpack.c.h.b16 %v3072
    %v5731 = vunpack.c.l.b16 %v3073
    %v5732 = vunpack.c.h.b16 %v3073
    %v5733 = vunpack.c.l.b16 %v3074
    %v5734 = vunpack.c.h.b16 %v3074
    %v5735 = vunpack.c.l.b16 %v3075
    %v5736 = vunpack.c.h.b16 %v3075
    %v5737 = vunpack.c.l.b16 %v3076
    %v5738 = vunpack.c.h.b16 %v3076
    %v5739 = vunpack.c.l.b16 %v3077
    %v5740 = vunpack.c.h.b16 %v3077
    %v5741 = vunpack.c.l.b16 %v3078
    %v5742 = vunpack.c.h.b16 %v3078
    %v5743 = vunpack.c.l.b16 %v3079
    %v5744 = vunpack.c.h.b16 %v3079
    %v5745 = vunpack.c.l.b16 %v3080
    %v5746 = vunpack.c.h.b16 %v3080
    %v5747 = vunpack.c.l.b16 %v3081
    %v5748 = vunpack.c.h.b16 %v3081
    %v5749 = vunpack.c.l.b16 %v3082
    %v5750 = vunpack.c.h.b16 %v3082
    %v5751 = vunpack.c.l.b16 %v3083
    %v5752 = vunpack.c.h.b16 %v3083
    %v5753 = vunpack.c.l.b16 %v3084
    %v5754 = vunpack.c.h.b16 %v3084
    %v5755 = vunpack.c.l.b16 %v3085
    %v5756 = vunpack.c.h.b16 %v3085
    %v5757 = vunpack.c.l.b16 %v3086
    %v5758 = vunpack.c.h.b16 %v3086
    %v5759 = vunpack.c.l.b16 %v3087
    %v5760 = vunpack.c.h.b16 %v3087
    %v5761 = vunpack.c.l.b16 %v3088
    %v5762 = vunpack.c.h.b16 %v3088
    %v5763 = vunpack.c.l.b16 %v3089
    %v5764 = vunpack.c.h.b16 %v3089
    %v5765 = vunpack.c.l.b16 %v3090
    %v5766 = vunpack.c.h.b16 %v3090
    %v5767 = vunpack.c.l.b16 %v3091
    %v5768 = vunpack.c.h.b16 %v3091
    %v5769 = vunpack.c.l.b16 %v3092
    %v5770 = vunpack.c.h.b16 %v3092
    %v5771 = vunpack.c.l.b16 %v3093
    %v5772 = vunpack.c.h.b16 %v3093
    %v5773 = vunpack.c.l.b16 %v3094
    %v5774 = vunpack.c.h.b16 %v3094
    %v5775 = vunpack.c.l.b16 %v3095
    %v5776 = vunpack.c.h.b16 %v3095
    %v5777 = vunpack.c.l.b16 %v3096
    %v5778 = vunpack.c.h.b16 %v3096
    %v5779 = vunpack.c.l.b16 %v3097
    %v5780 = vunpack.c.h.b16 %v3097
    %v5781 = vunpack.c.l.b16 %v3098
    %v5782 = vunpack.c.h.b16 %v3098
    %v5783 = vunpack.c.l.b16 %v3099
    %v5784 = vunpack.c.h.b16 %v3099
    %v5785 = vunpack.c.l.b16 %v3100
    %v5786 = vunpack.c.h.b16 %v3100
    %v5787 = vunpack.c.l.b16 %v3101
    %v5788 = vunpack.c.h.b16 %v3101
    %v5789 = vunpack.c.l.b16 %v3102
    %v5790 = vunpack.c.h.b16 %v3102
    %v5791 = vunpack.c.l.b16 %v3103
    %v5792 = vunpack.c.h.b16 %v3103
    %v5793 = vunpack.c.l.b16 %v3104
    %v5794 = vunpack.c.h.b16 %v3104
    %v5795 = vunpack.c.l.b16 %v3105
    %v5796 = vunpack.c.h.b16 %v3105
    %v5797 = vunpack.c.l.b16 %v3106
    %v5798 = vunpack.c.h.b16 %v3106
    %v5799 = vunpack.c.l.b16 %v3107
    %v5800 = vunpack.c.h.b16 %v3107
    %v5801 = vunpack.c.l.b16 %v3108
    %v5802 = vunpack.c.h.b16 %v3108
    %v5803 = vunpack.c.l.b16 %v3109
    %v5804 = vunpack.c.h.b16 %v3109
    %v5805 = vunpack.c.l.b16 %v3110
    %v5806 = vunpack.c.h.b16 %v3110
    %v5807 = vunpack.c.l.b16 %v3111
    %v5808 = vunpack.c.h.b16 %v3111
    %v5809 = vunpack.c.l.b16 %v3112
    %v5810 = vunpack.c.h.b16 %v3112
    %v5811 = vunpack.c.l.b16 %v3113
    %v5812 = vunpack.c.h.b16 %v3113
    %v5813 = vunpack.c.l.b16 %v3114
    %v5814 = vunpack.c.h.b16 %v3114
    %v5815 = vunpack.c.l.b16 %v3115
    %v5816 = vunpack.c.h.b16 %v3115
    %v5817 = vunpack.c.l.b16 %v3116
    %v5818 = vunpack.c.h.b16 %v3116
    %v5819 = vunpack.c.l.b16 %v3117
    %v5820 = vunpack.c.h.b16 %v3117
    %v5821 = vunpack.c.l.b16 %v3118
    %v5822 = vunpack.c.h.b16 %v3118
    %v5823 = vunpack.c.l.b16 %v3119
    %v5824 = vunpack.c.h.b16 %v3119
    %v5825 = vunpack.c.l.b16 %v3120
    %v5826 = vunpack.c.h.b16 %v3120
    %v5827 = vunpack.c.l.b16 %v3121
    %v5828 = vunpack.c.h.b16 %v3121
    %v5829 = vunpack.c.l.b16 %v3122
    %v5830 = vunpack.c.h.b16 %v3122
    %v5831 = vunpack.c.l.b16 %v3123
    %v5832 = vunpack.c.h.b16 %v3123
    %v5833 = vunpack.c.l.b16 %v3124
    %v5834 = vunpack.c.h.b16 %v3124
    %v5835 = vunpack.c.l.b16 %v3125
    %v5836 = vunpack.c.h.b16 %v3125
    %v5837 = vunpack.c.l.b16 %v3126
    %v5838 = vunpack.c.h.b16 %v3126
    %v5839 = vunpack.c.l.b16 %v3127
    %v5840 = vunpack.c.h.b16 %v3127
    %v5841 = vunpack.c.l.b16 %v3128
    %v5842 = vunpack.c.h.b16 %v3128
    %v5843 = vunpack.c.l.b16 %v3129
    %v5844 = vunpack.c.h.b16 %v3129
    %v5845 = vunpack.c.l.b16 %v3130
    %v5846 = vunpack.c.h.b16 %v3130
    %v5847 = vunpack.c.l.b16 %v3131
    %v5848 = vunpack.c.h.b16 %v3131
    %v5849 = vunpack.c.l.b16 %v3132
    %v5850 = vunpack.c.h.b16 %v3132
    %v5851 = vunpack.c.l.b16 %v3133
    %v5852 = vunpack.c.h.b16 %v3133
    %v5853 = vunpack.c.l.b16 %v3134
    %v5854 = vunpack.c.h.b16 %v3134
    %v5855 = vunpack.c.l.b16 %v3135
    %v5856 = vunpack.c.h.b16 %v3135
    %v5857 = vunpack.c.l.b16 %v3136
    %v5858 = vunpack.c.h.b16 %v3136
    %v5859 = vunpack.c.l.b16 %v3137
    %v5860 = vunpack.c.h.b16 %v3137
    %v5861 = vunpack.c.l.b16 %v3138
    %v5862 = vunpack.c.h.b16 %v3138
    %v5863 = vunpack.c.l.b16 %v3139
    %v5864 = vunpack.c.h.b16 %v3139
    %v5865 = vunpack.c.l.b16 %v3140
    %v5866 = vunpack.c.h.b16 %v3140
    %v5867 = vunpack.c.l.b16 %v3141
    %v5868 = vunpack.c.h.b16 %v3141
    %v5869 = vunpack.c.l.b16 %v3142
    %v5870 = vunpack.c.h.b16 %v3142
    %v5871 = vunpack.c.l.b16 %v3143
    %v5872 = vunpack.c.h.b16 %v3143
    %v5873 = vunpack.c.l.b16 %v3144
    %v5874 = vunpack.c.h.b16 %v3144
    %v5875 = vunpack.c.l.b16 %v3145
    %v5876 = vunpack.c.h.b16 %v3145
    %v5877 = vunpack.c.l.b16 %v3146
    %v5878 = vunpack.c.h.b16 %v3146
    %v5879 = vunpack.c.l.b16 %v3147
    %v5880 = vunpack.c.h.b16 %v3147
    %v5881 = vunpack.c.l.b16 %v3148
    %v5882 = vunpack.c.h.b16 %v3148
    %v5883 = vunpack.c.l.b16 %v3149
    %v5884 = vunpack.c.h.b16 %v3149
    %v5885 = vunpack.c.l.b16 %v3150
    %v5886 = vunpack.c.h.b16 %v3150
    %v5887 = vunpack.c.l.b16 %v3151
    %v5888 = vunpack.c.h.b16 %v3151
    %v5889 = vunpack.c.l.b16 %v3152
    %v5890 = vunpack.c.h.b16 %v3152
    %v5891 = vunpack.c.l.b16 %v3153
    %v5892 = vunpack.c.h.b16 %v3153
    %v5893 = vunpack.c.l.b16 %v3154
    %v5894 = vunpack.c.h.b16 %v3154
    %v5895 = vunpack.c.l.b16 %v3155
    %v5896 = vunpack.c.h.b16 %v3155
    %v5897 = vunpack.c.l.b16 %v3156
    %v5898 = vunpack.c.h.b16 %v3156
    %v5899 = vunpack.c.l.b16 %v3157
    %v5900 = vunpack.c.h.b16 %v3157
    %v5901 = vunpack.c.l.b16 %v3158
    %v5902 = vunpack.c.h.b16 %v3158
    %v5903 = vunpack.c.l.b16 %v3159
    %v5904 = vunpack.c.h.b16 %v3159
    %v5905 = vunpack.c.l.b16 %v3160
    %v5906 = vunpack.c.h.b16 %v3160
    %v5907 = vunpack.c.l.b16 %v3161
    %v5908 = vunpack.c.h.b16 %v3161
    %v5909 = vunpack.c.l.b16 %v3162
    %v5910 = vunpack.c.h.b16 %v3162
    %v5911 = vunpack.c.l.b16 %v3163
    %v5912 = vunpack.c.h.b16 %v3163
    %v5913 = vunpack.c.l.b16 %v3164
    %v5914 = vunpack.c.h.b16 %v3164
    %v5915 = vunpack.c.l.b16 %v3165
    %v5916 = vunpack.c.h.b16 %v3165
    %v5917 = vunpack.c.l.b16 %v3166
    %v5918 = vunpack.c.h.b16 %v3166
    %v5919 = vunpack.c.l.b16 %v3167
    %v5920 = vunpack.c.h.b16 %v3167
    %v5921 = vunpack.c.l.b16 %v3168
    %v5922 = vunpack.c.h.b16 %v3168
    %v5923 = vunpack.c.l.b16 %v3169
    %v5924 = vunpack.c.h.b16 %v3169
    %v5925 = vunpack.c.l.b16 %v3170
    %v5926 = vunpack.c.h.b16 %v3170
    %v5927 = vunpack.c.l.b16 %v3171
    %v5928 = vunpack.c.h.b16 %v3171
    %v5929 = vunpack.c.l.b16 %v3172
    %v5930 = vunpack.c.h.b16 %v3172
    %v5931 = vunpack.c.l.b16 %v3173
    %v5932 = vunpack.c.h.b16 %v3173
    %v5933 = vunpack.c.l.b16 %v3174
    %v5934 = vunpack.c.h.b16 %v3174
    %v5935 = vunpack.c.l.b16 %v3175
    %v5936 = vunpack.c.h.b16 %v3175
    %v5937 = vunpack.c.l.b16 %v3176
    %v5938 = vunpack.c.h.b16 %v3176
    %v5939 = vunpack.c.l.b16 %v3177
    %v5940 = vunpack.c.h.b16 %v3177
    %v5941 = vunpack.c.l.b16 %v3178
    %v5942 = vunpack.c.h.b16 %v3178
    %v5943 = vunpack.c.l.b16 %v3179
    %v5944 = vunpack.c.h.b16 %v3179
    %v5945 = vunpack.c.l.b16 %v3180
    %v5946 = vunpack.c.h.b16 %v3180
    %v5947 = vunpack.c.l.b16 %v3181
    %v5948 = vunpack.c.h.b16 %v3181
    %v5949 = vunpack.c.l.b16 %v3182
    %v5950 = vunpack.c.h.b16 %v3182
    %v5951 = vunpack.c.l.b16 %v3183
    %v5952 = vunpack.c.h.b16 %v3183
    %v5953 = vunpack.c.l.b16 %v3184
    %v5954 = vunpack.c.h.b16 %v3184
    %v5955 = vunpack.c.l.b16 %v3185
    %v5956 = vunpack.c.h.b16 %v3185
    %v5957 = vunpack.c.l.b16 %v3186
    %v5958 = vunpack.c.h.b16 %v3186
    %v5959 = vunpack.c.l.b16 %v3187
    %v5960 = vunpack.c.h.b16 %v3187
    %v5961 = vunpack.c.l.b16 %v3188
    %v5962 = vunpack.c.h.b16 %v3188
    %v5963 = vunpack.c.l.b16 %v3189
    %v5964 = vunpack.c.h.b16 %v3189
    %v5965 = vunpack.c.l.b16 %v3190
    %v5966 = vunpack.c.h.b16 %v3190
    %v5967 = vunpack.c.l.b16 %v3191
    %v5968 = vunpack.c.h.b16 %v3191
    %v5969 = vunpack.c.l.b16 %v3192
    %v5970 = vunpack.c.h.b16 %v3192
    %v5971 = vunpack.c.l.b16 %v3193
    %v5972 = vunpack.c.h.b16 %v3193
    %v5973 = vunpack.c.l.b16 %v3194
    %v5974 = vunpack.c.h.b16 %v3194
    %v5975 = vunpack.c.l.b16 %v3195
    %v5976 = vunpack.c.h.b16 %v3195
    %v5977 = vunpack.c.l.b16 %v3196
    %v5978 = vunpack.c.h.b16 %v3196
    %v5979 = vunpack.c.l.b16 %v3197
    %v5980 = vunpack.c.h.b16 %v3197
    %v5981 = vunpack.c.l.b16 %v3198
    %v5982 = vunpack.c.h.b16 %v3198
    %v5983 = vunpack.c.l.b16 %v3199
    %v5984 = vunpack.c.h.b16 %v3199
    %v5985 = vunpack.c.l.b16 %v3200
    %v5986 = vunpack.c.h.b16 %v3200
    %v5987 = vunpack.c.l.b16 %v3201
    %v5988 = vunpack.c.h.b16 %v3201
    %v5989 = vunpack.c.l.b16 %v3202
    %v5990 = vunpack.c.h.b16 %v3202
    %v5991 = vunpack.c.l.b16 %v3203
    %v5992 = vunpack.c.h.b16 %v3203
    %v5993 = vunpack.c.l.b16 %v3204
    %v5994 = vunpack.c.h.b16 %v3204
    %v5995 = vunpack.c.l.b16 %v3205
    %v5996 = vunpack.c.h.b16 %v3205
    %v5997 = vunpack.c.l.b16 %v3206
    %v5998 = vunpack.c.h.b16 %v3206
    %v5999 = vunpack.c.l.b16 %v3207
    %v6000 = vunpack.c.h.b16 %v3207
    %v6001 = vunpack.c.l.b16 %v3208
    %v6002 = vunpack.c.h.b16 %v3208
    %v6003 = vunpack.c.l.b16 %v3209
    %v6004 = vunpack.c.h.b16 %v3209
    %v6005 = vunpack.c.l.b16 %v3210
    %v6006 = vunpack.c.h.b16 %v3210
    %v6007 = vunpack.c.l.b16 %v3211
    %v6008 = vunpack.c.h.b16 %v3211
    %v6009 = vunpack.c.l.b16 %v3212
    %v6010 = vunpack.c.h.b16 %v3212
    %v6011 = vunpack.c.l.b16 %v3213
    %v6012 = vunpack.c.h.b16 %v3213
    %v6013 = vunpack.c.l.b16 %v3214
    %v6014 = vunpack.c.h.b16 %v3214
    %v6015 = vunpack.c.l.b16 %v3215
    %v6016 = vunpack.c.h.b16 %v3215
    %v6017 = vunpack.c.l.b16 %v3216
    %v6018 = vunpack.c.h.b16 %v3216
    %v6019 = vunpack.c.l.b16 %v3217
    %v6020 = vunpack.c.h.b16 %v3217
    %v6021 = vunpack.c.l.b16 %v3218
    %v6022 = vunpack.c.h.b16 %v3218
    %v6023 = vunpack.c.l.b16 %v3219
    %v6024 = vunpack.c.h.b16 %v3219
    %v6025 = vunpack.c.l.b16 %v3220
    %v6026 = vunpack.c.h.b16 %v3220
    %v6027 = vunpack.c.l.b16 %v3221
    %v6028 = vunpack.c.h.b16 %v3221
    %v6029 = vunpack.c.l.b16 %v3222
    %v6030 = vunpack.c.h.b16 %v3222
    %v6031 = vunpack.c.l.b16 %v3223
    %v6032 = vunpack.c.h.b16 %v3223
    %v6033 = vunpack.c.l.b16 %v3224
    %v6034 = vunpack.c.h.b16 %v3224
    %v6035 = vunpack.c.l.b16 %v3225
    %v6036 = vunpack.c.h.b16 %v3225
    %v6037 = vunpack.c.l.b16 %v3226
    %v6038 = vunpack.c.h.b16 %v3226
    %v6039 = vunpack.c.l.b16 %v3227
    %v6040 = vunpack.c.h.b16 %v3227
    %v6041 = vunpack.c.l.b16 %v3228
    %v6042 = vunpack.c.h.b16 %v3228
    %v6043 = vunpack.c.l.b16 %v3229
    %v6044 = vunpack.c.h.b16 %v3229
    %v6045 = vunpack.c.l.b16 %v3230
    %v6046 = vunpack.c.h.b16 %v3230
    %v6047 = vunpack.c.l.b16 %v3231
    %v6048 = vunpack.c.h.b16 %v3231
    %v6049 = vunpack.c.l.b16 %v3232
    %v6050 = vunpack.c.h.b16 %v3232
    %v6051 = vunpack.c.l.b16 %v3233
    %v6052 = vunpack.c.h.b16 %v3233
    %v6053 = vunpack.c.l.b16 %v3234
    %v6054 = vunpack.c.h.b16 %v3234
    %v6055 = vunpack.c.l.b16 %v3235
    %v6056 = vunpack.c.h.b16 %v3235
    %v6057 = vunpack.c.l.b16 %v3236
    %v6058 = vunpack.c.h.b16 %v3236
    %v6059 = vunpack.c.l.b16 %v3237
    %v6060 = vunpack.c.h.b16 %v3237
    %v6061 = vunpack.c.l.b16 %v3238
    %v6062 = vunpack.c.h.b16 %v3238
    %v6063 = vunpack.c.l.b16 %v3239
    %v6064 = vunpack.c.h.b16 %v3239
    %v6065 = vunpack.c.l.b16 %v3240
    %v6066 = vunpack.c.h.b16 %v3240
    %v6067 = vunpack.c.l.b16 %v3241
    %v6068 = vunpack.c.h.b16 %v3241
    %v6069 = vunpack.c.l.b16 %v3242
    %v6070 = vunpack.c.h.b16 %v3242
    %v6071 = vunpack.c.l.b16 %v3243
    %v6072 = vunpack.c.h.b16 %v3243
    %v6073 = vunpack.c.l.b16 %v3244
    %v6074 = vunpack.c.h.b16 %v3244
    %v6075 = vunpack.c.l.b16 %v3245
    %v6076 = vunpack.c.h.b16 %v3245
    %v6077 = vunpack.c.l.b16 %v3246
    %v6078 = vunpack.c.h.b16 %v3246
    %v6079 = vunpack.c.l.b16 %v3247
    %v6080 = vunpack.c.h.b16 %v3247
    %v6081 = vunpack.c.l.b16 %v3248
    %v6082 = vunpack.c.h.b16 %v3248
    %v6083 = vunpack.c.l.b16 %v3249
    %v6084 = vunpack.c.h.b16 %v3249
    %v6085 = vunpack.c.l.b16 %v3250
    %v6086 = vunpack.c.h.b16 %v3250
    %v6087 = vunpack.c.l.b16 %v3251
    %v6088 = vunpack.c.h.b16 %v3251
    %v6089 = vunpack.c.l.b16 %v3252
    %v6090 = vunpack.c.h.b16 %v3252
    %v6091 = vunpack.c.l.b16 %v3253
    %v6092 = vunpack.c.h.b16 %v3253
    %v6093 = vunpack.c.l.b16 %v3254
    %v6094 = vunpack.c.h.b16 %v3254
    %v6095 = vunpack.c.l.b16 %v3255
    %v6096 = vunpack.c.h.b16 %v3255
    %v6097 = vunpack.c.l.b16 %v3256
    %v6098 = vunpack.c.h.b16 %v3256
    %v6099 = vunpack.c.l.b16 %v3257
    %v6100 = vunpack.c.h.b16 %v3257
    %v6101 = vunpack.c.l.b16 %v3258
    %v6102 = vunpack.c.h.b16 %v3258
    %v6103 = vunpack.c.l.b16 %v3259
    %v6104 = vunpack.c.h.b16 %v3259
    %v6105 = vunpack.c.l.b16 %v3260
    %v6106 = vunpack.c.h.b16 %v3260
    %v6107 = vunpack.c.l.b16 %v3261
    %v6108 = vunpack.c.h.b16 %v3261
    %v6109 = vunpack.c.l.b16 %v3262
    %v6110 = vunpack.c.h.b16 %v3262
    %v6111 = vunpack.c.l.b16 %v3263
    %v6112 = vunpack.c.h.b16 %v3263
    %v6113 = vunpack.c.l.b16 %v3264
    %v6114 = vunpack.c.h.b16 %v3264
    %v6115 = vunpack.c.l.b16 %v3265
    %v6116 = vunpack.c.h.b16 %v3265
    %v6117 = vunpack.c.l.b16 %v3266
    %v6118 = vunpack.c.h.b16 %v3266
    %v6119 = vunpack.c.l.b16 %v3267
    %v6120 = vunpack.c.h.b16 %v3267
    %v6121 = vunpack.c.l.b16 %v3268
    %v6122 = vunpack.c.h.b16 %v3268
    %v6123 = vunpack.c.l.b16 %v3269
    %v6124 = vunpack.c.h.b16 %v3269
    %v6125 = vunpack.c.l.b16 %v3270
    %v6126 = vunpack.c.h.b16 %v3270
    %v6127 = vunpack.c.l.b16 %v3271
    %v6128 = vunpack.c.h.b16 %v3271
    %v6129 = vunpack.c.l.b16 %v3272
    %v6130 = vunpack.c.h.b16 %v3272
    %v6131 = vunpack.c.l.b16 %v3273
    %v6132 = vunpack.c.h.b16 %v3273
    %v6133 = vunpack.c.l.b16 %v3274
    %v6134 = vunpack.c.h.b16 %v3274
    %v6135 = vunpack.c.l.b16 %v3275
    %v6136 = vunpack.c.h.b16 %v3275
    %v6137 = vunpack.c.l.b16 %v3276
    %v6138 = vunpack.c.h.b16 %v3276
    %v6139 = vunpack.c.l.b16 %v3277
    %v6140 = vunpack.c.h.b16 %v3277
    %v6141 = vunpack.c.l.b16 %v3278
    %v6142 = vunpack.c.h.b16 %v3278
    %v6143 = vunpack.c.l.b16 %v3279
    %v6144 = vunpack.c.h.b16 %v3279
    %v6145 = vunpack.c.l.b16 %v3280
    %v6146 = vunpack.c.h.b16 %v3280
    %v6147 = vunpack.c.l.b16 %v3281
    %v6148 = vunpack.c.h.b16 %v3281
    %v6149 = vunpack.c.l.b16 %v3282
    %v6150 = vunpack.c.h.b16 %v3282
    %v6151 = vunpack.c.l.b16 %v3283
    %v6152 = vunpack.c.h.b16 %v3283
    %v6153 = vunpack.c.l.b16 %v3284
    %v6154 = vunpack.c.h.b16 %v3284
    %v6155 = vunpack.c.l.b16 %v3285
    %v6156 = vunpack.c.h.b16 %v3285
    %v6157 = vunpack.c.l.b16 %v3286
    %v6158 = vunpack.c.h.b16 %v3286
    %v6159 = vunpack.c.l.b16 %v3287
    %v6160 = vunpack.c.h.b16 %v3287
    %v6161 = vunpack.c.l.b16 %v3288
    %v6162 = vunpack.c.h.b16 %v3288
    %v6163 = vunpack.c.l.b16 %v3289
    %v6164 = vunpack.c.h.b16 %v3289
    %v6165 = vunpack.c.l.b16 %v3290
    %v6166 = vunpack.c.h.b16 %v3290
    %v6167 = vunpack.c.l.b16 %v3291
    %v6168 = vunpack.c.h.b16 %v3291
    %v6169 = vunpack.c.l.b16 %v3292
    %v6170 = vunpack.c.h.b16 %v3292
    %v6171 = vunpack.c.l.b16 %v3293
    %v6172 = vunpack.c.h.b16 %v3293
    %v6173 = vunpack.c.l.b16 %v3294
    %v6174 = vunpack.c.h.b16 %v3294
    %v6175 = vunpack.c.l.b16 %v3295
    %v6176 = vunpack.c.h.b16 %v3295
    %v6177 = vunpack.c.l.b16 %v3296
    %v6178 = vunpack.c.h.b16 %v3296
    %v6179 = vunpack.c.l.b16 %v3297
    %v6180 = vunpack.c.h.b16 %v3297
    %v6181 = vunpack.c.l.b16 %v3298
    %v6182 = vunpack.c.h.b16 %v3298
    %v6183 = vunpack.c.l.b16 %v3299
    %v6184 = vunpack.c.h.b16 %v3299
    %v6185 = vunpack.c.l.b16 %v3300
    %v6186 = vunpack.c.h.b16 %v3300
    %v6187 = vunpack.c.l.b16 %v3301
    %v6188 = vunpack.c.h.b16 %v3301
    %v6189 = vunpack.c.l.b16 %v3302
    %v6190 = vunpack.c.h.b16 %v3302
    %v6191 = vunpack.c.l.b16 %v3303
    %v6192 = vunpack.c.h.b16 %v3303
    %v6193 = vunpack.c.l.b16 %v3304
    %v6194 = vunpack.c.h.b16 %v3304
    %v6195 = vunpack.c.l.b16 %v3305
    %v6196 = vunpack.c.h.b16 %v3305
    %v6197 = vunpack.c.l.b16 %v3306
    %v6198 = vunpack.c.h.b16 %v3306
    %v6199 = vunpack.c.l.b16 %v3307
    %v6200 = vunpack.c.h.b16 %v3307
    %v6201 = vunpack.c.l.b16 %v3308
    %v6202 = vunpack.c.h.b16 %v3308
    %v6203 = vunpack.c.l.b16 %v3309
    %v6204 = vunpack.c.h.b16 %v3309
    %v6205 = vunpack.c.l.b16 %v3310
    %v6206 = vunpack.c.h.b16 %v3310
    %v6207 = vunpack.c.l.b16 %v3311
    %v6208 = vunpack.c.h.b16 %v3311
    %v6209 = vunpack.c.l.b16 %v3312
    %v6210 = vunpack.c.h.b16 %v3312
    %v6211 = vunpack.c.l.b16 %v3313
    %v6212 = vunpack.c.h.b16 %v3313
    %v6213 = vunpack.c.l.b16 %v3314
    %v6214 = vunpack.c.h.b16 %v3314
    %v6215 = vunpack.c.l.b16 %v3315
    %v6216 = vunpack.c.h.b16 %v3315
    %v6217 = vunpack.c.l.b16 %v3316
    %v6218 = vunpack.c.h.b16 %v3316
    %v6219 = vunpack.c.l.b16 %v3317
    %v6220 = vunpack.c.h.b16 %v3317
    %v6221 = vunpack.c.l.b16 %v3318
    %v6222 = vunpack.c.h.b16 %v3318
    %v6223 = vunpack.c.l.b16 %v3319
    %v6224 = vunpack.c.h.b16 %v3319
    %v6225 = vunpack.c.l.b16 %v3320
    %v6226 = vunpack.c.h.b16 %v3320
    %v6227 = vunpack.c.l.b16 %v3321
    %v6228 = vunpack.c.h.b16 %v3321
    %v6229 = vunpack.c.l.b16 %v3322
    %v6230 = vunpack.c.h.b16 %v3322
    %v6231 = vunpack.c.l.b16 %v3323
    %v6232 = vunpack.c.h.b16 %v3323
    %v6233 = vunpack.c.l.b16 %v3324
    %v6234 = vunpack.c.h.b16 %v3324
    %v6235 = vunpack.c.l.b16 %v3325
    %v6236 = vunpack.c.h.b16 %v3325
    %v6237 = vunpack.c.l.b16 %v3326
    %v6238 = vunpack.c.h.b16 %v3326
    %v6239 = vunpack.c.l.b16 %v3327
    %v6240 = vunpack.c.h.b16 %v3327
    %v6241 = vunpack.c.l.b16 %v3328
    %v6242 = vunpack.c.h.b16 %v3328
    %v6243 = vunpack.c.l.b16 %v3329
    %v6244 = vunpack.c.h.b16 %v3329
    %v6245 = vunpack.c.l.b16 %v3330
    %v6246 = vunpack.c.h.b16 %v3330
    %v6247 = vunpack.c.l.b16 %v3331
    %v6248 = vunpack.c.h.b16 %v3331
    %v6249 = vunpack.c.l.b16 %v3332
    %v6250 = vunpack.c.h.b16 %v3332
    %v6251 = vunpack.c.l.b16 %v3333
    %v6252 = vunpack.c.h.b16 %v3333
    %v6253 = vunpack.c.l.b16 %v3334
    %v6254 = vunpack.c.h.b16 %v3334
    %v6255 = vunpack.c.l.b16 %v3335
    %v6256 = vunpack.c.h.b16 %v3335
    %v6257 = vunpack.c.l.b16 %v3336
    %v6258 = vunpack.c.h.b16 %v3336
    %v6259 = vunpack.c.l.b16 %v3337
    %v6260 = vunpack.c.h.b16 %v3337
    %v6261 = vunpack.c.l.b16 %v3338
    %v6262 = vunpack.c.h.b16 %v3338
    %v6263 = vunpack.c.l.b16 %v3339
    %v6264 = vunpack.c.h.b16 %v3339
    %v6265 = vunpack.c.l.b16 %v3340
    %v6266 = vunpack.c.h.b16 %v3340
    %v6267 = vunpack.c.l.b16 %v3341
    %v6268 = vunpack.c.h.b16 %v3341
    %v6269 = vunpack.c.l.b16 %v3342
    %v6270 = vunpack.c.h.b16 %v3342
    %v6271 = vunpack.c.l.b16 %v3343
    %v6272 = vunpack.c.h.b16 %v3343
    %v6273 = vunpack.c.l.b16 %v3344
    %v6274 = vunpack.c.h.b16 %v3344
    %v6275 = vunpack.c.l.b16 %v3345
    %v6276 = vunpack.c.h.b16 %v3345
    %v6277 = vunpack.c.l.b16 %v3346
    %v6278 = vunpack.c.h.b16 %v3346
    %v6279 = vunpack.c.l.b16 %v3347
    %v6280 = vunpack.c.h.b16 %v3347
    %v6281 = vunpack.c.l.b16 %v3348
    %v6282 = vunpack.c.h.b16 %v3348
    %v6283 = vunpack.c.l.b16 %v3349
    %v6284 = vunpack.c.h.b16 %v3349
    %v6285 = vunpack.c.l.b16 %v3350
    %v6286 = vunpack.c.h.b16 %v3350
    %v6287 = vunpack.c.l.b16 %v3351
    %v6288 = vunpack.c.h.b16 %v3351
    %v6289 = vunpack.c.l.b16 %v3352
    %v6290 = vunpack.c.h.b16 %v3352
    %v6291 = vunpack.c.l.b16 %v3353
    %v6292 = vunpack.c.h.b16 %v3353
    %v6293 = vunpack.c.l.b16 %v3354
    %v6294 = vunpack.c.h.b16 %v3354
    %v6295 = vunpack.c.l.b16 %v3355
    %v6296 = vunpack.c.h.b16 %v3355
    %v6297 = vunpack.c.l.b16 %v3356
    %v6298 = vunpack.c.h.b16 %v3356
    %v6299 = vunpack.c.l.b16 %v3357
    %v6300 = vunpack.c.h.b16 %v3357
    %v6301 = vunpack.c.l.b16 %v3358
    %v6302 = vunpack.c.h.b16 %v3358
    %v6303 = vunpack.c.l.b16 %v3359
    %v6304 = vunpack.c.h.b16 %v3359
    %v6305 = vunpack.c.l.b16 %v3360
    %v6306 = vunpack.c.h.b16 %v3360
    %v6307 = vunpack.c.l.b16 %v3361
    %v6308 = vunpack.c.h.b16 %v3361
    %v6309 = vunpack.c.l.b16 %v3362
    %v6310 = vunpack.c.h.b16 %v3362
    %v6311 = vunpack.c.l.b16 %v3363
    %v6312 = vunpack.c.h.b16 %v3363
    %v6313 = vunpack.c.l.b16 %v3364
    %v6314 = vunpack.c.h.b16 %v3364
    %v6315 = vunpack.c.l.b16 %v3365
    %v6316 = vunpack.c.h.b16 %v3365
    %v6317 = vunpack.c.l.b16 %v3366
    %v6318 = vunpack.c.h.b16 %v3366
    %v6319 = vunpack.c.l.b16 %v3367
    %v6320 = vunpack.c.h.b16 %v3367
    %v6321 = vunpack.c.l.b16 %v3368
    %v6322 = vunpack.c.h.b16 %v3368
    %v6323 = vunpack.c.l.b16 %v3369
    %v6324 = vunpack.c.h.b16 %v3369
    %v6325 = vunpack.c.l.b16 %v3370
    %v6326 = vunpack.c.h.b16 %v3370
    %v6327 = vunpack.c.l.b16 %v3371
    %v6328 = vunpack.c.h.b16 %v3371
    %v6329 = vunpack.c.l.b16 %v3372
    %v6330 = vunpack.c.h.b16 %v3372
    %v6331 = vunpack.c.l.b16 %v3373
    %v6332 = vunpack.c.h.b16 %v3373
    %v6333 = vunpack.c.l.b16 %v3374
    %v6334 = vunpack.c.h.b16 %v3374
    %v6335 = vunpack.c.l.b16 %v3375
    %v6336 = vunpack.c.h.b16 %v3375
    %v6337 = vunpack.c.l.b16 %v3376
    %v6338 = vunpack.c.h.b16 %v3376
    %v6339 = vunpack.c.l.b16 %v3377
    %v6340 = vunpack.c.h.b16 %v3377
    %v6341 = vunpack.c.l.b16 %v3378
    %v6342 = vunpack.c.h.b16 %v3378
    %v6343 = vunpack.c.l.b16 %v3379
    %v6344 = vunpack.c.h.b16 %v3379
    %v6345 = vunpack.c.l.b16 %v3380
    %v6346 = vunpack.c.h.b16 %v3380
    %v6347 = vunpack.c.l.b16 %v3381
    %v6348 = vunpack.c.h.b16 %v3381
    %v6349 = vunpack.c.l.b16 %v3382
    %v6350 = vunpack.c.h.b16 %v3382
    %v6351 = vunpack.c.l.b16 %v3383
    %v6352 = vunpack.c.h.b16 %v3383
    %v6353 = vunpack.c.l.b16 %v3384
    %v6354 = vunpack.c.h.b16 %v3384
    %v6355 = vunpack.c.l.b16 %v3385
    %v6356 = vunpack.c.h.b16 %v3385
    %v6357 = vunpack.c.l.b16 %v3386
    %v6358 = vunpack.c.h.b16 %v3386
    %v6359 = vunpack.c.l.b16 %v3387
    %v6360 = vunpack.c.h.b16 %v3387
    %v6361 = vunpack.c.l.b16 %v3388
    %v6362 = vunpack.c.h.b16 %v3388
    %v6363 = vunpack.c.l.b16 %v3389
    %v6364 = vunpack.c.h.b16 %v3389
    %v6365 = vunpack.c.l.b16 %v3390
    %v6366 = vunpack.c.h.b16 %v3390
    %v6367 = vunpack.c.l.b16 %v3391
    %v6368 = vunpack.c.h.b16 %v3391
    %v6369 = vunpack.c.l.b16 %v3392
    %v6370 = vunpack.c.h.b16 %v3392
    %v6371 = vunpack.c.l.b16 %v3393
    %v6372 = vunpack.c.h.b16 %v3393
    %v6373 = vunpack.c.l.b16 %v3394
    %v6374 = vunpack.c.h.b16 %v3394
    %v6375 = vunpack.c.l.b16 %v3395
    %v6376 = vunpack.c.h.b16 %v3395
    %v6377 = vunpack.c.l.b16 %v3396
    %v6378 = vunpack.c.h.b16 %v3396
    %v6379 = vunpack.c.l.b16 %v3397
    %v6380 = vunpack.c.h.b16 %v3397
    %v6381 = vunpack.c.l.b16 %v3398
    %v6382 = vunpack.c.h.b16 %v3398
    %v6383 = vunpack.c.l.b16 %v3399
    %v6384 = vunpack.c.h.b16 %v3399
    %v6385 = vunpack.c.l.b16 %v3400
    %v6386 = vunpack.c.h.b16 %v3400
    %v6387 = vunpack.c.l.b16 %v3401
    %v6388 = vunpack.c.h.b16 %v3401
    %v6389 = vunpack.c.l.b16 %v3402
    %v6390 = vunpack.c.h.b16 %v3402
    %v6391 = vunpack.c.l.b16 %v3403
    %v6392 = vunpack.c.h.b16 %v3403
    %v6393 = vunpack.c.l.b16 %v3404
    %v6394 = vunpack.c.h.b16 %v3404
    %v6395 = vunpack.c.l.b16 %v3405
    %v6396 = vunpack.c.h.b16 %v3405
    %v6397 = vunpack.c.l.b16 %v3406
    %v6398 = vunpack.c.h.b16 %v3406
    %v6399 = vunpack.c.l.b16 %v3407
    %v6400 = vunpack.c.h.b16 %v3407
    %v6401 = vunpack.c.l.b16 %v3408
    %v6402 = vunpack.c.h.b16 %v3408
    %v6403 = vunpack.c.l.b16 %v3409
    %v6404 = vunpack.c.h.b16 %v3409
    %v6405 = vunpack.c.l.b16 %v3410
    %v6406 = vunpack.c.h.b16 %v3410
    %v6407 = vunpack.c.l.b16 %v3411
    %v6408 = vunpack.c.h.b16 %v3411
    %v6409 = vunpack.c.l.b16 %v3412
    %v6410 = vunpack.c.h.b16 %v3412
    %v6411 = vunpack.c.l.b16 %v3413
    %v6412 = vunpack.c.h.b16 %v3413
    %v6413 = vunpack.c.l.b16 %v3414
    %v6414 = vunpack.c.h.b16 %v3414
    %v6415 = vunpack.c.l.b16 %v3415
    %v6416 = vunpack.c.h.b16 %v3415
    %v6417 = vunpack.c.l.b16 %v3416
    %v6418 = vunpack.c.h.b16 %v3416
    %v6419 = vunpack.c.l.b16 %v3417
    %v6420 = vunpack.c.h.b16 %v3417
    %v6421 = vunpack.c.l.b16 %v3418
    %v6422 = vunpack.c.h.b16 %v3418
    %v6423 = vunpack.c.l.b16 %v3419
    %v6424 = vunpack.c.h.b16 %v3419
    %v6425 = vunpack.c.l.b16 %v3420
    %v6426 = vunpack.c.h.b16 %v3420
    %v6427 = vunpack.c.l.b16 %v3421
    %v6428 = vunpack.c.h.b16 %v3421
    %v6429 = vunpack.c.l.b16 %v3422
    %v6430 = vunpack.c.h.b16 %v3422
    %v6431 = vunpack.c.l.b16 %v3423
    %v6432 = vunpack.c.h.b16 %v3423
    %v6433 = vunpack.c.l.b16 %v3424
    %v6434 = vunpack.c.h.b16 %v3424
    %v6435 = vunpack.c.l.b16 %v3425
    %v6436 = vunpack.c.h.b16 %v3425
    %v6437 = vunpack.c.l.b16 %v3426
    %v6438 = vunpack.c.h.b16 %v3426
    %v6439 = vunpack.c.l.b16 %v3427
    %v6440 = vunpack.c.h.b16 %v3427
    %v6441 = vunpack.c.l.b16 %v3428
    %v6442 = vunpack.c.h.b16 %v3428
    %v6443 = vunpack.c.l.b16 %v3429
    %v6444 = vunpack.c.h.b16 %v3429
    %v6445 = vunpack.c.l.b16 %v3430
    %v6446 = vunpack.c.h.b16 %v3430
    %v6447 = vunpack.c.l.b16 %v3431
    %v6448 = vunpack.c.h.b16 %v3431
    %v6449 = vunpack.c.l.b16 %v3432
    %v6450 = vunpack.c.h.b16 %v3432
    %v6451 = vunpack.c.l.b16 %v3433
    %v6452 = vunpack.c.h.b16 %v3433
    %v6453 = vunpack.c.l.b16 %v3434
    %v6454 = vunpack.c.h.b16 %v3434
    %v6455 = vunpack.c.l.b16 %v3435
    %v6456 = vunpack.c.h.b16 %v3435
    %v6457 = vunpack.c.l.b16 %v3436
    %v6458 = vunpack.c.h.b16 %v3436
    %v6459 = vunpack.c.l.b16 %v3437
    %v6460 = vunpack.c.h.b16 %v3437
    %v6461 = vunpack.c.l.b16 %v3438
    %v6462 = vunpack.c.h.b16 %v3438
    %v6463 = vunpack.c.l.b16 %v3439
    %v6464 = vunpack.c.h.b16 %v3439
    %v6465 = vunpack.c.l.b16 %v3440
    %v6466 = vunpack.c.h.b16 %v3440
    %v6467 = vunpack.c.l.b16 %v3441
    %v6468 = vunpack.c.h.b16 %v3441
    %v6469 = vunpack.c.l.b16 %v3442
    %v6470 = vunpack.c.h.b16 %v3442
    %v6471 = vunpack.c.l.b16 %v3443
    %v6472 = vunpack.c.h.b16 %v3443
    %v6473 = vunpack.c.l.b16 %v3444
    %v6474 = vunpack.c.h.b16 %v3444
    %v6475 = vunpack.c.l.b16 %v3445
    %v6476 = vunpack.c.h.b16 %v3445
    %v6477 = vunpack.c.l.b16 %v3446
    %v6478 = vunpack.c.h.b16 %v3446
    %v6479 = vunpack.c.l.b16 %v3447
    %v6480 = vunpack.c.h.b16 %v3447
    %v6481 = vunpack.c.l.b16 %v3448
    %v6482 = vunpack.c.h.b16 %v3448
    %v6483 = vunpack.c.l.b16 %v3449
    %v6484 = vunpack.c.h.b16 %v3449
    %v6485 = vunpack.c.l.b16 %v3450
    %v6486 = vunpack.c.h.b16 %v3450
    %v6487 = vunpack.c.l.b16 %v3451
    %v6488 = vunpack.c.h.b16 %v3451
    %v6489 = vunpack.c.l.b16 %v3452
    %v6490 = vunpack.c.h.b16 %v3452
    %v6491 = vunpack.c.l.b16 %v3453
    %v6492 = vunpack.c.h.b16 %v3453
    %v6493 = vunpack.c.l.b16 %v3454
    %v6494 = vunpack.c.h.b16 %v3454
    %v6495 = vunpack.c.l.b16 %v3455
    %v6496 = vunpack.c.h.b16 %v3455
    %v6497 = vunpack.c.l.b16 %v3456
    %v6498 = vunpack.c.h.b16 %v3456
    %v6499 = vunpack.c.l.b16 %v3457
    %v6500 = vunpack.c.h.b16 %v3457
    %v6501 = vunpack.c.l.b16 %v3458
    %v6502 = vunpack.c.h.b16 %v3458
    %v6503 = vunpack.c.l.b16 %v3459
    %v6504 = vunpack.c.h.b16 %v3459
    %v6505 = vunpack.c.l.b16 %v3460
    %v6506 = vunpack.c.h.b16 %v3460
    %v6507 = vunpack.c.l.b16 %v3461
    %v6508 = vunpack.c.h.b16 %v3461
    %v6509 = vunpack.c.l.b16 %v3462
    %v6510 = vunpack.c.h.b16 %v3462
    %v6511 = vunpack.c.l.b16 %v3463
    %v6512 = vunpack.c.h.b16 %v3463
    %v6513 = vunpack.c.l.b16 %v3464
    %v6514 = vunpack.c.h.b16 %v3464
    %v6515 = vunpack.c.l.b16 %v3465
    %v6516 = vunpack.c.h.b16 %v3465
    %v6517 = vunpack.c.l.b16 %v3466
    %v6518 = vunpack.c.h.b16 %v3466
    %v6519 = vunpack.c.l.b16 %v3467
    %v6520 = vunpack.c.h.b16 %v3467
    %v6521 = vunpack.c.l.b16 %v3468
    %v6522 = vunpack.c.h.b16 %v3468
    %v6523 = vunpack.c.l.b16 %v3469
    %v6524 = vunpack.c.h.b16 %v3469
    %v6525 = vunpack.c.l.b16 %v3470
    %v6526 = vunpack.c.h.b16 %v3470
    %v6527 = vunpack.c.l.b16 %v3471
    %v6528 = vunpack.c.h.b16 %v3471
    %v6529 = vunpack.c.l.b16 %v3472
    %v6530 = vunpack.c.h.b16 %v3472
    %v6531 = vunpack.c.l.b16 %v3473
    %v6532 = vunpack.c.h.b16 %v3473
    %v6533 = vunpack.c.l.b16 %v3474
    %v6534 = vunpack.c.h.b16 %v3474
    %v6535 = vunpack.c.l.b16 %v3475
    %v6536 = vunpack.c.h.b16 %v3475
    %v6537 = vunpack.c.l.b16 %v3476
    %v6538 = vunpack.c.h.b16 %v3476
    %v6539 = vunpack.c.l.b16 %v3477
    %v6540 = vunpack.c.h.b16 %v3477
    %v6541 = vunpack.c.l.b16 %v3478
    %v6542 = vunpack.c.h.b16 %v3478
    %v6543 = vunpack.c.l.b16 %v3479
    %v6544 = vunpack.c.h.b16 %v3479
    %v6545 = vunpack.c.l.b16 %v3480
    %v6546 = vunpack.c.h.b16 %v3480
    %v6547 = vunpack.c.l.b16 %v3481
    %v6548 = vunpack.c.h.b16 %v3481
    %v6549 = vunpack.c.l.b16 %v3482
    %v6550 = vunpack.c.h.b16 %v3482
    %v6551 = vunpack.c.l.b16 %v3483
    %v6552 = vunpack.c.h.b16 %v3483
    %v6553 = vunpack.c.l.b16 %v3484
    %v6554 = vunpack.c.h.b16 %v3484
    %v6555 = vunpack.c.l.b16 %v3485
    %v6556 = vunpack.c.h.b16 %v3485
    %v6557 = vunpack.c.l.b16 %v3486
    %v6558 = vunpack.c.h.b16 %v3486
    %v6559 = vunpack.c.l.b16 %v3487
    %v6560 = vunpack.c.h.b16 %v3487
    %v6561 = vunpack.c.l.b16 %v3488
    %v6562 = vunpack.c.h.b16 %v3488
    %v6563 = vunpack.c.l.b16 %v3489
    %v6564 = vunpack.c.h.b16 %v3489
    %v6565 = vunpack.c.l.b16 %v3490
    %v6566 = vunpack.c.h.b16 %v3490
    %v6567 = vunpack.c.l.b16 %v3491
    %v6568 = vunpack.c.h.b16 %v3491
    %v6569 = vunpack.c.l.b16 %v3492
    %v6570 = vunpack.c.h.b16 %v3492
    %v6571 = vunpack.c.l.b16 %v3493
    %v6572 = vunpack.c.h.b16 %v3493
    %v6573 = vunpack.c.l.b16 %v3494
    %v6574 = vunpack.c.h.b16 %v3494
    %v6575 = vunpack.c.l.b16 %v3495
    %v6576 = vunpack.c.h.b16 %v3495
    %v6577 = vunpack.c.l.b16 %v3496
    %v6578 = vunpack.c.h.b16 %v3496
    %v6579 = vunpack.c.l.b16 %v3497
    %v6580 = vunpack.c.h.b16 %v3497
    %v6581 = vunpack.c.l.b16 %v3498
    %v6582 = vunpack.c.h.b16 %v3498
    %v6583 = vunpack.c.l.b16 %v3499
    %v6584 = vunpack.c.h.b16 %v3499
    %v6585 = vunpack.c.l.b16 %v3500
    %v6586 = vunpack.c.h.b16 %v3500
    %v6587 = vunpack.c.l.b16 %v3501
    %v6588 = vunpack.c.h.b16 %v3501
    %v6589 = vunpack.c.l.b16 %v3502
    %v6590 = vunpack.c.h.b16 %v3502
    %v6591 = vunpack.c.l.b16 %v3503
    %v6592 = vunpack.c.h.b16 %v3503
    %v6593 = vunpack.c.l.b16 %v3504
    %v6594 = vunpack.c.h.b16 %v3504
    %v6595 = vunpack.c.l.b16 %v3505
    %v6596 = vunpack.c.h.b16 %v3505
    %v6597 = vunpack.c.l.b16 %v3506
    %v6598 = vunpack.c.h.b16 %v3506
    %v6599 = vunpack.c.l.b16 %v3507
    %v6600 = vunpack.c.h.b16 %v3507
    %v6601 = vunpack.c.l.b16 %v3508
    %v6602 = vunpack.c.h.b16 %v3508
    %v6603 = vunpack.c.l.b16 %v3509
    %v6604 = vunpack.c.h.b16 %v3509
    %v6605 = vunpack.c.l.b16 %v3510
    %v6606 = vunpack.c.h.b16 %v3510
    %v6607 = vunpack.c.l.b16 %v3511
    %v6608 = vunpack.c.h.b16 %v3511
    %v6609 = vunpack.c.l.b16 %v3512
    %v6610 = vunpack.c.h.b16 %v3512
    %v6611 = vunpack.c.l.b16 %v3513
    %v6612 = vunpack.c.h.b16 %v3513
    %v6613 = vunpack.c.l.b16 %v3514
    %v6614 = vunpack.c.h.b16 %v3514
    %v6615 = vunpack.c.l.b16 %v3515
    %v6616 = vunpack.c.h.b16 %v3515
    %v6617 = vunpack.c.l.b16 %v3516
    %v6618 = vunpack.c.h.b16 %v3516
    %v6619 = vunpack.c.l.b16 %v3517
    %v6620 = vunpack.c.h.b16 %v3517
    %v6621 = vunpack.c.l.b16 %v3518
    %v6622 = vunpack.c.h.b16 %v3518
    %v6623 = vunpack.c.l.b16 %v3519
    %v6624 = vunpack.c.h.b16 %v3519
    %v6625 = vunpack.c.l.b16 %v3520
    %v6626 = vunpack.c.h.b16 %v3520
    %v6627 = vunpack.c.l.b16 %v3521
    %v6628 = vunpack.c.h.b16 %v3521
    %v6629 = vunpack.c.l.b16 %v3522
    %v6630 = vunpack.c.h.b16 %v3522
    %v6631 = vunpack.c.l.b16 %v3523
    %v6632 = vunpack.c.h.b16 %v3523
    %v6633 = vunpack.c.l.b16 %v3524
    %v6634 = vunpack.c.h.b16 %v3524
    %v6635 = vunpack.c.l.b16 %v3525
    %v6636 = vunpack.c.h.b16 %v3525
    %v6637 = vunpack.c.l.b16 %v3526
    %v6638 = vunpack.c.h.b16 %v3526
    %v6639 = vunpack.c.l.b16 %v3527
    %v6640 = vunpack.c.h.b16 %v3527
    %v6641 = vunpack.c.l.b16 %v3528
    %v6642 = vunpack.c.h.b16 %v3528
    %v6643 = vunpack.c.l.b16 %v3529
    %v6644 = vunpack.c.h.b16 %v3529
    %v6645 = vunpack.c.l.b16 %v3530
    %v6646 = vunpack.c.h.b16 %v3530
    %v6647 = vunpack.c.l.b16 %v3531
    %v6648 = vunpack.c.h.b16 %v3531
    %v6649 = vunpack.c.l.b16 %v3532
    %v6650 = vunpack.c.h.b16 %v3532
    %v6651 = vunpack.c.l.b16 %v3533
    %v6652 = vunpack.c.h.b16 %v3533
    %v6653 = vunpack.c.l.b16 %v3534
    %v6654 = vunpack.c.h.b16 %v3534
    %v6655 = vunpack.c.l.b16 %v3535
    %v6656 = vunpack.c.h.b16 %v3535
    %v6657 = vunpack.c.l.b16 %v3536
    %v6658 = vunpack.c.h.b16 %v3536
    %v6659 = vunpack.c.l.b16 %v3537
    %v6660 = vunpack.c.h.b16 %v3537
    %v6661 = vunpack.c.l.b16 %v3538
    %v6662 = vunpack.c.h.b16 %v3538
    %v6663 = vunpack.c.l.b16 %v3539
    %v6664 = vunpack.c.h.b16 %v3539
    %v6665 = vunpack.c.l.b16 %v3540
    %v6666 = vunpack.c.h.b16 %v3540
    %v6667 = vunpack.c.l.b16 %v3541
    %v6668 = vunpack.c.h.b16 %v3541
    %v6669 = vunpack.c.l.b16 %v3542
    %v6670 = vunpack.c.h.b16 %v3542
    %v6671 = vunpack.c.l.b16 %v3543
    %v6672 = vunpack.c.h.b16 %v3543
    %v6673 = vunpack.c.l.b16 %v3544
    %v6674 = vunpack.c.h.b16 %v3544
    %v6675 = vunpack.c.l.b16 %v3545
    %v6676 = vunpack.c.h.b16 %v3545
    %v6677 = vunpack.c.l.b16 %v3546
    %v6678 = vunpack.c.h.b16 %v3546
    %v6679 = vunpack.c.l.b16 %v3547
    %v6680 = vunpack.c.h.b16 %v3547
    %v6681 = vunpack.c.l.b16 %v3548
    %v6682 = vunpack.c.h.b16 %v3548
    %v6683 = vunpack.c.l.b16 %v3549
    %v6684 = vunpack.c.h.b16 %v3549
    %v6685 = vunpack.c.l.b16 %v3550
    %v6686 = vunpack.c.h.b16 %v3550
    %v6687 = vunpack.c.l.b16 %v3551
    %v6688 = vunpack.c.h.b16 %v3551
    %v6689 = vunpack.c.l.b16 %v3552
    %v6690 = vunpack.c.h.b16 %v3552
    %v6691 = vunpack.c.l.b16 %v3553
    %v6692 = vunpack.c.h.b16 %v3553
    %v6693 = vunpack.c.l.b16 %v3554
    %v6694 = vunpack.c.h.b16 %v3554
    %v6695 = vunpack.c.l.b16 %v3555
    %v6696 = vunpack.c.h.b16 %v3555
    %v6697 = vunpack.c.l.b16 %v3556
    %v6698 = vunpack.c.h.b16 %v3556
    %v6699 = vunpack.c.l.b16 %v3557
    %v6700 = vunpack.c.h.b16 %v3557
    %v6701 = vunpack.c.l.b16 %v3558
    %v6702 = vunpack.c.h.b16 %v3558
    %v6703 = vunpack.c.l.b16 %v3559
    %v6704 = vunpack.c.h.b16 %v3559
    %v6705 = vunpack.c.l.b16 %v3560
    %v6706 = vunpack.c.h.b16 %v3560
    %v6707 = vunpack.c.l.b16 %v3561
    %v6708 = vunpack.c.h.b16 %v3561
    %v6709 = vunpack.c.l.b16 %v3562
    %v6710 = vunpack.c.h.b16 %v3562
    %v6711 = vunpack.c.l.b16 %v3563
    %v6712 = vunpack.c.h.b16 %v3563
    %v6713 = vunpack.c.l.b16 %v3564
    %v6714 = vunpack.c.h.b16 %v3564
    %v6715 = vunpack.c.l.b16 %v3565
    %v6716 = vunpack.c.h.b16 %v3565
    %v6717 = vunpack.c.l.b16 %v3566
    %v6718 = vunpack.c.h.b16 %v3566
    %v6719 = vunpack.c.l.b16 %v3567
    %v6720 = vunpack.c.h.b16 %v3567
    %v6721 = vunpack.c.l.b16 %v3568
    %v6722 = vunpack.c.h.b16 %v3568
    %v6723 = vunpack.c.l.b16 %v3569
    %v6724 = vunpack.c.h.b16 %v3569
    %v6725 = vunpack.c.l.b16 %v3570
    %v6726 = vunpack.c.h.b16 %v3570
    %v6727 = vpack.c.b16 %v4695, %v4679
    %v6728 = vpack.c.b16 %v4696, %v4680
    %v6729 = vpack.c.b16 %v4697, %v4681
    %v6730 = vpack.c.b16 %v4698, %v4682
    %v6731 = vpack.c.b16 %v4699, %v4683
    %v6732 = vpack.c.b16 %v4700, %v4684
    %v6733 = vpack.c.b16 %v4701, %v4685
    %v6734 = vpack.c.b16 %v4702, %v4686
    %v6735 = vpack.c.b16 %v4703, %v4687
    %v6736 = vpack.c.b16 %v4704, %v4688
    %v6737 = vpack.c.b16 %v4705, %v4689
    %v6738 = vpack.c.b16 %v4706, %v4690
    %v6739 = vpack.c.b16 %v4707, %v4691
    %v6740 = vpack.c.b16 %v4708, %v4692
    %v6741 = vpack.c.b16 %v4709, %v4693
    %v6742 = vpack.c.b16 %v4710, %v4694
    %v6743 = vpack.c.b16 %v4727, %v4711
    %v6744 = vpack.c.b16 %v4728, %v4712
    %v6745 = vpack.c.b16 %v4729, %v4713
    %v6746 = vpack.c.b16 %v4730, %v4714
    %v6747 = vpack.c.b16 %v4731, %v4715
    %v6748 = vpack.c.b16 %v4732, %v4716
    %v6749 = vpack.c.b16 %v4733, %v4717
    %v6750 = vpack.c.b16 %v4734, %v4718
    %v6751 = vpack.c.b16 %v4735, %v4719
    %v6752 = vpack.c.b16 %v4736, %v4720
    %v6753 = vpack.c.b16 %v4737, %v4721
    %v6754 = vpack.c.b16 %v4738, %v4722
    %v6755 = vpack.c.b16 %v4739, %v4723
    %v6756 = vpack.c.b16 %v4740, %v4724
    %v6757 = vpack.c.b16 %v4741, %v4725
    %v6758 = vpack.c.b16 %v4742, %v4726
    %v6759 = vpack.c.b16 %v4759, %v4743
    %v6760 = vpack.c.b16 %v4760, %v4744
    %v6761 = vpack.c.b16 %v4761, %v4745
    %v6762 = vpack.c.b16 %v4762, %v4746
    %v6763 = vpack.c.b16 %v4763, %v4747
    %v6764 = vpack.c.b16 %v4764, %v4748
    %v6765 = vpack.c.b16 %v4765, %v4749
    %v6766 = vpack.c.b16 %v4766, %v4750
    %v6767 = vpack.c.b16 %v4767, %v4751
    %v6768 = vpack.c.b16 %v4768, %v4752
    %v6769 = vpack.c.b16 %v4769, %v4753
    %v6770 = vpack.c.b16 %v4770, %v4754
    %v6771 = vpack.c.b16 %v4771, %v4755
    %v6772 = vpack.c.b16 %v4772, %v4756
    %v6773 = vpack.c.b16 %v4773, %v4757
    %v6774 = vpack.c.b16 %v4774, %v4758
    %v6775 = vpack.c.b16 %v4791, %v4775
    %v6776 = vpack.c.b16 %v4792, %v4776
    %v6777 = vpack.c.b16 %v4793, %v4777
    %v6778 = vpack.c.b16 %v4794, %v4778
    %v6779 = vpack.c.b16 %v4795, %v4779
    %v6780 = vpack.c.b16 %v4796, %v4780
    %v6781 = vpack.c.b16 %v4797, %v4781
    %v6782 = vpack.c.b16 %v4798, %v4782
    %v6783 = vpack.c.b16 %v4799, %v4783
    %v6784 = vpack.c.b16 %v4800, %v4784
    %v6785 = vpack.c.b16 %v4801, %v4785
    %v6786 = vpack.c.b16 %v4802, %v4786
    %v6787 = vpack.c.b16 %v4803, %v4787
    %v6788 = vpack.c.b16 %v4804, %v4788
    %v6789 = vpack.c.b16 %v4805, %v4789
    %v6790 = vpack.c.b16 %v4806, %v4790
    %v6791 = vpack.c.b16 %v4823, %v4807
    %v6792 = vpack.c.b16 %v4824, %v4808
    %v6793 = vpack.c.b16 %v4825, %v4809
    %v6794 = vpack.c.b16 %v4826, %v4810
    %v6795 = vpack.c.b16 %v4827, %v4811
    %v6796 = vpack.c.b16 %v4828, %v4812
    %v6797 = vpack.c.b16 %v4829, %v4813
    %v6798 = vpack.c.b16 %v4830, %v4814
    %v6799 = vpack.c.b16 %v4831, %v4815
    %v6800 = vpack.c.b16 %v4832, %v4816
    %v6801 = vpack.c.b16 %v4833, %v4817
    %v6802 = vpack.c.b16 %v4834, %v4818
    %v6803 = vpack.c.b16 %v4835, %v4819
    %v6804 = vpack.c.b16 %v4836, %v4820
    %v6805 = vpack.c.b16 %v4837, %v4821
    %v6806 = vpack.c.b16 %v4838, %v4822
    %v6807 = vpack.c.b16 %v4855, %v4839
    %v6808 = vpack.c.b16 %v4856, %v4840
    %v6809 = vpack.c.b16 %v4857, %v4841
    %v6810 = vpack.c.b16 %v4858, %v4842
    %v6811 = vpack.c.b16 %v4859, %v4843
    %v6812 = vpack.c.b16 %v4860, %v4844
    %v6813 = vpack.c.b16 %v4861, %v4845
    %v6814 = vpack.c.b16 %v4862, %v4846
    %v6815 = vpack.c.b16 %v4863, %v4847
    %v6816 = vpack.c.b16 %v4864, %v4848
    %v6817 = vpack.c.b16 %v4865, %v4849
    %v6818 = vpack.c.b16 %v4866, %v4850
    %v6819 = vpack.c.b16 %v4867, %v4851
    %v6820 = vpack.c.b16 %v4868, %v4852
    %v6821 = vpack.c.b16 %v4869, %v4853
    %v6822 = vpack.c.b16 %v4870, %v4854
    %v6823 = vpack.c.b16 %v4887, %v4871
    %v6824 = vpack.c.b16 %v4888, %v4872
    %v6825 = vpack.c.b16 %v4889, %v4873
    %v6826 = vpack.c.b16 %v4890, %v4874
    %v6827 = vpack.c.b16 %v4891, %v4875
    %v6828 = vpack.c.b16 %v4892, %v4876
    %v6829 = vpack.c.b16 %v4893, %v4877
    %v6830 = vpack.c.b16 %v4894, %v4878
    %v6831 = vpack.c.b16 %v4895, %v4879
    %v6832 = vpack.c.b16 %v4896, %v4880
    %v6833 = vpack.c.b16 %v4897, %v4881
    %v6834 = vpack.c.b16 %v4898, %v4882
    %v6835 = vpack.c.b16 %v4899, %v4883
    %v6836 = vpack.c.b16 %v4900, %v4884
    %v6837 = vpack.c.b16 %v4901, %v4885
    %v6838 = vpack.c.b16 %v4902, %v4886
    %v6839 = vpack.c.b16 %v4919, %v4903
    %v6840 = vpack.c.b16 %v4920, %v4904
    %v6841 = vpack.c.b16 %v4921, %v4905
    %v6842 = vpack.c.b16 %v4922, %v4906
    %v6843 = vpack.c.b16 %v4923, %v4907
    %v6844 = vpack.c.b16 %v4924, %v4908
    %v6845 = vpack.c.b16 %v4925, %v4909
    %v6846 = vpack.c.b16 %v4926, %v4910
    %v6847 = vpack.c.b16 %v4927, %v4911
    %v6848 = vpack.c.b16 %v4928, %v4912
    %v6849 = vpack.c.b16 %v4929, %v4913
    %v6850 = vpack.c.b16 %v4930, %v4914
    %v6851 = vpack.c.b16 %v4931, %v4915
    %v6852 = vpack.c.b16 %v4932, %v4916
    %v6853 = vpack.c.b16 %v4933, %v4917
    %v6854 = vpack.c.b16 %v4934, %v4918
    %v6855 = vpack.c.b16 %v4951, %v4935
    %v6856 = vpack.c.b16 %v4952, %v4936
    %v6857 = vpack.c.b16 %v4953, %v4937
    %v6858 = vpack.c.b16 %v4954, %v4938
    %v6859 = vpack.c.b16 %v4955, %v4939
    %v6860 = vpack.c.b16 %v4956, %v4940
    %v6861 = vpack.c.b16 %v4957, %v4941
    %v6862 = vpack.c.b16 %v4958, %v4942
    %v6863 = vpack.c.b16 %v4959, %v4943
    %v6864 = vpack.c.b16 %v4960, %v4944
    %v6865 = vpack.c.b16 %v4961, %v4945
    %v6866 = vpack.c.b16 %v4962, %v4946
    %v6867 = vpack.c.b16 %v4963, %v4947
    %v6868 = vpack.c.b16 %v4964, %v4948
    %v6869 = vpack.c.b16 %v4965, %v4949
    %v6870 = vpack.c.b16 %v4966, %v4950
    %v6871 = vpack.c.b16 %v4983, %v4967
    %v6872 = vpack.c.b16 %v4984, %v4968
    %v6873 = vpack.c.b16 %v4985, %v4969
    %v6874 = vpack.c.b16 %v4986, %v4970
    %v6875 = vpack.c.b16 %v4987, %v4971
    %v6876 = vpack.c.b16 %v4988, %v4972
    %v6877 = vpack.c.b16 %v4989, %v4973
    %v6878 = vpack.c.b16 %v4990, %v4974
    %v6879 = vpack.c.b16 %v4991, %v4975
    %v6880 = vpack.c.b16 %v4992, %v4976
    %v6881 = vpack.c.b16 %v4993, %v4977
    %v6882 = vpack.c.b16 %v4994, %v4978
    %v6883 = vpack.c.b16 %v4995, %v4979
    %v6884 = vpack.c.b16 %v4996, %v4980
    %v6885 = vpack.c.b16 %v4997, %v4981
    %v6886 = vpack.c.b16 %v4998, %v4982
    %v6887 = vpack.c.b16 %v5015, %v4999
    %v6888 = vpack.c.b16 %v5016, %v5000
    %v6889 = vpack.c.b16 %v5017, %v5001
    %v6890 = vpack.c.b16 %v5018, %v5002
    %v6891 = vpack.c.b16 %v5019, %v5003
    %v6892 = vpack.c.b16 %v5020, %v5004
    %v6893 = vpack.c.b16 %v5021, %v5005
    %v6894 = vpack.c.b16 %v5022, %v5006
    %v6895 = vpack.c.b16 %v5023, %v5007
    %v6896 = vpack.c.b16 %v5024, %v5008
    %v6897 = vpack.c.b16 %v5025, %v5009
    %v6898 = vpack.c.b16 %v5026, %v5010
    %v6899 = vpack.c.b16 %v5027, %v5011
    %v6900 = vpack.c.b16 %v5028, %v5012
    %v6901 = vpack.c.b16 %v5029, %v5013
    %v6902 = vpack.c.b16 %v5030, %v5014
    %v6903 = vpack.c.b16 %v5047, %v5031
    %v6904 = vpack.c.b16 %v5048, %v5032
    %v6905 = vpack.c.b16 %v5049, %v5033
    %v6906 = vpack.c.b16 %v5050, %v5034
    %v6907 = vpack.c.b16 %v5051, %v5035
    %v6908 = vpack.c.b16 %v5052, %v5036
    %v6909 = vpack.c.b16 %v5053, %v5037
    %v6910 = vpack.c.b16 %v5054, %v5038
    %v6911 = vpack.c.b16 %v5055, %v5039
    %v6912 = vpack.c.b16 %v5056, %v5040
    %v6913 = vpack.c.b16 %v5057, %v5041
    %v6914 = vpack.c.b16 %v5058, %v5042
    %v6915 = vpack.c.b16 %v5059, %v5043
    %v6916 = vpack.c.b16 %v5060, %v5044
    %v6917 = vpack.c.b16 %v5061, %v5045
    %v6918 = vpack.c.b16 %v5062, %v5046
    %v6919 = vpack.c.b16 %v5079, %v5063
    %v6920 = vpack.c.b16 %v5080, %v5064
    %v6921 = vpack.c.b16 %v5081, %v5065
    %v6922 = vpack.c.b16 %v5082, %v5066
    %v6923 = vpack.c.b16 %v5083, %v5067
    %v6924 = vpack.c.b16 %v5084, %v5068
    %v6925 = vpack.c.b16 %v5085, %v5069
    %v6926 = vpack.c.b16 %v5086, %v5070
    %v6927 = vpack.c.b16 %v5087, %v5071
    %v6928 = vpack.c.b16 %v5088, %v5072
    %v6929 = vpack.c.b16 %v5089, %v5073
    %v6930 = vpack.c.b16 %v5090, %v5074
    %v6931 = vpack.c.b16 %v5091, %v5075
    %v6932 = vpack.c.b16 %v5092, %v5076
    %v6933 = vpack.c.b16 %v5093, %v5077
    %v6934 = vpack.c.b16 %v5094, %v5078
    %v6935 = vpack.c.b16 %v5111, %v5095
    %v6936 = vpack.c.b16 %v5112, %v5096
    %v6937 = vpack.c.b16 %v5113, %v5097
    %v6938 = vpack.c.b16 %v5114, %v5098
    %v6939 = vpack.c.b16 %v5115, %v5099
    %v6940 = vpack.c.b16 %v5116, %v5100
    %v6941 = vpack.c.b16 %v5117, %v5101
    %v6942 = vpack.c.b16 %v5118, %v5102
    %v6943 = vpack.c.b16 %v5119, %v5103
    %v6944 = vpack.c.b16 %v5120, %v5104
    %v6945 = vpack.c.b16 %v5121, %v5105
    %v6946 = vpack.c.b16 %v5122, %v5106
    %v6947 = vpack.c.b16 %v5123, %v5107
    %v6948 = vpack.c.b16 %v5124, %v5108
    %v6949 = vpack.c.b16 %v5125, %v5109
    %v6950 = vpack.c.b16 %v5126, %v5110
    %v6951 = vpack.c.b16 %v5143, %v5127
    %v6952 = vpack.c.b16 %v5144, %v5128
    %v6953 = vpack.c.b16 %v5145, %v5129
    %v6954 = vpack.c.b16 %v5146, %v5130
    %v6955 = vpack.c.b16 %v5147, %v5131
    %v6956 = vpack.c.b16 %v5148, %v5132
    %v6957 = vpack.c.b16 %v5149, %v5133
    %v6958 = vpack.c.b16 %v5150, %v5134
    %v6959 = vpack.c.b16 %v5151, %v5135
    %v6960 = vpack.c.b16 %v5152, %v5136
    %v6961 = vpack.c.b16 %v5153, %v5137
    %v6962 = vpack.c.b16 %v5154, %v5138
    %v6963 = vpack.c.b16 %v5155, %v5139
    %v6964 = vpack.c.b16 %v5156, %v5140
    %v6965 = vpack.c.b16 %v5157, %v5141
    %v6966 = vpack.c.b16 %v5158, %v5142
    %v6967 = vpack.c.b16 %v5175, %v5159
    %v6968 = vpack.c.b16 %v5176, %v5160
    %v6969 = vpack.c.b16 %v5177, %v5161
    %v6970 = vpack.c.b16 %v5178, %v5162
    %v6971 = vpack.c.b16 %v5179, %v5163
    %v6972 = vpack.c.b16 %v5180, %v5164
    %v6973 = vpack.c.b16 %v5181, %v5165
    %v6974 = vpack.c.b16 %v5182, %v5166
    %v6975 = vpack.c.b16 %v5183, %v5167
    %v6976 = vpack.c.b16 %v5184, %v5168
    %v6977 = vpack.c.b16 %v5185, %v5169
    %v6978 = vpack.c.b16 %v5186, %v5170
    %v6979 = vpack.c.b16 %v5187, %v5171
    %v6980 = vpack.c.b16 %v5188, %v5172
    %v6981 = vpack.c.b16 %v5189, %v5173
    %v6982 = vpack.c.b16 %v5190, %v5174
    %v6983 = vpack.c.b16 %v5207, %v5191
    %v6984 = vpack.c.b16 %v5208, %v5192
    %v6985 = vpack.c.b16 %v5209, %v5193
    %v6986 = vpack.c.b16 %v5210, %v5194
    %v6987 = vpack.c.b16 %v5211, %v5195
    %v6988 = vpack.c.b16 %v5212, %v5196
    %v6989 = vpack.c.b16 %v5213, %v5197
    %v6990 = vpack.c.b16 %v5214, %v5198
    %v6991 = vpack.c.b16 %v5215, %v5199
    %v6992 = vpack.c.b16 %v5216, %v5200
    %v6993 = vpack.c.b16 %v5217, %v5201
    %v6994 = vpack.c.b16 %v5218, %v5202
    %v6995 = vpack.c.b16 %v5219, %v5203
    %v6996 = vpack.c.b16 %v5220, %v5204
    %v6997 = vpack.c.b16 %v5221, %v5205
    %v6998 = vpack.c.b16 %v5222, %v5206
    %v6999 = vpack.c.b16 %v5239, %v5223
    %v7000 = vpack.c.b16 %v5240, %v5224
    %v7001 = vpack.c.b16 %v5241, %v5225
    %v7002 = vpack.c.b16 %v5242, %v5226
    %v7003 = vpack.c.b16 %v5243, %v5227
    %v7004 = vpack.c.b16 %v5244, %v5228
    %v7005 = vpack.c.b16 %v5245, %v5229
    %v7006 = vpack.c.b16 %v5246, %v5230
    %v7007 = vpack.c.b16 %v5247, %v5231
    %v7008 = vpack.c.b16 %v5248, %v5232
    %v7009 = vpack.c.b16 %v5249, %v5233
    %v7010 = vpack.c.b16 %v5250, %v5234
    %v7011 = vpack.c.b16 %v5251, %v5235
    %v7012 = vpack.c.b16 %v5252, %v5236
    %v7013 = vpack.c.b16 %v5253, %v5237
    %v7014 = vpack.c.b16 %v5254, %v5238
    %v7015 = vpack.c.b16 %v5271, %v5255
    %v7016 = vpack.c.b16 %v5272, %v5256
    %v7017 = vpack.c.b16 %v5273, %v5257
    %v7018 = vpack.c.b16 %v5274, %v5258
    %v7019 = vpack.c.b16 %v5275, %v5259
    %v7020 = vpack.c.b16 %v5276, %v5260
    %v7021 = vpack.c.b16 %v5277, %v5261
    %v7022 = vpack.c.b16 %v5278, %v5262
    %v7023 = vpack.c.b16 %v5279, %v5263
    %v7024 = vpack.c.b16 %v5280, %v5264
    %v7025 = vpack.c.b16 %v5281, %v5265
    %v7026 = vpack.c.b16 %v5282, %v5266
    %v7027 = vpack.c.b16 %v5283, %v5267
    %v7028 = vpack.c.b16 %v5284, %v5268
    %v7029 = vpack.c.b16 %v5285, %v5269
    %v7030 = vpack.c.b16 %v5286, %v5270
    %v7031 = vpack.c.b16 %v5303, %v5287
    %v7032 = vpack.c.b16 %v5304, %v5288
    %v7033 = vpack.c.b16 %v5305, %v5289
    %v7034 = vpack.c.b16 %v5306, %v5290
    %v7035 = vpack.c.b16 %v5307, %v5291
    %v7036 = vpack.c.b16 %v5308, %v5292
    %v7037 = vpack.c.b16 %v5309, %v5293
    %v7038 = vpack.c.b16 %v5310, %v5294
    %v7039 = vpack.c.b16 %v5311, %v5295
    %v7040 = vpack.c.b16 %v5312, %v5296
    %v7041 = vpack.c.b16 %v5313, %v5297
    %v7042 = vpack.c.b16 %v5314, %v5298
    %v7043 = vpack.c.b16 %v5315, %v5299
    %v7044 = vpack.c.b16 %v5316, %v5300
    %v7045 = vpack.c.b16 %v5317, %v5301
    %v7046 = vpack.c.b16 %v5318, %v5302
    %v7047 = vpack.c.b16 %v5335, %v5319
    %v7048 = vpack.c.b16 %v5336, %v5320
    %v7049 = vpack.c.b16 %v5337, %v5321
    %v7050 = vpack.c.b16 %v5338, %v5322
    %v7051 = vpack.c.b16 %v5339, %v5323
    %v7052 = vpack.c.b16 %v5340, %v5324
    %v7053 = vpack.c.b16 %v5341, %v5325
    %v7054 = vpack.c.b16 %v5342, %v5326
    %v7055 = vpack.c.b16 %v5343, %v5327
    %v7056 = vpack.c.b16 %v5344, %v5328
    %v7057 = vpack.c.b16 %v5345, %v5329
    %v7058 = vpack.c.b16 %v5346, %v5330
    %v7059 = vpack.c.b16 %v5347, %v5331
    %v7060 = vpack.c.b16 %v5348, %v5332
    %v7061 = vpack.c.b16 %v5349, %v5333
    %v7062 = vpack.c.b16 %v5350, %v5334
    %v7063 = vpack.c.b16 %v5367, %v5351
    %v7064 = vpack.c.b16 %v5368, %v5352
    %v7065 = vpack.c.b16 %v5369, %v5353
    %v7066 = vpack.c.b16 %v5370, %v5354
    %v7067 = vpack.c.b16 %v5371, %v5355
    %v7068 = vpack.c.b16 %v5372, %v5356
    %v7069 = vpack.c.b16 %v5373, %v5357
    %v7070 = vpack.c.b16 %v5374, %v5358
    %v7071 = vpack.c.b16 %v5375, %v5359
    %v7072 = vpack.c.b16 %v5376, %v5360
    %v7073 = vpack.c.b16 %v5377, %v5361
    %v7074 = vpack.c.b16 %v5378, %v5362
    %v7075 = vpack.c.b16 %v5379, %v5363
    %v7076 = vpack.c.b16 %v5380, %v5364
    %v7077 = vpack.c.b16 %v5381, %v5365
    %v7078 = vpack.c.b16 %v5382, %v5366
    %v7079 = vpack.c.b16 %v5399, %v5383
    %v7080 = vpack.c.b16 %v5400, %v5384
    %v7081 = vpack.c.b16 %v5401, %v5385
    %v7082 = vpack.c.b16 %v5402, %v5386
    %v7083 = vpack.c.b16 %v5403, %v5387
    %v7084 = vpack.c.b16 %v5404, %v5388
    %v7085 = vpack.c.b16 %v5405, %v5389
    %v7086 = vpack.c.b16 %v5406, %v5390
    %v7087 = vpack.c.b16 %v5407, %v5391
    %v7088 = vpack.c.b16 %v5408, %v5392
    %v7089 = vpack.c.b16 %v5409, %v5393
    %v7090 = vpack.c.b16 %v5410, %v5394
    %v7091 = vpack.c.b16 %v5411, %v5395
    %v7092 = vpack.c.b16 %v5412, %v5396
    %v7093 = vpack.c.b16 %v5413, %v5397
    %v7094 = vpack.c.b16 %v5414, %v5398
    %v7095 = vpack.c.b16 %v5431, %v5415
    %v7096 = vpack.c.b16 %v5432, %v5416
    %v7097 = vpack.c.b16 %v5433, %v5417
    %v7098 = vpack.c.b16 %v5434, %v5418
    %v7099 = vpack.c.b16 %v5435, %v5419
    %v7100 = vpack.c.b16 %v5436, %v5420
    %v7101 = vpack.c.b16 %v5437, %v5421
    %v7102 = vpack.c.b16 %v5438, %v5422
    %v7103 = vpack.c.b16 %v5439, %v5423
    %v7104 = vpack.c.b16 %v5440, %v5424
    %v7105 = vpack.c.b16 %v5441, %v5425
    %v7106 = vpack.c.b16 %v5442, %v5426
    %v7107 = vpack.c.b16 %v5443, %v5427
    %v7108 = vpack.c.b16 %v5444, %v5428
    %v7109 = vpack.c.b16 %v5445, %v5429
    %v7110 = vpack.c.b16 %v5446, %v5430
    %v7111 = vpack.c.b16 %v5463, %v5447
    %v7112 = vpack.c.b16 %v5464, %v5448
    %v7113 = vpack.c.b16 %v5465, %v5449
    %v7114 = vpack.c.b16 %v5466, %v5450
    %v7115 = vpack.c.b16 %v5467, %v5451
    %v7116 = vpack.c.b16 %v5468, %v5452
    %v7117 = vpack.c.b16 %v5469, %v5453
    %v7118 = vpack.c.b16 %v5470, %v5454
    %v7119 = vpack.c.b16 %v5471, %v5455
    %v7120 = vpack.c.b16 %v5472, %v5456
    %v7121 = vpack.c.b16 %v5473, %v5457
    %v7122 = vpack.c.b16 %v5474, %v5458
    %v7123 = vpack.c.b16 %v5475, %v5459
    %v7124 = vpack.c.b16 %v5476, %v5460
    %v7125 = vpack.c.b16 %v5477, %v5461
    %v7126 = vpack.c.b16 %v5478, %v5462
    %v7127 = vpack.c.b16 %v5495, %v5479
    %v7128 = vpack.c.b16 %v5496, %v5480
    %v7129 = vpack.c.b16 %v5497, %v5481
    %v7130 = vpack.c.b16 %v5498, %v5482
    %v7131 = vpack.c.b16 %v5499, %v5483
    %v7132 = vpack.c.b16 %v5500, %v5484
    %v7133 = vpack.c.b16 %v5501, %v5485
    %v7134 = vpack.c.b16 %v5502, %v5486
    %v7135 = vpack.c.b16 %v5503, %v5487
    %v7136 = vpack.c.b16 %v5504, %v5488
    %v7137 = vpack.c.b16 %v5505, %v5489
    %v7138 = vpack.c.b16 %v5506, %v5490
    %v7139 = vpack.c.b16 %v5507, %v5491
    %v7140 = vpack.c.b16 %v5508, %v5492
    %v7141 = vpack.c.b16 %v5509, %v5493
    %v7142 = vpack.c.b16 %v5510, %v5494
    %v7143 = vpack.c.b16 %v5527, %v5511
    %v7144 = vpack.c.b16 %v5528, %v5512
    %v7145 = vpack.c.b16 %v5529, %v5513
    %v7146 = vpack.c.b16 %v5530, %v5514
    %v7147 = vpack.c.b16 %v5531, %v5515
    %v7148 = vpack.c.b16 %v5532, %v5516
    %v7149 = vpack.c.b16 %v5533, %v5517
    %v7150 = vpack.c.b16 %v5534, %v5518
    %v7151 = vpack.c.b16 %v5535, %v5519
    %v7152 = vpack.c.b16 %v5536, %v5520
    %v7153 = vpack.c.b16 %v5537, %v5521
    %v7154 = vpack.c.b16 %v5538, %v5522
    %v7155 = vpack.c.b16 %v5539, %v5523
    %v7156 = vpack.c.b16 %v5540, %v5524
    %v7157 = vpack.c.b16 %v5541, %v5525
    %v7158 = vpack.c.b16 %v5542, %v5526
    %v7159 = vpack.c.b16 %v5559, %v5543
    %v7160 = vpack.c.b16 %v5560, %v5544
    %v7161 = vpack.c.b16 %v5561, %v5545
    %v7162 = vpack.c.b16 %v5562, %v5546
    %v7163 = vpack.c.b16 %v5563, %v5547
    %v7164 = vpack.c.b16 %v5564, %v5548
    %v7165 = vpack.c.b16 %v5565, %v5549
    %v7166 = vpack.c.b16 %v5566, %v5550
    %v7167 = vpack.c.b16 %v5567, %v5551
    %v7168 = vpack.c.b16 %v5568, %v5552
    %v7169 = vpack.c.b16 %v5569, %v5553
    %v7170 = vpack.c.b16 %v5570, %v5554
    %v7171 = vpack.c.b16 %v5571, %v5555
    %v7172 = vpack.c.b16 %v5572, %v5556
    %v7173 = vpack.c.b16 %v5573, %v5557
    %v7174 = vpack.c.b16 %v5574, %v5558
    %v7175 = vpack.c.b16 %v5591, %v5575
    %v7176 = vpack.c.b16 %v5592, %v5576
    %v7177 = vpack.c.b16 %v5593, %v5577
    %v7178 = vpack.c.b16 %v5594, %v5578
    %v7179 = vpack.c.b16 %v5595, %v5579
    %v7180 = vpack.c.b16 %v5596, %v5580
    %v7181 = vpack.c.b16 %v5597, %v5581
    %v7182 = vpack.c.b16 %v5598, %v5582
    %v7183 = vpack.c.b16 %v5599, %v5583
    %v7184 = vpack.c.b16 %v5600, %v5584
    %v7185 = vpack.c.b16 %v5601, %v5585
    %v7186 = vpack.c.b16 %v5602, %v5586
    %v7187 = vpack.c.b16 %v5603, %v5587
    %v7188 = vpack.c.b16 %v5604, %v5588
    %v7189 = vpack.c.b16 %v5605, %v5589
    %v7190 = vpack.c.b16 %v5606, %v5590
    %v7191 = vpack.c.b16 %v5623, %v5607
    %v7192 = vpack.c.b16 %v5624, %v5608
    %v7193 = vpack.c.b16 %v5625, %v5609
    %v7194 = vpack.c.b16 %v5626, %v5610
    %v7195 = vpack.c.b16 %v5627, %v5611
    %v7196 = vpack.c.b16 %v5628, %v5612
    %v7197 = vpack.c.b16 %v5629, %v5613
    %v7198 = vpack.c.b16 %v5630, %v5614
    %v7199 = vpack.c.b16 %v5631, %v5615
    %v7200 = vpack.c.b16 %v5632, %v5616
    %v7201 = vpack.c.b16 %v5633, %v5617
    %v7202 = vpack.c.b16 %v5634, %v5618
    %v7203 = vpack.c.b16 %v5635, %v5619
    %v7204 = vpack.c.b16 %v5636, %v5620
    %v7205 = vpack.c.b16 %v5637, %v5621
    %v7206 = vpack.c.b16 %v5638, %v5622
    %v7207 = vpack.c.b16 %v5655, %v5639
    %v7208 = vpack.c.b16 %v5656, %v5640
    %v7209 = vpack.c.b16 %v5657, %v5641
    %v7210 = vpack.c.b16 %v5658, %v5642
    %v7211 = vpack.c.b16 %v5659, %v5643
    %v7212 = vpack.c.b16 %v5660, %v5644
    %v7213 = vpack.c.b16 %v5661, %v5645
    %v7214 = vpack.c.b16 %v5662, %v5646
    %v7215 = vpack.c.b16 %v5663, %v5647
    %v7216 = vpack.c.b16 %v5664, %v5648
    %v7217 = vpack.c.b16 %v5665, %v5649
    %v7218 = vpack.c.b16 %v5666, %v5650
    %v7219 = vpack.c.b16 %v5667, %v5651
    %v7220 = vpack.c.b16 %v5668, %v5652
    %v7221 = vpack.c.b16 %v5669, %v5653
    %v7222 = vpack.c.b16 %v5670, %v5654
    %v7223 = vpack.c.b16 %v5687, %v5671
    %v7224 = vpack.c.b16 %v5688, %v5672
    %v7225 = vpack.c.b16 %v5689, %v5673
    %v7226 = vpack.c.b16 %v5690, %v5674
    %v7227 = vpack.c.b16 %v5691, %v5675
    %v7228 = vpack.c.b16 %v5692, %v5676
    %v7229 = vpack.c.b16 %v5693, %v5677
    %v7230 = vpack.c.b16 %v5694, %v5678
    %v7231 = vpack.c.b16 %v5695, %v5679
    %v7232 = vpack.c.b16 %v5696, %v5680
    %v7233 = vpack.c.b16 %v5697, %v5681
    %v7234 = vpack.c.b16 %v5698, %v5682
    %v7235 = vpack.c.b16 %v5699, %v5683
    %v7236 = vpack.c.b16 %v5700, %v5684
    %v7237 = vpack.c.b16 %v5701, %v5685
    %v7238 = vpack.c.b16 %v5702, %v5686
    %v7239 = vpack.c.b16 %v5719, %v5703
    %v7240 = vpack.c.b16 %v5720, %v5704
    %v7241 = vpack.c.b16 %v5721, %v5705
    %v7242 = vpack.c.b16 %v5722, %v5706
    %v7243 = vpack.c.b16 %v5723, %v5707
    %v7244 = vpack.c.b16 %v5724, %v5708
    %v7245 = vpack.c.b16 %v5725, %v5709
    %v7246 = vpack.c.b16 %v5726, %v5710
    %v7247 = vpack.c.b16 %v5727, %v5711
    %v7248 = vpack.c.b16 %v5728, %v5712
    %v7249 = vpack.c.b16 %v5729, %v5713
    %v7250 = vpack.c.b16 %v5730, %v5714
    %v7251 = vpack.c.b16 %v5731, %v5715
    %v7252 = vpack.c.b16 %v5732, %v5716
    %v7253 = vpack.c.b16 %v5733, %v5717
    %v7254 = vpack.c.b16 %v5734, %v5718
    %v7255 = vpack.c.b16 %v5751, %v5735
    %v7256 = vpack.c.b16 %v5752, %v5736
    %v7257 = vpack.c.b16 %v5753, %v5737
    %v7258 = vpack.c.b16 %v5754, %v5738
    %v7259 = vpack.c.b16 %v5755, %v5739
    %v7260 = vpack.c.b16 %v5756, %v5740
    %v7261 = vpack.c.b16 %v5757, %v5741
    %v7262 = vpack.c.b16 %v5758, %v5742
    %v7263 = vpack.c.b16 %v5759, %v5743
    %v7264 = vpack.c.b16 %v5760, %v5744
    %v7265 = vpack.c.b16 %v5761, %v5745
    %v7266 = vpack.c.b16 %v5762, %v5746
    %v7267 = vpack.c.b16 %v5763, %v5747
    %v7268 = vpack.c.b16 %v5764, %v5748
    %v7269 = vpack.c.b16 %v5765, %v5749
    %v7270 = vpack.c.b16 %v5766, %v5750
    %v7271 = vpack.c.b16 %v5783, %v5767
    %v7272 = vpack.c.b16 %v5784, %v5768
    %v7273 = vpack.c.b16 %v5785, %v5769
    %v7274 = vpack.c.b16 %v5786, %v5770
    %v7275 = vpack.c.b16 %v5787, %v5771
    %v7276 = vpack.c.b16 %v5788, %v5772
    %v7277 = vpack.c.b16 %v5789, %v5773
    %v7278 = vpack.c.b16 %v5790, %v5774
    %v7279 = vpack.c.b16 %v5791, %v5775
    %v7280 = vpack.c.b16 %v5792, %v5776
    %v7281 = vpack.c.b16 %v5793, %v5777
    %v7282 = vpack.c.b16 %v5794, %v5778
    %v7283 = vpack.c.b16 %v5795, %v5779
    %v7284 = vpack.c.b16 %v5796, %v5780
    %v7285 = vpack.c.b16 %v5797, %v5781
    %v7286 = vpack.c.b16 %v5798, %v5782
    %v7287 = vpack.c.b16 %v5815, %v5799
    %v7288 = vpack.c.b16 %v5816, %v5800
    %v7289 = vpack.c.b16 %v5817, %v5801
    %v7290 = vpack.c.b16 %v5818, %v5802
    %v7291 = vpack.c.b16 %v5819, %v5803
    %v7292 = vpack.c.b16 %v5820, %v5804
    %v7293 = vpack.c.b16 %v5821, %v5805
    %v7294 = vpack.c.b16 %v5822, %v5806
    %v7295 = vpack.c.b16 %v5823, %v5807
    %v7296 = vpack.c.b16 %v5824, %v5808
    %v7297 = vpack.c.b16 %v5825, %v5809
    %v7298 = vpack.c.b16 %v5826, %v5810
    %v7299 = vpack.c.b16 %v5827, %v5811
    %v7300 = vpack.c.b16 %v5828, %v5812
    %v7301 = vpack.c.b16 %v5829, %v5813
    %v7302 = vpack.c.b16 %v5830, %v5814
    %v7303 = vpack.c.b16 %v5847, %v5831
    %v7304 = vpack.c.b16 %v5848, %v5832
    %v7305 = vpack.c.b16 %v5849, %v5833
    %v7306 = vpack.c.b16 %v5850, %v5834
    %v7307 = vpack.c.b16 %v5851, %v5835
    %v7308 = vpack.c.b16 %v5852, %v5836
    %v7309 = vpack.c.b16 %v5853, %v5837
    %v7310 = vpack.c.b16 %v5854, %v5838
    %v7311 = vpack.c.b16 %v5855, %v5839
    %v7312 = vpack.c.b16 %v5856, %v5840
    %v7313 = vpack.c.b16 %v5857, %v5841
    %v7314 = vpack.c.b16 %v5858, %v5842
    %v7315 = vpack.c.b16 %v5859, %v5843
    %v7316 = vpack.c.b16 %v5860, %v5844
    %v7317 = vpack.c.b16 %v5861, %v5845
    %v7318 = vpack.c.b16 %v5862, %v5846
    %v7319 = vpack.c.b16 %v5879, %v5863
    %v7320 = vpack.c.b16 %v5880, %v5864
    %v7321 = vpack.c.b16 %v5881, %v5865
    %v7322 = vpack.c.b16 %v5882, %v5866
    %v7323 = vpack.c.b16 %v5883, %v5867
    %v7324 = vpack.c.b16 %v5884, %v5868
    %v7325 = vpack.c.b16 %v5885, %v5869
    %v7326 = vpack.c.b16 %v5886, %v5870
    %v7327 = vpack.c.b16 %v5887, %v5871
    %v7328 = vpack.c.b16 %v5888, %v5872
    %v7329 = vpack.c.b16 %v5889, %v5873
    %v7330 = vpack.c.b16 %v5890, %v5874
    %v7331 = vpack.c.b16 %v5891, %v5875
    %v7332 = vpack.c.b16 %v5892, %v5876
    %v7333 = vpack.c.b16 %v5893, %v5877
    %v7334 = vpack.c.b16 %v5894, %v5878
    %v7335 = vpack.c.b16 %v5911, %v5895
    %v7336 = vpack.c.b16 %v5912, %v5896
    %v7337 = vpack.c.b16 %v5913, %v5897
    %v7338 = vpack.c.b16 %v5914, %v5898
    %v7339 = vpack.c.b16 %v5915, %v5899
    %v7340 = vpack.c.b16 %v5916, %v5900
    %v7341 = vpack.c.b16 %v5917, %v5901
    %v7342 = vpack.c.b16 %v5918, %v5902
    %v7343 = vpack.c.b16 %v5919, %v5903
    %v7344 = vpack.c.b16 %v5920, %v5904
    %v7345 = vpack.c.b16 %v5921, %v5905
    %v7346 = vpack.c.b16 %v5922, %v5906
    %v7347 = vpack.c.b16 %v5923, %v5907
    %v7348 = vpack.c.b16 %v5924, %v5908
    %v7349 = vpack.c.b16 %v5925, %v5909
    %v7350 = vpack.c.b16 %v5926, %v5910
    %v7351 = vpack.c.b16 %v5943, %v5927
    %v7352 = vpack.c.b16 %v5944, %v5928
    %v7353 = vpack.c.b16 %v5945, %v5929
    %v7354 = vpack.c.b16 %v5946, %v5930
    %v7355 = vpack.c.b16 %v5947, %v5931
    %v7356 = vpack.c.b16 %v5948, %v5932
    %v7357 = vpack.c.b16 %v5949, %v5933
    %v7358 = vpack.c.b16 %v5950, %v5934
    %v7359 = vpack.c.b16 %v5951, %v5935
    %v7360 = vpack.c.b16 %v5952, %v5936
    %v7361 = vpack.c.b16 %v5953, %v5937
    %v7362 = vpack.c.b16 %v5954, %v5938
    %v7363 = vpack.c.b16 %v5955, %v5939
    %v7364 = vpack.c.b16 %v5956, %v5940
    %v7365 = vpack.c.b16 %v5957, %v5941
    %v7366 = vpack.c.b16 %v5958, %v5942
    %v7367 = vpack.c.b16 %v5975, %v5959
    %v7368 = vpack.c.b16 %v5976, %v5960
    %v7369 = vpack.c.b16 %v5977, %v5961
    %v7370 = vpack.c.b16 %v5978, %v5962
    %v7371 = vpack.c.b16 %v5979, %v5963
    %v7372 = vpack.c.b16 %v5980, %v5964
    %v7373 = vpack.c.b16 %v5981, %v5965
    %v7374 = vpack.c.b16 %v5982, %v5966
    %v7375 = vpack.c.b16 %v5983, %v5967
    %v7376 = vpack.c.b16 %v5984, %v5968
    %v7377 = vpack.c.b16 %v5985, %v5969
    %v7378 = vpack.c.b16 %v5986, %v5970
    %v7379 = vpack.c.b16 %v5987, %v5971
    %v7380 = vpack.c.b16 %v5988, %v5972
    %v7381 = vpack.c.b16 %v5989, %v5973
    %v7382 = vpack.c.b16 %v5990, %v5974
    %v7383 = vpack.c.b16 %v6007, %v5991
    %v7384 = vpack.c.b16 %v6008, %v5992
    %v7385 = vpack.c.b16 %v6009, %v5993
    %v7386 = vpack.c.b16 %v6010, %v5994
    %v7387 = vpack.c.b16 %v6011, %v5995
    %v7388 = vpack.c.b16 %v6012, %v5996
    %v7389 = vpack.c.b16 %v6013, %v5997
    %v7390 = vpack.c.b16 %v6014, %v5998
    %v7391 = vpack.c.b16 %v6015, %v5999
    %v7392 = vpack.c.b16 %v6016, %v6000
    %v7393 = vpack.c.b16 %v6017, %v6001
    %v7394 = vpack.c.b16 %v6018, %v6002
    %v7395 = vpack.c.b16 %v6019, %v6003
    %v7396 = vpack.c.b16 %v6020, %v6004
    %v7397 = vpack.c.b16 %v6021, %v6005
    %v7398 = vpack.c.b16 %v6022, %v6006
    %v7399 = vpack.c.b16 %v6039, %v6023
    %v7400 = vpack.c.b16 %v6040, %v6024
    %v7401 = vpack.c.b16 %v6041, %v6025
    %v7402 = vpack.c.b16 %v6042, %v6026
    %v7403 = vpack.c.b16 %v6043, %v6027
    %v7404 = vpack.c.b16 %v6044, %v6028
    %v7405 = vpack.c.b16 %v6045, %v6029
    %v7406 = vpack.c.b16 %v6046, %v6030
    %v7407 = vpack.c.b16 %v6047, %v6031
    %v7408 = vpack.c.b16 %v6048, %v6032
    %v7409 = vpack.c.b16 %v6049, %v6033
    %v7410 = vpack.c.b16 %v6050, %v6034
    %v7411 = vpack.c.b16 %v6051, %v6035
    %v7412 = vpack.c.b16 %v6052, %v6036
    %v7413 = vpack.c.b16 %v6053, %v6037
    %v7414 = vpack.c.b16 %v6054, %v6038
    %v7415 = vpack.c.b16 %v6071, %v6055
    %v7416 = vpack.c.b16 %v6072, %v6056
    %v7417 = vpack.c.b16 %v6073, %v6057
    %v7418 = vpack.c.b16 %v6074, %v6058
    %v7419 = vpack.c.b16 %v6075, %v6059
    %v7420 = vpack.c.b16 %v6076, %v6060
    %v7421 = vpack.c.b16 %v6077, %v6061
    %v7422 = vpack.c.b16 %v6078, %v6062
    %v7423 = vpack.c.b16 %v6079, %v6063
    %v7424 = vpack.c.b16 %v6080, %v6064
    %v7425 = vpack.c.b16 %v6081, %v6065
    %v7426 = vpack.c.b16 %v6082, %v6066
    %v7427 = vpack.c.b16 %v6083, %v6067
    %v7428 = vpack.c.b16 %v6084, %v6068
    %v7429 = vpack.c.b16 %v6085, %v6069
    %v7430 = vpack.c.b16 %v6086, %v6070
    %v7431 = vpack.c.b16 %v6103, %v6087
    %v7432 = vpack.c.b16 %v6104, %v6088
    %v7433 = vpack.c.b16 %v6105, %v6089
    %v7434 = vpack.c.b16 %v6106, %v6090
    %v7435 = vpack.c.b16 %v6107, %v6091
    %v7436 = vpack.c.b16 %v6108, %v6092
    %v7437 = vpack.c.b16 %v6109, %v6093
    %v7438 = vpack.c.b16 %v6110, %v6094
    %v7439 = vpack.c.b16 %v6111, %v6095
    %v7440 = vpack.c.b16 %v6112, %v6096
    %v7441 = vpack.c.b16 %v6113, %v6097
    %v7442 = vpack.c.b16 %v6114, %v6098
    %v7443 = vpack.c.b16 %v6115, %v6099
    %v7444 = vpack.c.b16 %v6116, %v6100
    %v7445 = vpack.c.b16 %v6117, %v6101
    %v7446 = vpack.c.b16 %v6118, %v6102
    %v7447 = vpack.c.b16 %v6135, %v6119
    %v7448 = vpack.c.b16 %v6136, %v6120
    %v7449 = vpack.c.b16 %v6137, %v6121
    %v7450 = vpack.c.b16 %v6138, %v6122
    %v7451 = vpack.c.b16 %v6139, %v6123
    %v7452 = vpack.c.b16 %v6140, %v6124
    %v7453 = vpack.c.b16 %v6141, %v6125
    %v7454 = vpack.c.b16 %v6142, %v6126
    %v7455 = vpack.c.b16 %v6143, %v6127
    %v7456 = vpack.c.b16 %v6144, %v6128
    %v7457 = vpack.c.b16 %v6145, %v6129
    %v7458 = vpack.c.b16 %v6146, %v6130
    %v7459 = vpack.c.b16 %v6147, %v6131
    %v7460 = vpack.c.b16 %v6148, %v6132
    %v7461 = vpack.c.b16 %v6149, %v6133
    %v7462 = vpack.c.b16 %v6150, %v6134
    %v7463 = vpack.c.b16 %v6167, %v6151
    %v7464 = vpack.c.b16 %v6168, %v6152
    %v7465 = vpack.c.b16 %v6169, %v6153
    %v7466 = vpack.c.b16 %v6170, %v6154
    %v7467 = vpack.c.b16 %v6171, %v6155
    %v7468 = vpack.c.b16 %v6172, %v6156
    %v7469 = vpack.c.b16 %v6173, %v6157
    %v7470 = vpack.c.b16 %v6174, %v6158
    %v7471 = vpack.c.b16 %v6175, %v6159
    %v7472 = vpack.c.b16 %v6176, %v6160
    %v7473 = vpack.c.b16 %v6177, %v6161
    %v7474 = vpack.c.b16 %v6178, %v6162
    %v7475 = vpack.c.b16 %v6179, %v6163
    %v7476 = vpack.c.b16 %v6180, %v6164
    %v7477 = vpack.c.b16 %v6181, %v6165
    %v7478 = vpack.c.b16 %v6182, %v6166
    %v7479 = vpack.c.b16 %v6199, %v6183
    %v7480 = vpack.c.b16 %v6200, %v6184
    %v7481 = vpack.c.b16 %v6201, %v6185
    %v7482 = vpack.c.b16 %v6202, %v6186
    %v7483 = vpack.c.b16 %v6203, %v6187
    %v7484 = vpack.c.b16 %v6204, %v6188
    %v7485 = vpack.c.b16 %v6205, %v6189
    %v7486 = vpack.c.b16 %v6206, %v6190
    %v7487 = vpack.c.b16 %v6207, %v6191
    %v7488 = vpack.c.b16 %v6208, %v6192
    %v7489 = vpack.c.b16 %v6209, %v6193
    %v7490 = vpack.c.b16 %v6210, %v6194
    %v7491 = vpack.c.b16 %v6211, %v6195
    %v7492 = vpack.c.b16 %v6212, %v6196
    %v7493 = vpack.c.b16 %v6213, %v6197
    %v7494 = vpack.c.b16 %v6214, %v6198
    %v7495 = vpack.c.b16 %v6231, %v6215
    %v7496 = vpack.c.b16 %v6232, %v6216
    %v7497 = vpack.c.b16 %v6233, %v6217
    %v7498 = vpack.c.b16 %v6234, %v6218
    %v7499 = vpack.c.b16 %v6235, %v6219
    %v7500 = vpack.c.b16 %v6236, %v6220
    %v7501 = vpack.c.b16 %v6237, %v6221
    %v7502 = vpack.c.b16 %v6238, %v6222
    %v7503 = vpack.c.b16 %v6239, %v6223
    %v7504 = vpack.c.b16 %v6240, %v6224
    %v7505 = vpack.c.b16 %v6241, %v6225
    %v7506 = vpack.c.b16 %v6242, %v6226
    %v7507 = vpack.c.b16 %v6243, %v6227
    %v7508 = vpack.c.b16 %v6244, %v6228
    %v7509 = vpack.c.b16 %v6245, %v6229
    %v7510 = vpack.c.b16 %v6246, %v6230
    %v7511 = vpack.c.b16 %v6263, %v6247
    %v7512 = vpack.c.b16 %v6264, %v6248
    %v7513 = vpack.c.b16 %v6265, %v6249
    %v7514 = vpack.c.b16 %v6266, %v6250
    %v7515 = vpack.c.b16 %v6267, %v6251
    %v7516 = vpack.c.b16 %v6268, %v6252
    %v7517 = vpack.c.b16 %v6269, %v6253
    %v7518 = vpack.c.b16 %v6270, %v6254
    %v7519 = vpack.c.b16 %v6271, %v6255
    %v7520 = vpack.c.b16 %v6272, %v6256
    %v7521 = vpack.c.b16 %v6273, %v6257
    %v7522 = vpack.c.b16 %v6274, %v6258
    %v7523 = vpack.c.b16 %v6275, %v6259
    %v7524 = vpack.c.b16 %v6276, %v6260
    %v7525 = vpack.c.b16 %v6277, %v6261
    %v7526 = vpack.c.b16 %v6278, %v6262
    %v7527 = vpack.c.b16 %v6295, %v6279
    %v7528 = vpack.c.b16 %v6296, %v6280
    %v7529 = vpack.c.b16 %v6297, %v6281
    %v7530 = vpack.c.b16 %v6298, %v6282
    %v7531 = vpack.c.b16 %v6299, %v6283
    %v7532 = vpack.c.b16 %v6300, %v6284
    %v7533 = vpack.c.b16 %v6301, %v6285
    %v7534 = vpack.c.b16 %v6302, %v6286
    %v7535 = vpack.c.b16 %v6303, %v6287
    %v7536 = vpack.c.b16 %v6304, %v6288
    %v7537 = vpack.c.b16 %v6305, %v6289
    %v7538 = vpack.c.b16 %v6306, %v6290
    %v7539 = vpack.c.b16 %v6307, %v6291
    %v7540 = vpack.c.b16 %v6308, %v6292
    %v7541 = vpack.c.b16 %v6309, %v6293
    %v7542 = vpack.c.b16 %v6310, %v6294
    %v7543 = vpack.c.b16 %v6327, %v6311
    %v7544 = vpack.c.b16 %v6328, %v6312
    %v7545 = vpack.c.b16 %v6329, %v6313
    %v7546 = vpack.c.b16 %v6330, %v6314
    %v7547 = vpack.c.b16 %v6331, %v6315
    %v7548 = vpack.c.b16 %v6332, %v6316
    %v7549 = vpack.c.b16 %v6333, %v6317
    %v7550 = vpack.c.b16 %v6334, %v6318
    %v7551 = vpack.c.b16 %v6335, %v6319
    %v7552 = vpack.c.b16 %v6336, %v6320
    %v7553 = vpack.c.b16 %v6337, %v6321
    %v7554 = vpack.c.b16 %v6338, %v6322
    %v7555 = vpack.c.b16 %v6339, %v6323
    %v7556 = vpack.c.b16 %v6340, %v6324
    %v7557 = vpack.c.b16 %v6341, %v6325
    %v7558 = vpack.c.b16 %v6342, %v6326
    %v7559 = vpack.c.b16 %v6359, %v6343
    %v7560 = vpack.c.b16 %v6360, %v6344
    %v7561 = vpack.c.b16 %v6361, %v6345
    %v7562 = vpack.c.b16 %v6362, %v6346
    %v7563 = vpack.c.b16 %v6363, %v6347
    %v7564 = vpack.c.b16 %v6364, %v6348
    %v7565 = vpack.c.b16 %v6365, %v6349
    %v7566 = vpack.c.b16 %v6366, %v6350
    %v7567 = vpack.c.b16 %v6367, %v6351
    %v7568 = vpack.c.b16 %v6368, %v6352
    %v7569 = vpack.c.b16 %v6369, %v6353
    %v7570 = vpack.c.b16 %v6370, %v6354
    %v7571 = vpack.c.b16 %v6371, %v6355
    %v7572 = vpack.c.b16 %v6372, %v6356
    %v7573 = vpack.c.b16 %v6373, %v6357
    %v7574 = vpack.c.b16 %v6374, %v6358
    %v7575 = vpack.c.b16 %v6391, %v6375
    %v7576 = vpack.c.b16 %v6392, %v6376
    %v7577 = vpack.c.b16 %v6393, %v6377
    %v7578 = vpack.c.b16 %v6394, %v6378
    %v7579 = vpack.c.b16 %v6395, %v6379
    %v7580 = vpack.c.b16 %v6396, %v6380
    %v7581 = vpack.c.b16 %v6397, %v6381
    %v7582 = vpack.c.b16 %v6398, %v6382
    %v7583 = vpack.c.b16 %v6399, %v6383
    %v7584 = vpack.c.b16 %v6400, %v6384
    %v7585 = vpack.c.b16 %v6401, %v6385
    %v7586 = vpack.c.b16 %v6402, %v6386
    %v7587 = vpack.c.b16 %v6403, %v6387
    %v7588 = vpack.c.b16 %v6404, %v6388
    %v7589 = vpack.c.b16 %v6405, %v6389
    %v7590 = vpack.c.b16 %v6406, %v6390
    %v7591 = vpack.c.b16 %v6423, %v6407
    %v7592 = vpack.c.b16 %v6424, %v6408
    %v7593 = vpack.c.b16 %v6425, %v6409
    %v7594 = vpack.c.b16 %v6426, %v6410
    %v7595 = vpack.c.b16 %v6427, %v6411
    %v7596 = vpack.c.b16 %v6428, %v6412
    %v7597 = vpack.c.b16 %v6429, %v6413
    %v7598 = vpack.c.b16 %v6430, %v6414
    %v7599 = vpack.c.b16 %v6431, %v6415
    %v7600 = vpack.c.b16 %v6432, %v6416
    %v7601 = vpack.c.b16 %v6433, %v6417
    %v7602 = vpack.c.b16 %v6434, %v6418
    %v7603 = vpack.c.b16 %v6435, %v6419
    %v7604 = vpack.c.b16 %v6436, %v6420
    %v7605 = vpack.c.b16 %v6437, %v6421
    %v7606 = vpack.c.b16 %v6438, %v6422
    %v7607 = vpack.c.b16 %v6455, %v6439
    %v7608 = vpack.c.b16 %v6456, %v6440
    %v7609 = vpack.c.b16 %v6457, %v6441
    %v7610 = vpack.c.b16 %v6458, %v6442
    %v7611 = vpack.c.b16 %v6459, %v6443
    %v7612 = vpack.c.b16 %v6460, %v6444
    %v7613 = vpack.c.b16 %v6461, %v6445
    %v7614 = vpack.c.b16 %v6462, %v6446
    %v7615 = vpack.c.b16 %v6463, %v6447
    %v7616 = vpack.c.b16 %v6464, %v6448
    %v7617 = vpack.c.b16 %v6465, %v6449
    %v7618 = vpack.c.b16 %v6466, %v6450
    %v7619 = vpack.c.b16 %v6467, %v6451
    %v7620 = vpack.c.b16 %v6468, %v6452
    %v7621 = vpack.c.b16 %v6469, %v6453
    %v7622 = vpack.c.b16 %v6470, %v6454
    %v7623 = vpack.c.b16 %v6487, %v6471
    %v7624 = vpack.c.b16 %v6488, %v6472
    %v7625 = vpack.c.b16 %v6489, %v6473
    %v7626 = vpack.c.b16 %v6490, %v6474
    %v7627 = vpack.c.b16 %v6491, %v6475
    %v7628 = vpack.c.b16 %v6492, %v6476
    %v7629 = vpack.c.b16 %v6493, %v6477
    %v7630 = vpack.c.b16 %v6494, %v6478
    %v7631 = vpack.c.b16 %v6495, %v6479
    %v7632 = vpack.c.b16 %v6496, %v6480
    %v7633 = vpack.c.b16 %v6497, %v6481
    %v7634 = vpack.c.b16 %v6498, %v6482
    %v7635 = vpack.c.b16 %v6499, %v6483
    %v7636 = vpack.c.b16 %v6500, %v6484
    %v7637 = vpack.c.b16 %v6501, %v6485
    %v7638 = vpack.c.b16 %v6502, %v6486
    %v7639 = vpack.c.b16 %v6519, %v6503
    %v7640 = vpack.c.b16 %v6520, %v6504
    %v7641 = vpack.c.b16 %v6521, %v6505
    %v7642 = vpack.c.b16 %v6522, %v6506
    %v7643 = vpack.c.b16 %v6523, %v6507
    %v7644 = vpack.c.b16 %v6524, %v6508
    %v7645 = vpack.c.b16 %v6525, %v6509
    %v7646 = vpack.c.b16 %v6526, %v6510
    %v7647 = vpack.c.b16 %v6527, %v6511
    %v7648 = vpack.c.b16 %v6528, %v6512
    %v7649 = vpack.c.b16 %v6529, %v6513
    %v7650 = vpack.c.b16 %v6530, %v6514
    %v7651 = vpack.c.b16 %v6531, %v6515
    %v7652 = vpack.c.b16 %v6532, %v6516
    %v7653 = vpack.c.b16 %v6533, %v6517
    %v7654 = vpack.c.b16 %v6534, %v6518
    %v7655 = vpack.c.b16 %v6551, %v6535
    %v7656 = vpack.c.b16 %v6552, %v6536
    %v7657 = vpack.c.b16 %v6553, %v6537
    %v7658 = vpack.c.b16 %v6554, %v6538
    %v7659 = vpack.c.b16 %v6555, %v6539
    %v7660 = vpack.c.b16 %v6556, %v6540
    %v7661 = vpack.c.b16 %v6557, %v6541
    %v7662 = vpack.c.b16 %v6558, %v6542
    %v7663 = vpack.c.b16 %v6559, %v6543
    %v7664 = vpack.c.b16 %v6560, %v6544
    %v7665 = vpack.c.b16 %v6561, %v6545
    %v7666 = vpack.c.b16 %v6562, %v6546
    %v7667 = vpack.c.b16 %v6563, %v6547
    %v7668 = vpack.c.b16 %v6564, %v6548
    %v7669 = vpack.c.b16 %v6565, %v6549
    %v7670 = vpack.c.b16 %v6566, %v6550
    %v7671 = vpack.c.b16 %v6583, %v6567
    %v7672 = vpack.c.b16 %v6584, %v6568
    %v7673 = vpack.c.b16 %v6585, %v6569
    %v7674 = vpack.c.b16 %v6586, %v6570
    %v7675 = vpack.c.b16 %v6587, %v6571
    %v7676 = vpack.c.b16 %v6588, %v6572
    %v7677 = vpack.c.b16 %v6589, %v6573
    %v7678 = vpack.c.b16 %v6590, %v6574
    %v7679 = vpack.c.b16 %v6591, %v6575
    %v7680 = vpack.c.b16 %v6592, %v6576
    %v7681 = vpack.c.b16 %v6593, %v6577
    %v7682 = vpack.c.b16 %v6594, %v6578
    %v7683 = vpack.c.b16 %v6595, %v6579
    %v7684 = vpack.c.b16 %v6596, %v6580
    %v7685 = vpack.c.b16 %v6597, %v6581
    %v7686 = vpack.c.b16 %v6598, %v6582
    %v7687 = vpack.c.b16 %v6615, %v6599
    %v7688 = vpack.c.b16 %v6616, %v6600
    %v7689 = vpack.c.b16 %v6617, %v6601
    %v7690 = vpack.c.b16 %v6618, %v6602
    %v7691 = vpack.c.b16 %v6619, %v6603
    %v7692 = vpack.c.b16 %v6620, %v6604
    %v7693 = vpack.c.b16 %v6621, %v6605
    %v7694 = vpack.c.b16 %v6622, %v6606
    %v7695 = vpack.c.b16 %v6623, %v6607
    %v7696 = vpack.c.b16 %v6624, %v6608
    %v7697 = vpack.c.b16 %v6625, %v6609
    %v7698 = vpack.c.b16 %v6626, %v6610
    %v7699 = vpack.c.b16 %v6627, %v6611
    %v7700 = vpack.c.b16 %v6628, %v6612
    %v7701 = vpack.c.b16 %v6629, %v6613
    %v7702 = vpack.c.b16 %v6630, %v6614
    %v7703 = vpack.c.b16 %v6647, %v6631
    %v7704 = vpack.c.b16 %v6648, %v6632
    %v7705 = vpack.c.b16 %v6649, %v6633
    %v7706 = vpack.c.b16 %v6650, %v6634
    %v7707 = vpack.c.b16 %v6651, %v6635
    %v7708 = vpack.c.b16 %v6652, %v6636
    %v7709 = vpack.c.b16 %v6653, %v6637
    %v7710 = vpack.c.b16 %v6654, %v6638
    %v7711 = vpack.c.b16 %v6655, %v6639
    %v7712 = vpack.c.b16 %v6656, %v6640
    %v7713 = vpack.c.b16 %v6657, %v6641
    %v7714 = vpack.c.b16 %v6658, %v6642
    %v7715 = vpack.c.b16 %v6659, %v6643
    %v7716 = vpack.c.b16 %v6660, %v6644
    %v7717 = vpack.c.b16 %v6661, %v6645
    %v7718 = vpack.c.b16 %v6662, %v6646
    %v7719 = vpack.c.b16 %v6679, %v6663
    %v7720 = vpack.c.b16 %v6680, %v6664
    %v7721 = vpack.c.b16 %v6681, %v6665
    %v7722 = vpack.c.b16 %v6682, %v6666
    %v7723 = vpack.c.b16 %v6683, %v6667
    %v7724 = vpack.c.b16 %v6684, %v6668
    %v7725 = vpack.c.b16 %v6685, %v6669
    %v7726 = vpack.c.b16 %v6686, %v6670
    %v7727 = vpack.c.b16 %v6687, %v6671
    %v7728 = vpack.c.b16 %v6688, %v6672
    %v7729 = vpack.c.b16 %v6689, %v6673
    %v7730 = vpack.c.b16 %v6690, %v6674
    %v7731 = vpack.c.b16 %v6691, %v6675
    %v7732 = vpack.c.b16 %v6692, %v6676
    %v7733 = vpack.c.b16 %v6693, %v6677
    %v7734 = vpack.c.b16 %v6694, %v6678
    %v7735 = vpack.c.b16 %v6711, %v6695
    %v7736 = vpack.c.b16 %v6712, %v6696
    %v7737 = vpack.c.b16 %v6713, %v6697
    %v7738 = vpack.c.b16 %v6714, %v6698
    %v7739 = vpack.c.b16 %v6715, %v6699
    %v7740 = vpack.c.b16 %v6716, %v6700
    %v7741 = vpack.c.b16 %v6717, %v6701
    %v7742 = vpack.c.b16 %v6718, %v6702
    %v7743 = vpack.c.b16 %v6719, %v6703
    %v7744 = vpack.c.b16 %v6720, %v6704
    %v7745 = vpack.c.b16 %v6721, %v6705
    %v7746 = vpack.c.b16 %v6722, %v6706
    %v7747 = vpack.c.b16 %v6723, %v6707
    %v7748 = vpack.c.b16 %v6724, %v6708
    %v7749 = vpack.c.b16 %v6725, %v6709
    %v7750 = vpack.c.b16 %v6726, %v6710
    %8775 = vmatprep.subr.bf16.mxu0 %v6840
    %8776 = vmatpush1.bf16.msra.mxu0 %v6839
    %8777 = vmatprep.subr.bf16.mxu0 %v6824
    %8778 = vmatpush1.bf16.msra.mxu0 %v6823
    %8779 = vmatprep.subr.bf16.mxu0 %v6808
    %8780 = vmatpush1.bf16.msra.mxu0 %v6807
    %8781 = vmatprep.subr.bf16.mxu0 %v6792
    %8782 = vmatpush1.bf16.msra.mxu0 %v6791
    %8783 = vmatprep.subr.bf16.mxu0 %v6776
    %8784 = vmatpush1.bf16.msra.mxu0 %v6775
    %8785 = vmatprep.subr.bf16.mxu0 %v6760
    %8786 = vmatpush1.bf16.msra.mxu0 %v6759
    %8787 = vmatprep.subr.bf16.mxu0 %v6744
    %8788 = vmatpush1.bf16.msra.mxu0 %v6743
    %8789 = vmatprep.subr.bf16.mxu0 %v6728
    %8790 = vmatpush1.bf16.msra.mxu0 %v6727
    %8791 = vmatprep.subr.bf16.mxu0 %v6968
    %8792 = vmatpush2.bf16.msra.mxu0 %v6967
    %8793 = vmatprep.subr.bf16.mxu0 %v6952
    %8794 = vmatpush2.bf16.msra.mxu0 %v6951
    %8795 = vmatprep.subr.bf16.mxu0 %v6936
    %8796 = vmatpush2.bf16.msra.mxu0 %v6935
    %8797 = vmatprep.subr.bf16.mxu0 %v6920
    %8798 = vmatpush2.bf16.msra.mxu0 %v6919
    %8799 = vmatprep.subr.bf16.mxu0 %v6904
    %8800 = vmatpush2.bf16.msra.mxu0 %v6903
    %8801 = vmatprep.subr.bf16.mxu0 %v6888
    %8802 = vmatpush2.bf16.msra.mxu0 %v6887
    %8803 = vmatprep.subr.bf16.mxu0 %v6872
    %8804 = vmatpush2.bf16.msra.mxu0 %v6871
    %8805 = vmatprep.subr.bf16.mxu0 %v6856
    %8806 = vmatpush2.bf16.msra.mxu0 %v6855
    %8807 = vmatprep.mubr.bf16.mxu0 %v2540
    %8808 = vmatmul.mubr.bf16.gmra.mxu0 %v2539
    %v8809 = vpop.f32.mrf.mxu0
    %v8810 = vadd.f32 %v3578, %v8809
    %v8811 = vpop.f32.mrf.mxu0
    %v8812 = vadd.f32 %v3582, %v8811
    %v8813 = vpop.f32.mrf.mxu0
    %v8814 = vpop.f32.mrf.mxu0
    %8815 = vdwg.mxu0
    %8816 = vmatprep.subr.bf16.mxu0 %v7096
    %8817 = vmatpush1.bf16.msra.mxu0 %v7095
    %8818 = vmatprep.subr.bf16.mxu0 %v7080
    %8819 = vmatpush1.bf16.msra.mxu0 %v7079
    %8820 = vmatprep.subr.bf16.mxu0 %v7064
    %8821 = vmatpush1.bf16.msra.mxu0 %v7063
    %8822 = vmatprep.subr.bf16.mxu0 %v7048
    %8823 = vmatpush1.bf16.msra.mxu0 %v7047
    %8824 = vmatprep.subr.bf16.mxu0 %v7032
    %8825 = vmatpush1.bf16.msra.mxu0 %v7031
    %8826 = vmatprep.subr.bf16.mxu0 %v7016
    %8827 = vmatpush1.bf16.msra.mxu0 %v7015
    %8828 = vmatprep.subr.bf16.mxu0 %v7000
    %8829 = vmatpush1.bf16.msra.mxu0 %v6999
    %8830 = vmatprep.subr.bf16.mxu0 %v6984
    %8831 = vmatpush1.bf16.msra.mxu0 %v6983
    %8832 = vmatprep.subr.bf16.mxu0 %v7224
    %8833 = vmatpush2.bf16.msra.mxu0 %v7223
    %8834 = vmatprep.subr.bf16.mxu0 %v7208
    %8835 = vmatpush2.bf16.msra.mxu0 %v7207
    %8836 = vmatprep.subr.bf16.mxu0 %v7192
    %8837 = vmatpush2.bf16.msra.mxu0 %v7191
    %8838 = vmatprep.subr.bf16.mxu0 %v7176
    %8839 = vmatpush2.bf16.msra.mxu0 %v7175
    %8840 = vmatprep.subr.bf16.mxu0 %v7160
    %8841 = vmatpush2.bf16.msra.mxu0 %v7159
    %8842 = vmatprep.subr.bf16.mxu0 %v7144
    %8843 = vmatpush2.bf16.msra.mxu0 %v7143
    %8844 = vmatprep.subr.bf16.mxu0 %v7128
    %8845 = vmatpush2.bf16.msra.mxu0 %v7127
    %8846 = vmatprep.subr.bf16.mxu0 %v7112
    %8847 = vmatpush2.bf16.msra.mxu0 %v7111
    %8848 = vmatprep.mubr.bf16.mxu0 %v2542
    %8849 = vmatmul.mubr.bf16.gmra.mxu0 %v2541
    %v8850 = vpop.f32.mrf.mxu0
    %v8851 = vadd.f32 %v8810, %v8850
    %v8852 = vpop.f32.mrf.mxu0
    %v8853 = vadd.f32 %v8812, %v8852
    %v8854 = vpop.f32.mrf.mxu0
    %v8855 = vpop.f32.mrf.mxu0
    %8856 = vdwg.mxu0
    %8857 = vmatprep.subr.bf16.mxu0 %v7352
    %8858 = vmatpush1.bf16.msra.mxu0 %v7351
    %8859 = vmatprep.subr.bf16.mxu0 %v7336
    %8860 = vmatpush1.bf16.msra.mxu0 %v7335
    %8861 = vmatprep.subr.bf16.mxu0 %v7320
    %8862 = vmatpush1.bf16.msra.mxu0 %v7319
    %8863 = vmatprep.subr.bf16.mxu0 %v7304
    %8864 = vmatpush1.bf16.msra.mxu0 %v7303
    %8865 = vmatprep.subr.bf16.mxu0 %v7288
    %8866 = vmatpush1.bf16.msra.mxu0 %v7287
    %8867 = vmatprep.subr.bf16.mxu0 %v7272
    %8868 = vmatpush1.bf16.msra.mxu0 %v7271
    %8869 = vmatprep.subr.bf16.mxu0 %v7256
    %8870 = vmatpush1.bf16.msra.mxu0 %v7255
    %8871 = vmatprep.subr.bf16.mxu0 %v7240
    %8872 = vmatpush1.bf16.msra.mxu0 %v7239
    %8873 = vmatprep.subr.bf16.mxu0 %v7480
    %8874 = vmatpush2.bf16.msra.mxu0 %v7479
    %8875 = vmatprep.subr.bf16.mxu0 %v7464
    %8876 = vmatpush2.bf16.msra.mxu0 %v7463
    %8877 = vmatprep.subr.bf16.mxu0 %v7448
    %8878 = vmatpush2.bf16.msra.mxu0 %v7447
    %8879 = vmatprep.subr.bf16.mxu0 %v7432
    %8880 = vmatpush2.bf16.msra.mxu0 %v7431
    %8881 = vmatprep.subr.bf16.mxu0 %v7416
    %8882 = vmatpush2.bf16.msra.mxu0 %v7415
    %8883 = vmatprep.subr.bf16.mxu0 %v7400
    %8884 = vmatpush2.bf16.msra.mxu0 %v7399
    %8885 = vmatprep.subr.bf16.mxu0 %v7384
    %8886 = vmatpush2.bf16.msra.mxu0 %v7383
    %8887 = vmatprep.subr.bf16.mxu0 %v7368
    %8888 = vmatpush2.bf16.msra.mxu0 %v7367
    %8889 = vmatprep.mubr.bf16.mxu0 %v2544
    %8890 = vmatmul.mubr.bf16.gmra.mxu0 %v2543
    %v8891 = vpop.f32.mrf.mxu0
    %v8892 = vadd.f32 %v8851, %v8891
    %v8893 = vpop.f32.mrf.mxu0
    %v8894 = vadd.f32 %v8853, %v8893
    %v8895 = vpop.f32.mrf.mxu0
    %v8896 = vpop.f32.mrf.mxu0
    %8897 = vdwg.mxu0
    %8898 = vmatprep.subr.bf16.mxu0 %v7608
    %8899 = vmatpush1.bf16.msra.mxu0 %v7607
    %8900 = vmatprep.subr.bf16.mxu0 %v7592
    %8901 = vmatpush1.bf16.msra.mxu0 %v7591
    %8902 = vmatprep.subr.bf16.mxu0 %v7576
    %8903 = vmatpush1.bf16.msra.mxu0 %v7575
    %8904 = vmatprep.subr.bf16.mxu0 %v7560
    %8905 = vmatpush1.bf16.msra.mxu0 %v7559
    %8906 = vmatprep.subr.bf16.mxu0 %v7544
    %8907 = vmatpush1.bf16.msra.mxu0 %v7543
    %8908 = vmatprep.subr.bf16.mxu0 %v7528
    %8909 = vmatpush1.bf16.msra.mxu0 %v7527
    %8910 = vmatprep.subr.bf16.mxu0 %v7512
    %8911 = vmatpush1.bf16.msra.mxu0 %v7511
    %8912 = vmatprep.subr.bf16.mxu0 %v7496
    %8913 = vmatpush1.bf16.msra.mxu0 %v7495
    %8914 = vmatprep.subr.bf16.mxu0 %v7736
    %8915 = vmatpush2.bf16.msra.mxu0 %v7735
    %8916 = vmatprep.subr.bf16.mxu0 %v7720
    %8917 = vmatpush2.bf16.msra.mxu0 %v7719
    %8918 = vmatprep.subr.bf16.mxu0 %v7704
    %8919 = vmatpush2.bf16.msra.mxu0 %v7703
    %8920 = vmatprep.subr.bf16.mxu0 %v7688
    %8921 = vmatpush2.bf16.msra.mxu0 %v7687
    %8922 = vmatprep.subr.bf16.mxu0 %v7672
    %8923 = vmatpush2.bf16.msra.mxu0 %v7671
    %8924 = vmatprep.subr.bf16.mxu0 %v7656
    %8925 = vmatpush2.bf16.msra.mxu0 %v7655
    %8926 = vmatprep.subr.bf16.mxu0 %v7640
    %8927 = vmatpush2.bf16.msra.mxu0 %v7639
    %8928 = vmatprep.subr.bf16.mxu0 %v7624
    %8929 = vmatpush2.bf16.msra.mxu0 %v7623
    %8930 = vmatprep.mubr.bf16.mxu0 %v2546
    %8931 = vmatmul.mubr.bf16.gmra.mxu0 %v2545
    %v8932 = vpop.f32.mrf.mxu0
    %v8933 = vadd.f32 %v8892, %v8932
    %v8934 = vpop.f32.mrf.mxu0
    %v8935 = vadd.f32 %v8894, %v8934
    %v8936 = vpop.f32.mrf.mxu0
    %v8937 = vpop.f32.mrf.mxu0
    %8938 = vdwg.mxu0
    %8939 = vmatprep.subr.bf16.mxu0 %v6842
    %8940 = vmatpush1.bf16.msra.mxu0 %v6841
    %8941 = vmatprep.subr.bf16.mxu0 %v6826
    %8942 = vmatpush1.bf16.msra.mxu0 %v6825
    %8943 = vmatprep.subr.bf16.mxu0 %v6810
    %8944 = vmatpush1.bf16.msra.mxu0 %v6809
    %8945 = vmatprep.subr.bf16.mxu0 %v6794
    %8946 = vmatpush1.bf16.msra.mxu0 %v6793
    %8947 = vmatprep.subr.bf16.mxu0 %v6778
    %8948 = vmatpush1.bf16.msra.mxu0 %v6777
    %8949 = vmatprep.subr.bf16.mxu0 %v6762
    %8950 = vmatpush1.bf16.msra.mxu0 %v6761
    %8951 = vmatprep.subr.bf16.mxu0 %v6746
    %8952 = vmatpush1.bf16.msra.mxu0 %v6745
    %8953 = vmatprep.subr.bf16.mxu0 %v6730
    %8954 = vmatpush1.bf16.msra.mxu0 %v6729
    %8955 = vmatprep.subr.bf16.mxu0 %v6970
    %8956 = vmatpush2.bf16.msra.mxu0 %v6969
    %8957 = vmatprep.subr.bf16.mxu0 %v6954
    %8958 = vmatpush2.bf16.msra.mxu0 %v6953
    %8959 = vmatprep.subr.bf16.mxu0 %v6938
    %8960 = vmatpush2.bf16.msra.mxu0 %v6937
    %8961 = vmatprep.subr.bf16.mxu0 %v6922
    %8962 = vmatpush2.bf16.msra.mxu0 %v6921
    %8963 = vmatprep.subr.bf16.mxu0 %v6906
    %8964 = vmatpush2.bf16.msra.mxu0 %v6905
    %8965 = vmatprep.subr.bf16.mxu0 %v6890
    %8966 = vmatpush2.bf16.msra.mxu0 %v6889
    %8967 = vmatprep.subr.bf16.mxu0 %v6874
    %8968 = vmatpush2.bf16.msra.mxu0 %v6873
    %8969 = vmatprep.subr.bf16.mxu0 %v6858
    %8970 = vmatpush2.bf16.msra.mxu0 %v6857
    %8971 = vmatprep.mubr.bf16.mxu0 %v2540
    %8972 = vmatmul.mubr.bf16.gmra.mxu0 %v2539
    %v8973 = vpop.f32.mrf.mxu0
    %v8974 = vadd.f32 %v3586, %v8973
    %v8975 = vpop.f32.mrf.mxu0
    %v8976 = vadd.f32 %v3590, %v8975
    %v8977 = vpop.f32.mrf.mxu0
    %v8978 = vpop.f32.mrf.mxu0
    %8979 = vdwg.mxu0
    %8980 = vmatprep.subr.bf16.mxu0 %v7098
    %8981 = vmatpush1.bf16.msra.mxu0 %v7097
    %8982 = vmatprep.subr.bf16.mxu0 %v7082
    %8983 = vmatpush1.bf16.msra.mxu0 %v7081
    %8984 = vmatprep.subr.bf16.mxu0 %v7066
    %8985 = vmatpush1.bf16.msra.mxu0 %v7065
    %8986 = vmatprep.subr.bf16.mxu0 %v7050
    %8987 = vmatpush1.bf16.msra.mxu0 %v7049
    %8988 = vmatprep.subr.bf16.mxu0 %v7034
    %8989 = vmatpush1.bf16.msra.mxu0 %v7033
    %8990 = vmatprep.subr.bf16.mxu0 %v7018
    %8991 = vmatpush1.bf16.msra.mxu0 %v7017
    %8992 = vmatprep.subr.bf16.mxu0 %v7002
    %8993 = vmatpush1.bf16.msra.mxu0 %v7001
    %8994 = vmatprep.subr.bf16.mxu0 %v6986
    %8995 = vmatpush1.bf16.msra.mxu0 %v6985
    %8996 = vmatprep.subr.bf16.mxu0 %v7226
    %8997 = vmatpush2.bf16.msra.mxu0 %v7225
    %8998 = vmatprep.subr.bf16.mxu0 %v7210
    %8999 = vmatpush2.bf16.msra.mxu0 %v7209
    %9000 = vmatprep.subr.bf16.mxu0 %v7194
    %9001 = vmatpush2.bf16.msra.mxu0 %v7193
    %9002 = vmatprep.subr.bf16.mxu0 %v7178
    %9003 = vmatpush2.bf16.msra.mxu0 %v7177
    %9004 = vmatprep.subr.bf16.mxu0 %v7162
    %9005 = vmatpush2.bf16.msra.mxu0 %v7161
    %9006 = vmatprep.subr.bf16.mxu0 %v7146
    %9007 = vmatpush2.bf16.msra.mxu0 %v7145
    %9008 = vmatprep.subr.bf16.mxu0 %v7130
    %9009 = vmatpush2.bf16.msra.mxu0 %v7129
    %9010 = vmatprep.subr.bf16.mxu0 %v7114
    %9011 = vmatpush2.bf16.msra.mxu0 %v7113
    %9012 = vmatprep.mubr.bf16.mxu0 %v2542
    %9013 = vmatmul.mubr.bf16.gmra.mxu0 %v2541
    %v9014 = vpop.f32.mrf.mxu0
    %v9015 = vadd.f32 %v8974, %v9014
    %v9016 = vpop.f32.mrf.mxu0
    %v9017 = vadd.f32 %v8976, %v9016
    %v9018 = vpop.f32.mrf.mxu0
    %v9019 = vpop.f32.mrf.mxu0
    %9020 = vdwg.mxu0
    %9021 = vmatprep.subr.bf16.mxu0 %v7354
    %9022 = vmatpush1.bf16.msra.mxu0 %v7353
    %9023 = vmatprep.subr.bf16.mxu0 %v7338
    %9024 = vmatpush1.bf16.msra.mxu0 %v7337
    %9025 = vmatprep.subr.bf16.mxu0 %v7322
    %9026 = vmatpush1.bf16.msra.mxu0 %v7321
    %9027 = vmatprep.subr.bf16.mxu0 %v7306
    %9028 = vmatpush1.bf16.msra.mxu0 %v7305
    %9029 = vmatprep.subr.bf16.mxu0 %v7290
    %9030 = vmatpush1.bf16.msra.mxu0 %v7289
    %9031 = vmatprep.subr.bf16.mxu0 %v7274
    %9032 = vmatpush1.bf16.msra.mxu0 %v7273
    %9033 = vmatprep.subr.bf16.mxu0 %v7258
    %9034 = vmatpush1.bf16.msra.mxu0 %v7257
    %9035 = vmatprep.subr.bf16.mxu0 %v7242
    %9036 = vmatpush1.bf16.msra.mxu0 %v7241
    %9037 = vmatprep.subr.bf16.mxu0 %v7482
    %9038 = vmatpush2.bf16.msra.mxu0 %v7481
    %9039 = vmatprep.subr.bf16.mxu0 %v7466
    %9040 = vmatpush2.bf16.msra.mxu0 %v7465
    %9041 = vmatprep.subr.bf16.mxu0 %v7450
    %9042 = vmatpush2.bf16.msra.mxu0 %v7449
    %9043 = vmatprep.subr.bf16.mxu0 %v7434
    %9044 = vmatpush2.bf16.msra.mxu0 %v7433
    %9045 = vmatprep.subr.bf16.mxu0 %v7418
    %9046 = vmatpush2.bf16.msra.mxu0 %v7417
    %9047 = vmatprep.subr.bf16.mxu0 %v7402
    %9048 = vmatpush2.bf16.msra.mxu0 %v7401
    %9049 = vmatprep.subr.bf16.mxu0 %v7386
    %9050 = vmatpush2.bf16.msra.mxu0 %v7385
    %9051 = vmatprep.subr.bf16.mxu0 %v7370
    %9052 = vmatpush2.bf16.msra.mxu0 %v7369
    %9053 = vmatprep.mubr.bf16.mxu0 %v2544
    %9054 = vmatmul.mubr.bf16.gmra.mxu0 %v2543
    %v9055 = vpop.f32.mrf.mxu0
    %v9056 = vadd.f32 %v9015, %v9055
    %v9057 = vpop.f32.mrf.mxu0
    %v9058 = vadd.f32 %v9017, %v9057
    %v9059 = vpop.f32.mrf.mxu0
    %v9060 = vpop.f32.mrf.mxu0
    %9061 = vdwg.mxu0
    %9062 = vmatprep.subr.bf16.mxu0 %v7610
    %9063 = vmatpush1.bf16.msra.mxu0 %v7609
    %9064 = vmatprep.subr.bf16.mxu0 %v7594
    %9065 = vmatpush1.bf16.msra.mxu0 %v7593
    %9066 = vmatprep.subr.bf16.mxu0 %v7578
    %9067 = vmatpush1.bf16.msra.mxu0 %v7577
    %9068 = vmatprep.subr.bf16.mxu0 %v7562
    %9069 = vmatpush1.bf16.msra.mxu0 %v7561
    %9070 = vmatprep.subr.bf16.mxu0 %v7546
    %9071 = vmatpush1.bf16.msra.mxu0 %v7545
    %9072 = vmatprep.subr.bf16.mxu0 %v7530
    %9073 = vmatpush1.bf16.msra.mxu0 %v7529
    %9074 = vmatprep.subr.bf16.mxu0 %v7514
    %9075 = vmatpush1.bf16.msra.mxu0 %v7513
    %9076 = vmatprep.subr.bf16.mxu0 %v7498
    %9077 = vmatpush1.bf16.msra.mxu0 %v7497
    %9078 = vmatprep.subr.bf16.mxu0 %v7738
    %9079 = vmatpush2.bf16.msra.mxu0 %v7737
    %9080 = vmatprep.subr.bf16.mxu0 %v7722
    %9081 = vmatpush2.bf16.msra.mxu0 %v7721
    %9082 = vmatprep.subr.bf16.mxu0 %v7706
    %9083 = vmatpush2.bf16.msra.mxu0 %v7705
    %9084 = vmatprep.subr.bf16.mxu0 %v7690
    %9085 = vmatpush2.bf16.msra.mxu0 %v7689
    %9086 = vmatprep.subr.bf16.mxu0 %v7674
    %9087 = vmatpush2.bf16.msra.mxu0 %v7673
    %9088 = vmatprep.subr.bf16.mxu0 %v7658
    %9089 = vmatpush2.bf16.msra.mxu0 %v7657
    %9090 = vmatprep.subr.bf16.mxu0 %v7642
    %9091 = vmatpush2.bf16.msra.mxu0 %v7641
    %9092 = vmatprep.subr.bf16.mxu0 %v7626
    %9093 = vmatpush2.bf16.msra.mxu0 %v7625
    %9094 = vmatprep.mubr.bf16.mxu0 %v2546
    %9095 = vmatmul.mubr.bf16.gmra.mxu0 %v2545
    %v9096 = vpop.f32.mrf.mxu0
    %v9097 = vadd.f32 %v9056, %v9096
    %v9098 = vpop.f32.mrf.mxu0
    %v9099 = vadd.f32 %v9058, %v9098
    %v9100 = vpop.f32.mrf.mxu0
    %v9101 = vpop.f32.mrf.mxu0
    %9102 = vdwg.mxu0
    %9103 = vmatprep.subr.bf16.mxu0 %v6844
    %9104 = vmatpush1.bf16.msra.mxu0 %v6843
    %9105 = vmatprep.subr.bf16.mxu0 %v6828
    %9106 = vmatpush1.bf16.msra.mxu0 %v6827
    %9107 = vmatprep.subr.bf16.mxu0 %v6812
    %9108 = vmatpush1.bf16.msra.mxu0 %v6811
    %9109 = vmatprep.subr.bf16.mxu0 %v6796
    %9110 = vmatpush1.bf16.msra.mxu0 %v6795
    %9111 = vmatprep.subr.bf16.mxu0 %v6780
    %9112 = vmatpush1.bf16.msra.mxu0 %v6779
    %9113 = vmatprep.subr.bf16.mxu0 %v6764
    %9114 = vmatpush1.bf16.msra.mxu0 %v6763
    %9115 = vmatprep.subr.bf16.mxu0 %v6748
    %9116 = vmatpush1.bf16.msra.mxu0 %v6747
    %9117 = vmatprep.subr.bf16.mxu0 %v6732
    %9118 = vmatpush1.bf16.msra.mxu0 %v6731
    %9119 = vmatprep.subr.bf16.mxu0 %v6972
    %9120 = vmatpush2.bf16.msra.mxu0 %v6971
    %9121 = vmatprep.subr.bf16.mxu0 %v6956
    %9122 = vmatpush2.bf16.msra.mxu0 %v6955
    %9123 = vmatprep.subr.bf16.mxu0 %v6940
    %9124 = vmatpush2.bf16.msra.mxu0 %v6939
    %9125 = vmatprep.subr.bf16.mxu0 %v6924
    %9126 = vmatpush2.bf16.msra.mxu0 %v6923
    %9127 = vmatprep.subr.bf16.mxu0 %v6908
    %9128 = vmatpush2.bf16.msra.mxu0 %v6907
    %9129 = vmatprep.subr.bf16.mxu0 %v6892
    %9130 = vmatpush2.bf16.msra.mxu0 %v6891
    %9131 = vmatprep.subr.bf16.mxu0 %v6876
    %9132 = vmatpush2.bf16.msra.mxu0 %v6875
    %9133 = vmatprep.subr.bf16.mxu0 %v6860
    %9134 = vmatpush2.bf16.msra.mxu0 %v6859
    %9135 = vmatprep.mubr.bf16.mxu0 %v2540
    %9136 = vmatmul.mubr.bf16.gmra.mxu0 %v2539
    %v9137 = vpop.f32.mrf.mxu0
    %v9138 = vadd.f32 %v3594, %v9137
    %v9139 = vpop.f32.mrf.mxu0
    %v9140 = vadd.f32 %v3598, %v9139
    %v9141 = vpop.f32.mrf.mxu0
    %v9142 = vpop.f32.mrf.mxu0
    %9143 = vdwg.mxu0
    %9144 = vmatprep.subr.bf16.mxu0 %v7100
    %9145 = vmatpush1.bf16.msra.mxu0 %v7099
    %9146 = vmatprep.subr.bf16.mxu0 %v7084
    %9147 = vmatpush1.bf16.msra.mxu0 %v7083
    %9148 = vmatprep.subr.bf16.mxu0 %v7068
    %9149 = vmatpush1.bf16.msra.mxu0 %v7067
    %9150 = vmatprep.subr.bf16.mxu0 %v7052
    %9151 = vmatpush1.bf16.msra.mxu0 %v7051
    %9152 = vmatprep.subr.bf16.mxu0 %v7036
    %9153 = vmatpush1.bf16.msra.mxu0 %v7035
    %9154 = vmatprep.subr.bf16.mxu0 %v7020
    %9155 = vmatpush1.bf16.msra.mxu0 %v7019
    %9156 = vmatprep.subr.bf16.mxu0 %v7004
    %9157 = vmatpush1.bf16.msra.mxu0 %v7003
    %9158 = vmatprep.subr.bf16.mxu0 %v6988
    %9159 = vmatpush1.bf16.msra.mxu0 %v6987
    %9160 = vmatprep.subr.bf16.mxu0 %v7228
    %9161 = vmatpush2.bf16.msra.mxu0 %v7227
    %9162 = vmatprep.subr.bf16.mxu0 %v7212
    %9163 = vmatpush2.bf16.msra.mxu0 %v7211
    %9164 = vmatprep.subr.bf16.mxu0 %v7196
    %9165 = vmatpush2.bf16.msra.mxu0 %v7195
    %9166 = vmatprep.subr.bf16.mxu0 %v7180
    %9167 = vmatpush2.bf16.msra.mxu0 %v7179
    %9168 = vmatprep.subr.bf16.mxu0 %v7164
    %9169 = vmatpush2.bf16.msra.mxu0 %v7163
    %9170 = vmatprep.subr.bf16.mxu0 %v7148
    %9171 = vmatpush2.bf16.msra.mxu0 %v7147
    %9172 = vmatprep.subr.bf16.mxu0 %v7132
    %9173 = vmatpush2.bf16.msra.mxu0 %v7131
    %9174 = vmatprep.subr.bf16.mxu0 %v7116
    %9175 = vmatpush2.bf16.msra.mxu0 %v7115
    %9176 = vmatprep.mubr.bf16.mxu0 %v2542
    %9177 = vmatmul.mubr.bf16.gmra.mxu0 %v2541
    %v9178 = vpop.f32.mrf.mxu0
    %v9179 = vadd.f32 %v9138, %v9178
    %v9180 = vpop.f32.mrf.mxu0
    %v9181 = vadd.f32 %v9140, %v9180
    %v9182 = vpop.f32.mrf.mxu0
    %v9183 = vpop.f32.mrf.mxu0
    %9184 = vdwg.mxu0
    %9185 = vmatprep.subr.bf16.mxu0 %v7356
    %9186 = vmatpush1.bf16.msra.mxu0 %v7355
    %9187 = vmatprep.subr.bf16.mxu0 %v7340
    %9188 = vmatpush1.bf16.msra.mxu0 %v7339
    %9189 = vmatprep.subr.bf16.mxu0 %v7324
    %9190 = vmatpush1.bf16.msra.mxu0 %v7323
    %9191 = vmatprep.subr.bf16.mxu0 %v7308
    %9192 = vmatpush1.bf16.msra.mxu0 %v7307
    %9193 = vmatprep.subr.bf16.mxu0 %v7292
    %9194 = vmatpush1.bf16.msra.mxu0 %v7291
    %9195 = vmatprep.subr.bf16.mxu0 %v7276
    %9196 = vmatpush1.bf16.msra.mxu0 %v7275
    %9197 = vmatprep.subr.bf16.mxu0 %v7260
    %9198 = vmatpush1.bf16.msra.mxu0 %v7259
    %9199 = vmatprep.subr.bf16.mxu0 %v7244
    %9200 = vmatpush1.bf16.msra.mxu0 %v7243
    %9201 = vmatprep.subr.bf16.mxu0 %v7484
    %9202 = vmatpush2.bf16.msra.mxu0 %v7483
    %9203 = vmatprep.subr.bf16.mxu0 %v7468
    %9204 = vmatpush2.bf16.msra.mxu0 %v7467
    %9205 = vmatprep.subr.bf16.mxu0 %v7452
    %9206 = vmatpush2.bf16.msra.mxu0 %v7451
    %9207 = vmatprep.subr.bf16.mxu0 %v7436
    %9208 = vmatpush2.bf16.msra.mxu0 %v7435
    %9209 = vmatprep.subr.bf16.mxu0 %v7420
    %9210 = vmatpush2.bf16.msra.mxu0 %v7419
    %9211 = vmatprep.subr.bf16.mxu0 %v7404
    %9212 = vmatpush2.bf16.msra.mxu0 %v7403
    %9213 = vmatprep.subr.bf16.mxu0 %v7388
    %9214 = vmatpush2.bf16.msra.mxu0 %v7387
    %9215 = vmatprep.subr.bf16.mxu0 %v7372
    %9216 = vmatpush2.bf16.msra.mxu0 %v7371
    %9217 = vmatprep.mubr.bf16.mxu0 %v2544
    %9218 = vmatmul.mubr.bf16.gmra.mxu0 %v2543
    %v9219 = vpop.f32.mrf.mxu0
    %v9220 = vadd.f32 %v9179, %v9219
    %v9221 = vpop.f32.mrf.mxu0
    %v9222 = vadd.f32 %v9181, %v9221
    %v9223 = vpop.f32.mrf.mxu0
    %v9224 = vpop.f32.mrf.mxu0
    %9225 = vdwg.mxu0
    %9226 = vmatprep.subr.bf16.mxu0 %v7612
    %9227 = vmatpush1.bf16.msra.mxu0 %v7611
    %9228 = vmatprep.subr.bf16.mxu0 %v7596
    %9229 = vmatpush1.bf16.msra.mxu0 %v7595
    %9230 = vmatprep.subr.bf16.mxu0 %v7580
    %9231 = vmatpush1.bf16.msra.mxu0 %v7579
    %9232 = vmatprep.subr.bf16.mxu0 %v7564
    %9233 = vmatpush1.bf16.msra.mxu0 %v7563
    %9234 = vmatprep.subr.bf16.mxu0 %v7548
    %9235 = vmatpush1.bf16.msra.mxu0 %v7547
    %9236 = vmatprep.subr.bf16.mxu0 %v7532
    %9237 = vmatpush1.bf16.msra.mxu0 %v7531
    %9238 = vmatprep.subr.bf16.mxu0 %v7516
    %9239 = vmatpush1.bf16.msra.mxu0 %v7515
    %9240 = vmatprep.subr.bf16.mxu0 %v7500
    %9241 = vmatpush1.bf16.msra.mxu0 %v7499
    %9242 = vmatprep.subr.bf16.mxu0 %v7740
    %9243 = vmatpush2.bf16.msra.mxu0 %v7739
    %9244 = vmatprep.subr.bf16.mxu0 %v7724
    %9245 = vmatpush2.bf16.msra.mxu0 %v7723
    %9246 = vmatprep.subr.bf16.mxu0 %v7708
    %9247 = vmatpush2.bf16.msra.mxu0 %v7707
    %9248 = vmatprep.subr.bf16.mxu0 %v7692
    %9249 = vmatpush2.bf16.msra.mxu0 %v7691
    %9250 = vmatprep.subr.bf16.mxu0 %v7676
    %9251 = vmatpush2.bf16.msra.mxu0 %v7675
    %9252 = vmatprep.subr.bf16.mxu0 %v7660
    %9253 = vmatpush2.bf16.msra.mxu0 %v7659
    %9254 = vmatprep.subr.bf16.mxu0 %v7644
    %9255 = vmatpush2.bf16.msra.mxu0 %v7643
    %9256 = vmatprep.subr.bf16.mxu0 %v7628
    %9257 = vmatpush2.bf16.msra.mxu0 %v7627
    %9258 = vmatprep.mubr.bf16.mxu0 %v2546
    %9259 = vmatmul.mubr.bf16.gmra.mxu0 %v2545
    %v9260 = vpop.f32.mrf.mxu0
    %v9261 = vadd.f32 %v9220, %v9260
    %v9262 = vpop.f32.mrf.mxu0
    %v9263 = vadd.f32 %v9222, %v9262
    %v9264 = vpop.f32.mrf.mxu0
    %v9265 = vpop.f32.mrf.mxu0
    %9266 = vdwg.mxu0
    %9267 = vmatprep.subr.bf16.mxu0 %v6846
    %9268 = vmatpush1.bf16.msra.mxu0 %v6845
    %9269 = vmatprep.subr.bf16.mxu0 %v6830
    %9270 = vmatpush1.bf16.msra.mxu0 %v6829
    %9271 = vmatprep.subr.bf16.mxu0 %v6814
    %9272 = vmatpush1.bf16.msra.mxu0 %v6813
    %9273 = vmatprep.subr.bf16.mxu0 %v6798
    %9274 = vmatpush1.bf16.msra.mxu0 %v6797
    %9275 = vmatprep.subr.bf16.mxu0 %v6782
    %9276 = vmatpush1.bf16.msra.mxu0 %v6781
    %9277 = vmatprep.subr.bf16.mxu0 %v6766
    %9278 = vmatpush1.bf16.msra.mxu0 %v6765
    %9279 = vmatprep.subr.bf16.mxu0 %v6750
    %9280 = vmatpush1.bf16.msra.mxu0 %v6749
    %9281 = vmatprep.subr.bf16.mxu0 %v6734
    %9282 = vmatpush1.bf16.msra.mxu0 %v6733
    %9283 = vmatprep.subr.bf16.mxu0 %v6974
    %9284 = vmatpush2.bf16.msra.mxu0 %v6973
    %9285 = vmatprep.subr.bf16.mxu0 %v6958
    %9286 = vmatpush2.bf16.msra.mxu0 %v6957
    %9287 = vmatprep.subr.bf16.mxu0 %v6942
    %9288 = vmatpush2.bf16.msra.mxu0 %v6941
    %9289 = vmatprep.subr.bf16.mxu0 %v6926
    %9290 = vmatpush2.bf16.msra.mxu0 %v6925
    %9291 = vmatprep.subr.bf16.mxu0 %v6910
    %9292 = vmatpush2.bf16.msra.mxu0 %v6909
    %9293 = vmatprep.subr.bf16.mxu0 %v6894
    %9294 = vmatpush2.bf16.msra.mxu0 %v6893
    %9295 = vmatprep.subr.bf16.mxu0 %v6878
    %9296 = vmatpush2.bf16.msra.mxu0 %v6877
    %9297 = vmatprep.subr.bf16.mxu0 %v6862
    %9298 = vmatpush2.bf16.msra.mxu0 %v6861
    %9299 = vmatprep.mubr.bf16.mxu0 %v2540
    %9300 = vmatmul.mubr.bf16.gmra.mxu0 %v2539
    %v9301 = vpop.f32.mrf.mxu0
    %v9302 = vadd.f32 %v3602, %v9301
    %v9303 = vpop.f32.mrf.mxu0
    %v9304 = vadd.f32 %v3606, %v9303
    %v9305 = vpop.f32.mrf.mxu0
    %v9306 = vpop.f32.mrf.mxu0
    %9307 = vdwg.mxu0
    %9308 = vmatprep.subr.bf16.mxu0 %v7102
    %9309 = vmatpush1.bf16.msra.mxu0 %v7101
    %9310 = vmatprep.subr.bf16.mxu0 %v7086
    %9311 = vmatpush1.bf16.msra.mxu0 %v7085
    %9312 = vmatprep.subr.bf16.mxu0 %v7070
    %9313 = vmatpush1.bf16.msra.mxu0 %v7069
    %9314 = vmatprep.subr.bf16.mxu0 %v7054
    %9315 = vmatpush1.bf16.msra.mxu0 %v7053
    %9316 = vmatprep.subr.bf16.mxu0 %v7038
    %9317 = vmatpush1.bf16.msra.mxu0 %v7037
    %9318 = vmatprep.subr.bf16.mxu0 %v7022
    %9319 = vmatpush1.bf16.msra.mxu0 %v7021
    %9320 = vmatprep.subr.bf16.mxu0 %v7006
    %9321 = vmatpush1.bf16.msra.mxu0 %v7005
    %9322 = vmatprep.subr.bf16.mxu0 %v6990
    %9323 = vmatpush1.bf16.msra.mxu0 %v6989
    %9324 = vmatprep.subr.bf16.mxu0 %v7230
    %9325 = vmatpush2.bf16.msra.mxu0 %v7229
    %9326 = vmatprep.subr.bf16.mxu0 %v7214
    %9327 = vmatpush2.bf16.msra.mxu0 %v7213
    %9328 = vmatprep.subr.bf16.mxu0 %v7198
    %9329 = vmatpush2.bf16.msra.mxu0 %v7197
    %9330 = vmatprep.subr.bf16.mxu0 %v7182
    %9331 = vmatpush2.bf16.msra.mxu0 %v7181
    %9332 = vmatprep.subr.bf16.mxu0 %v7166
    %9333 = vmatpush2.bf16.msra.mxu0 %v7165
    %9334 = vmatprep.subr.bf16.mxu0 %v7150
    %9335 = vmatpush2.bf16.msra.mxu0 %v7149
    %9336 = vmatprep.subr.bf16.mxu0 %v7134
    %9337 = vmatpush2.bf16.msra.mxu0 %v7133
    %9338 = vmatprep.subr.bf16.mxu0 %v7118
    %9339 = vmatpush2.bf16.msra.mxu0 %v7117
    %9340 = vmatprep.mubr.bf16.mxu0 %v2542
    %9341 = vmatmul.mubr.bf16.gmra.mxu0 %v2541
    %v9342 = vpop.f32.mrf.mxu0
    %v9343 = vadd.f32 %v9302, %v9342
    %v9344 = vpop.f32.mrf.mxu0
    %v9345 = vadd.f32 %v9304, %v9344
    %v9346 = vpop.f32.mrf.mxu0
    %v9347 = vpop.f32.mrf.mxu0
    %9348 = vdwg.mxu0
    %9349 = vmatprep.subr.bf16.mxu0 %v7358
    %9350 = vmatpush1.bf16.msra.mxu0 %v7357
    %9351 = vmatprep.subr.bf16.mxu0 %v7342
    %9352 = vmatpush1.bf16.msra.mxu0 %v7341
    %9353 = vmatprep.subr.bf16.mxu0 %v7326
    %9354 = vmatpush1.bf16.msra.mxu0 %v7325
    %9355 = vmatprep.subr.bf16.mxu0 %v7310
    %9356 = vmatpush1.bf16.msra.mxu0 %v7309
    %9357 = vmatprep.subr.bf16.mxu0 %v7294
    %9358 = vmatpush1.bf16.msra.mxu0 %v7293
    %9359 = vmatprep.subr.bf16.mxu0 %v7278
    %9360 = vmatpush1.bf16.msra.mxu0 %v7277
    %9361 = vmatprep.subr.bf16.mxu0 %v7262
    %9362 = vmatpush1.bf16.msra.mxu0 %v7261
    %9363 = vmatprep.subr.bf16.mxu0 %v7246
    %9364 = vmatpush1.bf16.msra.mxu0 %v7245
    %9365 = vmatprep.subr.bf16.mxu0 %v7486
    %9366 = vmatpush2.bf16.msra.mxu0 %v7485
    %9367 = vmatprep.subr.bf16.mxu0 %v7470
    %9368 = vmatpush2.bf16.msra.mxu0 %v7469
    %9369 = vmatprep.subr.bf16.mxu0 %v7454
    %9370 = vmatpush2.bf16.msra.mxu0 %v7453
    %9371 = vmatprep.subr.bf16.mxu0 %v7438
    %9372 = vmatpush2.bf16.msra.mxu0 %v7437
    %9373 = vmatprep.subr.bf16.mxu0 %v7422
    %9374 = vmatpush2.bf16.msra.mxu0 %v7421
    %9375 = vmatprep.subr.bf16.mxu0 %v7406
    %9376 = vmatpush2.bf16.msra.mxu0 %v7405
    %9377 = vmatprep.subr.bf16.mxu0 %v7390
    %9378 = vmatpush2.bf16.msra.mxu0 %v7389
    %9379 = vmatprep.subr.bf16.mxu0 %v7374
    %9380 = vmatpush2.bf16.msra.mxu0 %v7373
    %9381 = vmatprep.mubr.bf16.mxu0 %v2544
    %9382 = vmatmul.mubr.bf16.gmra.mxu0 %v2543
    %v9383 = vpop.f32.mrf.mxu0
    %v9384 = vadd.f32 %v9343, %v9383
    %v9385 = vpop.f32.mrf.mxu0
    %v9386 = vadd.f32 %v9345, %v9385
    %v9387 = vpop.f32.mrf.mxu0
    %v9388 = vpop.f32.mrf.mxu0
    %9389 = vdwg.mxu0
    %9390 = vmatprep.subr.bf16.mxu0 %v7614
    %9391 = vmatpush1.bf16.msra.mxu0 %v7613
    %9392 = vmatprep.subr.bf16.mxu0 %v7598
    %9393 = vmatpush1.bf16.msra.mxu0 %v7597
    %9394 = vmatprep.subr.bf16.mxu0 %v7582
    %9395 = vmatpush1.bf16.msra.mxu0 %v7581
    %9396 = vmatprep.subr.bf16.mxu0 %v7566
    %9397 = vmatpush1.bf16.msra.mxu0 %v7565
    %9398 = vmatprep.subr.bf16.mxu0 %v7550
    %9399 = vmatpush1.bf16.msra.mxu0 %v7549
    %9400 = vmatprep.subr.bf16.mxu0 %v7534
    %9401 = vmatpush1.bf16.msra.mxu0 %v7533
    %9402 = vmatprep.subr.bf16.mxu0 %v7518
    %9403 = vmatpush1.bf16.msra.mxu0 %v7517
    %9404 = vmatprep.subr.bf16.mxu0 %v7502
    %9405 = vmatpush1.bf16.msra.mxu0 %v7501
    %9406 = vmatprep.subr.bf16.mxu0 %v7742
    %9407 = vmatpush2.bf16.msra.mxu0 %v7741
    %9408 = vmatprep.subr.bf16.mxu0 %v7726
    %9409 = vmatpush2.bf16.msra.mxu0 %v7725
    %9410 = vmatprep.subr.bf16.mxu0 %v7710
    %9411 = vmatpush2.bf16.msra.mxu0 %v7709
    %9412 = vmatprep.subr.bf16.mxu0 %v7694
    %9413 = vmatpush2.bf16.msra.mxu0 %v7693
    %9414 = vmatprep.subr.bf16.mxu0 %v7678
    %9415 = vmatpush2.bf16.msra.mxu0 %v7677
    %9416 = vmatprep.subr.bf16.mxu0 %v7662
    %9417 = vmatpush2.bf16.msra.mxu0 %v7661
    %9418 = vmatprep.subr.bf16.mxu0 %v7646
    %9419 = vmatpush2.bf16.msra.mxu0 %v7645
    %9420 = vmatprep.subr.bf16.mxu0 %v7630
    %9421 = vmatpush2.bf16.msra.mxu0 %v7629
    %9422 = vmatprep.mubr.bf16.mxu0 %v2546
    %9423 = vmatmul.mubr.bf16.gmra.mxu0 %v2545
    %v9424 = vpop.f32.mrf.mxu0
    %v9425 = vadd.f32 %v9384, %v9424
    %v9426 = vpop.f32.mrf.mxu0
    %v9427 = vadd.f32 %v9386, %v9426
    %v9428 = vpop.f32.mrf.mxu0
    %v9429 = vpop.f32.mrf.mxu0
    %9430 = vdwg.mxu0
    %9431 = vmatprep.subr.bf16.mxu0 %v6848
    %9432 = vmatpush1.bf16.msra.mxu0 %v6847
    %9433 = vmatprep.subr.bf16.mxu0 %v6832
    %9434 = vmatpush1.bf16.msra.mxu0 %v6831
    %9435 = vmatprep.subr.bf16.mxu0 %v6816
    %9436 = vmatpush1.bf16.msra.mxu0 %v6815
    %9437 = vmatprep.subr.bf16.mxu0 %v6800
    %9438 = vmatpush1.bf16.msra.mxu0 %v6799
    %9439 = vmatprep.subr.bf16.mxu0 %v6784
    %9440 = vmatpush1.bf16.msra.mxu0 %v6783
    %9441 = vmatprep.subr.bf16.mxu0 %v6768
    %9442 = vmatpush1.bf16.msra.mxu0 %v6767
    %9443 = vmatprep.subr.bf16.mxu0 %v6752
    %9444 = vmatpush1.bf16.msra.mxu0 %v6751
    %9445 = vmatprep.subr.bf16.mxu0 %v6736
    %9446 = vmatpush1.bf16.msra.mxu0 %v6735
    %9447 = vmatprep.subr.bf16.mxu0 %v6976
    %9448 = vmatpush2.bf16.msra.mxu0 %v6975
    %9449 = vmatprep.subr.bf16.mxu0 %v6960
    %9450 = vmatpush2.bf16.msra.mxu0 %v6959
    %9451 = vmatprep.subr.bf16.mxu0 %v6944
    %9452 = vmatpush2.bf16.msra.mxu0 %v6943
    %9453 = vmatprep.subr.bf16.mxu0 %v6928
    %9454 = vmatpush2.bf16.msra.mxu0 %v6927
    %9455 = vmatprep.subr.bf16.mxu0 %v6912
    %9456 = vmatpush2.bf16.msra.mxu0 %v6911
    %9457 = vmatprep.subr.bf16.mxu0 %v6896
    %9458 = vmatpush2.bf16.msra.mxu0 %v6895
    %9459 = vmatprep.subr.bf16.mxu0 %v6880
    %9460 = vmatpush2.bf16.msra.mxu0 %v6879
    %9461 = vmatprep.subr.bf16.mxu0 %v6864
    %9462 = vmatpush2.bf16.msra.mxu0 %v6863
    %9463 = vmatprep.mubr.bf16.mxu0 %v2540
    %9464 = vmatmul.mubr.bf16.gmra.mxu0 %v2539
    %v9465 = vpop.f32.mrf.mxu0
    %v9466 = vadd.f32 %v3610, %v9465
    %v9467 = vpop.f32.mrf.mxu0
    %v9468 = vadd.f32 %v3614, %v9467
    %v9469 = vpop.f32.mrf.mxu0
    %v9470 = vpop.f32.mrf.mxu0
    %9471 = vdwg.mxu0
    %9472 = vmatprep.subr.bf16.mxu0 %v7104
    %9473 = vmatpush1.bf16.msra.mxu0 %v7103
    %9474 = vmatprep.subr.bf16.mxu0 %v7088
    %9475 = vmatpush1.bf16.msra.mxu0 %v7087
    %9476 = vmatprep.subr.bf16.mxu0 %v7072
    %9477 = vmatpush1.bf16.msra.mxu0 %v7071
    %9478 = vmatprep.subr.bf16.mxu0 %v7056
    %9479 = vmatpush1.bf16.msra.mxu0 %v7055
    %9480 = vmatprep.subr.bf16.mxu0 %v7040
    %9481 = vmatpush1.bf16.msra.mxu0 %v7039
    %9482 = vmatprep.subr.bf16.mxu0 %v7024
    %9483 = vmatpush1.bf16.msra.mxu0 %v7023
    %9484 = vmatprep.subr.bf16.mxu0 %v7008
    %9485 = vmatpush1.bf16.msra.mxu0 %v7007
    %9486 = vmatprep.subr.bf16.mxu0 %v6992
    %9487 = vmatpush1.bf16.msra.mxu0 %v6991
    %9488 = vmatprep.subr.bf16.mxu0 %v7232
    %9489 = vmatpush2.bf16.msra.mxu0 %v7231
    %9490 = vmatprep.subr.bf16.mxu0 %v7216
    %9491 = vmatpush2.bf16.msra.mxu0 %v7215
    %9492 = vmatprep.subr.bf16.mxu0 %v7200
    %9493 = vmatpush2.bf16.msra.mxu0 %v7199
    %9494 = vmatprep.subr.bf16.mxu0 %v7184
    %9495 = vmatpush2.bf16.msra.mxu0 %v7183
    %9496 = vmatprep.subr.bf16.mxu0 %v7168
    %9497 = vmatpush2.bf16.msra.mxu0 %v7167
    %9498 = vmatprep.subr.bf16.mxu0 %v7152
    %9499 = vmatpush2.bf16.msra.mxu0 %v7151
    %9500 = vmatprep.subr.bf16.mxu0 %v7136
    %9501 = vmatpush2.bf16.msra.mxu0 %v7135
    %9502 = vmatprep.subr.bf16.mxu0 %v7120
    %9503 = vmatpush2.bf16.msra.mxu0 %v7119
    %9504 = vmatprep.mubr.bf16.mxu0 %v2542
    %9505 = vmatmul.mubr.bf16.gmra.mxu0 %v2541
    %v9506 = vpop.f32.mrf.mxu0
    %v9507 = vadd.f32 %v9466, %v9506
    %v9508 = vpop.f32.mrf.mxu0
    %v9509 = vadd.f32 %v9468, %v9508
    %v9510 = vpop.f32.mrf.mxu0
    %v9511 = vpop.f32.mrf.mxu0
    %9512 = vdwg.mxu0
    %9513 = vmatprep.subr.bf16.mxu0 %v7360
    %9514 = vmatpush1.bf16.msra.mxu0 %v7359
    %9515 = vmatprep.subr.bf16.mxu0 %v7344
    %9516 = vmatpush1.bf16.msra.mxu0 %v7343
    %9517 = vmatprep.subr.bf16.mxu0 %v7328
    %9518 = vmatpush1.bf16.msra.mxu0 %v7327
    %9519 = vmatprep.subr.bf16.mxu0 %v7312
    %9520 = vmatpush1.bf16.msra.mxu0 %v7311
    %9521 = vmatprep.subr.bf16.mxu0 %v7296
    %9522 = vmatpush1.bf16.msra.mxu0 %v7295
    %9523 = vmatprep.subr.bf16.mxu0 %v7280
    %9524 = vmatpush1.bf16.msra.mxu0 %v7279
    %9525 = vmatprep.subr.bf16.mxu0 %v7264
    %9526 = vmatpush1.bf16.msra.mxu0 %v7263
    %9527 = vmatprep.subr.bf16.mxu0 %v7248
    %9528 = vmatpush1.bf16.msra.mxu0 %v7247
    %9529 = vmatprep.subr.bf16.mxu0 %v7488
    %9530 = vmatpush2.bf16.msra.mxu0 %v7487
    %9531 = vmatprep.subr.bf16.mxu0 %v7472
    %9532 = vmatpush2.bf16.msra.mxu0 %v7471
    %9533 = vmatprep.subr.bf16.mxu0 %v7456
    %9534 = vmatpush2.bf16.msra.mxu0 %v7455
    %9535 = vmatprep.subr.bf16.mxu0 %v7440
    %9536 = vmatpush2.bf16.msra.mxu0 %v7439
    %9537 = vmatprep.subr.bf16.mxu0 %v7424
    %9538 = vmatpush2.bf16.msra.mxu0 %v7423
    %9539 = vmatprep.subr.bf16.mxu0 %v7408
    %9540 = vmatpush2.bf16.msra.mxu0 %v7407
    %9541 = vmatprep.subr.bf16.mxu0 %v7392
    %9542 = vmatpush2.bf16.msra.mxu0 %v7391
    %9543 = vmatprep.subr.bf16.mxu0 %v7376
    %9544 = vmatpush2.bf16.msra.mxu0 %v7375
    %9545 = vmatprep.mubr.bf16.mxu0 %v2544
    %9546 = vmatmul.mubr.bf16.gmra.mxu0 %v2543
    %v9547 = vpop.f32.mrf.mxu0
    %v9548 = vadd.f32 %v9507, %v9547
    %v9549 = vpop.f32.mrf.mxu0
    %v9550 = vadd.f32 %v9509, %v9549
    %v9551 = vpop.f32.mrf.mxu0
    %v9552 = vpop.f32.mrf.mxu0
    %9553 = vdwg.mxu0
    %9554 = vmatprep.subr.bf16.mxu0 %v7616
    %9555 = vmatpush1.bf16.msra.mxu0 %v7615
    %9556 = vmatprep.subr.bf16.mxu0 %v7600
    %9557 = vmatpush1.bf16.msra.mxu0 %v7599
    %9558 = vmatprep.subr.bf16.mxu0 %v7584
    %9559 = vmatpush1.bf16.msra.mxu0 %v7583
    %9560 = vmatprep.subr.bf16.mxu0 %v7568
    %9561 = vmatpush1.bf16.msra.mxu0 %v7567
    %9562 = vmatprep.subr.bf16.mxu0 %v7552
    %9563 = vmatpush1.bf16.msra.mxu0 %v7551
    %9564 = vmatprep.subr.bf16.mxu0 %v7536
    %9565 = vmatpush1.bf16.msra.mxu0 %v7535
    %9566 = vmatprep.subr.bf16.mxu0 %v7520
    %9567 = vmatpush1.bf16.msra.mxu0 %v7519
    %9568 = vmatprep.subr.bf16.mxu0 %v7504
    %9569 = vmatpush1.bf16.msra.mxu0 %v7503
    %9570 = vmatprep.subr.bf16.mxu0 %v7744
    %9571 = vmatpush2.bf16.msra.mxu0 %v7743
    %9572 = vmatprep.subr.bf16.mxu0 %v7728
    %9573 = vmatpush2.bf16.msra.mxu0 %v7727
    %9574 = vmatprep.subr.bf16.mxu0 %v7712
    %9575 = vmatpush2.bf16.msra.mxu0 %v7711
    %9576 = vmatprep.subr.bf16.mxu0 %v7696
    %9577 = vmatpush2.bf16.msra.mxu0 %v7695
    %9578 = vmatprep.subr.bf16.mxu0 %v7680
    %9579 = vmatpush2.bf16.msra.mxu0 %v7679
    %9580 = vmatprep.subr.bf16.mxu0 %v7664
    %9581 = vmatpush2.bf16.msra.mxu0 %v7663
    %9582 = vmatprep.subr.bf16.mxu0 %v7648
    %9583 = vmatpush2.bf16.msra.mxu0 %v7647
    %9584 = vmatprep.subr.bf16.mxu0 %v7632
    %9585 = vmatpush2.bf16.msra.mxu0 %v7631
    %9586 = vmatprep.mubr.bf16.mxu0 %v2546
    %9587 = vmatmul.mubr.bf16.gmra.mxu0 %v2545
    %v9588 = vpop.f32.mrf.mxu0
    %v9589 = vadd.f32 %v9548, %v9588
    %v9590 = vpop.f32.mrf.mxu0
    %v9591 = vadd.f32 %v9550, %v9590
    %v9592 = vpop.f32.mrf.mxu0
    %v9593 = vpop.f32.mrf.mxu0
    %9594 = vdwg.mxu0
    %9595 = vmatprep.subr.bf16.mxu0 %v6850
    %9596 = vmatpush1.bf16.msra.mxu0 %v6849
    %9597 = vmatprep.subr.bf16.mxu0 %v6834
    %9598 = vmatpush1.bf16.msra.mxu0 %v6833
    %9599 = vmatprep.subr.bf16.mxu0 %v6818
    %9600 = vmatpush1.bf16.msra.mxu0 %v6817
    %9601 = vmatprep.subr.bf16.mxu0 %v6802
    %9602 = vmatpush1.bf16.msra.mxu0 %v6801
    %9603 = vmatprep.subr.bf16.mxu0 %v6786
    %9604 = vmatpush1.bf16.msra.mxu0 %v6785
    %9605 = vmatprep.subr.bf16.mxu0 %v6770
    %9606 = vmatpush1.bf16.msra.mxu0 %v6769
    %9607 = vmatprep.subr.bf16.mxu0 %v6754
    %9608 = vmatpush1.bf16.msra.mxu0 %v6753
    %9609 = vmatprep.subr.bf16.mxu0 %v6738
    %9610 = vmatpush1.bf16.msra.mxu0 %v6737
    %9611 = vmatprep.subr.bf16.mxu0 %v6978
    %9612 = vmatpush2.bf16.msra.mxu0 %v6977
    %9613 = vmatprep.subr.bf16.mxu0 %v6962
    %9614 = vmatpush2.bf16.msra.mxu0 %v6961
    %9615 = vmatprep.subr.bf16.mxu0 %v6946
    %9616 = vmatpush2.bf16.msra.mxu0 %v6945
    %9617 = vmatprep.subr.bf16.mxu0 %v6930
    %9618 = vmatpush2.bf16.msra.mxu0 %v6929
    %9619 = vmatprep.subr.bf16.mxu0 %v6914
    %9620 = vmatpush2.bf16.msra.mxu0 %v6913
    %9621 = vmatprep.subr.bf16.mxu0 %v6898
    %9622 = vmatpush2.bf16.msra.mxu0 %v6897
    %9623 = vmatprep.subr.bf16.mxu0 %v6882
    %9624 = vmatpush2.bf16.msra.mxu0 %v6881
    %9625 = vmatprep.subr.bf16.mxu0 %v6866
    %9626 = vmatpush2.bf16.msra.mxu0 %v6865
    %9627 = vmatprep.mubr.bf16.mxu0 %v2540
    %9628 = vmatmul.mubr.bf16.gmra.mxu0 %v2539
    %v9629 = vpop.f32.mrf.mxu0
    %v9630 = vadd.f32 %v3618, %v9629
    %v9631 = vpop.f32.mrf.mxu0
    %v9632 = vadd.f32 %v3622, %v9631
    %v9633 = vpop.f32.mrf.mxu0
    %v9634 = vpop.f32.mrf.mxu0
    %9635 = vdwg.mxu0
    %9636 = vmatprep.subr.bf16.mxu0 %v7106
    %9637 = vmatpush1.bf16.msra.mxu0 %v7105
    %9638 = vmatprep.subr.bf16.mxu0 %v7090
    %9639 = vmatpush1.bf16.msra.mxu0 %v7089
    %9640 = vmatprep.subr.bf16.mxu0 %v7074
    %9641 = vmatpush1.bf16.msra.mxu0 %v7073
    %9642 = vmatprep.subr.bf16.mxu0 %v7058
    %9643 = vmatpush1.bf16.msra.mxu0 %v7057
    %9644 = vmatprep.subr.bf16.mxu0 %v7042
    %9645 = vmatpush1.bf16.msra.mxu0 %v7041
    %9646 = vmatprep.subr.bf16.mxu0 %v7026
    %9647 = vmatpush1.bf16.msra.mxu0 %v7025
    %9648 = vmatprep.subr.bf16.mxu0 %v7010
    %9649 = vmatpush1.bf16.msra.mxu0 %v7009
    %9650 = vmatprep.subr.bf16.mxu0 %v6994
    %9651 = vmatpush1.bf16.msra.mxu0 %v6993
    %9652 = vmatprep.subr.bf16.mxu0 %v7234
    %9653 = vmatpush2.bf16.msra.mxu0 %v7233
    %9654 = vmatprep.subr.bf16.mxu0 %v7218
    %9655 = vmatpush2.bf16.msra.mxu0 %v7217
    %9656 = vmatprep.subr.bf16.mxu0 %v7202
    %9657 = vmatpush2.bf16.msra.mxu0 %v7201
    %9658 = vmatprep.subr.bf16.mxu0 %v7186
    %9659 = vmatpush2.bf16.msra.mxu0 %v7185
    %9660 = vmatprep.subr.bf16.mxu0 %v7170
    %9661 = vmatpush2.bf16.msra.mxu0 %v7169
    %9662 = vmatprep.subr.bf16.mxu0 %v7154
    %9663 = vmatpush2.bf16.msra.mxu0 %v7153
    %9664 = vmatprep.subr.bf16.mxu0 %v7138
    %9665 = vmatpush2.bf16.msra.mxu0 %v7137
    %9666 = vmatprep.subr.bf16.mxu0 %v7122
    %9667 = vmatpush2.bf16.msra.mxu0 %v7121
    %9668 = vmatprep.mubr.bf16.mxu0 %v2542
    %9669 = vmatmul.mubr.bf16.gmra.mxu0 %v2541
    %v9670 = vpop.f32.mrf.mxu0
    %v9671 = vadd.f32 %v9630, %v9670
    %v9672 = vpop.f32.mrf.mxu0
    %v9673 = vadd.f32 %v9632, %v9672
    %v9674 = vpop.f32.mrf.mxu0
    %v9675 = vpop.f32.mrf.mxu0
    %9676 = vdwg.mxu0
    %9677 = vmatprep.subr.bf16.mxu0 %v7362
    %9678 = vmatpush1.bf16.msra.mxu0 %v7361
    %9679 = vmatprep.subr.bf16.mxu0 %v7346
    %9680 = vmatpush1.bf16.msra.mxu0 %v7345
    %9681 = vmatprep.subr.bf16.mxu0 %v7330
    %9682 = vmatpush1.bf16.msra.mxu0 %v7329
    %9683 = vmatprep.subr.bf16.mxu0 %v7314
    %9684 = vmatpush1.bf16.msra.mxu0 %v7313
    %9685 = vmatprep.subr.bf16.mxu0 %v7298
    %9686 = vmatpush1.bf16.msra.mxu0 %v7297
    %9687 = vmatprep.subr.bf16.mxu0 %v7282
    %9688 = vmatpush1.bf16.msra.mxu0 %v7281
    %9689 = vmatprep.subr.bf16.mxu0 %v7266
    %9690 = vmatpush1.bf16.msra.mxu0 %v7265
    %9691 = vmatprep.subr.bf16.mxu0 %v7250
    %9692 = vmatpush1.bf16.msra.mxu0 %v7249
    %9693 = vmatprep.subr.bf16.mxu0 %v7490
    %9694 = vmatpush2.bf16.msra.mxu0 %v7489
    %9695 = vmatprep.subr.bf16.mxu0 %v7474
    %9696 = vmatpush2.bf16.msra.mxu0 %v7473
    %9697 = vmatprep.subr.bf16.mxu0 %v7458
    %9698 = vmatpush2.bf16.msra.mxu0 %v7457
    %9699 = vmatprep.subr.bf16.mxu0 %v7442
    %9700 = vmatpush2.bf16.msra.mxu0 %v7441
    %9701 = vmatprep.subr.bf16.mxu0 %v7426
    %9702 = vmatpush2.bf16.msra.mxu0 %v7425
    %9703 = vmatprep.subr.bf16.mxu0 %v7410
    %9704 = vmatpush2.bf16.msra.mxu0 %v7409
    %9705 = vmatprep.subr.bf16.mxu0 %v7394
    %9706 = vmatpush2.bf16.msra.mxu0 %v7393
    %9707 = vmatprep.subr.bf16.mxu0 %v7378
    %9708 = vmatpush2.bf16.msra.mxu0 %v7377
    %9709 = vmatprep.mubr.bf16.mxu0 %v2544
    %9710 = vmatmul.mubr.bf16.gmra.mxu0 %v2543
    %v9711 = vpop.f32.mrf.mxu0
    %v9712 = vadd.f32 %v9671, %v9711
    %v9713 = vpop.f32.mrf.mxu0
    %v9714 = vadd.f32 %v9673, %v9713
    %v9715 = vpop.f32.mrf.mxu0
    %v9716 = vpop.f32.mrf.mxu0
    %9717 = vdwg.mxu0
    %9718 = vmatprep.subr.bf16.mxu0 %v7618
    %9719 = vmatpush1.bf16.msra.mxu0 %v7617
    %9720 = vmatprep.subr.bf16.mxu0 %v7602
    %9721 = vmatpush1.bf16.msra.mxu0 %v7601
    %9722 = vmatprep.subr.bf16.mxu0 %v7586
    %9723 = vmatpush1.bf16.msra.mxu0 %v7585
    %9724 = vmatprep.subr.bf16.mxu0 %v7570
    %9725 = vmatpush1.bf16.msra.mxu0 %v7569
    %9726 = vmatprep.subr.bf16.mxu0 %v7554
    %9727 = vmatpush1.bf16.msra.mxu0 %v7553
    %9728 = vmatprep.subr.bf16.mxu0 %v7538
    %9729 = vmatpush1.bf16.msra.mxu0 %v7537
    %9730 = vmatprep.subr.bf16.mxu0 %v7522
    %9731 = vmatpush1.bf16.msra.mxu0 %v7521
    %9732 = vmatprep.subr.bf16.mxu0 %v7506
    %9733 = vmatpush1.bf16.msra.mxu0 %v7505
    %9734 = vmatprep.subr.bf16.mxu0 %v7746
    %9735 = vmatpush2.bf16.msra.mxu0 %v7745
    %9736 = vmatprep.subr.bf16.mxu0 %v7730
    %9737 = vmatpush2.bf16.msra.mxu0 %v7729
    %9738 = vmatprep.subr.bf16.mxu0 %v7714
    %9739 = vmatpush2.bf16.msra.mxu0 %v7713
    %9740 = vmatprep.subr.bf16.mxu0 %v7698
    %9741 = vmatpush2.bf16.msra.mxu0 %v7697
    %9742 = vmatprep.subr.bf16.mxu0 %v7682
    %9743 = vmatpush2.bf16.msra.mxu0 %v7681
    %9744 = vmatprep.subr.bf16.mxu0 %v7666
    %9745 = vmatpush2.bf16.msra.mxu0 %v7665
    %9746 = vmatprep.subr.bf16.mxu0 %v7650
    %9747 = vmatpush2.bf16.msra.mxu0 %v7649
    %9748 = vmatprep.subr.bf16.mxu0 %v7634
    %9749 = vmatpush2.bf16.msra.mxu0 %v7633
    %9750 = vmatprep.mubr.bf16.mxu0 %v2546
    %9751 = vmatmul.mubr.bf16.gmra.mxu0 %v2545
    %v9752 = vpop.f32.mrf.mxu0
    %v9753 = vadd.f32 %v9712, %v9752
    %v9754 = vpop.f32.mrf.mxu0
    %v9755 = vadd.f32 %v9714, %v9754
    %v9756 = vpop.f32.mrf.mxu0
    %v9757 = vpop.f32.mrf.mxu0
    %9758 = vdwg.mxu0
    %9759 = vmatprep.subr.bf16.mxu0 %v6852
    %9760 = vmatpush1.bf16.msra.mxu0 %v6851
    %9761 = vmatprep.subr.bf16.mxu0 %v6836
    %9762 = vmatpush1.bf16.msra.mxu0 %v6835
    %9763 = vmatprep.subr.bf16.mxu0 %v6820
    %9764 = vmatpush1.bf16.msra.mxu0 %v6819
    %9765 = vmatprep.subr.bf16.mxu0 %v6804
    %9766 = vmatpush1.bf16.msra.mxu0 %v6803
    %9767 = vmatprep.subr.bf16.mxu0 %v6788
    %9768 = vmatpush1.bf16.msra.mxu0 %v6787
    %9769 = vmatprep.subr.bf16.mxu0 %v6772
    %9770 = vmatpush1.bf16.msra.mxu0 %v6771
    %9771 = vmatprep.subr.bf16.mxu0 %v6756
    %9772 = vmatpush1.bf16.msra.mxu0 %v6755
    %9773 = vmatprep.subr.bf16.mxu0 %v6740
    %9774 = vmatpush1.bf16.msra.mxu0 %v6739
    %9775 = vmatprep.subr.bf16.mxu0 %v6980
    %9776 = vmatpush2.bf16.msra.mxu0 %v6979
    %9777 = vmatprep.subr.bf16.mxu0 %v6964
    %9778 = vmatpush2.bf16.msra.mxu0 %v6963
    %9779 = vmatprep.subr.bf16.mxu0 %v6948
    %9780 = vmatpush2.bf16.msra.mxu0 %v6947
    %9781 = vmatprep.subr.bf16.mxu0 %v6932
    %9782 = vmatpush2.bf16.msra.mxu0 %v6931
    %9783 = vmatprep.subr.bf16.mxu0 %v6916
    %9784 = vmatpush2.bf16.msra.mxu0 %v6915
    %9785 = vmatprep.subr.bf16.mxu0 %v6900
    %9786 = vmatpush2.bf16.msra.mxu0 %v6899
    %9787 = vmatprep.subr.bf16.mxu0 %v6884
    %9788 = vmatpush2.bf16.msra.mxu0 %v6883
    %9789 = vmatprep.subr.bf16.mxu0 %v6868
    %9790 = vmatpush2.bf16.msra.mxu0 %v6867
    %9791 = vmatprep.mubr.bf16.mxu0 %v2540
    %9792 = vmatmul.mubr.bf16.gmra.mxu0 %v2539
    %v9793 = vpop.f32.mrf.mxu0
    %v9794 = vadd.f32 %v3626, %v9793
    %v9795 = vpop.f32.mrf.mxu0
    %v9796 = vadd.f32 %v3630, %v9795
    %v9797 = vpop.f32.mrf.mxu0
    %v9798 = vpop.f32.mrf.mxu0
    %9799 = vdwg.mxu0
    %9800 = vmatprep.subr.bf16.mxu0 %v7108
    %9801 = vmatpush1.bf16.msra.mxu0 %v7107
    %9802 = vmatprep.subr.bf16.mxu0 %v7092
    %9803 = vmatpush1.bf16.msra.mxu0 %v7091
    %9804 = vmatprep.subr.bf16.mxu0 %v7076
    %9805 = vmatpush1.bf16.msra.mxu0 %v7075
    %9806 = vmatprep.subr.bf16.mxu0 %v7060
    %9807 = vmatpush1.bf16.msra.mxu0 %v7059
    %9808 = vmatprep.subr.bf16.mxu0 %v7044
    %9809 = vmatpush1.bf16.msra.mxu0 %v7043
    %9810 = vmatprep.subr.bf16.mxu0 %v7028
    %9811 = vmatpush1.bf16.msra.mxu0 %v7027
    %9812 = vmatprep.subr.bf16.mxu0 %v7012
    %9813 = vmatpush1.bf16.msra.mxu0 %v7011
    %9814 = vmatprep.subr.bf16.mxu0 %v6996
    %9815 = vmatpush1.bf16.msra.mxu0 %v6995
    %9816 = vmatprep.subr.bf16.mxu0 %v7236
    %9817 = vmatpush2.bf16.msra.mxu0 %v7235
    %9818 = vmatprep.subr.bf16.mxu0 %v7220
    %9819 = vmatpush2.bf16.msra.mxu0 %v7219
    %9820 = vmatprep.subr.bf16.mxu0 %v7204
    %9821 = vmatpush2.bf16.msra.mxu0 %v7203
    %9822 = vmatprep.subr.bf16.mxu0 %v7188
    %9823 = vmatpush2.bf16.msra.mxu0 %v7187
    %9824 = vmatprep.subr.bf16.mxu0 %v7172
    %9825 = vmatpush2.bf16.msra.mxu0 %v7171
    %9826 = vmatprep.subr.bf16.mxu0 %v7156
    %9827 = vmatpush2.bf16.msra.mxu0 %v7155
    %9828 = vmatprep.subr.bf16.mxu0 %v7140
    %9829 = vmatpush2.bf16.msra.mxu0 %v7139
    %9830 = vmatprep.subr.bf16.mxu0 %v7124
    %9831 = vmatpush2.bf16.msra.mxu0 %v7123
    %9832 = vmatprep.mubr.bf16.mxu0 %v2542
    %9833 = vmatmul.mubr.bf16.gmra.mxu0 %v2541
    %v9834 = vpop.f32.mrf.mxu0
    %v9835 = vadd.f32 %v9794, %v9834
    %v9836 = vpop.f32.mrf.mxu0
    %v9837 = vadd.f32 %v9796, %v9836
    %v9838 = vpop.f32.mrf.mxu0
    %v9839 = vpop.f32.mrf.mxu0
    %9840 = vdwg.mxu0
    %9841 = vmatprep.subr.bf16.mxu0 %v7364
    %9842 = vmatpush1.bf16.msra.mxu0 %v7363
    %9843 = vmatprep.subr.bf16.mxu0 %v7348
    %9844 = vmatpush1.bf16.msra.mxu0 %v7347
    %9845 = vmatprep.subr.bf16.mxu0 %v7332
    %9846 = vmatpush1.bf16.msra.mxu0 %v7331
    %9847 = vmatprep.subr.bf16.mxu0 %v7316
    %9848 = vmatpush1.bf16.msra.mxu0 %v7315
    %9849 = vmatprep.subr.bf16.mxu0 %v7300
    %9850 = vmatpush1.bf16.msra.mxu0 %v7299
    %9851 = vmatprep.subr.bf16.mxu0 %v7284
    %9852 = vmatpush1.bf16.msra.mxu0 %v7283
    %9853 = vmatprep.subr.bf16.mxu0 %v7268
    %9854 = vmatpush1.bf16.msra.mxu0 %v7267
    %9855 = vmatprep.subr.bf16.mxu0 %v7252
    %9856 = vmatpush1.bf16.msra.mxu0 %v7251
    %9857 = vmatprep.subr.bf16.mxu0 %v7492
    %9858 = vmatpush2.bf16.msra.mxu0 %v7491
    %9859 = vmatprep.subr.bf16.mxu0 %v7476
    %9860 = vmatpush2.bf16.msra.mxu0 %v7475
    %9861 = vmatprep.subr.bf16.mxu0 %v7460
    %9862 = vmatpush2.bf16.msra.mxu0 %v7459
    %9863 = vmatprep.subr.bf16.mxu0 %v7444
    %9864 = vmatpush2.bf16.msra.mxu0 %v7443
    %9865 = vmatprep.subr.bf16.mxu0 %v7428
    %9866 = vmatpush2.bf16.msra.mxu0 %v7427
    %9867 = vmatprep.subr.bf16.mxu0 %v7412
    %9868 = vmatpush2.bf16.msra.mxu0 %v7411
    %9869 = vmatprep.subr.bf16.mxu0 %v7396
    %9870 = vmatpush2.bf16.msra.mxu0 %v7395
    %9871 = vmatprep.subr.bf16.mxu0 %v7380
    %9872 = vmatpush2.bf16.msra.mxu0 %v7379
    %9873 = vmatprep.mubr.bf16.mxu0 %v2544
    %9874 = vmatmul.mubr.bf16.gmra.mxu0 %v2543
    %v9875 = vpop.f32.mrf.mxu0
    %v9876 = vadd.f32 %v9835, %v9875
    %v9877 = vpop.f32.mrf.mxu0
    %v9878 = vadd.f32 %v9837, %v9877
    %v9879 = vpop.f32.mrf.mxu0
    %v9880 = vpop.f32.mrf.mxu0
    %9881 = vdwg.mxu0
    %9882 = vmatprep.subr.bf16.mxu0 %v7620
    %9883 = vmatpush1.bf16.msra.mxu0 %v7619
    %9884 = vmatprep.subr.bf16.mxu0 %v7604
    %9885 = vmatpush1.bf16.msra.mxu0 %v7603
    %9886 = vmatprep.subr.bf16.mxu0 %v7588
    %9887 = vmatpush1.bf16.msra.mxu0 %v7587
    %9888 = vmatprep.subr.bf16.mxu0 %v7572
    %9889 = vmatpush1.bf16.msra.mxu0 %v7571
    %9890 = vmatprep.subr.bf16.mxu0 %v7556
    %9891 = vmatpush1.bf16.msra.mxu0 %v7555
    %9892 = vmatprep.subr.bf16.mxu0 %v7540
    %9893 = vmatpush1.bf16.msra.mxu0 %v7539
    %9894 = vmatprep.subr.bf16.mxu0 %v7524
    %9895 = vmatpush1.bf16.msra.mxu0 %v7523
    %9896 = vmatprep.subr.bf16.mxu0 %v7508
    %9897 = vmatpush1.bf16.msra.mxu0 %v7507
    %9898 = vmatprep.subr.bf16.mxu0 %v7748
    %9899 = vmatpush2.bf16.msra.mxu0 %v7747
    %9900 = vmatprep.subr.bf16.mxu0 %v7732
    %9901 = vmatpush2.bf16.msra.mxu0 %v7731
    %9902 = vmatprep.subr.bf16.mxu0 %v7716
    %9903 = vmatpush2.bf16.msra.mxu0 %v7715
    %9904 = vmatprep.subr.bf16.mxu0 %v7700
    %9905 = vmatpush2.bf16.msra.mxu0 %v7699
    %9906 = vmatprep.subr.bf16.mxu0 %v7684
    %9907 = vmatpush2.bf16.msra.mxu0 %v7683
    %9908 = vmatprep.subr.bf16.mxu0 %v7668
    %9909 = vmatpush2.bf16.msra.mxu0 %v7667
    %9910 = vmatprep.subr.bf16.mxu0 %v7652
    %9911 = vmatpush2.bf16.msra.mxu0 %v7651
    %9912 = vmatprep.subr.bf16.mxu0 %v7636
    %9913 = vmatpush2.bf16.msra.mxu0 %v7635
    %9914 = vmatprep.mubr.bf16.mxu0 %v2546
    %9915 = vmatmul.mubr.bf16.gmra.mxu0 %v2545
    %v9916 = vpop.f32.mrf.mxu0
    %v9917 = vadd.f32 %v9876, %v9916
    %v9918 = vpop.f32.mrf.mxu0
    %v9919 = vadd.f32 %v9878, %v9918
    %v9920 = vpop.f32.mrf.mxu0
    %v9921 = vpop.f32.mrf.mxu0
    %9922 = vdwg.mxu0
    %9923 = vmatprep.subr.bf16.mxu0 %v6854
    %9924 = vmatpush1.bf16.msra.mxu0 %v6853
    %9925 = vmatprep.subr.bf16.mxu0 %v6838
    %9926 = vmatpush1.bf16.msra.mxu0 %v6837
    %9927 = vmatprep.subr.bf16.mxu0 %v6822
    %9928 = vmatpush1.bf16.msra.mxu0 %v6821
    %9929 = vmatprep.subr.bf16.mxu0 %v6806
    %9930 = vmatpush1.bf16.msra.mxu0 %v6805
    %9931 = vmatprep.subr.bf16.mxu0 %v6790
    %9932 = vmatpush1.bf16.msra.mxu0 %v6789
    %9933 = vmatprep.subr.bf16.mxu0 %v6774
    %9934 = vmatpush1.bf16.msra.mxu0 %v6773
    %9935 = vmatprep.subr.bf16.mxu0 %v6758
    %9936 = vmatpush1.bf16.msra.mxu0 %v6757
    %9937 = vmatprep.subr.bf16.mxu0 %v6742
    %9938 = vmatpush1.bf16.msra.mxu0 %v6741
    %9939 = vmatprep.subr.bf16.mxu0 %v6982
    %9940 = vmatpush2.bf16.msra.mxu0 %v6981
    %9941 = vmatprep.subr.bf16.mxu0 %v6966
    %9942 = vmatpush2.bf16.msra.mxu0 %v6965
    %9943 = vmatprep.subr.bf16.mxu0 %v6950
    %9944 = vmatpush2.bf16.msra.mxu0 %v6949
    %9945 = vmatprep.subr.bf16.mxu0 %v6934
    %9946 = vmatpush2.bf16.msra.mxu0 %v6933
    %9947 = vmatprep.subr.bf16.mxu0 %v6918
    %9948 = vmatpush2.bf16.msra.mxu0 %v6917
    %9949 = vmatprep.subr.bf16.mxu0 %v6902
    %9950 = vmatpush2.bf16.msra.mxu0 %v6901
    %9951 = vmatprep.subr.bf16.mxu0 %v6886
    %9952 = vmatpush2.bf16.msra.mxu0 %v6885
    %9953 = vmatprep.subr.bf16.mxu0 %v6870
    %9954 = vmatpush2.bf16.msra.mxu0 %v6869
    %9955 = vmatprep.mubr.bf16.mxu0 %v2540
    %9956 = vmatmul.mubr.bf16.gmra.mxu0 %v2539
    %v9957 = vpop.f32.mrf.mxu0
    %v9958 = vadd.f32 %v3634, %v9957
    %v9959 = vpop.f32.mrf.mxu0
    %v9960 = vadd.f32 %v3638, %v9959
    %v9961 = vpop.f32.mrf.mxu0
    %v9962 = vpop.f32.mrf.mxu0
    %9963 = vdwg.mxu0
    %9964 = vmatprep.subr.bf16.mxu0 %v7110
    %9965 = vmatpush1.bf16.msra.mxu0 %v7109
    %9966 = vmatprep.subr.bf16.mxu0 %v7094
    %9967 = vmatpush1.bf16.msra.mxu0 %v7093
    %9968 = vmatprep.subr.bf16.mxu0 %v7078
    %9969 = vmatpush1.bf16.msra.mxu0 %v7077
    %9970 = vmatprep.subr.bf16.mxu0 %v7062
    %9971 = vmatpush1.bf16.msra.mxu0 %v7061
    %9972 = vmatprep.subr.bf16.mxu0 %v7046
    %9973 = vmatpush1.bf16.msra.mxu0 %v7045
    %9974 = vmatprep.subr.bf16.mxu0 %v7030
    %9975 = vmatpush1.bf16.msra.mxu0 %v7029
    %9976 = vmatprep.subr.bf16.mxu0 %v7014
    %9977 = vmatpush1.bf16.msra.mxu0 %v7013
    %9978 = vmatprep.subr.bf16.mxu0 %v6998
    %9979 = vmatpush1.bf16.msra.mxu0 %v6997
    %9980 = vmatprep.subr.bf16.mxu0 %v7238
    %9981 = vmatpush2.bf16.msra.mxu0 %v7237
    %9982 = vmatprep.subr.bf16.mxu0 %v7222
    %9983 = vmatpush2.bf16.msra.mxu0 %v7221
    %9984 = vmatprep.subr.bf16.mxu0 %v7206
    %9985 = vmatpush2.bf16.msra.mxu0 %v7205
    %9986 = vmatprep.subr.bf16.mxu0 %v7190
    %9987 = vmatpush2.bf16.msra.mxu0 %v7189
    %9988 = vmatprep.subr.bf16.mxu0 %v7174
    %9989 = vmatpush2.bf16.msra.mxu0 %v7173
    %9990 = vmatprep.subr.bf16.mxu0 %v7158
    %9991 = vmatpush2.bf16.msra.mxu0 %v7157
    %9992 = vmatprep.subr.bf16.mxu0 %v7142
    %9993 = vmatpush2.bf16.msra.mxu0 %v7141
    %9994 = vmatprep.subr.bf16.mxu0 %v7126
    %9995 = vmatpush2.bf16.msra.mxu0 %v7125
    %9996 = vmatprep.mubr.bf16.mxu0 %v2542
    %9997 = vmatmul.mubr.bf16.gmra.mxu0 %v2541
    %v9998 = vpop.f32.mrf.mxu0
    %v9999 = vadd.f32 %v9958, %v9998
    %v10000 = vpop.f32.mrf.mxu0
    %v10001 = vadd.f32 %v9960, %v10000
    %v10002 = vpop.f32.mrf.mxu0
    %v10003 = vpop.f32.mrf.mxu0
    %10004 = vdwg.mxu0
    %10005 = vmatprep.subr.bf16.mxu0 %v7366
    %10006 = vmatpush1.bf16.msra.mxu0 %v7365
    %10007 = vmatprep.subr.bf16.mxu0 %v7350
    %10008 = vmatpush1.bf16.msra.mxu0 %v7349
    %10009 = vmatprep.subr.bf16.mxu0 %v7334
    %10010 = vmatpush1.bf16.msra.mxu0 %v7333
    %10011 = vmatprep.subr.bf16.mxu0 %v7318
    %10012 = vmatpush1.bf16.msra.mxu0 %v7317
    %10013 = vmatprep.subr.bf16.mxu0 %v7302
    %10014 = vmatpush1.bf16.msra.mxu0 %v7301
    %10015 = vmatprep.subr.bf16.mxu0 %v7286
    %10016 = vmatpush1.bf16.msra.mxu0 %v7285
    %10017 = vmatprep.subr.bf16.mxu0 %v7270
    %10018 = vmatpush1.bf16.msra.mxu0 %v7269
    %10019 = vmatprep.subr.bf16.mxu0 %v7254
    %10020 = vmatpush1.bf16.msra.mxu0 %v7253
    %10021 = vmatprep.subr.bf16.mxu0 %v7494
    %10022 = vmatpush2.bf16.msra.mxu0 %v7493
    %10023 = vmatprep.subr.bf16.mxu0 %v7478
    %10024 = vmatpush2.bf16.msra.mxu0 %v7477
    %10025 = vmatprep.subr.bf16.mxu0 %v7462
    %10026 = vmatpush2.bf16.msra.mxu0 %v7461
    %10027 = vmatprep.subr.bf16.mxu0 %v7446
    %10028 = vmatpush2.bf16.msra.mxu0 %v7445
    %10029 = vmatprep.subr.bf16.mxu0 %v7430
    %10030 = vmatpush2.bf16.msra.mxu0 %v7429
    %10031 = vmatprep.subr.bf16.mxu0 %v7414
    %10032 = vmatpush2.bf16.msra.mxu0 %v7413
    %10033 = vmatprep.subr.bf16.mxu0 %v7398
    %10034 = vmatpush2.bf16.msra.mxu0 %v7397
    %10035 = vmatprep.subr.bf16.mxu0 %v7382
    %10036 = vmatpush2.bf16.msra.mxu0 %v7381
    %10037 = vmatprep.mubr.bf16.mxu0 %v2544
    %10038 = vmatmul.mubr.bf16.gmra.mxu0 %v2543
    %v10039 = vpop.f32.mrf.mxu0
    %v10040 = vadd.f32 %v9999, %v10039
    %v10041 = vpop.f32.mrf.mxu0
    %v10042 = vadd.f32 %v10001, %v10041
    %v10043 = vpop.f32.mrf.mxu0
    %v10044 = vpop.f32.mrf.mxu0
    %10045 = vdwg.mxu0
    %10046 = vmatprep.subr.bf16.mxu0 %v7622
    %10047 = vmatpush1.bf16.msra.mxu0 %v7621
    %10048 = vmatprep.subr.bf16.mxu0 %v7606
    %10049 = vmatpush1.bf16.msra.mxu0 %v7605
    %10050 = vmatprep.subr.bf16.mxu0 %v7590
    %10051 = vmatpush1.bf16.msra.mxu0 %v7589
    %10052 = vmatprep.subr.bf16.mxu0 %v7574
    %10053 = vmatpush1.bf16.msra.mxu0 %v7573
    %10054 = vmatprep.subr.bf16.mxu0 %v7558
    %10055 = vmatpush1.bf16.msra.mxu0 %v7557
    %10056 = vmatprep.subr.bf16.mxu0 %v7542
    %10057 = vmatpush1.bf16.msra.mxu0 %v7541
    %10058 = vmatprep.subr.bf16.mxu0 %v7526
    %10059 = vmatpush1.bf16.msra.mxu0 %v7525
    %10060 = vmatprep.subr.bf16.mxu0 %v7510
    %10061 = vmatpush1.bf16.msra.mxu0 %v7509
    %10062 = vmatprep.subr.bf16.mxu0 %v7750
    %10063 = vmatpush2.bf16.msra.mxu0 %v7749
    %10064 = vmatprep.subr.bf16.mxu0 %v7734
    %10065 = vmatpush2.bf16.msra.mxu0 %v7733
    %10066 = vmatprep.subr.bf16.mxu0 %v7718
    %10067 = vmatpush2.bf16.msra.mxu0 %v7717
    %10068 = vmatprep.subr.bf16.mxu0 %v7702
    %10069 = vmatpush2.bf16.msra.mxu0 %v7701
    %10070 = vmatprep.subr.bf16.mxu0 %v7686
    %10071 = vmatpush2.bf16.msra.mxu0 %v7685
    %10072 = vmatprep.subr.bf16.mxu0 %v7670
    %10073 = vmatpush2.bf16.msra.mxu0 %v7669
    %10074 = vmatprep.subr.bf16.mxu0 %v7654
    %10075 = vmatpush2.bf16.msra.mxu0 %v7653
    %10076 = vmatprep.subr.bf16.mxu0 %v7638
    %10077 = vmatpush2.bf16.msra.mxu0 %v7637
    %10078 = vmatprep.mubr.bf16.mxu0 %v2546
    %10079 = vmatmul.mubr.bf16.gmra.mxu0 %v2545
    %v10080 = vpop.f32.mrf.mxu0
    %v10081 = vadd.f32 %v10040, %v10080
    %v10082 = vpop.f32.mrf.mxu0
    %v10083 = vadd.f32 %v10042, %v10082
    %v10084 = vpop.f32.mrf.mxu0
    %v10085 = vpop.f32.mrf.mxu0
    %10086 = vdwg.mxu0
    %v10087 = vpack.c.bf16 %v8933, %v8933
    %v10088 = vpack.c.bf16 %v8935, %v8935
    %v10089 = vpack.c.bf16 %v9097, %v9097
    %v10090 = vpack.c.bf16 %v9099, %v9099
    %v10091 = vpack.c.bf16 %v9261, %v9261
    %v10092 = vpack.c.bf16 %v9263, %v9263
    %v10093 = vpack.c.bf16 %v9425, %v9425
    %v10094 = vpack.c.bf16 %v9427, %v9427
    %v10095 = vpack.c.bf16 %v9589, %v9589
    %v10096 = vpack.c.bf16 %v9591, %v9591
    %v10097 = vpack.c.bf16 %v9753, %v9753
    %v10098 = vpack.c.bf16 %v9755, %v9755
    %v10099 = vpack.c.bf16 %v9917, %v9917
    %v10100 = vpack.c.bf16 %v9919, %v9919
    %v10101 = vpack.c.bf16 %v10081, %v10081
    %v10102 = vpack.c.bf16 %v10083, %v10083
    %v10119 = vunpack.c.l.b16 %v10087
    %v10120 = vunpack.c.l.b16 %v10088
    %v10121 = vunpack.c.l.b16 %v10089
    %v10122 = vunpack.c.l.b16 %v10090
    %v10123 = vunpack.c.l.b16 %v10091
    %v10124 = vunpack.c.l.b16 %v10092
    %v10125 = vunpack.c.l.b16 %v10093
    %v10126 = vunpack.c.l.b16 %v10094
    %v10127 = vunpack.c.l.b16 %v10095
    %v10128 = vunpack.c.l.b16 %v10096
    %v10129 = vunpack.c.l.b16 %v10097
    %v10130 = vunpack.c.l.b16 %v10098
    %v10131 = vunpack.c.l.b16 %v10099
    %v10132 = vunpack.c.l.b16 %v10100
    %v10133 = vunpack.c.l.b16 %v10101
    %v10134 = vunpack.c.l.b16 %v10102
    %v10135 = vpack.c.b16 %v10120, %v10119
    %v10136 = vpack.c.b16 %v10122, %v10121
    %v10137 = vpack.c.b16 %v10124, %v10123
    %v10138 = vpack.c.b16 %v10126, %v10125
    %v10139 = vpack.c.b16 %v10128, %v10127
    %v10140 = vpack.c.b16 %v10130, %v10129
    %v10141 = vpack.c.b16 %v10132, %v10131
    %v10142 = vpack.c.b16 %v10134, %v10133
    %10151 = vst [vmem:[%s11] sm:$0xff] %v10135
    %10152 = vst [vmem:[%s11 + $0x8] sm:$0xff] %v10136
    %10153 = vst [vmem:[%s11 + $0x10] sm:$0xff] %v10137
    %10154 = vst [vmem:[%s11 + $0x18] sm:$0xff] %v10138
    %10155 = vst [vmem:[%s11 + $0x20] sm:$0xff] %v10139
    %10156 = vst [vmem:[%s11 + $0x28] sm:$0xff] %v10140
    %10157 = vst [vmem:[%s11 + $0x30] sm:$0xff] %v10141
    %10158 = vst [vmem:[%s11 + $0x38] sm:$0xff] %v10142
    // Predicated region
    $region86: #{hypernetwork_forward.2} parent=1 // pred_check
      _
    $region87: #{hypernetwork_forward.2} parent=1 // pred_check_branch
      %10160 = sbr.rel (0) target = $region89
    $region88: #{hypernetwork_forward.2} parent=1 // pred_region
      _
    $region89: #{hypernetwork_forward.2} parent=1 // pred_fallthru
      _
    // Predicated region
    $region90: #{hypernetwork_forward.2} parent=1 // pred_check
      _
    $region91: #{hypernetwork_forward.2} parent=1 // pred_check_branch
      %10162 = sbr.rel (0) target = $region93
    $region92: #{hypernetwork_forward.2} parent=1 // pred_region
      _
    $region93: #{hypernetwork_forward.2} parent=1 // pred_fallthru
      _
    %10163 = vsyncpa [#allocation3], 1
    %10164 = vsyncpa [#allocation5], 1
    %10165 = vsyncpa [#allocation8], 1
    %10166 = vsyncpa [#allocation11], 1
    %10167 = vsyncpa [#allocation14], 1
    %10168 = vsyncpa [#allocation17], 1

</llo_original>
